<compile_context>
chip_gen: v6e
topology: v6e:2x2x1
jax: 0.10.0
libtpu: 0.0.40
codegen_flags: <defaults>
</compile_context>

<pallas_src>
import functools

import jax
import jax.numpy as jnp
from jax import lax
from jax.experimental import pallas as pl
from jax.experimental.pallas import tpu as pltpu

EPS = 1e-5  # nn.BatchNorm2d default eps


def _basic_block_kernel(x_ref, masks_ref, w1_ref, g1_ref, b1_ref,
                        w2_ref, g2_ref, b2_ref, o_ref, h_ref,
                        *, n_img, cin, cmid, cout, H, W):
    # x_ref    : (N, Cp, H*W)  input, channels padded to a multiple of 8 (VMEM)
    # masks_ref: (9, 1, H*W)   0/1 border-validity mask per 3x3 tap     (VMEM)
    # w*_ref   : (9*Ci*Co,)    conv weights, [(kh,kw), cin, cout] order  (SMEM)
    # g*,b*    : (C,)          BN gamma / beta                           (SMEM)
    # o_ref    : (N, Cout, H*W) output                                   (VMEM)
    # h_ref    : (Cmid_pad, H*W) scratch holding one image's bn1 output  (VMEM)
    HW = H * W

    def conv3x3(src, w_ref, n_in, n_out):
        """3x3 / stride-1 / pad-1 conv for one image.

        src: (Cp, HW) f32 value (channels on sublanes, flat spatial on lanes).
        Each tap = lane roll (XLU) * border mask; the channel contraction is a
        VPU scalar-broadcast FMA.  Returns n_out accumulators of shape (1, HW).
        """
        acc = [None] * n_out
        for t in range(9):
            kh, kw = divmod(t, 3)
            s = (kh - 1) * W + (kw - 1)          # flat spatial offset of tap
            if s == 0:                           # center tap: no shift, no mask
                tap = src
            else:
                # rolled[:, g] == src[:, (g + s) mod HW]; wrap-around positions
                # are exactly the out-of-image taps and get masked to zero.
                rolled = pltpu.roll(src, (-s) % HW, axis=1)
                tap = rolled * masks_ref[t]
            for ci in range(n_in):
                row = tap[ci:ci + 1, :]
                for co in range(n_out):
                    wv = w_ref[(t * n_in + ci) * n_out + co]
                    contrib = wv * row
                    acc[co] = contrib if acc[co] is None else acc[co] + contrib
        return acc

    def bn_scale_bias(rows, g_ref, b_ref, c):
        """Training-mode BN for channel c folded into (scale, bias), two-pass f32."""
        inv_cnt = 1.0 / float(n_img * HW)
        tot = None
        for n in range(n_img):
            p = jnp.sum(rows[n][c], axis=1, keepdims=True)        # (1, 1)
            tot = p if tot is None else tot + p
        mean = tot * inv_cnt
        sq = None
        for n in range(n_img):
            d = rows[n][c] - mean
            p = jnp.sum(d * d, axis=1, keepdims=True)
            sq = p if sq is None else sq + p
        var = sq * inv_cnt                                         # biased, as torch BN
        scale = g_ref[c] * lax.rsqrt(var + EPS)                    # (1, 1)
        bias = b_ref[c] - mean * scale                             # (1, 1)
        return scale, bias

    # ---- conv1 on every image (raw pre-BN activations kept as values) --------
    acc1 = [conv3x3(x_ref[n], w1_ref, cin, cmid) for n in range(n_img)]

    # ---- bn1 (global batch stats, folded scale/bias) + relu -------------------
    h1 = [[None] * cmid for _ in range(n_img)]
    for c in range(cmid):
        scale, bias = bn_scale_bias(acc1, g1_ref, b1_ref, c)
        for n in range(n_img):
            h1[n][c] = jnp.maximum(acc1[n][c] * scale + bias, 0.0)

    # ---- conv2, per image, via a small packed (Cmid_pad, HW) scratch ----------
    pad_rows = h_ref.shape[0] - cmid
    if pad_rows > 0:
        # pad rows are never multiplied by a weight; zero them once for hygiene
        h_ref[cmid:cmid + pad_rows, :] = jnp.zeros((pad_rows, HW), jnp.float32)
    acc2 = []
    for n in range(n_img):
        for c in range(cmid):
            h_ref[c:c + 1, :] = h1[n][c]
        acc2.append(conv3x3(h_ref[...], w2_ref, cmid, cout))

    # ---- bn2 + identity shortcut + relu, lane-dense stores (last dim = HW) ----
    for c in range(cout):
        scale, bias = bn_scale_bias(acc2, g2_ref, b2_ref, c)
        for n in range(n_img):
            y = acc2[n][c] * scale + bias + x_ref[n, c:c + 1, :]
            o_ref[n, c:c + 1, :] = jnp.maximum(y, 0.0)


def basic_block_forward(x_nchw, params):
    """x_nchw: (N, Cin, H, W) float32 -> (N, Cout, H, W). PyTorch BasicBlock fwd."""
    N, Cin, H, W = x_nchw.shape
    HW = H * W
    w1, g1, b1 = params["w1"], params["g1"], params["b1"]
    w2, g2, b2 = params["w2"], params["g2"], params["b2"]
    Cmid, Cout = w1.shape[-1], w2.shape[-1]
    if Cout != Cin:
        raise ValueError("identity shortcut requires Cout == Cin (downsample=None)")
    if HW % 128 != 0:
        raise ValueError("H*W must be a multiple of 128 for the lane-dense layout")

    # Channels rounded up to a multiple of 8 sublanes (no-op at real ResNet widths).
    Cp = max(8, -(-Cin // 8) * 8)
    Cmid_p = max(8, -(-Cmid // 8) * 8)
    x = x_nchw.reshape(N, Cin, HW).astype(jnp.float32)     # pure reshape, no transpose
    if Cp != Cin:
        x = jnp.pad(x, ((0, 0), (0, Cp - Cin), (0, 0)))

    # 0/1 border-validity masks for the 9 taps over the flattened H*W (lane) axis.
    hh = jnp.arange(H, dtype=jnp.int32).reshape(H, 1)
    ww = jnp.arange(W, dtype=jnp.int32).reshape(1, W)
    masks = []
    for kh in range(3):
        for kw in range(3):
            dh, dw = kh - 1, kw - 1
            valid = ((hh + dh >= 0) & (hh + dh < H) &
                     (ww + dw >= 0) & (ww + dw < W))
            masks.append(valid.astype(jnp.float32).reshape(1, HW))
    masks = jnp.stack(masks, axis=0)                        # (9, 1, HW)

    vmem = pl.BlockSpec(memory_space=pltpu.MemorySpace.VMEM)
    smem = pl.BlockSpec(memory_space=pltpu.MemorySpace.SMEM)
    kernel = functools.partial(_basic_block_kernel, n_img=N, cin=Cin,
                               cmid=Cmid, cout=Cout, H=H, W=W)
    out = pl.pallas_call(
        kernel,
        out_shape=jax.ShapeDtypeStruct((N, Cout, HW), jnp.float32),
        in_specs=[vmem, vmem, smem, smem, smem, smem, smem, smem],
        out_specs=vmem,
        scratch_shapes=[pltpu.VMEM((Cmid_p, HW), jnp.float32)],
    )(x, masks,
      w1.reshape(-1).astype(jnp.float32),
      g1.reshape(-1).astype(jnp.float32),
      b1.reshape(-1).astype(jnp.float32),
      w2.reshape(-1).astype(jnp.float32),
      g2.reshape(-1).astype(jnp.float32),
      b2.reshape(-1).astype(jnp.float32))
    return out.reshape(N, Cout, H, W)


def basic_block_reference(x_nchw, params):
    """Pure-JAX NCHW reference, used only for a correctness check."""
    x = x_nchw.astype(jnp.float32)
    dn = ("NCHW", "HWIO", "NCHW")

    def conv(h, w):
        return lax.conv_general_dilated(h, w, (1, 1), "SAME", dimension_numbers=dn)

    def bn(h, g, b):
        m = jnp.mean(h, axis=(0, 2, 3), keepdims=True)
        v = jnp.mean((h - m) ** 2, axis=(0, 2, 3), keepdims=True)
        return ((h - m) * lax.rsqrt(v + EPS) * g.reshape(1, -1, 1, 1)
                + b.reshape(1, -1, 1, 1))

    h = jnp.maximum(bn(conv(x, params["w1"]), params["g1"], params["b1"]), 0.0)
    y = bn(conv(h, params["w2"]), params["g2"], params["b2"]) + x
    return jnp.maximum(y, 0.0)


def init_params(key, in_channels, out_channels, expansion=1):
    cmid = out_channels
    cout = out_channels * expansion
    k1, k2, k3, k4 = jax.random.split(key, 4)
    # PyTorch conv weight layout is (Cout, Cin, 3, 3); we store HWIO.
    w1_oihw = 0.1 * jax.random.normal(k1, (cmid, in_channels, 3, 3), jnp.float32)
    w2_oihw = 0.1 * jax.random.normal(k2, (cout, cmid, 3, 3), jnp.float32)
    return {
        "w1": jnp.transpose(w1_oihw, (2, 3, 1, 0)),                # (3,3,Cin,Cmid)
        "g1": 1.0 + 0.1 * jax.random.normal(k3, (cmid,), jnp.float32),
        "b1": 0.1 * jax.random.normal(k4, (cmid,), jnp.float32),
        "w2": jnp.transpose(w2_oihw, (2, 3, 1, 0)),                # (3,3,Cmid,Cout)
        "g2": 1.0 + 0.05 * jax.random.normal(k4, (cout,), jnp.float32),
        "b2": 0.05 * jax.random.normal(k3, (cout,), jnp.float32),
    }


if __name__ == "__main__":
    key = jax.random.PRNGKey(0)
    kx, kp = jax.random.split(key)

    # BasicBlock(in_channels=4, out_channels=4, stride=1, expansion=1, downsample=None)
    N, C, H, W = 2, 4, 16, 16
    x = jax.random.normal(kx, (N, C, H, W), jnp.float32)
    params = init_params(kp, in_channels=C, out_channels=C, expansion=1)

    out = jax.block_until_ready(basic_block_forward(x, params))
    ref = jax.block_until_ready(basic_block_reference(x, params))

    assert out.shape == (N, C, H, W)
    assert jnp.max(jnp.abs(out - ref)) < 2e-4, "Pallas kernel mismatch vs reference"
    print("KERNEL_OK")
</pallas_src>

<mosaic_0001>
module attributes {stable_mosaic.version = 11 : i64} {
  func.func @_basic_block_kernel(%arg0: memref<2x8x256xf32, #tpu.memory_space<vmem>>, %arg1: memref<9x1x256xf32, #tpu.memory_space<vmem>>, %arg2: memref<144xf32, #tpu.memory_space<smem>>, %arg3: memref<4xf32, #tpu.memory_space<smem>>, %arg4: memref<4xf32, #tpu.memory_space<smem>>, %arg5: memref<144xf32, #tpu.memory_space<smem>>, %arg6: memref<4xf32, #tpu.memory_space<smem>>, %arg7: memref<4xf32, #tpu.memory_space<smem>>, %arg8: memref<2x4x256xf32, #tpu.memory_space<vmem>>, %arg9: memref<8x256xf32, #tpu.memory_space<vmem>>) attributes {dimension_semantics = [], scalar_prefetch = 0 : i64, scratch_operands = 1 : i64, tpu.core_type = #tpu.core_type<tc>} {
    %c0 = arith.constant 0 : index
    %c0_0 = arith.constant 0 : index
    %c0_1 = arith.constant 0 : index
    %0 = vector.load %arg0[%c0, %c0_0, %c0_1] : memref<2x8x256xf32, #tpu.memory_space<vmem>>, vector<1x8x256xf32>
    %1 = vector.shape_cast %0 : vector<1x8x256xf32> to vector<8x256xf32>
    %c17_i32 = arith.constant 17 : i32
    %2 = tpu.dynamic_rotate %1 by %c17_i32 dim 1 : vector<8x256xf32>, i32 -> vector<8x256xf32>
    %c0_2 = arith.constant 0 : index
    %c0_3 = arith.constant 0 : index
    %c0_4 = arith.constant 0 : index
    %3 = vector.load %arg1[%c0_2, %c0_3, %c0_4] : memref<9x1x256xf32, #tpu.memory_space<vmem>>, vector<1x1x256xf32>
    %4 = vector.shape_cast %3 : vector<1x1x256xf32> to vector<1x256xf32>
    %5 = vector.broadcast %4 : vector<1x256xf32> to vector<8x256xf32>
    %6 = arith.mulf %2, %5 : vector<8x256xf32>
    %7 = vector.extract_strided_slice %6 {offsets = [0, 0], sizes = [1, 256], strides = [1, 1]} : vector<8x256xf32> to vector<1x256xf32>
    %c0_5 = arith.constant 0 : index
    %8 = memref.load %arg2[%c0_5] : memref<144xf32, #tpu.memory_space<smem>>
    %9 = vector.broadcast %8 : f32 to vector<1x256xf32>
    %10 = arith.mulf %9, %7 : vector<1x256xf32>
    %c1 = arith.constant 1 : index
    %11 = memref.load %arg2[%c1] : memref<144xf32, #tpu.memory_space<smem>>
    %12 = vector.broadcast %11 : f32 to vector<1x256xf32>
    %13 = arith.mulf %12, %7 : vector<1x256xf32>
    %c2 = arith.constant 2 : index
    %14 = memref.load %arg2[%c2] : memref<144xf32, #tpu.memory_space<smem>>
    %15 = vector.broadcast %14 : f32 to vector<1x256xf32>
    %16 = arith.mulf %15, %7 : vector<1x256xf32>
    %c3 = arith.constant 3 : index
    %17 = memref.load %arg2[%c3] : memref<144xf32, #tpu.memory_space<smem>>
    %18 = vector.broadcast %17 : f32 to vector<1x256xf32>
    %19 = arith.mulf %18, %7 : vector<1x256xf32>
    %20 = vector.extract_strided_slice %6 {offsets = [1, 0], sizes = [1, 256], strides = [1, 1]} : vector<8x256xf32> to vector<1x256xf32>
    %c4 = arith.constant 4 : index
    %21 = memref.load %arg2[%c4] : memref<144xf32, #tpu.memory_space<smem>>
    %22 = vector.broadcast %21 : f32 to vector<1x256xf32>
    %23 = arith.mulf %22, %20 : vector<1x256xf32>
    %24 = arith.addf %10, %23 : vector<1x256xf32>
    %c5 = arith.constant 5 : index
    %25 = memref.load %arg2[%c5] : memref<144xf32, #tpu.memory_space<smem>>
    %26 = vector.broadcast %25 : f32 to vector<1x256xf32>
    %27 = arith.mulf %26, %20 : vector<1x256xf32>
    %28 = arith.addf %13, %27 : vector<1x256xf32>
    %c6 = arith.constant 6 : index
    %29 = memref.load %arg2[%c6] : memref<144xf32, #tpu.memory_space<smem>>
    %30 = vector.broadcast %29 : f32 to vector<1x256xf32>
    %31 = arith.mulf %30, %20 : vector<1x256xf32>
    %32 = arith.addf %16, %31 : vector<1x256xf32>
    %c7 = arith.constant 7 : index
    %33 = memref.load %arg2[%c7] : memref<144xf32, #tpu.memory_space<smem>>
    %34 = vector.broadcast %33 : f32 to vector<1x256xf32>
    %35 = arith.mulf %34, %20 : vector<1x256xf32>
    %36 = arith.addf %19, %35 : vector<1x256xf32>
    %37 = vector.extract_strided_slice %6 {offsets = [2, 0], sizes = [1, 256], strides = [1, 1]} : vector<8x256xf32> to vector<1x256xf32>
    %c8 = arith.constant 8 : index
    %38 = memref.load %arg2[%c8] : memref<144xf32, #tpu.memory_space<smem>>
    %39 = vector.broadcast %38 : f32 to vector<1x256xf32>
    %40 = arith.mulf %39, %37 : vector<1x256xf32>
    %41 = arith.addf %24, %40 : vector<1x256xf32>
    %c9 = arith.constant 9 : index
    %42 = memref.load %arg2[%c9] : memref<144xf32, #tpu.memory_space<smem>>
    %43 = vector.broadcast %42 : f32 to vector<1x256xf32>
    %44 = arith.mulf %43, %37 : vector<1x256xf32>
    %45 = arith.addf %28, %44 : vector<1x256xf32>
    %c10 = arith.constant 10 : index
    %46 = memref.load %arg2[%c10] : memref<144xf32, #tpu.memory_space<smem>>
    %47 = vector.broadcast %46 : f32 to vector<1x256xf32>
    %48 = arith.mulf %47, %37 : vector<1x256xf32>
    %49 = arith.addf %32, %48 : vector<1x256xf32>
    %c11 = arith.constant 11 : index
    %50 = memref.load %arg2[%c11] : memref<144xf32, #tpu.memory_space<smem>>
    %51 = vector.broadcast %50 : f32 to vector<1x256xf32>
    %52 = arith.mulf %51, %37 : vector<1x256xf32>
    %53 = arith.addf %36, %52 : vector<1x256xf32>
    %54 = vector.extract_strided_slice %6 {offsets = [3, 0], sizes = [1, 256], strides = [1, 1]} : vector<8x256xf32> to vector<1x256xf32>
    %c12 = arith.constant 12 : index
    %55 = memref.load %arg2[%c12] : memref<144xf32, #tpu.memory_space<smem>>
    %56 = vector.broadcast %55 : f32 to vector<1x256xf32>
    %57 = arith.mulf %56, %54 : vector<1x256xf32>
    %58 = arith.addf %41, %57 : vector<1x256xf32>
    %c13 = arith.constant 13 : index
    %59 = memref.load %arg2[%c13] : memref<144xf32, #tpu.memory_space<smem>>
    %60 = vector.broadcast %59 : f32 to vector<1x256xf32>
    %61 = arith.mulf %60, %54 : vector<1x256xf32>
    %62 = arith.addf %45, %61 : vector<1x256xf32>
    %c14 = arith.constant 14 : index
    %63 = memref.load %arg2[%c14] : memref<144xf32, #tpu.memory_space<smem>>
    %64 = vector.broadcast %63 : f32 to vector<1x256xf32>
    %65 = arith.mulf %64, %54 : vector<1x256xf32>
    %66 = arith.addf %49, %65 : vector<1x256xf32>
    %c15 = arith.constant 15 : index
    %67 = memref.load %arg2[%c15] : memref<144xf32, #tpu.memory_space<smem>>
    %68 = vector.broadcast %67 : f32 to vector<1x256xf32>
    %69 = arith.mulf %68, %54 : vector<1x256xf32>
    %70 = arith.addf %53, %69 : vector<1x256xf32>
    %c16_i32 = arith.constant 16 : i32
    %71 = tpu.dynamic_rotate %1 by %c16_i32 dim 1 : vector<8x256xf32>, i32 -> vector<8x256xf32>
    %c1_6 = arith.constant 1 : index
    %c0_7 = arith.constant 0 : index
    %c0_8 = arith.constant 0 : index
    %72 = vector.load %arg1[%c1_6, %c0_7, %c0_8] : memref<9x1x256xf32, #tpu.memory_space<vmem>>, vector<1x1x256xf32>
    %73 = vector.shape_cast %72 : vector<1x1x256xf32> to vector<1x256xf32>
    %74 = vector.broadcast %73 : vector<1x256xf32> to vector<8x256xf32>
    %75 = arith.mulf %71, %74 : vector<8x256xf32>
    %76 = vector.extract_strided_slice %75 {offsets = [0, 0], sizes = [1, 256], strides = [1, 1]} : vector<8x256xf32> to vector<1x256xf32>
    %c16 = arith.constant 16 : index
    %77 = memref.load %arg2[%c16] : memref<144xf32, #tpu.memory_space<smem>>
    %78 = vector.broadcast %77 : f32 to vector<1x256xf32>
    %79 = arith.mulf %78, %76 : vector<1x256xf32>
    %80 = arith.addf %58, %79 : vector<1x256xf32>
    %c17 = arith.constant 17 : index
    %81 = memref.load %arg2[%c17] : memref<144xf32, #tpu.memory_space<smem>>
    %82 = vector.broadcast %81 : f32 to vector<1x256xf32>
    %83 = arith.mulf %82, %76 : vector<1x256xf32>
    %84 = arith.addf %62, %83 : vector<1x256xf32>
    %c18 = arith.constant 18 : index
    %85 = memref.load %arg2[%c18] : memref<144xf32, #tpu.memory_space<smem>>
    %86 = vector.broadcast %85 : f32 to vector<1x256xf32>
    %87 = arith.mulf %86, %76 : vector<1x256xf32>
    %88 = arith.addf %66, %87 : vector<1x256xf32>
    %c19 = arith.constant 19 : index
    %89 = memref.load %arg2[%c19] : memref<144xf32, #tpu.memory_space<smem>>
    %90 = vector.broadcast %89 : f32 to vector<1x256xf32>
    %91 = arith.mulf %90, %76 : vector<1x256xf32>
    %92 = arith.addf %70, %91 : vector<1x256xf32>
    %93 = vector.extract_strided_slice %75 {offsets = [1, 0], sizes = [1, 256], strides = [1, 1]} : vector<8x256xf32> to vector<1x256xf32>
    %c20 = arith.constant 20 : index
    %94 = memref.load %arg2[%c20] : memref<144xf32, #tpu.memory_space<smem>>
    %95 = vector.broadcast %94 : f32 to vector<1x256xf32>
    %96 = arith.mulf %95, %93 : vector<1x256xf32>
    %97 = arith.addf %80, %96 : vector<1x256xf32>
    %c21 = arith.constant 21 : index
    %98 = memref.load %arg2[%c21] : memref<144xf32, #tpu.memory_space<smem>>
    %99 = vector.broadcast %98 : f32 to vector<1x256xf32>
    %100 = arith.mulf %99, %93 : vector<1x256xf32>
    %101 = arith.addf %84, %100 : vector<1x256xf32>
    %c22 = arith.constant 22 : index
    %102 = memref.load %arg2[%c22] : memref<144xf32, #tpu.memory_space<smem>>
    %103 = vector.broadcast %102 : f32 to vector<1x256xf32>
    %104 = arith.mulf %103, %93 : vector<1x256xf32>
    %105 = arith.addf %88, %104 : vector<1x256xf32>
    %c23 = arith.constant 23 : index
    %106 = memref.load %arg2[%c23] : memref<144xf32, #tpu.memory_space<smem>>
    %107 = vector.broadcast %106 : f32 to vector<1x256xf32>
    %108 = arith.mulf %107, %93 : vector<1x256xf32>
    %109 = arith.addf %92, %108 : vector<1x256xf32>
    %110 = vector.extract_strided_slice %75 {offsets = [2, 0], sizes = [1, 256], strides = [1, 1]} : vector<8x256xf32> to vector<1x256xf32>
    %c24 = arith.constant 24 : index
    %111 = memref.load %arg2[%c24] : memref<144xf32, #tpu.memory_space<smem>>
    %112 = vector.broadcast %111 : f32 to vector<1x256xf32>
    %113 = arith.mulf %112, %110 : vector<1x256xf32>
    %114 = arith.addf %97, %113 : vector<1x256xf32>
    %c25 = arith.constant 25 : index
    %115 = memref.load %arg2[%c25] : memref<144xf32, #tpu.memory_space<smem>>
    %116 = vector.broadcast %115 : f32 to vector<1x256xf32>
    %117 = arith.mulf %116, %110 : vector<1x256xf32>
    %118 = arith.addf %101, %117 : vector<1x256xf32>
    %c26 = arith.constant 26 : index
    %119 = memref.load %arg2[%c26] : memref<144xf32, #tpu.memory_space<smem>>
    %120 = vector.broadcast %119 : f32 to vector<1x256xf32>
    %121 = arith.mulf %120, %110 : vector<1x256xf32>
    %122 = arith.addf %105, %121 : vector<1x256xf32>
    %c27 = arith.constant 27 : index
    %123 = memref.load %arg2[%c27] : memref<144xf32, #tpu.memory_space<smem>>
    %124 = vector.broadcast %123 : f32 to vector<1x256xf32>
    %125 = arith.mulf %124, %110 : vector<1x256xf32>
    %126 = arith.addf %109, %125 : vector<1x256xf32>
    %127 = vector.extract_strided_slice %75 {offsets = [3, 0], sizes = [1, 256], strides = [1, 1]} : vector<8x256xf32> to vector<1x256xf32>
    %c28 = arith.constant 28 : index
    %128 = memref.load %arg2[%c28] : memref<144xf32, #tpu.memory_space<smem>>
    %129 = vector.broadcast %128 : f32 to vector<1x256xf32>
    %130 = arith.mulf %129, %127 : vector<1x256xf32>
    %131 = arith.addf %114, %130 : vector<1x256xf32>
    %c29 = arith.constant 29 : index
    %132 = memref.load %arg2[%c29] : memref<144xf32, #tpu.memory_space<smem>>
    %133 = vector.broadcast %132 : f32 to vector<1x256xf32>
    %134 = arith.mulf %133, %127 : vector<1x256xf32>
    %135 = arith.addf %118, %134 : vector<1x256xf32>
    %c30 = arith.constant 30 : index
    %136 = memref.load %arg2[%c30] : memref<144xf32, #tpu.memory_space<smem>>
    %137 = vector.broadcast %136 : f32 to vector<1x256xf32>
    %138 = arith.mulf %137, %127 : vector<1x256xf32>
    %139 = arith.addf %122, %138 : vector<1x256xf32>
    %c31 = arith.constant 31 : index
    %140 = memref.load %arg2[%c31] : memref<144xf32, #tpu.memory_space<smem>>
    %141 = vector.broadcast %140 : f32 to vector<1x256xf32>
    %142 = arith.mulf %141, %127 : vector<1x256xf32>
    %143 = arith.addf %126, %142 : vector<1x256xf32>
    %c15_i32 = arith.constant 15 : i32
    %144 = tpu.dynamic_rotate %1 by %c15_i32 dim 1 : vector<8x256xf32>, i32 -> vector<8x256xf32>
    %c2_9 = arith.constant 2 : index
    %c0_10 = arith.constant 0 : index
    %c0_11 = arith.constant 0 : index
    %145 = vector.load %arg1[%c2_9, %c0_10, %c0_11] : memref<9x1x256xf32, #tpu.memory_space<vmem>>, vector<1x1x256xf32>
    %146 = vector.shape_cast %145 : vector<1x1x256xf32> to vector<1x256xf32>
    %147 = vector.broadcast %146 : vector<1x256xf32> to vector<8x256xf32>
    %148 = arith.mulf %144, %147 : vector<8x256xf32>
    %149 = vector.extract_strided_slice %148 {offsets = [0, 0], sizes = [1, 256], strides = [1, 1]} : vector<8x256xf32> to vector<1x256xf32>
    %c32 = arith.constant 32 : index
    %150 = memref.load %arg2[%c32] : memref<144xf32, #tpu.memory_space<smem>>
    %151 = vector.broadcast %150 : f32 to vector<1x256xf32>
    %152 = arith.mulf %151, %149 : vector<1x256xf32>
    %153 = arith.addf %131, %152 : vector<1x256xf32>
    %c33 = arith.constant 33 : index
    %154 = memref.load %arg2[%c33] : memref<144xf32, #tpu.memory_space<smem>>
    %155 = vector.broadcast %154 : f32 to vector<1x256xf32>
    %156 = arith.mulf %155, %149 : vector<1x256xf32>
    %157 = arith.addf %135, %156 : vector<1x256xf32>
    %c34 = arith.constant 34 : index
    %158 = memref.load %arg2[%c34] : memref<144xf32, #tpu.memory_space<smem>>
    %159 = vector.broadcast %158 : f32 to vector<1x256xf32>
    %160 = arith.mulf %159, %149 : vector<1x256xf32>
    %161 = arith.addf %139, %160 : vector<1x256xf32>
    %c35 = arith.constant 35 : index
    %162 = memref.load %arg2[%c35] : memref<144xf32, #tpu.memory_space<smem>>
    %163 = vector.broadcast %162 : f32 to vector<1x256xf32>
    %164 = arith.mulf %163, %149 : vector<1x256xf32>
    %165 = arith.addf %143, %164 : vector<1x256xf32>
    %166 = vector.extract_strided_slice %148 {offsets = [1, 0], sizes = [1, 256], strides = [1, 1]} : vector<8x256xf32> to vector<1x256xf32>
    %c36 = arith.constant 36 : index
    %167 = memref.load %arg2[%c36] : memref<144xf32, #tpu.memory_space<smem>>
    %168 = vector.broadcast %167 : f32 to vector<1x256xf32>
    %169 = arith.mulf %168, %166 : vector<1x256xf32>
    %170 = arith.addf %153, %169 : vector<1x256xf32>
    %c37 = arith.constant 37 : index
    %171 = memref.load %arg2[%c37] : memref<144xf32, #tpu.memory_space<smem>>
    %172 = vector.broadcast %171 : f32 to vector<1x256xf32>
    %173 = arith.mulf %172, %166 : vector<1x256xf32>
    %174 = arith.addf %157, %173 : vector<1x256xf32>
    %c38 = arith.constant 38 : index
    %175 = memref.load %arg2[%c38] : memref<144xf32, #tpu.memory_space<smem>>
    %176 = vector.broadcast %175 : f32 to vector<1x256xf32>
    %177 = arith.mulf %176, %166 : vector<1x256xf32>
    %178 = arith.addf %161, %177 : vector<1x256xf32>
    %c39 = arith.constant 39 : index
    %179 = memref.load %arg2[%c39] : memref<144xf32, #tpu.memory_space<smem>>
    %180 = vector.broadcast %179 : f32 to vector<1x256xf32>
    %181 = arith.mulf %180, %166 : vector<1x256xf32>
    %182 = arith.addf %165, %181 : vector<1x256xf32>
    %183 = vector.extract_strided_slice %148 {offsets = [2, 0], sizes = [1, 256], strides = [1, 1]} : vector<8x256xf32> to vector<1x256xf32>
    %c40 = arith.constant 40 : index
    %184 = memref.load %arg2[%c40] : memref<144xf32, #tpu.memory_space<smem>>
    %185 = vector.broadcast %184 : f32 to vector<1x256xf32>
    %186 = arith.mulf %185, %183 : vector<1x256xf32>
    %187 = arith.addf %170, %186 : vector<1x256xf32>
    %c41 = arith.constant 41 : index
    %188 = memref.load %arg2[%c41] : memref<144xf32, #tpu.memory_space<smem>>
    %189 = vector.broadcast %188 : f32 to vector<1x256xf32>
    %190 = arith.mulf %189, %183 : vector<1x256xf32>
    %191 = arith.addf %174, %190 : vector<1x256xf32>
    %c42 = arith.constant 42 : index
    %192 = memref.load %arg2[%c42] : memref<144xf32, #tpu.memory_space<smem>>
    %193 = vector.broadcast %192 : f32 to vector<1x256xf32>
    %194 = arith.mulf %193, %183 : vector<1x256xf32>
    %195 = arith.addf %178, %194 : vector<1x256xf32>
    %c43 = arith.constant 43 : index
    %196 = memref.load %arg2[%c43] : memref<144xf32, #tpu.memory_space<smem>>
    %197 = vector.broadcast %196 : f32 to vector<1x256xf32>
    %198 = arith.mulf %197, %183 : vector<1x256xf32>
    %199 = arith.addf %182, %198 : vector<1x256xf32>
    %200 = vector.extract_strided_slice %148 {offsets = [3, 0], sizes = [1, 256], strides = [1, 1]} : vector<8x256xf32> to vector<1x256xf32>
    %c44 = arith.constant 44 : index
    %201 = memref.load %arg2[%c44] : memref<144xf32, #tpu.memory_space<smem>>
    %202 = vector.broadcast %201 : f32 to vector<1x256xf32>
    %203 = arith.mulf %202, %200 : vector<1x256xf32>
    %204 = arith.addf %187, %203 : vector<1x256xf32>
    %c45 = arith.constant 45 : index
    %205 = memref.load %arg2[%c45] : memref<144xf32, #tpu.memory_space<smem>>
    %206 = vector.broadcast %205 : f32 to vector<1x256xf32>
    %207 = arith.mulf %206, %200 : vector<1x256xf32>
    %208 = arith.addf %191, %207 : vector<1x256xf32>
    %c46 = arith.constant 46 : index
    %209 = memref.load %arg2[%c46] : memref<144xf32, #tpu.memory_space<smem>>
    %210 = vector.broadcast %209 : f32 to vector<1x256xf32>
    %211 = arith.mulf %210, %200 : vector<1x256xf32>
    %212 = arith.addf %195, %211 : vector<1x256xf32>
    %c47 = arith.constant 47 : index
    %213 = memref.load %arg2[%c47] : memref<144xf32, #tpu.memory_space<smem>>
    %214 = vector.broadcast %213 : f32 to vector<1x256xf32>
    %215 = arith.mulf %214, %200 : vector<1x256xf32>
    %216 = arith.addf %199, %215 : vector<1x256xf32>
    %c1_i32 = arith.constant 1 : i32
    %217 = tpu.dynamic_rotate %1 by %c1_i32 dim 1 : vector<8x256xf32>, i32 -> vector<8x256xf32>
    %c3_12 = arith.constant 3 : index
    %c0_13 = arith.constant 0 : index
    %c0_14 = arith.constant 0 : index
    %218 = vector.load %arg1[%c3_12, %c0_13, %c0_14] : memref<9x1x256xf32, #tpu.memory_space<vmem>>, vector<1x1x256xf32>
    %219 = vector.shape_cast %218 : vector<1x1x256xf32> to vector<1x256xf32>
    %220 = vector.broadcast %219 : vector<1x256xf32> to vector<8x256xf32>
    %221 = arith.mulf %217, %220 : vector<8x256xf32>
    %222 = vector.extract_strided_slice %221 {offsets = [0, 0], sizes = [1, 256], strides = [1, 1]} : vector<8x256xf32> to vector<1x256xf32>
    %c48 = arith.constant 48 : index
    %223 = memref.load %arg2[%c48] : memref<144xf32, #tpu.memory_space<smem>>
    %224 = vector.broadcast %223 : f32 to vector<1x256xf32>
    %225 = arith.mulf %224, %222 : vector<1x256xf32>
    %226 = arith.addf %204, %225 : vector<1x256xf32>
    %c49 = arith.constant 49 : index
    %227 = memref.load %arg2[%c49] : memref<144xf32, #tpu.memory_space<smem>>
    %228 = vector.broadcast %227 : f32 to vector<1x256xf32>
    %229 = arith.mulf %228, %222 : vector<1x256xf32>
    %230 = arith.addf %208, %229 : vector<1x256xf32>
    %c50 = arith.constant 50 : index
    %231 = memref.load %arg2[%c50] : memref<144xf32, #tpu.memory_space<smem>>
    %232 = vector.broadcast %231 : f32 to vector<1x256xf32>
    %233 = arith.mulf %232, %222 : vector<1x256xf32>
    %234 = arith.addf %212, %233 : vector<1x256xf32>
    %c51 = arith.constant 51 : index
    %235 = memref.load %arg2[%c51] : memref<144xf32, #tpu.memory_space<smem>>
    %236 = vector.broadcast %235 : f32 to vector<1x256xf32>
    %237 = arith.mulf %236, %222 : vector<1x256xf32>
    %238 = arith.addf %216, %237 : vector<1x256xf32>
    %239 = vector.extract_strided_slice %221 {offsets = [1, 0], sizes = [1, 256], strides = [1, 1]} : vector<8x256xf32> to vector<1x256xf32>
    %c52 = arith.constant 52 : index
    %240 = memref.load %arg2[%c52] : memref<144xf32, #tpu.memory_space<smem>>
    %241 = vector.broadcast %240 : f32 to vector<1x256xf32>
    %242 = arith.mulf %241, %239 : vector<1x256xf32>
    %243 = arith.addf %226, %242 : vector<1x256xf32>
    %c53 = arith.constant 53 : index
    %244 = memref.load %arg2[%c53] : memref<144xf32, #tpu.memory_space<smem>>
    %245 = vector.broadcast %244 : f32 to vector<1x256xf32>
    %246 = arith.mulf %245, %239 : vector<1x256xf32>
    %247 = arith.addf %230, %246 : vector<1x256xf32>
    %c54 = arith.constant 54 : index
    %248 = memref.load %arg2[%c54] : memref<144xf32, #tpu.memory_space<smem>>
    %249 = vector.broadcast %248 : f32 to vector<1x256xf32>
    %250 = arith.mulf %249, %239 : vector<1x256xf32>
    %251 = arith.addf %234, %250 : vector<1x256xf32>
    %c55 = arith.constant 55 : index
    %252 = memref.load %arg2[%c55] : memref<144xf32, #tpu.memory_space<smem>>
    %253 = vector.broadcast %252 : f32 to vector<1x256xf32>
    %254 = arith.mulf %253, %239 : vector<1x256xf32>
    %255 = arith.addf %238, %254 : vector<1x256xf32>
    %256 = vector.extract_strided_slice %221 {offsets = [2, 0], sizes = [1, 256], strides = [1, 1]} : vector<8x256xf32> to vector<1x256xf32>
    %c56 = arith.constant 56 : index
    %257 = memref.load %arg2[%c56] : memref<144xf32, #tpu.memory_space<smem>>
    %258 = vector.broadcast %257 : f32 to vector<1x256xf32>
    %259 = arith.mulf %258, %256 : vector<1x256xf32>
    %260 = arith.addf %243, %259 : vector<1x256xf32>
    %c57 = arith.constant 57 : index
    %261 = memref.load %arg2[%c57] : memref<144xf32, #tpu.memory_space<smem>>
    %262 = vector.broadcast %261 : f32 to vector<1x256xf32>
    %263 = arith.mulf %262, %256 : vector<1x256xf32>
    %264 = arith.addf %247, %263 : vector<1x256xf32>
    %c58 = arith.constant 58 : index
    %265 = memref.load %arg2[%c58] : memref<144xf32, #tpu.memory_space<smem>>
    %266 = vector.broadcast %265 : f32 to vector<1x256xf32>
    %267 = arith.mulf %266, %256 : vector<1x256xf32>
    %268 = arith.addf %251, %267 : vector<1x256xf32>
    %c59 = arith.constant 59 : index
    %269 = memref.load %arg2[%c59] : memref<144xf32, #tpu.memory_space<smem>>
    %270 = vector.broadcast %269 : f32 to vector<1x256xf32>
    %271 = arith.mulf %270, %256 : vector<1x256xf32>
    %272 = arith.addf %255, %271 : vector<1x256xf32>
    %273 = vector.extract_strided_slice %221 {offsets = [3, 0], sizes = [1, 256], strides = [1, 1]} : vector<8x256xf32> to vector<1x256xf32>
    %c60 = arith.constant 60 : index
    %274 = memref.load %arg2[%c60] : memref<144xf32, #tpu.memory_space<smem>>
    %275 = vector.broadcast %274 : f32 to vector<1x256xf32>
    %276 = arith.mulf %275, %273 : vector<1x256xf32>
    %277 = arith.addf %260, %276 : vector<1x256xf32>
    %c61 = arith.constant 61 : index
    %278 = memref.load %arg2[%c61] : memref<144xf32, #tpu.memory_space<smem>>
    %279 = vector.broadcast %278 : f32 to vector<1x256xf32>
    %280 = arith.mulf %279, %273 : vector<1x256xf32>
    %281 = arith.addf %264, %280 : vector<1x256xf32>
    %c62 = arith.constant 62 : index
    %282 = memref.load %arg2[%c62] : memref<144xf32, #tpu.memory_space<smem>>
    %283 = vector.broadcast %282 : f32 to vector<1x256xf32>
    %284 = arith.mulf %283, %273 : vector<1x256xf32>
    %285 = arith.addf %268, %284 : vector<1x256xf32>
    %c63 = arith.constant 63 : index
    %286 = memref.load %arg2[%c63] : memref<144xf32, #tpu.memory_space<smem>>
    %287 = vector.broadcast %286 : f32 to vector<1x256xf32>
    %288 = arith.mulf %287, %273 : vector<1x256xf32>
    %289 = arith.addf %272, %288 : vector<1x256xf32>
    %290 = vector.extract_strided_slice %1 {offsets = [0, 0], sizes = [1, 256], strides = [1, 1]} : vector<8x256xf32> to vector<1x256xf32>
    %c64 = arith.constant 64 : index
    %291 = memref.load %arg2[%c64] : memref<144xf32, #tpu.memory_space<smem>>
    %292 = vector.broadcast %291 : f32 to vector<1x256xf32>
    %293 = arith.mulf %292, %290 : vector<1x256xf32>
    %294 = arith.addf %277, %293 : vector<1x256xf32>
    %c65 = arith.constant 65 : index
    %295 = memref.load %arg2[%c65] : memref<144xf32, #tpu.memory_space<smem>>
    %296 = vector.broadcast %295 : f32 to vector<1x256xf32>
    %297 = arith.mulf %296, %290 : vector<1x256xf32>
    %298 = arith.addf %281, %297 : vector<1x256xf32>
    %c66 = arith.constant 66 : index
    %299 = memref.load %arg2[%c66] : memref<144xf32, #tpu.memory_space<smem>>
    %300 = vector.broadcast %299 : f32 to vector<1x256xf32>
    %301 = arith.mulf %300, %290 : vector<1x256xf32>
    %302 = arith.addf %285, %301 : vector<1x256xf32>
    %c67 = arith.constant 67 : index
    %303 = memref.load %arg2[%c67] : memref<144xf32, #tpu.memory_space<smem>>
    %304 = vector.broadcast %303 : f32 to vector<1x256xf32>
    %305 = arith.mulf %304, %290 : vector<1x256xf32>
    %306 = arith.addf %289, %305 : vector<1x256xf32>
    %307 = vector.extract_strided_slice %1 {offsets = [1, 0], sizes = [1, 256], strides = [1, 1]} : vector<8x256xf32> to vector<1x256xf32>
    %c68 = arith.constant 68 : index
    %308 = memref.load %arg2[%c68] : memref<144xf32, #tpu.memory_space<smem>>
    %309 = vector.broadcast %308 : f32 to vector<1x256xf32>
    %310 = arith.mulf %309, %307 : vector<1x256xf32>
    %311 = arith.addf %294, %310 : vector<1x256xf32>
    %c69 = arith.constant 69 : index
    %312 = memref.load %arg2[%c69] : memref<144xf32, #tpu.memory_space<smem>>
    %313 = vector.broadcast %312 : f32 to vector<1x256xf32>
    %314 = arith.mulf %313, %307 : vector<1x256xf32>
    %315 = arith.addf %298, %314 : vector<1x256xf32>
    %c70 = arith.constant 70 : index
    %316 = memref.load %arg2[%c70] : memref<144xf32, #tpu.memory_space<smem>>
    %317 = vector.broadcast %316 : f32 to vector<1x256xf32>
    %318 = arith.mulf %317, %307 : vector<1x256xf32>
    %319 = arith.addf %302, %318 : vector<1x256xf32>
    %c71 = arith.constant 71 : index
    %320 = memref.load %arg2[%c71] : memref<144xf32, #tpu.memory_space<smem>>
    %321 = vector.broadcast %320 : f32 to vector<1x256xf32>
    %322 = arith.mulf %321, %307 : vector<1x256xf32>
    %323 = arith.addf %306, %322 : vector<1x256xf32>
    %324 = vector.extract_strided_slice %1 {offsets = [2, 0], sizes = [1, 256], strides = [1, 1]} : vector<8x256xf32> to vector<1x256xf32>
    %c72 = arith.constant 72 : index
    %325 = memref.load %arg2[%c72] : memref<144xf32, #tpu.memory_space<smem>>
    %326 = vector.broadcast %325 : f32 to vector<1x256xf32>
    %327 = arith.mulf %326, %324 : vector<1x256xf32>
    %328 = arith.addf %311, %327 : vector<1x256xf32>
    %c73 = arith.constant 73 : index
    %329 = memref.load %arg2[%c73] : memref<144xf32, #tpu.memory_space<smem>>
    %330 = vector.broadcast %329 : f32 to vector<1x256xf32>
    %331 = arith.mulf %330, %324 : vector<1x256xf32>
    %332 = arith.addf %315, %331 : vector<1x256xf32>
    %c74 = arith.constant 74 : index
    %333 = memref.load %arg2[%c74] : memref<144xf32, #tpu.memory_space<smem>>
    %334 = vector.broadcast %333 : f32 to vector<1x256xf32>
    %335 = arith.mulf %334, %324 : vector<1x256xf32>
    %336 = arith.addf %319, %335 : vector<1x256xf32>
    %c75 = arith.constant 75 : index
    %337 = memref.load %arg2[%c75] : memref<144xf32, #tpu.memory_space<smem>>
    %338 = vector.broadcast %337 : f32 to vector<1x256xf32>
    %339 = arith.mulf %338, %324 : vector<1x256xf32>
    %340 = arith.addf %323, %339 : vector<1x256xf32>
    %341 = vector.extract_strided_slice %1 {offsets = [3, 0], sizes = [1, 256], strides = [1, 1]} : vector<8x256xf32> to vector<1x256xf32>
    %c76 = arith.constant 76 : index
    %342 = memref.load %arg2[%c76] : memref<144xf32, #tpu.memory_space<smem>>
    %343 = vector.broadcast %342 : f32 to vector<1x256xf32>
    %344 = arith.mulf %343, %341 : vector<1x256xf32>
    %345 = arith.addf %328, %344 : vector<1x256xf32>
    %c77 = arith.constant 77 : index
    %346 = memref.load %arg2[%c77] : memref<144xf32, #tpu.memory_space<smem>>
    %347 = vector.broadcast %346 : f32 to vector<1x256xf32>
    %348 = arith.mulf %347, %341 : vector<1x256xf32>
    %349 = arith.addf %332, %348 : vector<1x256xf32>
    %c78 = arith.constant 78 : index
    %350 = memref.load %arg2[%c78] : memref<144xf32, #tpu.memory_space<smem>>
    %351 = vector.broadcast %350 : f32 to vector<1x256xf32>
    %352 = arith.mulf %351, %341 : vector<1x256xf32>
    %353 = arith.addf %336, %352 : vector<1x256xf32>
    %c79 = arith.constant 79 : index
    %354 = memref.load %arg2[%c79] : memref<144xf32, #tpu.memory_space<smem>>
    %355 = vector.broadcast %354 : f32 to vector<1x256xf32>
    %356 = arith.mulf %355, %341 : vector<1x256xf32>
    %357 = arith.addf %340, %356 : vector<1x256xf32>
    %c255_i32 = arith.constant 255 : i32
    %358 = tpu.dynamic_rotate %1 by %c255_i32 dim 1 : vector<8x256xf32>, i32 -> vector<8x256xf32>
    %c5_15 = arith.constant 5 : index
    %c0_16 = arith.constant 0 : index
    %c0_17 = arith.constant 0 : index
    %359 = vector.load %arg1[%c5_15, %c0_16, %c0_17] : memref<9x1x256xf32, #tpu.memory_space<vmem>>, vector<1x1x256xf32>
    %360 = vector.shape_cast %359 : vector<1x1x256xf32> to vector<1x256xf32>
    %361 = vector.broadcast %360 : vector<1x256xf32> to vector<8x256xf32>
    %362 = arith.mulf %358, %361 : vector<8x256xf32>
    %363 = vector.extract_strided_slice %362 {offsets = [0, 0], sizes = [1, 256], strides = [1, 1]} : vector<8x256xf32> to vector<1x256xf32>
    %c80 = arith.constant 80 : index
    %364 = memref.load %arg2[%c80] : memref<144xf32, #tpu.memory_space<smem>>
    %365 = vector.broadcast %364 : f32 to vector<1x256xf32>
    %366 = arith.mulf %365, %363 : vector<1x256xf32>
    %367 = arith.addf %345, %366 : vector<1x256xf32>
    %c81 = arith.constant 81 : index
    %368 = memref.load %arg2[%c81] : memref<144xf32, #tpu.memory_space<smem>>
    %369 = vector.broadcast %368 : f32 to vector<1x256xf32>
    %370 = arith.mulf %369, %363 : vector<1x256xf32>
    %371 = arith.addf %349, %370 : vector<1x256xf32>
    %c82 = arith.constant 82 : index
    %372 = memref.load %arg2[%c82] : memref<144xf32, #tpu.memory_space<smem>>
    %373 = vector.broadcast %372 : f32 to vector<1x256xf32>
    %374 = arith.mulf %373, %363 : vector<1x256xf32>
    %375 = arith.addf %353, %374 : vector<1x256xf32>
    %c83 = arith.constant 83 : index
    %376 = memref.load %arg2[%c83] : memref<144xf32, #tpu.memory_space<smem>>
    %377 = vector.broadcast %376 : f32 to vector<1x256xf32>
    %378 = arith.mulf %377, %363 : vector<1x256xf32>
    %379 = arith.addf %357, %378 : vector<1x256xf32>
    %380 = vector.extract_strided_slice %362 {offsets = [1, 0], sizes = [1, 256], strides = [1, 1]} : vector<8x256xf32> to vector<1x256xf32>
    %c84 = arith.constant 84 : index
    %381 = memref.load %arg2[%c84] : memref<144xf32, #tpu.memory_space<smem>>
    %382 = vector.broadcast %381 : f32 to vector<1x256xf32>
    %383 = arith.mulf %382, %380 : vector<1x256xf32>
    %384 = arith.addf %367, %383 : vector<1x256xf32>
    %c85 = arith.constant 85 : index
    %385 = memref.load %arg2[%c85] : memref<144xf32, #tpu.memory_space<smem>>
    %386 = vector.broadcast %385 : f32 to vector<1x256xf32>
    %387 = arith.mulf %386, %380 : vector<1x256xf32>
    %388 = arith.addf %371, %387 : vector<1x256xf32>
    %c86 = arith.constant 86 : index
    %389 = memref.load %arg2[%c86] : memref<144xf32, #tpu.memory_space<smem>>
    %390 = vector.broadcast %389 : f32 to vector<1x256xf32>
    %391 = arith.mulf %390, %380 : vector<1x256xf32>
    %392 = arith.addf %375, %391 : vector<1x256xf32>
    %c87 = arith.constant 87 : index
    %393 = memref.load %arg2[%c87] : memref<144xf32, #tpu.memory_space<smem>>
    %394 = vector.broadcast %393 : f32 to vector<1x256xf32>
    %395 = arith.mulf %394, %380 : vector<1x256xf32>
    %396 = arith.addf %379, %395 : vector<1x256xf32>
    %397 = vector.extract_strided_slice %362 {offsets = [2, 0], sizes = [1, 256], strides = [1, 1]} : vector<8x256xf32> to vector<1x256xf32>
    %c88 = arith.constant 88 : index
    %398 = memref.load %arg2[%c88] : memref<144xf32, #tpu.memory_space<smem>>
    %399 = vector.broadcast %398 : f32 to vector<1x256xf32>
    %400 = arith.mulf %399, %397 : vector<1x256xf32>
    %401 = arith.addf %384, %400 : vector<1x256xf32>
    %c89 = arith.constant 89 : index
    %402 = memref.load %arg2[%c89] : memref<144xf32, #tpu.memory_space<smem>>
    %403 = vector.broadcast %402 : f32 to vector<1x256xf32>
    %404 = arith.mulf %403, %397 : vector<1x256xf32>
    %405 = arith.addf %388, %404 : vector<1x256xf32>
    %c90 = arith.constant 90 : index
    %406 = memref.load %arg2[%c90] : memref<144xf32, #tpu.memory_space<smem>>
    %407 = vector.broadcast %406 : f32 to vector<1x256xf32>
    %408 = arith.mulf %407, %397 : vector<1x256xf32>
    %409 = arith.addf %392, %408 : vector<1x256xf32>
    %c91 = arith.constant 91 : index
    %410 = memref.load %arg2[%c91] : memref<144xf32, #tpu.memory_space<smem>>
    %411 = vector.broadcast %410 : f32 to vector<1x256xf32>
    %412 = arith.mulf %411, %397 : vector<1x256xf32>
    %413 = arith.addf %396, %412 : vector<1x256xf32>
    %414 = vector.extract_strided_slice %362 {offsets = [3, 0], sizes = [1, 256], strides = [1, 1]} : vector<8x256xf32> to vector<1x256xf32>
    %c92 = arith.constant 92 : index
    %415 = memref.load %arg2[%c92] : memref<144xf32, #tpu.memory_space<smem>>
    %416 = vector.broadcast %415 : f32 to vector<1x256xf32>
    %417 = arith.mulf %416, %414 : vector<1x256xf32>
    %418 = arith.addf %401, %417 : vector<1x256xf32>
    %c93 = arith.constant 93 : index
    %419 = memref.load %arg2[%c93] : memref<144xf32, #tpu.memory_space<smem>>
    %420 = vector.broadcast %419 : f32 to vector<1x256xf32>
    %421 = arith.mulf %420, %414 : vector<1x256xf32>
    %422 = arith.addf %405, %421 : vector<1x256xf32>
    %c94 = arith.constant 94 : index
    %423 = memref.load %arg2[%c94] : memref<144xf32, #tpu.memory_space<smem>>
    %424 = vector.broadcast %423 : f32 to vector<1x256xf32>
    %425 = arith.mulf %424, %414 : vector<1x256xf32>
    %426 = arith.addf %409, %425 : vector<1x256xf32>
    %c95 = arith.constant 95 : index
    %427 = memref.load %arg2[%c95] : memref<144xf32, #tpu.memory_space<smem>>
    %428 = vector.broadcast %427 : f32 to vector<1x256xf32>
    %429 = arith.mulf %428, %414 : vector<1x256xf32>
    %430 = arith.addf %413, %429 : vector<1x256xf32>
    %c241_i32 = arith.constant 241 : i32
    %431 = tpu.dynamic_rotate %1 by %c241_i32 dim 1 : vector<8x256xf32>, i32 -> vector<8x256xf32>
    %c6_18 = arith.constant 6 : index
    %c0_19 = arith.constant 0 : index
    %c0_20 = arith.constant 0 : index
    %432 = vector.load %arg1[%c6_18, %c0_19, %c0_20] : memref<9x1x256xf32, #tpu.memory_space<vmem>>, vector<1x1x256xf32>
    %433 = vector.shape_cast %432 : vector<1x1x256xf32> to vector<1x256xf32>
    %434 = vector.broadcast %433 : vector<1x256xf32> to vector<8x256xf32>
    %435 = arith.mulf %431, %434 : vector<8x256xf32>
    %436 = vector.extract_strided_slice %435 {offsets = [0, 0], sizes = [1, 256], strides = [1, 1]} : vector<8x256xf32> to vector<1x256xf32>
    %c96 = arith.constant 96 : index
    %437 = memref.load %arg2[%c96] : memref<144xf32, #tpu.memory_space<smem>>
    %438 = vector.broadcast %437 : f32 to vector<1x256xf32>
    %439 = arith.mulf %438, %436 : vector<1x256xf32>
    %440 = arith.addf %418, %439 : vector<1x256xf32>
    %c97 = arith.constant 97 : index
    %441 = memref.load %arg2[%c97] : memref<144xf32, #tpu.memory_space<smem>>
    %442 = vector.broadcast %441 : f32 to vector<1x256xf32>
    %443 = arith.mulf %442, %436 : vector<1x256xf32>
    %444 = arith.addf %422, %443 : vector<1x256xf32>
    %c98 = arith.constant 98 : index
    %445 = memref.load %arg2[%c98] : memref<144xf32, #tpu.memory_space<smem>>
    %446 = vector.broadcast %445 : f32 to vector<1x256xf32>
    %447 = arith.mulf %446, %436 : vector<1x256xf32>
    %448 = arith.addf %426, %447 : vector<1x256xf32>
    %c99 = arith.constant 99 : index
    %449 = memref.load %arg2[%c99] : memref<144xf32, #tpu.memory_space<smem>>
    %450 = vector.broadcast %449 : f32 to vector<1x256xf32>
    %451 = arith.mulf %450, %436 : vector<1x256xf32>
    %452 = arith.addf %430, %451 : vector<1x256xf32>
    %453 = vector.extract_strided_slice %435 {offsets = [1, 0], sizes = [1, 256], strides = [1, 1]} : vector<8x256xf32> to vector<1x256xf32>
    %c100 = arith.constant 100 : index
    %454 = memref.load %arg2[%c100] : memref<144xf32, #tpu.memory_space<smem>>
    %455 = vector.broadcast %454 : f32 to vector<1x256xf32>
    %456 = arith.mulf %455, %453 : vector<1x256xf32>
    %457 = arith.addf %440, %456 : vector<1x256xf32>
    %c101 = arith.constant 101 : index
    %458 = memref.load %arg2[%c101] : memref<144xf32, #tpu.memory_space<smem>>
    %459 = vector.broadcast %458 : f32 to vector<1x256xf32>
    %460 = arith.mulf %459, %453 : vector<1x256xf32>
    %461 = arith.addf %444, %460 : vector<1x256xf32>
    %c102 = arith.constant 102 : index
    %462 = memref.load %arg2[%c102] : memref<144xf32, #tpu.memory_space<smem>>
    %463 = vector.broadcast %462 : f32 to vector<1x256xf32>
    %464 = arith.mulf %463, %453 : vector<1x256xf32>
    %465 = arith.addf %448, %464 : vector<1x256xf32>
    %c103 = arith.constant 103 : index
    %466 = memref.load %arg2[%c103] : memref<144xf32, #tpu.memory_space<smem>>
    %467 = vector.broadcast %466 : f32 to vector<1x256xf32>
    %468 = arith.mulf %467, %453 : vector<1x256xf32>
    %469 = arith.addf %452, %468 : vector<1x256xf32>
    %470 = vector.extract_strided_slice %435 {offsets = [2, 0], sizes = [1, 256], strides = [1, 1]} : vector<8x256xf32> to vector<1x256xf32>
    %c104 = arith.constant 104 : index
    %471 = memref.load %arg2[%c104] : memref<144xf32, #tpu.memory_space<smem>>
    %472 = vector.broadcast %471 : f32 to vector<1x256xf32>
    %473 = arith.mulf %472, %470 : vector<1x256xf32>
    %474 = arith.addf %457, %473 : vector<1x256xf32>
    %c105 = arith.constant 105 : index
    %475 = memref.load %arg2[%c105] : memref<144xf32, #tpu.memory_space<smem>>
    %476 = vector.broadcast %475 : f32 to vector<1x256xf32>
    %477 = arith.mulf %476, %470 : vector<1x256xf32>
    %478 = arith.addf %461, %477 : vector<1x256xf32>
    %c106 = arith.constant 106 : index
    %479 = memref.load %arg2[%c106] : memref<144xf32, #tpu.memory_space<smem>>
    %480 = vector.broadcast %479 : f32 to vector<1x256xf32>
    %481 = arith.mulf %480, %470 : vector<1x256xf32>
    %482 = arith.addf %465, %481 : vector<1x256xf32>
    %c107 = arith.constant 107 : index
    %483 = memref.load %arg2[%c107] : memref<144xf32, #tpu.memory_space<smem>>
    %484 = vector.broadcast %483 : f32 to vector<1x256xf32>
    %485 = arith.mulf %484, %470 : vector<1x256xf32>
    %486 = arith.addf %469, %485 : vector<1x256xf32>
    %487 = vector.extract_strided_slice %435 {offsets = [3, 0], sizes = [1, 256], strides = [1, 1]} : vector<8x256xf32> to vector<1x256xf32>
    %c108 = arith.constant 108 : index
    %488 = memref.load %arg2[%c108] : memref<144xf32, #tpu.memory_space<smem>>
    %489 = vector.broadcast %488 : f32 to vector<1x256xf32>
    %490 = arith.mulf %489, %487 : vector<1x256xf32>
    %491 = arith.addf %474, %490 : vector<1x256xf32>
    %c109 = arith.constant 109 : index
    %492 = memref.load %arg2[%c109] : memref<144xf32, #tpu.memory_space<smem>>
    %493 = vector.broadcast %492 : f32 to vector<1x256xf32>
    %494 = arith.mulf %493, %487 : vector<1x256xf32>
    %495 = arith.addf %478, %494 : vector<1x256xf32>
    %c110 = arith.constant 110 : index
    %496 = memref.load %arg2[%c110] : memref<144xf32, #tpu.memory_space<smem>>
    %497 = vector.broadcast %496 : f32 to vector<1x256xf32>
    %498 = arith.mulf %497, %487 : vector<1x256xf32>
    %499 = arith.addf %482, %498 : vector<1x256xf32>
    %c111 = arith.constant 111 : index
    %500 = memref.load %arg2[%c111] : memref<144xf32, #tpu.memory_space<smem>>
    %501 = vector.broadcast %500 : f32 to vector<1x256xf32>
    %502 = arith.mulf %501, %487 : vector<1x256xf32>
    %503 = arith.addf %486, %502 : vector<1x256xf32>
    %c240_i32 = arith.constant 240 : i32
    %504 = tpu.dynamic_rotate %1 by %c240_i32 dim 1 : vector<8x256xf32>, i32 -> vector<8x256xf32>
    %c7_21 = arith.constant 7 : index
    %c0_22 = arith.constant 0 : index
    %c0_23 = arith.constant 0 : index
    %505 = vector.load %arg1[%c7_21, %c0_22, %c0_23] : memref<9x1x256xf32, #tpu.memory_space<vmem>>, vector<1x1x256xf32>
    %506 = vector.shape_cast %505 : vector<1x1x256xf32> to vector<1x256xf32>
    %507 = vector.broadcast %506 : vector<1x256xf32> to vector<8x256xf32>
    %508 = arith.mulf %504, %507 : vector<8x256xf32>
    %509 = vector.extract_strided_slice %508 {offsets = [0, 0], sizes = [1, 256], strides = [1, 1]} : vector<8x256xf32> to vector<1x256xf32>
    %c112 = arith.constant 112 : index
    %510 = memref.load %arg2[%c112] : memref<144xf32, #tpu.memory_space<smem>>
    %511 = vector.broadcast %510 : f32 to vector<1x256xf32>
    %512 = arith.mulf %511, %509 : vector<1x256xf32>
    %513 = arith.addf %491, %512 : vector<1x256xf32>
    %c113 = arith.constant 113 : index
    %514 = memref.load %arg2[%c113] : memref<144xf32, #tpu.memory_space<smem>>
    %515 = vector.broadcast %514 : f32 to vector<1x256xf32>
    %516 = arith.mulf %515, %509 : vector<1x256xf32>
    %517 = arith.addf %495, %516 : vector<1x256xf32>
    %c114 = arith.constant 114 : index
    %518 = memref.load %arg2[%c114] : memref<144xf32, #tpu.memory_space<smem>>
    %519 = vector.broadcast %518 : f32 to vector<1x256xf32>
    %520 = arith.mulf %519, %509 : vector<1x256xf32>
    %521 = arith.addf %499, %520 : vector<1x256xf32>
    %c115 = arith.constant 115 : index
    %522 = memref.load %arg2[%c115] : memref<144xf32, #tpu.memory_space<smem>>
    %523 = vector.broadcast %522 : f32 to vector<1x256xf32>
    %524 = arith.mulf %523, %509 : vector<1x256xf32>
    %525 = arith.addf %503, %524 : vector<1x256xf32>
    %526 = vector.extract_strided_slice %508 {offsets = [1, 0], sizes = [1, 256], strides = [1, 1]} : vector<8x256xf32> to vector<1x256xf32>
    %c116 = arith.constant 116 : index
    %527 = memref.load %arg2[%c116] : memref<144xf32, #tpu.memory_space<smem>>
    %528 = vector.broadcast %527 : f32 to vector<1x256xf32>
    %529 = arith.mulf %528, %526 : vector<1x256xf32>
    %530 = arith.addf %513, %529 : vector<1x256xf32>
    %c117 = arith.constant 117 : index
    %531 = memref.load %arg2[%c117] : memref<144xf32, #tpu.memory_space<smem>>
    %532 = vector.broadcast %531 : f32 to vector<1x256xf32>
    %533 = arith.mulf %532, %526 : vector<1x256xf32>
    %534 = arith.addf %517, %533 : vector<1x256xf32>
    %c118 = arith.constant 118 : index
    %535 = memref.load %arg2[%c118] : memref<144xf32, #tpu.memory_space<smem>>
    %536 = vector.broadcast %535 : f32 to vector<1x256xf32>
    %537 = arith.mulf %536, %526 : vector<1x256xf32>
    %538 = arith.addf %521, %537 : vector<1x256xf32>
    %c119 = arith.constant 119 : index
    %539 = memref.load %arg2[%c119] : memref<144xf32, #tpu.memory_space<smem>>
    %540 = vector.broadcast %539 : f32 to vector<1x256xf32>
    %541 = arith.mulf %540, %526 : vector<1x256xf32>
    %542 = arith.addf %525, %541 : vector<1x256xf32>
    %543 = vector.extract_strided_slice %508 {offsets = [2, 0], sizes = [1, 256], strides = [1, 1]} : vector<8x256xf32> to vector<1x256xf32>
    %c120 = arith.constant 120 : index
    %544 = memref.load %arg2[%c120] : memref<144xf32, #tpu.memory_space<smem>>
    %545 = vector.broadcast %544 : f32 to vector<1x256xf32>
    %546 = arith.mulf %545, %543 : vector<1x256xf32>
    %547 = arith.addf %530, %546 : vector<1x256xf32>
    %c121 = arith.constant 121 : index
    %548 = memref.load %arg2[%c121] : memref<144xf32, #tpu.memory_space<smem>>
    %549 = vector.broadcast %548 : f32 to vector<1x256xf32>
    %550 = arith.mulf %549, %543 : vector<1x256xf32>
    %551 = arith.addf %534, %550 : vector<1x256xf32>
    %c122 = arith.constant 122 : index
    %552 = memref.load %arg2[%c122] : memref<144xf32, #tpu.memory_space<smem>>
    %553 = vector.broadcast %552 : f32 to vector<1x256xf32>
    %554 = arith.mulf %553, %543 : vector<1x256xf32>
    %555 = arith.addf %538, %554 : vector<1x256xf32>
    %c123 = arith.constant 123 : index
    %556 = memref.load %arg2[%c123] : memref<144xf32, #tpu.memory_space<smem>>
    %557 = vector.broadcast %556 : f32 to vector<1x256xf32>
    %558 = arith.mulf %557, %543 : vector<1x256xf32>
    %559 = arith.addf %542, %558 : vector<1x256xf32>
    %560 = vector.extract_strided_slice %508 {offsets = [3, 0], sizes = [1, 256], strides = [1, 1]} : vector<8x256xf32> to vector<1x256xf32>
    %c124 = arith.constant 124 : index
    %561 = memref.load %arg2[%c124] : memref<144xf32, #tpu.memory_space<smem>>
    %562 = vector.broadcast %561 : f32 to vector<1x256xf32>
    %563 = arith.mulf %562, %560 : vector<1x256xf32>
    %564 = arith.addf %547, %563 : vector<1x256xf32>
    %c125 = arith.constant 125 : index
    %565 = memref.load %arg2[%c125] : memref<144xf32, #tpu.memory_space<smem>>
    %566 = vector.broadcast %565 : f32 to vector<1x256xf32>
    %567 = arith.mulf %566, %560 : vector<1x256xf32>
    %568 = arith.addf %551, %567 : vector<1x256xf32>
    %c126 = arith.constant 126 : index
    %569 = memref.load %arg2[%c126] : memref<144xf32, #tpu.memory_space<smem>>
    %570 = vector.broadcast %569 : f32 to vector<1x256xf32>
    %571 = arith.mulf %570, %560 : vector<1x256xf32>
    %572 = arith.addf %555, %571 : vector<1x256xf32>
    %c127 = arith.constant 127 : index
    %573 = memref.load %arg2[%c127] : memref<144xf32, #tpu.memory_space<smem>>
    %574 = vector.broadcast %573 : f32 to vector<1x256xf32>
    %575 = arith.mulf %574, %560 : vector<1x256xf32>
    %576 = arith.addf %559, %575 : vector<1x256xf32>
    %c239_i32 = arith.constant 239 : i32
    %577 = tpu.dynamic_rotate %1 by %c239_i32 dim 1 : vector<8x256xf32>, i32 -> vector<8x256xf32>
    %c8_24 = arith.constant 8 : index
    %c0_25 = arith.constant 0 : index
    %c0_26 = arith.constant 0 : index
    %578 = vector.load %arg1[%c8_24, %c0_25, %c0_26] : memref<9x1x256xf32, #tpu.memory_space<vmem>>, vector<1x1x256xf32>
    %579 = vector.shape_cast %578 : vector<1x1x256xf32> to vector<1x256xf32>
    %580 = vector.broadcast %579 : vector<1x256xf32> to vector<8x256xf32>
    %581 = arith.mulf %577, %580 : vector<8x256xf32>
    %582 = vector.extract_strided_slice %581 {offsets = [0, 0], sizes = [1, 256], strides = [1, 1]} : vector<8x256xf32> to vector<1x256xf32>
    %c128 = arith.constant 128 : index
    %583 = memref.load %arg2[%c128] : memref<144xf32, #tpu.memory_space<smem>>
    %584 = vector.broadcast %583 : f32 to vector<1x256xf32>
    %585 = arith.mulf %584, %582 : vector<1x256xf32>
    %586 = arith.addf %564, %585 : vector<1x256xf32>
    %c129 = arith.constant 129 : index
    %587 = memref.load %arg2[%c129] : memref<144xf32, #tpu.memory_space<smem>>
    %588 = vector.broadcast %587 : f32 to vector<1x256xf32>
    %589 = arith.mulf %588, %582 : vector<1x256xf32>
    %590 = arith.addf %568, %589 : vector<1x256xf32>
    %c130 = arith.constant 130 : index
    %591 = memref.load %arg2[%c130] : memref<144xf32, #tpu.memory_space<smem>>
    %592 = vector.broadcast %591 : f32 to vector<1x256xf32>
    %593 = arith.mulf %592, %582 : vector<1x256xf32>
    %594 = arith.addf %572, %593 : vector<1x256xf32>
    %c131 = arith.constant 131 : index
    %595 = memref.load %arg2[%c131] : memref<144xf32, #tpu.memory_space<smem>>
    %596 = vector.broadcast %595 : f32 to vector<1x256xf32>
    %597 = arith.mulf %596, %582 : vector<1x256xf32>
    %598 = arith.addf %576, %597 : vector<1x256xf32>
    %599 = vector.extract_strided_slice %581 {offsets = [1, 0], sizes = [1, 256], strides = [1, 1]} : vector<8x256xf32> to vector<1x256xf32>
    %c132 = arith.constant 132 : index
    %600 = memref.load %arg2[%c132] : memref<144xf32, #tpu.memory_space<smem>>
    %601 = vector.broadcast %600 : f32 to vector<1x256xf32>
    %602 = arith.mulf %601, %599 : vector<1x256xf32>
    %603 = arith.addf %586, %602 : vector<1x256xf32>
    %c133 = arith.constant 133 : index
    %604 = memref.load %arg2[%c133] : memref<144xf32, #tpu.memory_space<smem>>
    %605 = vector.broadcast %604 : f32 to vector<1x256xf32>
    %606 = arith.mulf %605, %599 : vector<1x256xf32>
    %607 = arith.addf %590, %606 : vector<1x256xf32>
    %c134 = arith.constant 134 : index
    %608 = memref.load %arg2[%c134] : memref<144xf32, #tpu.memory_space<smem>>
    %609 = vector.broadcast %608 : f32 to vector<1x256xf32>
    %610 = arith.mulf %609, %599 : vector<1x256xf32>
    %611 = arith.addf %594, %610 : vector<1x256xf32>
    %c135 = arith.constant 135 : index
    %612 = memref.load %arg2[%c135] : memref<144xf32, #tpu.memory_space<smem>>
    %613 = vector.broadcast %612 : f32 to vector<1x256xf32>
    %614 = arith.mulf %613, %599 : vector<1x256xf32>
    %615 = arith.addf %598, %614 : vector<1x256xf32>
    %616 = vector.extract_strided_slice %581 {offsets = [2, 0], sizes = [1, 256], strides = [1, 1]} : vector<8x256xf32> to vector<1x256xf32>
    %c136 = arith.constant 136 : index
    %617 = memref.load %arg2[%c136] : memref<144xf32, #tpu.memory_space<smem>>
    %618 = vector.broadcast %617 : f32 to vector<1x256xf32>
    %619 = arith.mulf %618, %616 : vector<1x256xf32>
    %620 = arith.addf %603, %619 : vector<1x256xf32>
    %c137 = arith.constant 137 : index
    %621 = memref.load %arg2[%c137] : memref<144xf32, #tpu.memory_space<smem>>
    %622 = vector.broadcast %621 : f32 to vector<1x256xf32>
    %623 = arith.mulf %622, %616 : vector<1x256xf32>
    %624 = arith.addf %607, %623 : vector<1x256xf32>
    %c138 = arith.constant 138 : index
    %625 = memref.load %arg2[%c138] : memref<144xf32, #tpu.memory_space<smem>>
    %626 = vector.broadcast %625 : f32 to vector<1x256xf32>
    %627 = arith.mulf %626, %616 : vector<1x256xf32>
    %628 = arith.addf %611, %627 : vector<1x256xf32>
    %c139 = arith.constant 139 : index
    %629 = memref.load %arg2[%c139] : memref<144xf32, #tpu.memory_space<smem>>
    %630 = vector.broadcast %629 : f32 to vector<1x256xf32>
    %631 = arith.mulf %630, %616 : vector<1x256xf32>
    %632 = arith.addf %615, %631 : vector<1x256xf32>
    %633 = vector.extract_strided_slice %581 {offsets = [3, 0], sizes = [1, 256], strides = [1, 1]} : vector<8x256xf32> to vector<1x256xf32>
    %c140 = arith.constant 140 : index
    %634 = memref.load %arg2[%c140] : memref<144xf32, #tpu.memory_space<smem>>
    %635 = vector.broadcast %634 : f32 to vector<1x256xf32>
    %636 = arith.mulf %635, %633 : vector<1x256xf32>
    %637 = arith.addf %620, %636 : vector<1x256xf32>
    %c141 = arith.constant 141 : index
    %638 = memref.load %arg2[%c141] : memref<144xf32, #tpu.memory_space<smem>>
    %639 = vector.broadcast %638 : f32 to vector<1x256xf32>
    %640 = arith.mulf %639, %633 : vector<1x256xf32>
    %641 = arith.addf %624, %640 : vector<1x256xf32>
    %c142 = arith.constant 142 : index
    %642 = memref.load %arg2[%c142] : memref<144xf32, #tpu.memory_space<smem>>
    %643 = vector.broadcast %642 : f32 to vector<1x256xf32>
    %644 = arith.mulf %643, %633 : vector<1x256xf32>
    %645 = arith.addf %628, %644 : vector<1x256xf32>
    %c143 = arith.constant 143 : index
    %646 = memref.load %arg2[%c143] : memref<144xf32, #tpu.memory_space<smem>>
    %647 = vector.broadcast %646 : f32 to vector<1x256xf32>
    %648 = arith.mulf %647, %633 : vector<1x256xf32>
    %649 = arith.addf %632, %648 : vector<1x256xf32>
    %c1_27 = arith.constant 1 : index
    %c0_28 = arith.constant 0 : index
    %c0_29 = arith.constant 0 : index
    %650 = vector.load %arg0[%c1_27, %c0_28, %c0_29] : memref<2x8x256xf32, #tpu.memory_space<vmem>>, vector<1x8x256xf32>
    %651 = vector.shape_cast %650 : vector<1x8x256xf32> to vector<8x256xf32>
    %c17_i32_30 = arith.constant 17 : i32
    %652 = tpu.dynamic_rotate %651 by %c17_i32_30 dim 1 : vector<8x256xf32>, i32 -> vector<8x256xf32>
    %c0_31 = arith.constant 0 : index
    %c0_32 = arith.constant 0 : index
    %c0_33 = arith.constant 0 : index
    %653 = vector.load %arg1[%c0_31, %c0_32, %c0_33] : memref<9x1x256xf32, #tpu.memory_space<vmem>>, vector<1x1x256xf32>
    %654 = vector.shape_cast %653 : vector<1x1x256xf32> to vector<1x256xf32>
    %655 = vector.broadcast %654 : vector<1x256xf32> to vector<8x256xf32>
    %656 = arith.mulf %652, %655 : vector<8x256xf32>
    %657 = vector.extract_strided_slice %656 {offsets = [0, 0], sizes = [1, 256], strides = [1, 1]} : vector<8x256xf32> to vector<1x256xf32>
    %c0_34 = arith.constant 0 : index
    %658 = memref.load %arg2[%c0_34] : memref<144xf32, #tpu.memory_space<smem>>
    %659 = vector.broadcast %658 : f32 to vector<1x256xf32>
    %660 = arith.mulf %659, %657 : vector<1x256xf32>
    %c1_35 = arith.constant 1 : index
    %661 = memref.load %arg2[%c1_35] : memref<144xf32, #tpu.memory_space<smem>>
    %662 = vector.broadcast %661 : f32 to vector<1x256xf32>
    %663 = arith.mulf %662, %657 : vector<1x256xf32>
    %c2_36 = arith.constant 2 : index
    %664 = memref.load %arg2[%c2_36] : memref<144xf32, #tpu.memory_space<smem>>
    %665 = vector.broadcast %664 : f32 to vector<1x256xf32>
    %666 = arith.mulf %665, %657 : vector<1x256xf32>
    %c3_37 = arith.constant 3 : index
    %667 = memref.load %arg2[%c3_37] : memref<144xf32, #tpu.memory_space<smem>>
    %668 = vector.broadcast %667 : f32 to vector<1x256xf32>
    %669 = arith.mulf %668, %657 : vector<1x256xf32>
    %670 = vector.extract_strided_slice %656 {offsets = [1, 0], sizes = [1, 256], strides = [1, 1]} : vector<8x256xf32> to vector<1x256xf32>
    %c4_38 = arith.constant 4 : index
    %671 = memref.load %arg2[%c4_38] : memref<144xf32, #tpu.memory_space<smem>>
    %672 = vector.broadcast %671 : f32 to vector<1x256xf32>
    %673 = arith.mulf %672, %670 : vector<1x256xf32>
    %674 = arith.addf %660, %673 : vector<1x256xf32>
    %c5_39 = arith.constant 5 : index
    %675 = memref.load %arg2[%c5_39] : memref<144xf32, #tpu.memory_space<smem>>
    %676 = vector.broadcast %675 : f32 to vector<1x256xf32>
    %677 = arith.mulf %676, %670 : vector<1x256xf32>
    %678 = arith.addf %663, %677 : vector<1x256xf32>
    %c6_40 = arith.constant 6 : index
    %679 = memref.load %arg2[%c6_40] : memref<144xf32, #tpu.memory_space<smem>>
    %680 = vector.broadcast %679 : f32 to vector<1x256xf32>
    %681 = arith.mulf %680, %670 : vector<1x256xf32>
    %682 = arith.addf %666, %681 : vector<1x256xf32>
    %c7_41 = arith.constant 7 : index
    %683 = memref.load %arg2[%c7_41] : memref<144xf32, #tpu.memory_space<smem>>
    %684 = vector.broadcast %683 : f32 to vector<1x256xf32>
    %685 = arith.mulf %684, %670 : vector<1x256xf32>
    %686 = arith.addf %669, %685 : vector<1x256xf32>
    %687 = vector.extract_strided_slice %656 {offsets = [2, 0], sizes = [1, 256], strides = [1, 1]} : vector<8x256xf32> to vector<1x256xf32>
    %c8_42 = arith.constant 8 : index
    %688 = memref.load %arg2[%c8_42] : memref<144xf32, #tpu.memory_space<smem>>
    %689 = vector.broadcast %688 : f32 to vector<1x256xf32>
    %690 = arith.mulf %689, %687 : vector<1x256xf32>
    %691 = arith.addf %674, %690 : vector<1x256xf32>
    %c9_43 = arith.constant 9 : index
    %692 = memref.load %arg2[%c9_43] : memref<144xf32, #tpu.memory_space<smem>>
    %693 = vector.broadcast %692 : f32 to vector<1x256xf32>
    %694 = arith.mulf %693, %687 : vector<1x256xf32>
    %695 = arith.addf %678, %694 : vector<1x256xf32>
    %c10_44 = arith.constant 10 : index
    %696 = memref.load %arg2[%c10_44] : memref<144xf32, #tpu.memory_space<smem>>
    %697 = vector.broadcast %696 : f32 to vector<1x256xf32>
    %698 = arith.mulf %697, %687 : vector<1x256xf32>
    %699 = arith.addf %682, %698 : vector<1x256xf32>
    %c11_45 = arith.constant 11 : index
    %700 = memref.load %arg2[%c11_45] : memref<144xf32, #tpu.memory_space<smem>>
    %701 = vector.broadcast %700 : f32 to vector<1x256xf32>
    %702 = arith.mulf %701, %687 : vector<1x256xf32>
    %703 = arith.addf %686, %702 : vector<1x256xf32>
    %704 = vector.extract_strided_slice %656 {offsets = [3, 0], sizes = [1, 256], strides = [1, 1]} : vector<8x256xf32> to vector<1x256xf32>
    %c12_46 = arith.constant 12 : index
    %705 = memref.load %arg2[%c12_46] : memref<144xf32, #tpu.memory_space<smem>>
    %706 = vector.broadcast %705 : f32 to vector<1x256xf32>
    %707 = arith.mulf %706, %704 : vector<1x256xf32>
    %708 = arith.addf %691, %707 : vector<1x256xf32>
    %c13_47 = arith.constant 13 : index
    %709 = memref.load %arg2[%c13_47] : memref<144xf32, #tpu.memory_space<smem>>
    %710 = vector.broadcast %709 : f32 to vector<1x256xf32>
    %711 = arith.mulf %710, %704 : vector<1x256xf32>
    %712 = arith.addf %695, %711 : vector<1x256xf32>
    %c14_48 = arith.constant 14 : index
    %713 = memref.load %arg2[%c14_48] : memref<144xf32, #tpu.memory_space<smem>>
    %714 = vector.broadcast %713 : f32 to vector<1x256xf32>
    %715 = arith.mulf %714, %704 : vector<1x256xf32>
    %716 = arith.addf %699, %715 : vector<1x256xf32>
    %c15_49 = arith.constant 15 : index
    %717 = memref.load %arg2[%c15_49] : memref<144xf32, #tpu.memory_space<smem>>
    %718 = vector.broadcast %717 : f32 to vector<1x256xf32>
    %719 = arith.mulf %718, %704 : vector<1x256xf32>
    %720 = arith.addf %703, %719 : vector<1x256xf32>
    %c16_i32_50 = arith.constant 16 : i32
    %721 = tpu.dynamic_rotate %651 by %c16_i32_50 dim 1 : vector<8x256xf32>, i32 -> vector<8x256xf32>
    %c1_51 = arith.constant 1 : index
    %c0_52 = arith.constant 0 : index
    %c0_53 = arith.constant 0 : index
    %722 = vector.load %arg1[%c1_51, %c0_52, %c0_53] : memref<9x1x256xf32, #tpu.memory_space<vmem>>, vector<1x1x256xf32>
    %723 = vector.shape_cast %722 : vector<1x1x256xf32> to vector<1x256xf32>
    %724 = vector.broadcast %723 : vector<1x256xf32> to vector<8x256xf32>
    %725 = arith.mulf %721, %724 : vector<8x256xf32>
    %726 = vector.extract_strided_slice %725 {offsets = [0, 0], sizes = [1, 256], strides = [1, 1]} : vector<8x256xf32> to vector<1x256xf32>
    %c16_54 = arith.constant 16 : index
    %727 = memref.load %arg2[%c16_54] : memref<144xf32, #tpu.memory_space<smem>>
    %728 = vector.broadcast %727 : f32 to vector<1x256xf32>
    %729 = arith.mulf %728, %726 : vector<1x256xf32>
    %730 = arith.addf %708, %729 : vector<1x256xf32>
    %c17_55 = arith.constant 17 : index
    %731 = memref.load %arg2[%c17_55] : memref<144xf32, #tpu.memory_space<smem>>
    %732 = vector.broadcast %731 : f32 to vector<1x256xf32>
    %733 = arith.mulf %732, %726 : vector<1x256xf32>
    %734 = arith.addf %712, %733 : vector<1x256xf32>
    %c18_56 = arith.constant 18 : index
    %735 = memref.load %arg2[%c18_56] : memref<144xf32, #tpu.memory_space<smem>>
    %736 = vector.broadcast %735 : f32 to vector<1x256xf32>
    %737 = arith.mulf %736, %726 : vector<1x256xf32>
    %738 = arith.addf %716, %737 : vector<1x256xf32>
    %c19_57 = arith.constant 19 : index
    %739 = memref.load %arg2[%c19_57] : memref<144xf32, #tpu.memory_space<smem>>
    %740 = vector.broadcast %739 : f32 to vector<1x256xf32>
    %741 = arith.mulf %740, %726 : vector<1x256xf32>
    %742 = arith.addf %720, %741 : vector<1x256xf32>
    %743 = vector.extract_strided_slice %725 {offsets = [1, 0], sizes = [1, 256], strides = [1, 1]} : vector<8x256xf32> to vector<1x256xf32>
    %c20_58 = arith.constant 20 : index
    %744 = memref.load %arg2[%c20_58] : memref<144xf32, #tpu.memory_space<smem>>
    %745 = vector.broadcast %744 : f32 to vector<1x256xf32>
    %746 = arith.mulf %745, %743 : vector<1x256xf32>
    %747 = arith.addf %730, %746 : vector<1x256xf32>
    %c21_59 = arith.constant 21 : index
    %748 = memref.load %arg2[%c21_59] : memref<144xf32, #tpu.memory_space<smem>>
    %749 = vector.broadcast %748 : f32 to vector<1x256xf32>
    %750 = arith.mulf %749, %743 : vector<1x256xf32>
    %751 = arith.addf %734, %750 : vector<1x256xf32>
    %c22_60 = arith.constant 22 : index
    %752 = memref.load %arg2[%c22_60] : memref<144xf32, #tpu.memory_space<smem>>
    %753 = vector.broadcast %752 : f32 to vector<1x256xf32>
    %754 = arith.mulf %753, %743 : vector<1x256xf32>
    %755 = arith.addf %738, %754 : vector<1x256xf32>
    %c23_61 = arith.constant 23 : index
    %756 = memref.load %arg2[%c23_61] : memref<144xf32, #tpu.memory_space<smem>>
    %757 = vector.broadcast %756 : f32 to vector<1x256xf32>
    %758 = arith.mulf %757, %743 : vector<1x256xf32>
    %759 = arith.addf %742, %758 : vector<1x256xf32>
    %760 = vector.extract_strided_slice %725 {offsets = [2, 0], sizes = [1, 256], strides = [1, 1]} : vector<8x256xf32> to vector<1x256xf32>
    %c24_62 = arith.constant 24 : index
    %761 = memref.load %arg2[%c24_62] : memref<144xf32, #tpu.memory_space<smem>>
    %762 = vector.broadcast %761 : f32 to vector<1x256xf32>
    %763 = arith.mulf %762, %760 : vector<1x256xf32>
    %764 = arith.addf %747, %763 : vector<1x256xf32>
    %c25_63 = arith.constant 25 : index
    %765 = memref.load %arg2[%c25_63] : memref<144xf32, #tpu.memory_space<smem>>
    %766 = vector.broadcast %765 : f32 to vector<1x256xf32>
    %767 = arith.mulf %766, %760 : vector<1x256xf32>
    %768 = arith.addf %751, %767 : vector<1x256xf32>
    %c26_64 = arith.constant 26 : index
    %769 = memref.load %arg2[%c26_64] : memref<144xf32, #tpu.memory_space<smem>>
    %770 = vector.broadcast %769 : f32 to vector<1x256xf32>
    %771 = arith.mulf %770, %760 : vector<1x256xf32>
    %772 = arith.addf %755, %771 : vector<1x256xf32>
    %c27_65 = arith.constant 27 : index
    %773 = memref.load %arg2[%c27_65] : memref<144xf32, #tpu.memory_space<smem>>
    %774 = vector.broadcast %773 : f32 to vector<1x256xf32>
    %775 = arith.mulf %774, %760 : vector<1x256xf32>
    %776 = arith.addf %759, %775 : vector<1x256xf32>
    %777 = vector.extract_strided_slice %725 {offsets = [3, 0], sizes = [1, 256], strides = [1, 1]} : vector<8x256xf32> to vector<1x256xf32>
    %c28_66 = arith.constant 28 : index
    %778 = memref.load %arg2[%c28_66] : memref<144xf32, #tpu.memory_space<smem>>
    %779 = vector.broadcast %778 : f32 to vector<1x256xf32>
    %780 = arith.mulf %779, %777 : vector<1x256xf32>
    %781 = arith.addf %764, %780 : vector<1x256xf32>
    %c29_67 = arith.constant 29 : index
    %782 = memref.load %arg2[%c29_67] : memref<144xf32, #tpu.memory_space<smem>>
    %783 = vector.broadcast %782 : f32 to vector<1x256xf32>
    %784 = arith.mulf %783, %777 : vector<1x256xf32>
    %785 = arith.addf %768, %784 : vector<1x256xf32>
    %c30_68 = arith.constant 30 : index
    %786 = memref.load %arg2[%c30_68] : memref<144xf32, #tpu.memory_space<smem>>
    %787 = vector.broadcast %786 : f32 to vector<1x256xf32>
    %788 = arith.mulf %787, %777 : vector<1x256xf32>
    %789 = arith.addf %772, %788 : vector<1x256xf32>
    %c31_69 = arith.constant 31 : index
    %790 = memref.load %arg2[%c31_69] : memref<144xf32, #tpu.memory_space<smem>>
    %791 = vector.broadcast %790 : f32 to vector<1x256xf32>
    %792 = arith.mulf %791, %777 : vector<1x256xf32>
    %793 = arith.addf %776, %792 : vector<1x256xf32>
    %c15_i32_70 = arith.constant 15 : i32
    %794 = tpu.dynamic_rotate %651 by %c15_i32_70 dim 1 : vector<8x256xf32>, i32 -> vector<8x256xf32>
    %c2_71 = arith.constant 2 : index
    %c0_72 = arith.constant 0 : index
    %c0_73 = arith.constant 0 : index
    %795 = vector.load %arg1[%c2_71, %c0_72, %c0_73] : memref<9x1x256xf32, #tpu.memory_space<vmem>>, vector<1x1x256xf32>
    %796 = vector.shape_cast %795 : vector<1x1x256xf32> to vector<1x256xf32>
    %797 = vector.broadcast %796 : vector<1x256xf32> to vector<8x256xf32>
    %798 = arith.mulf %794, %797 : vector<8x256xf32>
    %799 = vector.extract_strided_slice %798 {offsets = [0, 0], sizes = [1, 256], strides = [1, 1]} : vector<8x256xf32> to vector<1x256xf32>
    %c32_74 = arith.constant 32 : index
    %800 = memref.load %arg2[%c32_74] : memref<144xf32, #tpu.memory_space<smem>>
    %801 = vector.broadcast %800 : f32 to vector<1x256xf32>
    %802 = arith.mulf %801, %799 : vector<1x256xf32>
    %803 = arith.addf %781, %802 : vector<1x256xf32>
    %c33_75 = arith.constant 33 : index
    %804 = memref.load %arg2[%c33_75] : memref<144xf32, #tpu.memory_space<smem>>
    %805 = vector.broadcast %804 : f32 to vector<1x256xf32>
    %806 = arith.mulf %805, %799 : vector<1x256xf32>
    %807 = arith.addf %785, %806 : vector<1x256xf32>
    %c34_76 = arith.constant 34 : index
    %808 = memref.load %arg2[%c34_76] : memref<144xf32, #tpu.memory_space<smem>>
    %809 = vector.broadcast %808 : f32 to vector<1x256xf32>
    %810 = arith.mulf %809, %799 : vector<1x256xf32>
    %811 = arith.addf %789, %810 : vector<1x256xf32>
    %c35_77 = arith.constant 35 : index
    %812 = memref.load %arg2[%c35_77] : memref<144xf32, #tpu.memory_space<smem>>
    %813 = vector.broadcast %812 : f32 to vector<1x256xf32>
    %814 = arith.mulf %813, %799 : vector<1x256xf32>
    %815 = arith.addf %793, %814 : vector<1x256xf32>
    %816 = vector.extract_strided_slice %798 {offsets = [1, 0], sizes = [1, 256], strides = [1, 1]} : vector<8x256xf32> to vector<1x256xf32>
    %c36_78 = arith.constant 36 : index
    %817 = memref.load %arg2[%c36_78] : memref<144xf32, #tpu.memory_space<smem>>
    %818 = vector.broadcast %817 : f32 to vector<1x256xf32>
    %819 = arith.mulf %818, %816 : vector<1x256xf32>
    %820 = arith.addf %803, %819 : vector<1x256xf32>
    %c37_79 = arith.constant 37 : index
    %821 = memref.load %arg2[%c37_79] : memref<144xf32, #tpu.memory_space<smem>>
    %822 = vector.broadcast %821 : f32 to vector<1x256xf32>
    %823 = arith.mulf %822, %816 : vector<1x256xf32>
    %824 = arith.addf %807, %823 : vector<1x256xf32>
    %c38_80 = arith.constant 38 : index
    %825 = memref.load %arg2[%c38_80] : memref<144xf32, #tpu.memory_space<smem>>
    %826 = vector.broadcast %825 : f32 to vector<1x256xf32>
    %827 = arith.mulf %826, %816 : vector<1x256xf32>
    %828 = arith.addf %811, %827 : vector<1x256xf32>
    %c39_81 = arith.constant 39 : index
    %829 = memref.load %arg2[%c39_81] : memref<144xf32, #tpu.memory_space<smem>>
    %830 = vector.broadcast %829 : f32 to vector<1x256xf32>
    %831 = arith.mulf %830, %816 : vector<1x256xf32>
    %832 = arith.addf %815, %831 : vector<1x256xf32>
    %833 = vector.extract_strided_slice %798 {offsets = [2, 0], sizes = [1, 256], strides = [1, 1]} : vector<8x256xf32> to vector<1x256xf32>
    %c40_82 = arith.constant 40 : index
    %834 = memref.load %arg2[%c40_82] : memref<144xf32, #tpu.memory_space<smem>>
    %835 = vector.broadcast %834 : f32 to vector<1x256xf32>
    %836 = arith.mulf %835, %833 : vector<1x256xf32>
    %837 = arith.addf %820, %836 : vector<1x256xf32>
    %c41_83 = arith.constant 41 : index
    %838 = memref.load %arg2[%c41_83] : memref<144xf32, #tpu.memory_space<smem>>
    %839 = vector.broadcast %838 : f32 to vector<1x256xf32>
    %840 = arith.mulf %839, %833 : vector<1x256xf32>
    %841 = arith.addf %824, %840 : vector<1x256xf32>
    %c42_84 = arith.constant 42 : index
    %842 = memref.load %arg2[%c42_84] : memref<144xf32, #tpu.memory_space<smem>>
    %843 = vector.broadcast %842 : f32 to vector<1x256xf32>
    %844 = arith.mulf %843, %833 : vector<1x256xf32>
    %845 = arith.addf %828, %844 : vector<1x256xf32>
    %c43_85 = arith.constant 43 : index
    %846 = memref.load %arg2[%c43_85] : memref<144xf32, #tpu.memory_space<smem>>
    %847 = vector.broadcast %846 : f32 to vector<1x256xf32>
    %848 = arith.mulf %847, %833 : vector<1x256xf32>
    %849 = arith.addf %832, %848 : vector<1x256xf32>
    %850 = vector.extract_strided_slice %798 {offsets = [3, 0], sizes = [1, 256], strides = [1, 1]} : vector<8x256xf32> to vector<1x256xf32>
    %c44_86 = arith.constant 44 : index
    %851 = memref.load %arg2[%c44_86] : memref<144xf32, #tpu.memory_space<smem>>
    %852 = vector.broadcast %851 : f32 to vector<1x256xf32>
    %853 = arith.mulf %852, %850 : vector<1x256xf32>
    %854 = arith.addf %837, %853 : vector<1x256xf32>
    %c45_87 = arith.constant 45 : index
    %855 = memref.load %arg2[%c45_87] : memref<144xf32, #tpu.memory_space<smem>>
    %856 = vector.broadcast %855 : f32 to vector<1x256xf32>
    %857 = arith.mulf %856, %850 : vector<1x256xf32>
    %858 = arith.addf %841, %857 : vector<1x256xf32>
    %c46_88 = arith.constant 46 : index
    %859 = memref.load %arg2[%c46_88] : memref<144xf32, #tpu.memory_space<smem>>
    %860 = vector.broadcast %859 : f32 to vector<1x256xf32>
    %861 = arith.mulf %860, %850 : vector<1x256xf32>
    %862 = arith.addf %845, %861 : vector<1x256xf32>
    %c47_89 = arith.constant 47 : index
    %863 = memref.load %arg2[%c47_89] : memref<144xf32, #tpu.memory_space<smem>>
    %864 = vector.broadcast %863 : f32 to vector<1x256xf32>
    %865 = arith.mulf %864, %850 : vector<1x256xf32>
    %866 = arith.addf %849, %865 : vector<1x256xf32>
    %c1_i32_90 = arith.constant 1 : i32
    %867 = tpu.dynamic_rotate %651 by %c1_i32_90 dim 1 : vector<8x256xf32>, i32 -> vector<8x256xf32>
    %c3_91 = arith.constant 3 : index
    %c0_92 = arith.constant 0 : index
    %c0_93 = arith.constant 0 : index
    %868 = vector.load %arg1[%c3_91, %c0_92, %c0_93] : memref<9x1x256xf32, #tpu.memory_space<vmem>>, vector<1x1x256xf32>
    %869 = vector.shape_cast %868 : vector<1x1x256xf32> to vector<1x256xf32>
    %870 = vector.broadcast %869 : vector<1x256xf32> to vector<8x256xf32>
    %871 = arith.mulf %867, %870 : vector<8x256xf32>
    %872 = vector.extract_strided_slice %871 {offsets = [0, 0], sizes = [1, 256], strides = [1, 1]} : vector<8x256xf32> to vector<1x256xf32>
    %c48_94 = arith.constant 48 : index
    %873 = memref.load %arg2[%c48_94] : memref<144xf32, #tpu.memory_space<smem>>
    %874 = vector.broadcast %873 : f32 to vector<1x256xf32>
    %875 = arith.mulf %874, %872 : vector<1x256xf32>
    %876 = arith.addf %854, %875 : vector<1x256xf32>
    %c49_95 = arith.constant 49 : index
    %877 = memref.load %arg2[%c49_95] : memref<144xf32, #tpu.memory_space<smem>>
    %878 = vector.broadcast %877 : f32 to vector<1x256xf32>
    %879 = arith.mulf %878, %872 : vector<1x256xf32>
    %880 = arith.addf %858, %879 : vector<1x256xf32>
    %c50_96 = arith.constant 50 : index
    %881 = memref.load %arg2[%c50_96] : memref<144xf32, #tpu.memory_space<smem>>
    %882 = vector.broadcast %881 : f32 to vector<1x256xf32>
    %883 = arith.mulf %882, %872 : vector<1x256xf32>
    %884 = arith.addf %862, %883 : vector<1x256xf32>
    %c51_97 = arith.constant 51 : index
    %885 = memref.load %arg2[%c51_97] : memref<144xf32, #tpu.memory_space<smem>>
    %886 = vector.broadcast %885 : f32 to vector<1x256xf32>
    %887 = arith.mulf %886, %872 : vector<1x256xf32>
    %888 = arith.addf %866, %887 : vector<1x256xf32>
    %889 = vector.extract_strided_slice %871 {offsets = [1, 0], sizes = [1, 256], strides = [1, 1]} : vector<8x256xf32> to vector<1x256xf32>
    %c52_98 = arith.constant 52 : index
    %890 = memref.load %arg2[%c52_98] : memref<144xf32, #tpu.memory_space<smem>>
    %891 = vector.broadcast %890 : f32 to vector<1x256xf32>
    %892 = arith.mulf %891, %889 : vector<1x256xf32>
    %893 = arith.addf %876, %892 : vector<1x256xf32>
    %c53_99 = arith.constant 53 : index
    %894 = memref.load %arg2[%c53_99] : memref<144xf32, #tpu.memory_space<smem>>
    %895 = vector.broadcast %894 : f32 to vector<1x256xf32>
    %896 = arith.mulf %895, %889 : vector<1x256xf32>
    %897 = arith.addf %880, %896 : vector<1x256xf32>
    %c54_100 = arith.constant 54 : index
    %898 = memref.load %arg2[%c54_100] : memref<144xf32, #tpu.memory_space<smem>>
    %899 = vector.broadcast %898 : f32 to vector<1x256xf32>
    %900 = arith.mulf %899, %889 : vector<1x256xf32>
    %901 = arith.addf %884, %900 : vector<1x256xf32>
    %c55_101 = arith.constant 55 : index
    %902 = memref.load %arg2[%c55_101] : memref<144xf32, #tpu.memory_space<smem>>
    %903 = vector.broadcast %902 : f32 to vector<1x256xf32>
    %904 = arith.mulf %903, %889 : vector<1x256xf32>
    %905 = arith.addf %888, %904 : vector<1x256xf32>
    %906 = vector.extract_strided_slice %871 {offsets = [2, 0], sizes = [1, 256], strides = [1, 1]} : vector<8x256xf32> to vector<1x256xf32>
    %c56_102 = arith.constant 56 : index
    %907 = memref.load %arg2[%c56_102] : memref<144xf32, #tpu.memory_space<smem>>
    %908 = vector.broadcast %907 : f32 to vector<1x256xf32>
    %909 = arith.mulf %908, %906 : vector<1x256xf32>
    %910 = arith.addf %893, %909 : vector<1x256xf32>
    %c57_103 = arith.constant 57 : index
    %911 = memref.load %arg2[%c57_103] : memref<144xf32, #tpu.memory_space<smem>>
    %912 = vector.broadcast %911 : f32 to vector<1x256xf32>
    %913 = arith.mulf %912, %906 : vector<1x256xf32>
    %914 = arith.addf %897, %913 : vector<1x256xf32>
    %c58_104 = arith.constant 58 : index
    %915 = memref.load %arg2[%c58_104] : memref<144xf32, #tpu.memory_space<smem>>
    %916 = vector.broadcast %915 : f32 to vector<1x256xf32>
    %917 = arith.mulf %916, %906 : vector<1x256xf32>
    %918 = arith.addf %901, %917 : vector<1x256xf32>
    %c59_105 = arith.constant 59 : index
    %919 = memref.load %arg2[%c59_105] : memref<144xf32, #tpu.memory_space<smem>>
    %920 = vector.broadcast %919 : f32 to vector<1x256xf32>
    %921 = arith.mulf %920, %906 : vector<1x256xf32>
    %922 = arith.addf %905, %921 : vector<1x256xf32>
    %923 = vector.extract_strided_slice %871 {offsets = [3, 0], sizes = [1, 256], strides = [1, 1]} : vector<8x256xf32> to vector<1x256xf32>
    %c60_106 = arith.constant 60 : index
    %924 = memref.load %arg2[%c60_106] : memref<144xf32, #tpu.memory_space<smem>>
    %925 = vector.broadcast %924 : f32 to vector<1x256xf32>
    %926 = arith.mulf %925, %923 : vector<1x256xf32>
    %927 = arith.addf %910, %926 : vector<1x256xf32>
    %c61_107 = arith.constant 61 : index
    %928 = memref.load %arg2[%c61_107] : memref<144xf32, #tpu.memory_space<smem>>
    %929 = vector.broadcast %928 : f32 to vector<1x256xf32>
    %930 = arith.mulf %929, %923 : vector<1x256xf32>
    %931 = arith.addf %914, %930 : vector<1x256xf32>
    %c62_108 = arith.constant 62 : index
    %932 = memref.load %arg2[%c62_108] : memref<144xf32, #tpu.memory_space<smem>>
    %933 = vector.broadcast %932 : f32 to vector<1x256xf32>
    %934 = arith.mulf %933, %923 : vector<1x256xf32>
    %935 = arith.addf %918, %934 : vector<1x256xf32>
    %c63_109 = arith.constant 63 : index
    %936 = memref.load %arg2[%c63_109] : memref<144xf32, #tpu.memory_space<smem>>
    %937 = vector.broadcast %936 : f32 to vector<1x256xf32>
    %938 = arith.mulf %937, %923 : vector<1x256xf32>
    %939 = arith.addf %922, %938 : vector<1x256xf32>
    %940 = vector.extract_strided_slice %651 {offsets = [0, 0], sizes = [1, 256], strides = [1, 1]} : vector<8x256xf32> to vector<1x256xf32>
    %c64_110 = arith.constant 64 : index
    %941 = memref.load %arg2[%c64_110] : memref<144xf32, #tpu.memory_space<smem>>
    %942 = vector.broadcast %941 : f32 to vector<1x256xf32>
    %943 = arith.mulf %942, %940 : vector<1x256xf32>
    %944 = arith.addf %927, %943 : vector<1x256xf32>
    %c65_111 = arith.constant 65 : index
    %945 = memref.load %arg2[%c65_111] : memref<144xf32, #tpu.memory_space<smem>>
    %946 = vector.broadcast %945 : f32 to vector<1x256xf32>
    %947 = arith.mulf %946, %940 : vector<1x256xf32>
    %948 = arith.addf %931, %947 : vector<1x256xf32>
    %c66_112 = arith.constant 66 : index
    %949 = memref.load %arg2[%c66_112] : memref<144xf32, #tpu.memory_space<smem>>
    %950 = vector.broadcast %949 : f32 to vector<1x256xf32>
    %951 = arith.mulf %950, %940 : vector<1x256xf32>
    %952 = arith.addf %935, %951 : vector<1x256xf32>
    %c67_113 = arith.constant 67 : index
    %953 = memref.load %arg2[%c67_113] : memref<144xf32, #tpu.memory_space<smem>>
    %954 = vector.broadcast %953 : f32 to vector<1x256xf32>
    %955 = arith.mulf %954, %940 : vector<1x256xf32>
    %956 = arith.addf %939, %955 : vector<1x256xf32>
    %957 = vector.extract_strided_slice %651 {offsets = [1, 0], sizes = [1, 256], strides = [1, 1]} : vector<8x256xf32> to vector<1x256xf32>
    %c68_114 = arith.constant 68 : index
    %958 = memref.load %arg2[%c68_114] : memref<144xf32, #tpu.memory_space<smem>>
    %959 = vector.broadcast %958 : f32 to vector<1x256xf32>
    %960 = arith.mulf %959, %957 : vector<1x256xf32>
    %961 = arith.addf %944, %960 : vector<1x256xf32>
    %c69_115 = arith.constant 69 : index
    %962 = memref.load %arg2[%c69_115] : memref<144xf32, #tpu.memory_space<smem>>
    %963 = vector.broadcast %962 : f32 to vector<1x256xf32>
    %964 = arith.mulf %963, %957 : vector<1x256xf32>
    %965 = arith.addf %948, %964 : vector<1x256xf32>
    %c70_116 = arith.constant 70 : index
    %966 = memref.load %arg2[%c70_116] : memref<144xf32, #tpu.memory_space<smem>>
    %967 = vector.broadcast %966 : f32 to vector<1x256xf32>
    %968 = arith.mulf %967, %957 : vector<1x256xf32>
    %969 = arith.addf %952, %968 : vector<1x256xf32>
    %c71_117 = arith.constant 71 : index
    %970 = memref.load %arg2[%c71_117] : memref<144xf32, #tpu.memory_space<smem>>
    %971 = vector.broadcast %970 : f32 to vector<1x256xf32>
    %972 = arith.mulf %971, %957 : vector<1x256xf32>
    %973 = arith.addf %956, %972 : vector<1x256xf32>
    %974 = vector.extract_strided_slice %651 {offsets = [2, 0], sizes = [1, 256], strides = [1, 1]} : vector<8x256xf32> to vector<1x256xf32>
    %c72_118 = arith.constant 72 : index
    %975 = memref.load %arg2[%c72_118] : memref<144xf32, #tpu.memory_space<smem>>
    %976 = vector.broadcast %975 : f32 to vector<1x256xf32>
    %977 = arith.mulf %976, %974 : vector<1x256xf32>
    %978 = arith.addf %961, %977 : vector<1x256xf32>
    %c73_119 = arith.constant 73 : index
    %979 = memref.load %arg2[%c73_119] : memref<144xf32, #tpu.memory_space<smem>>
    %980 = vector.broadcast %979 : f32 to vector<1x256xf32>
    %981 = arith.mulf %980, %974 : vector<1x256xf32>
    %982 = arith.addf %965, %981 : vector<1x256xf32>
    %c74_120 = arith.constant 74 : index
    %983 = memref.load %arg2[%c74_120] : memref<144xf32, #tpu.memory_space<smem>>
    %984 = vector.broadcast %983 : f32 to vector<1x256xf32>
    %985 = arith.mulf %984, %974 : vector<1x256xf32>
    %986 = arith.addf %969, %985 : vector<1x256xf32>
    %c75_121 = arith.constant 75 : index
    %987 = memref.load %arg2[%c75_121] : memref<144xf32, #tpu.memory_space<smem>>
    %988 = vector.broadcast %987 : f32 to vector<1x256xf32>
    %989 = arith.mulf %988, %974 : vector<1x256xf32>
    %990 = arith.addf %973, %989 : vector<1x256xf32>
    %991 = vector.extract_strided_slice %651 {offsets = [3, 0], sizes = [1, 256], strides = [1, 1]} : vector<8x256xf32> to vector<1x256xf32>
    %c76_122 = arith.constant 76 : index
    %992 = memref.load %arg2[%c76_122] : memref<144xf32, #tpu.memory_space<smem>>
    %993 = vector.broadcast %992 : f32 to vector<1x256xf32>
    %994 = arith.mulf %993, %991 : vector<1x256xf32>
    %995 = arith.addf %978, %994 : vector<1x256xf32>
    %c77_123 = arith.constant 77 : index
    %996 = memref.load %arg2[%c77_123] : memref<144xf32, #tpu.memory_space<smem>>
    %997 = vector.broadcast %996 : f32 to vector<1x256xf32>
    %998 = arith.mulf %997, %991 : vector<1x256xf32>
    %999 = arith.addf %982, %998 : vector<1x256xf32>
    %c78_124 = arith.constant 78 : index
    %1000 = memref.load %arg2[%c78_124] : memref<144xf32, #tpu.memory_space<smem>>
    %1001 = vector.broadcast %1000 : f32 to vector<1x256xf32>
    %1002 = arith.mulf %1001, %991 : vector<1x256xf32>
    %1003 = arith.addf %986, %1002 : vector<1x256xf32>
    %c79_125 = arith.constant 79 : index
    %1004 = memref.load %arg2[%c79_125] : memref<144xf32, #tpu.memory_space<smem>>
    %1005 = vector.broadcast %1004 : f32 to vector<1x256xf32>
    %1006 = arith.mulf %1005, %991 : vector<1x256xf32>
    %1007 = arith.addf %990, %1006 : vector<1x256xf32>
    %c255_i32_126 = arith.constant 255 : i32
    %1008 = tpu.dynamic_rotate %651 by %c255_i32_126 dim 1 : vector<8x256xf32>, i32 -> vector<8x256xf32>
    %c5_127 = arith.constant 5 : index
    %c0_128 = arith.constant 0 : index
    %c0_129 = arith.constant 0 : index
    %1009 = vector.load %arg1[%c5_127, %c0_128, %c0_129] : memref<9x1x256xf32, #tpu.memory_space<vmem>>, vector<1x1x256xf32>
    %1010 = vector.shape_cast %1009 : vector<1x1x256xf32> to vector<1x256xf32>
    %1011 = vector.broadcast %1010 : vector<1x256xf32> to vector<8x256xf32>
    %1012 = arith.mulf %1008, %1011 : vector<8x256xf32>
    %1013 = vector.extract_strided_slice %1012 {offsets = [0, 0], sizes = [1, 256], strides = [1, 1]} : vector<8x256xf32> to vector<1x256xf32>
    %c80_130 = arith.constant 80 : index
    %1014 = memref.load %arg2[%c80_130] : memref<144xf32, #tpu.memory_space<smem>>
    %1015 = vector.broadcast %1014 : f32 to vector<1x256xf32>
    %1016 = arith.mulf %1015, %1013 : vector<1x256xf32>
    %1017 = arith.addf %995, %1016 : vector<1x256xf32>
    %c81_131 = arith.constant 81 : index
    %1018 = memref.load %arg2[%c81_131] : memref<144xf32, #tpu.memory_space<smem>>
    %1019 = vector.broadcast %1018 : f32 to vector<1x256xf32>
    %1020 = arith.mulf %1019, %1013 : vector<1x256xf32>
    %1021 = arith.addf %999, %1020 : vector<1x256xf32>
    %c82_132 = arith.constant 82 : index
    %1022 = memref.load %arg2[%c82_132] : memref<144xf32, #tpu.memory_space<smem>>
    %1023 = vector.broadcast %1022 : f32 to vector<1x256xf32>
    %1024 = arith.mulf %1023, %1013 : vector<1x256xf32>
    %1025 = arith.addf %1003, %1024 : vector<1x256xf32>
    %c83_133 = arith.constant 83 : index
    %1026 = memref.load %arg2[%c83_133] : memref<144xf32, #tpu.memory_space<smem>>
    %1027 = vector.broadcast %1026 : f32 to vector<1x256xf32>
    %1028 = arith.mulf %1027, %1013 : vector<1x256xf32>
    %1029 = arith.addf %1007, %1028 : vector<1x256xf32>
    %1030 = vector.extract_strided_slice %1012 {offsets = [1, 0], sizes = [1, 256], strides = [1, 1]} : vector<8x256xf32> to vector<1x256xf32>
    %c84_134 = arith.constant 84 : index
    %1031 = memref.load %arg2[%c84_134] : memref<144xf32, #tpu.memory_space<smem>>
    %1032 = vector.broadcast %1031 : f32 to vector<1x256xf32>
    %1033 = arith.mulf %1032, %1030 : vector<1x256xf32>
    %1034 = arith.addf %1017, %1033 : vector<1x256xf32>
    %c85_135 = arith.constant 85 : index
    %1035 = memref.load %arg2[%c85_135] : memref<144xf32, #tpu.memory_space<smem>>
    %1036 = vector.broadcast %1035 : f32 to vector<1x256xf32>
    %1037 = arith.mulf %1036, %1030 : vector<1x256xf32>
    %1038 = arith.addf %1021, %1037 : vector<1x256xf32>
    %c86_136 = arith.constant 86 : index
    %1039 = memref.load %arg2[%c86_136] : memref<144xf32, #tpu.memory_space<smem>>
    %1040 = vector.broadcast %1039 : f32 to vector<1x256xf32>
    %1041 = arith.mulf %1040, %1030 : vector<1x256xf32>
    %1042 = arith.addf %1025, %1041 : vector<1x256xf32>
    %c87_137 = arith.constant 87 : index
    %1043 = memref.load %arg2[%c87_137] : memref<144xf32, #tpu.memory_space<smem>>
    %1044 = vector.broadcast %1043 : f32 to vector<1x256xf32>
    %1045 = arith.mulf %1044, %1030 : vector<1x256xf32>
    %1046 = arith.addf %1029, %1045 : vector<1x256xf32>
    %1047 = vector.extract_strided_slice %1012 {offsets = [2, 0], sizes = [1, 256], strides = [1, 1]} : vector<8x256xf32> to vector<1x256xf32>
    %c88_138 = arith.constant 88 : index
    %1048 = memref.load %arg2[%c88_138] : memref<144xf32, #tpu.memory_space<smem>>
    %1049 = vector.broadcast %1048 : f32 to vector<1x256xf32>
    %1050 = arith.mulf %1049, %1047 : vector<1x256xf32>
    %1051 = arith.addf %1034, %1050 : vector<1x256xf32>
    %c89_139 = arith.constant 89 : index
    %1052 = memref.load %arg2[%c89_139] : memref<144xf32, #tpu.memory_space<smem>>
    %1053 = vector.broadcast %1052 : f32 to vector<1x256xf32>
    %1054 = arith.mulf %1053, %1047 : vector<1x256xf32>
    %1055 = arith.addf %1038, %1054 : vector<1x256xf32>
    %c90_140 = arith.constant 90 : index
    %1056 = memref.load %arg2[%c90_140] : memref<144xf32, #tpu.memory_space<smem>>
    %1057 = vector.broadcast %1056 : f32 to vector<1x256xf32>
    %1058 = arith.mulf %1057, %1047 : vector<1x256xf32>
    %1059 = arith.addf %1042, %1058 : vector<1x256xf32>
    %c91_141 = arith.constant 91 : index
    %1060 = memref.load %arg2[%c91_141] : memref<144xf32, #tpu.memory_space<smem>>
    %1061 = vector.broadcast %1060 : f32 to vector<1x256xf32>
    %1062 = arith.mulf %1061, %1047 : vector<1x256xf32>
    %1063 = arith.addf %1046, %1062 : vector<1x256xf32>
    %1064 = vector.extract_strided_slice %1012 {offsets = [3, 0], sizes = [1, 256], strides = [1, 1]} : vector<8x256xf32> to vector<1x256xf32>
    %c92_142 = arith.constant 92 : index
    %1065 = memref.load %arg2[%c92_142] : memref<144xf32, #tpu.memory_space<smem>>
    %1066 = vector.broadcast %1065 : f32 to vector<1x256xf32>
    %1067 = arith.mulf %1066, %1064 : vector<1x256xf32>
    %1068 = arith.addf %1051, %1067 : vector<1x256xf32>
    %c93_143 = arith.constant 93 : index
    %1069 = memref.load %arg2[%c93_143] : memref<144xf32, #tpu.memory_space<smem>>
    %1070 = vector.broadcast %1069 : f32 to vector<1x256xf32>
    %1071 = arith.mulf %1070, %1064 : vector<1x256xf32>
    %1072 = arith.addf %1055, %1071 : vector<1x256xf32>
    %c94_144 = arith.constant 94 : index
    %1073 = memref.load %arg2[%c94_144] : memref<144xf32, #tpu.memory_space<smem>>
    %1074 = vector.broadcast %1073 : f32 to vector<1x256xf32>
    %1075 = arith.mulf %1074, %1064 : vector<1x256xf32>
    %1076 = arith.addf %1059, %1075 : vector<1x256xf32>
    %c95_145 = arith.constant 95 : index
    %1077 = memref.load %arg2[%c95_145] : memref<144xf32, #tpu.memory_space<smem>>
    %1078 = vector.broadcast %1077 : f32 to vector<1x256xf32>
    %1079 = arith.mulf %1078, %1064 : vector<1x256xf32>
    %1080 = arith.addf %1063, %1079 : vector<1x256xf32>
    %c241_i32_146 = arith.constant 241 : i32
    %1081 = tpu.dynamic_rotate %651 by %c241_i32_146 dim 1 : vector<8x256xf32>, i32 -> vector<8x256xf32>
    %c6_147 = arith.constant 6 : index
    %c0_148 = arith.constant 0 : index
    %c0_149 = arith.constant 0 : index
    %1082 = vector.load %arg1[%c6_147, %c0_148, %c0_149] : memref<9x1x256xf32, #tpu.memory_space<vmem>>, vector<1x1x256xf32>
    %1083 = vector.shape_cast %1082 : vector<1x1x256xf32> to vector<1x256xf32>
    %1084 = vector.broadcast %1083 : vector<1x256xf32> to vector<8x256xf32>
    %1085 = arith.mulf %1081, %1084 : vector<8x256xf32>
    %1086 = vector.extract_strided_slice %1085 {offsets = [0, 0], sizes = [1, 256], strides = [1, 1]} : vector<8x256xf32> to vector<1x256xf32>
    %c96_150 = arith.constant 96 : index
    %1087 = memref.load %arg2[%c96_150] : memref<144xf32, #tpu.memory_space<smem>>
    %1088 = vector.broadcast %1087 : f32 to vector<1x256xf32>
    %1089 = arith.mulf %1088, %1086 : vector<1x256xf32>
    %1090 = arith.addf %1068, %1089 : vector<1x256xf32>
    %c97_151 = arith.constant 97 : index
    %1091 = memref.load %arg2[%c97_151] : memref<144xf32, #tpu.memory_space<smem>>
    %1092 = vector.broadcast %1091 : f32 to vector<1x256xf32>
    %1093 = arith.mulf %1092, %1086 : vector<1x256xf32>
    %1094 = arith.addf %1072, %1093 : vector<1x256xf32>
    %c98_152 = arith.constant 98 : index
    %1095 = memref.load %arg2[%c98_152] : memref<144xf32, #tpu.memory_space<smem>>
    %1096 = vector.broadcast %1095 : f32 to vector<1x256xf32>
    %1097 = arith.mulf %1096, %1086 : vector<1x256xf32>
    %1098 = arith.addf %1076, %1097 : vector<1x256xf32>
    %c99_153 = arith.constant 99 : index
    %1099 = memref.load %arg2[%c99_153] : memref<144xf32, #tpu.memory_space<smem>>
    %1100 = vector.broadcast %1099 : f32 to vector<1x256xf32>
    %1101 = arith.mulf %1100, %1086 : vector<1x256xf32>
    %1102 = arith.addf %1080, %1101 : vector<1x256xf32>
    %1103 = vector.extract_strided_slice %1085 {offsets = [1, 0], sizes = [1, 256], strides = [1, 1]} : vector<8x256xf32> to vector<1x256xf32>
    %c100_154 = arith.constant 100 : index
    %1104 = memref.load %arg2[%c100_154] : memref<144xf32, #tpu.memory_space<smem>>
    %1105 = vector.broadcast %1104 : f32 to vector<1x256xf32>
    %1106 = arith.mulf %1105, %1103 : vector<1x256xf32>
    %1107 = arith.addf %1090, %1106 : vector<1x256xf32>
    %c101_155 = arith.constant 101 : index
    %1108 = memref.load %arg2[%c101_155] : memref<144xf32, #tpu.memory_space<smem>>
    %1109 = vector.broadcast %1108 : f32 to vector<1x256xf32>
    %1110 = arith.mulf %1109, %1103 : vector<1x256xf32>
    %1111 = arith.addf %1094, %1110 : vector<1x256xf32>
    %c102_156 = arith.constant 102 : index
    %1112 = memref.load %arg2[%c102_156] : memref<144xf32, #tpu.memory_space<smem>>
    %1113 = vector.broadcast %1112 : f32 to vector<1x256xf32>
    %1114 = arith.mulf %1113, %1103 : vector<1x256xf32>
    %1115 = arith.addf %1098, %1114 : vector<1x256xf32>
    %c103_157 = arith.constant 103 : index
    %1116 = memref.load %arg2[%c103_157] : memref<144xf32, #tpu.memory_space<smem>>
    %1117 = vector.broadcast %1116 : f32 to vector<1x256xf32>
    %1118 = arith.mulf %1117, %1103 : vector<1x256xf32>
    %1119 = arith.addf %1102, %1118 : vector<1x256xf32>
    %1120 = vector.extract_strided_slice %1085 {offsets = [2, 0], sizes = [1, 256], strides = [1, 1]} : vector<8x256xf32> to vector<1x256xf32>
    %c104_158 = arith.constant 104 : index
    %1121 = memref.load %arg2[%c104_158] : memref<144xf32, #tpu.memory_space<smem>>
    %1122 = vector.broadcast %1121 : f32 to vector<1x256xf32>
    %1123 = arith.mulf %1122, %1120 : vector<1x256xf32>
    %1124 = arith.addf %1107, %1123 : vector<1x256xf32>
    %c105_159 = arith.constant 105 : index
    %1125 = memref.load %arg2[%c105_159] : memref<144xf32, #tpu.memory_space<smem>>
    %1126 = vector.broadcast %1125 : f32 to vector<1x256xf32>
    %1127 = arith.mulf %1126, %1120 : vector<1x256xf32>
    %1128 = arith.addf %1111, %1127 : vector<1x256xf32>
    %c106_160 = arith.constant 106 : index
    %1129 = memref.load %arg2[%c106_160] : memref<144xf32, #tpu.memory_space<smem>>
    %1130 = vector.broadcast %1129 : f32 to vector<1x256xf32>
    %1131 = arith.mulf %1130, %1120 : vector<1x256xf32>
    %1132 = arith.addf %1115, %1131 : vector<1x256xf32>
    %c107_161 = arith.constant 107 : index
    %1133 = memref.load %arg2[%c107_161] : memref<144xf32, #tpu.memory_space<smem>>
    %1134 = vector.broadcast %1133 : f32 to vector<1x256xf32>
    %1135 = arith.mulf %1134, %1120 : vector<1x256xf32>
    %1136 = arith.addf %1119, %1135 : vector<1x256xf32>
    %1137 = vector.extract_strided_slice %1085 {offsets = [3, 0], sizes = [1, 256], strides = [1, 1]} : vector<8x256xf32> to vector<1x256xf32>
    %c108_162 = arith.constant 108 : index
    %1138 = memref.load %arg2[%c108_162] : memref<144xf32, #tpu.memory_space<smem>>
    %1139 = vector.broadcast %1138 : f32 to vector<1x256xf32>
    %1140 = arith.mulf %1139, %1137 : vector<1x256xf32>
    %1141 = arith.addf %1124, %1140 : vector<1x256xf32>
    %c109_163 = arith.constant 109 : index
    %1142 = memref.load %arg2[%c109_163] : memref<144xf32, #tpu.memory_space<smem>>
    %1143 = vector.broadcast %1142 : f32 to vector<1x256xf32>
    %1144 = arith.mulf %1143, %1137 : vector<1x256xf32>
    %1145 = arith.addf %1128, %1144 : vector<1x256xf32>
    %c110_164 = arith.constant 110 : index
    %1146 = memref.load %arg2[%c110_164] : memref<144xf32, #tpu.memory_space<smem>>
    %1147 = vector.broadcast %1146 : f32 to vector<1x256xf32>
    %1148 = arith.mulf %1147, %1137 : vector<1x256xf32>
    %1149 = arith.addf %1132, %1148 : vector<1x256xf32>
    %c111_165 = arith.constant 111 : index
    %1150 = memref.load %arg2[%c111_165] : memref<144xf32, #tpu.memory_space<smem>>
    %1151 = vector.broadcast %1150 : f32 to vector<1x256xf32>
    %1152 = arith.mulf %1151, %1137 : vector<1x256xf32>
    %1153 = arith.addf %1136, %1152 : vector<1x256xf32>
    %c240_i32_166 = arith.constant 240 : i32
    %1154 = tpu.dynamic_rotate %651 by %c240_i32_166 dim 1 : vector<8x256xf32>, i32 -> vector<8x256xf32>
    %c7_167 = arith.constant 7 : index
    %c0_168 = arith.constant 0 : index
    %c0_169 = arith.constant 0 : index
    %1155 = vector.load %arg1[%c7_167, %c0_168, %c0_169] : memref<9x1x256xf32, #tpu.memory_space<vmem>>, vector<1x1x256xf32>
    %1156 = vector.shape_cast %1155 : vector<1x1x256xf32> to vector<1x256xf32>
    %1157 = vector.broadcast %1156 : vector<1x256xf32> to vector<8x256xf32>
    %1158 = arith.mulf %1154, %1157 : vector<8x256xf32>
    %1159 = vector.extract_strided_slice %1158 {offsets = [0, 0], sizes = [1, 256], strides = [1, 1]} : vector<8x256xf32> to vector<1x256xf32>
    %c112_170 = arith.constant 112 : index
    %1160 = memref.load %arg2[%c112_170] : memref<144xf32, #tpu.memory_space<smem>>
    %1161 = vector.broadcast %1160 : f32 to vector<1x256xf32>
    %1162 = arith.mulf %1161, %1159 : vector<1x256xf32>
    %1163 = arith.addf %1141, %1162 : vector<1x256xf32>
    %c113_171 = arith.constant 113 : index
    %1164 = memref.load %arg2[%c113_171] : memref<144xf32, #tpu.memory_space<smem>>
    %1165 = vector.broadcast %1164 : f32 to vector<1x256xf32>
    %1166 = arith.mulf %1165, %1159 : vector<1x256xf32>
    %1167 = arith.addf %1145, %1166 : vector<1x256xf32>
    %c114_172 = arith.constant 114 : index
    %1168 = memref.load %arg2[%c114_172] : memref<144xf32, #tpu.memory_space<smem>>
    %1169 = vector.broadcast %1168 : f32 to vector<1x256xf32>
    %1170 = arith.mulf %1169, %1159 : vector<1x256xf32>
    %1171 = arith.addf %1149, %1170 : vector<1x256xf32>
    %c115_173 = arith.constant 115 : index
    %1172 = memref.load %arg2[%c115_173] : memref<144xf32, #tpu.memory_space<smem>>
    %1173 = vector.broadcast %1172 : f32 to vector<1x256xf32>
    %1174 = arith.mulf %1173, %1159 : vector<1x256xf32>
    %1175 = arith.addf %1153, %1174 : vector<1x256xf32>
    %1176 = vector.extract_strided_slice %1158 {offsets = [1, 0], sizes = [1, 256], strides = [1, 1]} : vector<8x256xf32> to vector<1x256xf32>
    %c116_174 = arith.constant 116 : index
    %1177 = memref.load %arg2[%c116_174] : memref<144xf32, #tpu.memory_space<smem>>
    %1178 = vector.broadcast %1177 : f32 to vector<1x256xf32>
    %1179 = arith.mulf %1178, %1176 : vector<1x256xf32>
    %1180 = arith.addf %1163, %1179 : vector<1x256xf32>
    %c117_175 = arith.constant 117 : index
    %1181 = memref.load %arg2[%c117_175] : memref<144xf32, #tpu.memory_space<smem>>
    %1182 = vector.broadcast %1181 : f32 to vector<1x256xf32>
    %1183 = arith.mulf %1182, %1176 : vector<1x256xf32>
    %1184 = arith.addf %1167, %1183 : vector<1x256xf32>
    %c118_176 = arith.constant 118 : index
    %1185 = memref.load %arg2[%c118_176] : memref<144xf32, #tpu.memory_space<smem>>
    %1186 = vector.broadcast %1185 : f32 to vector<1x256xf32>
    %1187 = arith.mulf %1186, %1176 : vector<1x256xf32>
    %1188 = arith.addf %1171, %1187 : vector<1x256xf32>
    %c119_177 = arith.constant 119 : index
    %1189 = memref.load %arg2[%c119_177] : memref<144xf32, #tpu.memory_space<smem>>
    %1190 = vector.broadcast %1189 : f32 to vector<1x256xf32>
    %1191 = arith.mulf %1190, %1176 : vector<1x256xf32>
    %1192 = arith.addf %1175, %1191 : vector<1x256xf32>
    %1193 = vector.extract_strided_slice %1158 {offsets = [2, 0], sizes = [1, 256], strides = [1, 1]} : vector<8x256xf32> to vector<1x256xf32>
    %c120_178 = arith.constant 120 : index
    %1194 = memref.load %arg2[%c120_178] : memref<144xf32, #tpu.memory_space<smem>>
    %1195 = vector.broadcast %1194 : f32 to vector<1x256xf32>
    %1196 = arith.mulf %1195, %1193 : vector<1x256xf32>
    %1197 = arith.addf %1180, %1196 : vector<1x256xf32>
    %c121_179 = arith.constant 121 : index
    %1198 = memref.load %arg2[%c121_179] : memref<144xf32, #tpu.memory_space<smem>>
    %1199 = vector.broadcast %1198 : f32 to vector<1x256xf32>
    %1200 = arith.mulf %1199, %1193 : vector<1x256xf32>
    %1201 = arith.addf %1184, %1200 : vector<1x256xf32>
    %c122_180 = arith.constant 122 : index
    %1202 = memref.load %arg2[%c122_180] : memref<144xf32, #tpu.memory_space<smem>>
    %1203 = vector.broadcast %1202 : f32 to vector<1x256xf32>
    %1204 = arith.mulf %1203, %1193 : vector<1x256xf32>
    %1205 = arith.addf %1188, %1204 : vector<1x256xf32>
    %c123_181 = arith.constant 123 : index
    %1206 = memref.load %arg2[%c123_181] : memref<144xf32, #tpu.memory_space<smem>>
    %1207 = vector.broadcast %1206 : f32 to vector<1x256xf32>
    %1208 = arith.mulf %1207, %1193 : vector<1x256xf32>
    %1209 = arith.addf %1192, %1208 : vector<1x256xf32>
    %1210 = vector.extract_strided_slice %1158 {offsets = [3, 0], sizes = [1, 256], strides = [1, 1]} : vector<8x256xf32> to vector<1x256xf32>
    %c124_182 = arith.constant 124 : index
    %1211 = memref.load %arg2[%c124_182] : memref<144xf32, #tpu.memory_space<smem>>
    %1212 = vector.broadcast %1211 : f32 to vector<1x256xf32>
    %1213 = arith.mulf %1212, %1210 : vector<1x256xf32>
    %1214 = arith.addf %1197, %1213 : vector<1x256xf32>
    %c125_183 = arith.constant 125 : index
    %1215 = memref.load %arg2[%c125_183] : memref<144xf32, #tpu.memory_space<smem>>
    %1216 = vector.broadcast %1215 : f32 to vector<1x256xf32>
    %1217 = arith.mulf %1216, %1210 : vector<1x256xf32>
    %1218 = arith.addf %1201, %1217 : vector<1x256xf32>
    %c126_184 = arith.constant 126 : index
    %1219 = memref.load %arg2[%c126_184] : memref<144xf32, #tpu.memory_space<smem>>
    %1220 = vector.broadcast %1219 : f32 to vector<1x256xf32>
    %1221 = arith.mulf %1220, %1210 : vector<1x256xf32>
    %1222 = arith.addf %1205, %1221 : vector<1x256xf32>
    %c127_185 = arith.constant 127 : index
    %1223 = memref.load %arg2[%c127_185] : memref<144xf32, #tpu.memory_space<smem>>
    %1224 = vector.broadcast %1223 : f32 to vector<1x256xf32>
    %1225 = arith.mulf %1224, %1210 : vector<1x256xf32>
    %1226 = arith.addf %1209, %1225 : vector<1x256xf32>
    %c239_i32_186 = arith.constant 239 : i32
    %1227 = tpu.dynamic_rotate %651 by %c239_i32_186 dim 1 : vector<8x256xf32>, i32 -> vector<8x256xf32>
    %c8_187 = arith.constant 8 : index
    %c0_188 = arith.constant 0 : index
    %c0_189 = arith.constant 0 : index
    %1228 = vector.load %arg1[%c8_187, %c0_188, %c0_189] : memref<9x1x256xf32, #tpu.memory_space<vmem>>, vector<1x1x256xf32>
    %1229 = vector.shape_cast %1228 : vector<1x1x256xf32> to vector<1x256xf32>
    %1230 = vector.broadcast %1229 : vector<1x256xf32> to vector<8x256xf32>
    %1231 = arith.mulf %1227, %1230 : vector<8x256xf32>
    %1232 = vector.extract_strided_slice %1231 {offsets = [0, 0], sizes = [1, 256], strides = [1, 1]} : vector<8x256xf32> to vector<1x256xf32>
    %c128_190 = arith.constant 128 : index
    %1233 = memref.load %arg2[%c128_190] : memref<144xf32, #tpu.memory_space<smem>>
    %1234 = vector.broadcast %1233 : f32 to vector<1x256xf32>
    %1235 = arith.mulf %1234, %1232 : vector<1x256xf32>
    %1236 = arith.addf %1214, %1235 : vector<1x256xf32>
    %c129_191 = arith.constant 129 : index
    %1237 = memref.load %arg2[%c129_191] : memref<144xf32, #tpu.memory_space<smem>>
    %1238 = vector.broadcast %1237 : f32 to vector<1x256xf32>
    %1239 = arith.mulf %1238, %1232 : vector<1x256xf32>
    %1240 = arith.addf %1218, %1239 : vector<1x256xf32>
    %c130_192 = arith.constant 130 : index
    %1241 = memref.load %arg2[%c130_192] : memref<144xf32, #tpu.memory_space<smem>>
    %1242 = vector.broadcast %1241 : f32 to vector<1x256xf32>
    %1243 = arith.mulf %1242, %1232 : vector<1x256xf32>
    %1244 = arith.addf %1222, %1243 : vector<1x256xf32>
    %c131_193 = arith.constant 131 : index
    %1245 = memref.load %arg2[%c131_193] : memref<144xf32, #tpu.memory_space<smem>>
    %1246 = vector.broadcast %1245 : f32 to vector<1x256xf32>
    %1247 = arith.mulf %1246, %1232 : vector<1x256xf32>
    %1248 = arith.addf %1226, %1247 : vector<1x256xf32>
    %1249 = vector.extract_strided_slice %1231 {offsets = [1, 0], sizes = [1, 256], strides = [1, 1]} : vector<8x256xf32> to vector<1x256xf32>
    %c132_194 = arith.constant 132 : index
    %1250 = memref.load %arg2[%c132_194] : memref<144xf32, #tpu.memory_space<smem>>
    %1251 = vector.broadcast %1250 : f32 to vector<1x256xf32>
    %1252 = arith.mulf %1251, %1249 : vector<1x256xf32>
    %1253 = arith.addf %1236, %1252 : vector<1x256xf32>
    %c133_195 = arith.constant 133 : index
    %1254 = memref.load %arg2[%c133_195] : memref<144xf32, #tpu.memory_space<smem>>
    %1255 = vector.broadcast %1254 : f32 to vector<1x256xf32>
    %1256 = arith.mulf %1255, %1249 : vector<1x256xf32>
    %1257 = arith.addf %1240, %1256 : vector<1x256xf32>
    %c134_196 = arith.constant 134 : index
    %1258 = memref.load %arg2[%c134_196] : memref<144xf32, #tpu.memory_space<smem>>
    %1259 = vector.broadcast %1258 : f32 to vector<1x256xf32>
    %1260 = arith.mulf %1259, %1249 : vector<1x256xf32>
    %1261 = arith.addf %1244, %1260 : vector<1x256xf32>
    %c135_197 = arith.constant 135 : index
    %1262 = memref.load %arg2[%c135_197] : memref<144xf32, #tpu.memory_space<smem>>
    %1263 = vector.broadcast %1262 : f32 to vector<1x256xf32>
    %1264 = arith.mulf %1263, %1249 : vector<1x256xf32>
    %1265 = arith.addf %1248, %1264 : vector<1x256xf32>
    %1266 = vector.extract_strided_slice %1231 {offsets = [2, 0], sizes = [1, 256], strides = [1, 1]} : vector<8x256xf32> to vector<1x256xf32>
    %c136_198 = arith.constant 136 : index
    %1267 = memref.load %arg2[%c136_198] : memref<144xf32, #tpu.memory_space<smem>>
    %1268 = vector.broadcast %1267 : f32 to vector<1x256xf32>
    %1269 = arith.mulf %1268, %1266 : vector<1x256xf32>
    %1270 = arith.addf %1253, %1269 : vector<1x256xf32>
    %c137_199 = arith.constant 137 : index
    %1271 = memref.load %arg2[%c137_199] : memref<144xf32, #tpu.memory_space<smem>>
    %1272 = vector.broadcast %1271 : f32 to vector<1x256xf32>
    %1273 = arith.mulf %1272, %1266 : vector<1x256xf32>
    %1274 = arith.addf %1257, %1273 : vector<1x256xf32>
    %c138_200 = arith.constant 138 : index
    %1275 = memref.load %arg2[%c138_200] : memref<144xf32, #tpu.memory_space<smem>>
    %1276 = vector.broadcast %1275 : f32 to vector<1x256xf32>
    %1277 = arith.mulf %1276, %1266 : vector<1x256xf32>
    %1278 = arith.addf %1261, %1277 : vector<1x256xf32>
    %c139_201 = arith.constant 139 : index
    %1279 = memref.load %arg2[%c139_201] : memref<144xf32, #tpu.memory_space<smem>>
    %1280 = vector.broadcast %1279 : f32 to vector<1x256xf32>
    %1281 = arith.mulf %1280, %1266 : vector<1x256xf32>
    %1282 = arith.addf %1265, %1281 : vector<1x256xf32>
    %1283 = vector.extract_strided_slice %1231 {offsets = [3, 0], sizes = [1, 256], strides = [1, 1]} : vector<8x256xf32> to vector<1x256xf32>
    %c140_202 = arith.constant 140 : index
    %1284 = memref.load %arg2[%c140_202] : memref<144xf32, #tpu.memory_space<smem>>
    %1285 = vector.broadcast %1284 : f32 to vector<1x256xf32>
    %1286 = arith.mulf %1285, %1283 : vector<1x256xf32>
    %1287 = arith.addf %1270, %1286 : vector<1x256xf32>
    %c141_203 = arith.constant 141 : index
    %1288 = memref.load %arg2[%c141_203] : memref<144xf32, #tpu.memory_space<smem>>
    %1289 = vector.broadcast %1288 : f32 to vector<1x256xf32>
    %1290 = arith.mulf %1289, %1283 : vector<1x256xf32>
    %1291 = arith.addf %1274, %1290 : vector<1x256xf32>
    %c142_204 = arith.constant 142 : index
    %1292 = memref.load %arg2[%c142_204] : memref<144xf32, #tpu.memory_space<smem>>
    %1293 = vector.broadcast %1292 : f32 to vector<1x256xf32>
    %1294 = arith.mulf %1293, %1283 : vector<1x256xf32>
    %1295 = arith.addf %1278, %1294 : vector<1x256xf32>
    %c143_205 = arith.constant 143 : index
    %1296 = memref.load %arg2[%c143_205] : memref<144xf32, #tpu.memory_space<smem>>
    %1297 = vector.broadcast %1296 : f32 to vector<1x256xf32>
    %1298 = arith.mulf %1297, %1283 : vector<1x256xf32>
    %1299 = arith.addf %1282, %1298 : vector<1x256xf32>
    %cst = arith.constant dense<0.000000e+00> : vector<1xf32>
    %1300 = vector.multi_reduction <add>, %637, %cst [1] : vector<1x256xf32> to vector<1xf32>
    %1301 = vector.shape_cast %1300 : vector<1xf32> to vector<1x1xf32>
    %cst_206 = arith.constant dense<0.000000e+00> : vector<1xf32>
    %1302 = vector.multi_reduction <add>, %1287, %cst_206 [1] : vector<1x256xf32> to vector<1xf32>
    %1303 = vector.shape_cast %1302 : vector<1xf32> to vector<1x1xf32>
    %1304 = arith.addf %1301, %1303 : vector<1x1xf32>
    %cst_207 = arith.constant 0.001953125 : f32
    %1305 = vector.broadcast %cst_207 : f32 to vector<1x1xf32>
    %1306 = arith.mulf %1304, %1305 : vector<1x1xf32>
    %1307 = vector.broadcast %1306 : vector<1x1xf32> to vector<1x256xf32>
    %1308 = arith.subf %637, %1307 : vector<1x256xf32>
    %1309 = arith.mulf %1308, %1308 : vector<1x256xf32>
    %cst_208 = arith.constant dense<0.000000e+00> : vector<1xf32>
    %1310 = vector.multi_reduction <add>, %1309, %cst_208 [1] : vector<1x256xf32> to vector<1xf32>
    %1311 = vector.shape_cast %1310 : vector<1xf32> to vector<1x1xf32>
    %1312 = vector.broadcast %1306 : vector<1x1xf32> to vector<1x256xf32>
    %1313 = arith.subf %1287, %1312 : vector<1x256xf32>
    %1314 = arith.mulf %1313, %1313 : vector<1x256xf32>
    %cst_209 = arith.constant dense<0.000000e+00> : vector<1xf32>
    %1315 = vector.multi_reduction <add>, %1314, %cst_209 [1] : vector<1x256xf32> to vector<1xf32>
    %1316 = vector.shape_cast %1315 : vector<1xf32> to vector<1x1xf32>
    %1317 = arith.addf %1311, %1316 : vector<1x1xf32>
    %cst_210 = arith.constant 0.001953125 : f32
    %1318 = vector.broadcast %cst_210 : f32 to vector<1x1xf32>
    %1319 = arith.mulf %1317, %1318 : vector<1x1xf32>
    %c0_211 = arith.constant 0 : index
    %1320 = memref.load %arg3[%c0_211] : memref<4xf32, #tpu.memory_space<smem>>
    %cst_212 = arith.constant 9.99999974E-6 : f32
    %1321 = vector.broadcast %cst_212 : f32 to vector<1x1xf32>
    %1322 = arith.addf %1319, %1321 : vector<1x1xf32>
    %1323 = math.rsqrt %1322 : vector<1x1xf32>
    %1324 = vector.broadcast %1320 : f32 to vector<1x1xf32>
    %1325 = arith.mulf %1324, %1323 : vector<1x1xf32>
    %c0_213 = arith.constant 0 : index
    %1326 = memref.load %arg4[%c0_213] : memref<4xf32, #tpu.memory_space<smem>>
    %1327 = arith.mulf %1306, %1325 : vector<1x1xf32>
    %1328 = vector.broadcast %1326 : f32 to vector<1x1xf32>
    %1329 = arith.subf %1328, %1327 : vector<1x1xf32>
    %1330 = vector.broadcast %1325 : vector<1x1xf32> to vector<1x256xf32>
    %1331 = arith.mulf %637, %1330 : vector<1x256xf32>
    %1332 = vector.broadcast %1329 : vector<1x1xf32> to vector<1x256xf32>
    %1333 = arith.addf %1331, %1332 : vector<1x256xf32>
    %cst_214 = arith.constant 0.000000e+00 : f32
    %1334 = vector.broadcast %cst_214 : f32 to vector<1x256xf32>
    %1335 = arith.maximumf %1333, %1334 : vector<1x256xf32>
    %1336 = vector.broadcast %1325 : vector<1x1xf32> to vector<1x256xf32>
    %1337 = arith.mulf %1287, %1336 : vector<1x256xf32>
    %1338 = vector.broadcast %1329 : vector<1x1xf32> to vector<1x256xf32>
    %1339 = arith.addf %1337, %1338 : vector<1x256xf32>
    %cst_215 = arith.constant 0.000000e+00 : f32
    %1340 = vector.broadcast %cst_215 : f32 to vector<1x256xf32>
    %1341 = arith.maximumf %1339, %1340 : vector<1x256xf32>
    %cst_216 = arith.constant dense<0.000000e+00> : vector<1xf32>
    %1342 = vector.multi_reduction <add>, %641, %cst_216 [1] : vector<1x256xf32> to vector<1xf32>
    %1343 = vector.shape_cast %1342 : vector<1xf32> to vector<1x1xf32>
    %cst_217 = arith.constant dense<0.000000e+00> : vector<1xf32>
    %1344 = vector.multi_reduction <add>, %1291, %cst_217 [1] : vector<1x256xf32> to vector<1xf32>
    %1345 = vector.shape_cast %1344 : vector<1xf32> to vector<1x1xf32>
    %1346 = arith.addf %1343, %1345 : vector<1x1xf32>
    %cst_218 = arith.constant 0.001953125 : f32
    %1347 = vector.broadcast %cst_218 : f32 to vector<1x1xf32>
    %1348 = arith.mulf %1346, %1347 : vector<1x1xf32>
    %1349 = vector.broadcast %1348 : vector<1x1xf32> to vector<1x256xf32>
    %1350 = arith.subf %641, %1349 : vector<1x256xf32>
    %1351 = arith.mulf %1350, %1350 : vector<1x256xf32>
    %cst_219 = arith.constant dense<0.000000e+00> : vector<1xf32>
    %1352 = vector.multi_reduction <add>, %1351, %cst_219 [1] : vector<1x256xf32> to vector<1xf32>
    %1353 = vector.shape_cast %1352 : vector<1xf32> to vector<1x1xf32>
    %1354 = vector.broadcast %1348 : vector<1x1xf32> to vector<1x256xf32>
    %1355 = arith.subf %1291, %1354 : vector<1x256xf32>
    %1356 = arith.mulf %1355, %1355 : vector<1x256xf32>
    %cst_220 = arith.constant dense<0.000000e+00> : vector<1xf32>
    %1357 = vector.multi_reduction <add>, %1356, %cst_220 [1] : vector<1x256xf32> to vector<1xf32>
    %1358 = vector.shape_cast %1357 : vector<1xf32> to vector<1x1xf32>
    %1359 = arith.addf %1353, %1358 : vector<1x1xf32>
    %cst_221 = arith.constant 0.001953125 : f32
    %1360 = vector.broadcast %cst_221 : f32 to vector<1x1xf32>
    %1361 = arith.mulf %1359, %1360 : vector<1x1xf32>
    %c1_222 = arith.constant 1 : index
    %1362 = memref.load %arg3[%c1_222] : memref<4xf32, #tpu.memory_space<smem>>
    %cst_223 = arith.constant 9.99999974E-6 : f32
    %1363 = vector.broadcast %cst_223 : f32 to vector<1x1xf32>
    %1364 = arith.addf %1361, %1363 : vector<1x1xf32>
    %1365 = math.rsqrt %1364 : vector<1x1xf32>
    %1366 = vector.broadcast %1362 : f32 to vector<1x1xf32>
    %1367 = arith.mulf %1366, %1365 : vector<1x1xf32>
    %c1_224 = arith.constant 1 : index
    %1368 = memref.load %arg4[%c1_224] : memref<4xf32, #tpu.memory_space<smem>>
    %1369 = arith.mulf %1348, %1367 : vector<1x1xf32>
    %1370 = vector.broadcast %1368 : f32 to vector<1x1xf32>
    %1371 = arith.subf %1370, %1369 : vector<1x1xf32>
    %1372 = vector.broadcast %1367 : vector<1x1xf32> to vector<1x256xf32>
    %1373 = arith.mulf %641, %1372 : vector<1x256xf32>
    %1374 = vector.broadcast %1371 : vector<1x1xf32> to vector<1x256xf32>
    %1375 = arith.addf %1373, %1374 : vector<1x256xf32>
    %cst_225 = arith.constant 0.000000e+00 : f32
    %1376 = vector.broadcast %cst_225 : f32 to vector<1x256xf32>
    %1377 = arith.maximumf %1375, %1376 : vector<1x256xf32>
    %1378 = vector.broadcast %1367 : vector<1x1xf32> to vector<1x256xf32>
    %1379 = arith.mulf %1291, %1378 : vector<1x256xf32>
    %1380 = vector.broadcast %1371 : vector<1x1xf32> to vector<1x256xf32>
    %1381 = arith.addf %1379, %1380 : vector<1x256xf32>
    %cst_226 = arith.constant 0.000000e+00 : f32
    %1382 = vector.broadcast %cst_226 : f32 to vector<1x256xf32>
    %1383 = arith.maximumf %1381, %1382 : vector<1x256xf32>
    %cst_227 = arith.constant dense<0.000000e+00> : vector<1xf32>
    %1384 = vector.multi_reduction <add>, %645, %cst_227 [1] : vector<1x256xf32> to vector<1xf32>
    %1385 = vector.shape_cast %1384 : vector<1xf32> to vector<1x1xf32>
    %cst_228 = arith.constant dense<0.000000e+00> : vector<1xf32>
    %1386 = vector.multi_reduction <add>, %1295, %cst_228 [1] : vector<1x256xf32> to vector<1xf32>
    %1387 = vector.shape_cast %1386 : vector<1xf32> to vector<1x1xf32>
    %1388 = arith.addf %1385, %1387 : vector<1x1xf32>
    %cst_229 = arith.constant 0.001953125 : f32
    %1389 = vector.broadcast %cst_229 : f32 to vector<1x1xf32>
    %1390 = arith.mulf %1388, %1389 : vector<1x1xf32>
    %1391 = vector.broadcast %1390 : vector<1x1xf32> to vector<1x256xf32>
    %1392 = arith.subf %645, %1391 : vector<1x256xf32>
    %1393 = arith.mulf %1392, %1392 : vector<1x256xf32>
    %cst_230 = arith.constant dense<0.000000e+00> : vector<1xf32>
    %1394 = vector.multi_reduction <add>, %1393, %cst_230 [1] : vector<1x256xf32> to vector<1xf32>
    %1395 = vector.shape_cast %1394 : vector<1xf32> to vector<1x1xf32>
    %1396 = vector.broadcast %1390 : vector<1x1xf32> to vector<1x256xf32>
    %1397 = arith.subf %1295, %1396 : vector<1x256xf32>
    %1398 = arith.mulf %1397, %1397 : vector<1x256xf32>
    %cst_231 = arith.constant dense<0.000000e+00> : vector<1xf32>
    %1399 = vector.multi_reduction <add>, %1398, %cst_231 [1] : vector<1x256xf32> to vector<1xf32>
    %1400 = vector.shape_cast %1399 : vector<1xf32> to vector<1x1xf32>
    %1401 = arith.addf %1395, %1400 : vector<1x1xf32>
    %cst_232 = arith.constant 0.001953125 : f32
    %1402 = vector.broadcast %cst_232 : f32 to vector<1x1xf32>
    %1403 = arith.mulf %1401, %1402 : vector<1x1xf32>
    %c2_233 = arith.constant 2 : index
    %1404 = memref.load %arg3[%c2_233] : memref<4xf32, #tpu.memory_space<smem>>
    %cst_234 = arith.constant 9.99999974E-6 : f32
    %1405 = vector.broadcast %cst_234 : f32 to vector<1x1xf32>
    %1406 = arith.addf %1403, %1405 : vector<1x1xf32>
    %1407 = math.rsqrt %1406 : vector<1x1xf32>
    %1408 = vector.broadcast %1404 : f32 to vector<1x1xf32>
    %1409 = arith.mulf %1408, %1407 : vector<1x1xf32>
    %c2_235 = arith.constant 2 : index
    %1410 = memref.load %arg4[%c2_235] : memref<4xf32, #tpu.memory_space<smem>>
    %1411 = arith.mulf %1390, %1409 : vector<1x1xf32>
    %1412 = vector.broadcast %1410 : f32 to vector<1x1xf32>
    %1413 = arith.subf %1412, %1411 : vector<1x1xf32>
    %1414 = vector.broadcast %1409 : vector<1x1xf32> to vector<1x256xf32>
    %1415 = arith.mulf %645, %1414 : vector<1x256xf32>
    %1416 = vector.broadcast %1413 : vector<1x1xf32> to vector<1x256xf32>
    %1417 = arith.addf %1415, %1416 : vector<1x256xf32>
    %cst_236 = arith.constant 0.000000e+00 : f32
    %1418 = vector.broadcast %cst_236 : f32 to vector<1x256xf32>
    %1419 = arith.maximumf %1417, %1418 : vector<1x256xf32>
    %1420 = vector.broadcast %1409 : vector<1x1xf32> to vector<1x256xf32>
    %1421 = arith.mulf %1295, %1420 : vector<1x256xf32>
    %1422 = vector.broadcast %1413 : vector<1x1xf32> to vector<1x256xf32>
    %1423 = arith.addf %1421, %1422 : vector<1x256xf32>
    %cst_237 = arith.constant 0.000000e+00 : f32
    %1424 = vector.broadcast %cst_237 : f32 to vector<1x256xf32>
    %1425 = arith.maximumf %1423, %1424 : vector<1x256xf32>
    %cst_238 = arith.constant dense<0.000000e+00> : vector<1xf32>
    %1426 = vector.multi_reduction <add>, %649, %cst_238 [1] : vector<1x256xf32> to vector<1xf32>
    %1427 = vector.shape_cast %1426 : vector<1xf32> to vector<1x1xf32>
    %cst_239 = arith.constant dense<0.000000e+00> : vector<1xf32>
    %1428 = vector.multi_reduction <add>, %1299, %cst_239 [1] : vector<1x256xf32> to vector<1xf32>
    %1429 = vector.shape_cast %1428 : vector<1xf32> to vector<1x1xf32>
    %1430 = arith.addf %1427, %1429 : vector<1x1xf32>
    %cst_240 = arith.constant 0.001953125 : f32
    %1431 = vector.broadcast %cst_240 : f32 to vector<1x1xf32>
    %1432 = arith.mulf %1430, %1431 : vector<1x1xf32>
    %1433 = vector.broadcast %1432 : vector<1x1xf32> to vector<1x256xf32>
    %1434 = arith.subf %649, %1433 : vector<1x256xf32>
    %1435 = arith.mulf %1434, %1434 : vector<1x256xf32>
    %cst_241 = arith.constant dense<0.000000e+00> : vector<1xf32>
    %1436 = vector.multi_reduction <add>, %1435, %cst_241 [1] : vector<1x256xf32> to vector<1xf32>
    %1437 = vector.shape_cast %1436 : vector<1xf32> to vector<1x1xf32>
    %1438 = vector.broadcast %1432 : vector<1x1xf32> to vector<1x256xf32>
    %1439 = arith.subf %1299, %1438 : vector<1x256xf32>
    %1440 = arith.mulf %1439, %1439 : vector<1x256xf32>
    %cst_242 = arith.constant dense<0.000000e+00> : vector<1xf32>
    %1441 = vector.multi_reduction <add>, %1440, %cst_242 [1] : vector<1x256xf32> to vector<1xf32>
    %1442 = vector.shape_cast %1441 : vector<1xf32> to vector<1x1xf32>
    %1443 = arith.addf %1437, %1442 : vector<1x1xf32>
    %cst_243 = arith.constant 0.001953125 : f32
    %1444 = vector.broadcast %cst_243 : f32 to vector<1x1xf32>
    %1445 = arith.mulf %1443, %1444 : vector<1x1xf32>
    %c3_244 = arith.constant 3 : index
    %1446 = memref.load %arg3[%c3_244] : memref<4xf32, #tpu.memory_space<smem>>
    %cst_245 = arith.constant 9.99999974E-6 : f32
    %1447 = vector.broadcast %cst_245 : f32 to vector<1x1xf32>
    %1448 = arith.addf %1445, %1447 : vector<1x1xf32>
    %1449 = math.rsqrt %1448 : vector<1x1xf32>
    %1450 = vector.broadcast %1446 : f32 to vector<1x1xf32>
    %1451 = arith.mulf %1450, %1449 : vector<1x1xf32>
    %c3_246 = arith.constant 3 : index
    %1452 = memref.load %arg4[%c3_246] : memref<4xf32, #tpu.memory_space<smem>>
    %1453 = arith.mulf %1432, %1451 : vector<1x1xf32>
    %1454 = vector.broadcast %1452 : f32 to vector<1x1xf32>
    %1455 = arith.subf %1454, %1453 : vector<1x1xf32>
    %1456 = vector.broadcast %1451 : vector<1x1xf32> to vector<1x256xf32>
    %1457 = arith.mulf %649, %1456 : vector<1x256xf32>
    %1458 = vector.broadcast %1455 : vector<1x1xf32> to vector<1x256xf32>
    %1459 = arith.addf %1457, %1458 : vector<1x256xf32>
    %cst_247 = arith.constant 0.000000e+00 : f32
    %1460 = vector.broadcast %cst_247 : f32 to vector<1x256xf32>
    %1461 = arith.maximumf %1459, %1460 : vector<1x256xf32>
    %1462 = vector.broadcast %1451 : vector<1x1xf32> to vector<1x256xf32>
    %1463 = arith.mulf %1299, %1462 : vector<1x256xf32>
    %1464 = vector.broadcast %1455 : vector<1x1xf32> to vector<1x256xf32>
    %1465 = arith.addf %1463, %1464 : vector<1x256xf32>
    %cst_248 = arith.constant 0.000000e+00 : f32
    %1466 = vector.broadcast %cst_248 : f32 to vector<1x256xf32>
    %1467 = arith.maximumf %1465, %1466 : vector<1x256xf32>
    %cst_249 = arith.constant 0.000000e+00 : f32
    %1468 = vector.broadcast %cst_249 : f32 to vector<4x256xf32>
    %c4_250 = arith.constant 4 : index
    %c0_251 = arith.constant 0 : index
    %1469 = vector.load %arg9[%c4_250, %c0_251] : memref<8x256xf32, #tpu.memory_space<vmem>>, vector<4x256xf32>
    tpu.vector_store %arg9[%c4_250, %c0_251], %1468 {strides = array<i32>} : memref<8x256xf32, #tpu.memory_space<vmem>>, vector<4x256xf32>,
    %c0_252 = arith.constant 0 : index
    %c0_253 = arith.constant 0 : index
    %1470 = vector.load %arg9[%c0_252, %c0_253] : memref<8x256xf32, #tpu.memory_space<vmem>>, vector<1x256xf32>
    tpu.vector_store %arg9[%c0_252, %c0_253], %1335 {strides = array<i32>} : memref<8x256xf32, #tpu.memory_space<vmem>>, vector<1x256xf32>,
    %c1_254 = arith.constant 1 : index
    %c0_255 = arith.constant 0 : index
    %1471 = vector.load %arg9[%c1_254, %c0_255] : memref<8x256xf32, #tpu.memory_space<vmem>>, vector<1x256xf32>
    tpu.vector_store %arg9[%c1_254, %c0_255], %1377 {strides = array<i32>} : memref<8x256xf32, #tpu.memory_space<vmem>>, vector<1x256xf32>,
    %c2_256 = arith.constant 2 : index
    %c0_257 = arith.constant 0 : index
    %1472 = vector.load %arg9[%c2_256, %c0_257] : memref<8x256xf32, #tpu.memory_space<vmem>>, vector<1x256xf32>
    tpu.vector_store %arg9[%c2_256, %c0_257], %1419 {strides = array<i32>} : memref<8x256xf32, #tpu.memory_space<vmem>>, vector<1x256xf32>,
    %c3_258 = arith.constant 3 : index
    %c0_259 = arith.constant 0 : index
    %1473 = vector.load %arg9[%c3_258, %c0_259] : memref<8x256xf32, #tpu.memory_space<vmem>>, vector<1x256xf32>
    tpu.vector_store %arg9[%c3_258, %c0_259], %1461 {strides = array<i32>} : memref<8x256xf32, #tpu.memory_space<vmem>>, vector<1x256xf32>,
    %c0_260 = arith.constant 0 : index
    %c0_261 = arith.constant 0 : index
    %1474 = vector.load %arg9[%c0_260, %c0_261] : memref<8x256xf32, #tpu.memory_space<vmem>>, vector<8x256xf32>
    %c17_i32_262 = arith.constant 17 : i32
    %1475 = tpu.dynamic_rotate %1474 by %c17_i32_262 dim 1 : vector<8x256xf32>, i32 -> vector<8x256xf32>
    %c0_263 = arith.constant 0 : index
    %c0_264 = arith.constant 0 : index
    %c0_265 = arith.constant 0 : index
    %1476 = vector.load %arg1[%c0_263, %c0_264, %c0_265] : memref<9x1x256xf32, #tpu.memory_space<vmem>>, vector<1x1x256xf32>
    %1477 = vector.shape_cast %1476 : vector<1x1x256xf32> to vector<1x256xf32>
    %1478 = vector.broadcast %1477 : vector<1x256xf32> to vector<8x256xf32>
    %1479 = arith.mulf %1475, %1478 : vector<8x256xf32>
    %1480 = vector.extract_strided_slice %1479 {offsets = [0, 0], sizes = [1, 256], strides = [1, 1]} : vector<8x256xf32> to vector<1x256xf32>
    %c0_266 = arith.constant 0 : index
    %1481 = memref.load %arg5[%c0_266] : memref<144xf32, #tpu.memory_space<smem>>
    %1482 = vector.broadcast %1481 : f32 to vector<1x256xf32>
    %1483 = arith.mulf %1482, %1480 : vector<1x256xf32>
    %c1_267 = arith.constant 1 : index
    %1484 = memref.load %arg5[%c1_267] : memref<144xf32, #tpu.memory_space<smem>>
    %1485 = vector.broadcast %1484 : f32 to vector<1x256xf32>
    %1486 = arith.mulf %1485, %1480 : vector<1x256xf32>
    %c2_268 = arith.constant 2 : index
    %1487 = memref.load %arg5[%c2_268] : memref<144xf32, #tpu.memory_space<smem>>
    %1488 = vector.broadcast %1487 : f32 to vector<1x256xf32>
    %1489 = arith.mulf %1488, %1480 : vector<1x256xf32>
    %c3_269 = arith.constant 3 : index
    %1490 = memref.load %arg5[%c3_269] : memref<144xf32, #tpu.memory_space<smem>>
    %1491 = vector.broadcast %1490 : f32 to vector<1x256xf32>
    %1492 = arith.mulf %1491, %1480 : vector<1x256xf32>
    %1493 = vector.extract_strided_slice %1479 {offsets = [1, 0], sizes = [1, 256], strides = [1, 1]} : vector<8x256xf32> to vector<1x256xf32>
    %c4_270 = arith.constant 4 : index
    %1494 = memref.load %arg5[%c4_270] : memref<144xf32, #tpu.memory_space<smem>>
    %1495 = vector.broadcast %1494 : f32 to vector<1x256xf32>
    %1496 = arith.mulf %1495, %1493 : vector<1x256xf32>
    %1497 = arith.addf %1483, %1496 : vector<1x256xf32>
    %c5_271 = arith.constant 5 : index
    %1498 = memref.load %arg5[%c5_271] : memref<144xf32, #tpu.memory_space<smem>>
    %1499 = vector.broadcast %1498 : f32 to vector<1x256xf32>
    %1500 = arith.mulf %1499, %1493 : vector<1x256xf32>
    %1501 = arith.addf %1486, %1500 : vector<1x256xf32>
    %c6_272 = arith.constant 6 : index
    %1502 = memref.load %arg5[%c6_272] : memref<144xf32, #tpu.memory_space<smem>>
    %1503 = vector.broadcast %1502 : f32 to vector<1x256xf32>
    %1504 = arith.mulf %1503, %1493 : vector<1x256xf32>
    %1505 = arith.addf %1489, %1504 : vector<1x256xf32>
    %c7_273 = arith.constant 7 : index
    %1506 = memref.load %arg5[%c7_273] : memref<144xf32, #tpu.memory_space<smem>>
    %1507 = vector.broadcast %1506 : f32 to vector<1x256xf32>
    %1508 = arith.mulf %1507, %1493 : vector<1x256xf32>
    %1509 = arith.addf %1492, %1508 : vector<1x256xf32>
    %1510 = vector.extract_strided_slice %1479 {offsets = [2, 0], sizes = [1, 256], strides = [1, 1]} : vector<8x256xf32> to vector<1x256xf32>
    %c8_274 = arith.constant 8 : index
    %1511 = memref.load %arg5[%c8_274] : memref<144xf32, #tpu.memory_space<smem>>
    %1512 = vector.broadcast %1511 : f32 to vector<1x256xf32>
    %1513 = arith.mulf %1512, %1510 : vector<1x256xf32>
    %1514 = arith.addf %1497, %1513 : vector<1x256xf32>
    %c9_275 = arith.constant 9 : index
    %1515 = memref.load %arg5[%c9_275] : memref<144xf32, #tpu.memory_space<smem>>
    %1516 = vector.broadcast %1515 : f32 to vector<1x256xf32>
    %1517 = arith.mulf %1516, %1510 : vector<1x256xf32>
    %1518 = arith.addf %1501, %1517 : vector<1x256xf32>
    %c10_276 = arith.constant 10 : index
    %1519 = memref.load %arg5[%c10_276] : memref<144xf32, #tpu.memory_space<smem>>
    %1520 = vector.broadcast %1519 : f32 to vector<1x256xf32>
    %1521 = arith.mulf %1520, %1510 : vector<1x256xf32>
    %1522 = arith.addf %1505, %1521 : vector<1x256xf32>
    %c11_277 = arith.constant 11 : index
    %1523 = memref.load %arg5[%c11_277] : memref<144xf32, #tpu.memory_space<smem>>
    %1524 = vector.broadcast %1523 : f32 to vector<1x256xf32>
    %1525 = arith.mulf %1524, %1510 : vector<1x256xf32>
    %1526 = arith.addf %1509, %1525 : vector<1x256xf32>
    %1527 = vector.extract_strided_slice %1479 {offsets = [3, 0], sizes = [1, 256], strides = [1, 1]} : vector<8x256xf32> to vector<1x256xf32>
    %c12_278 = arith.constant 12 : index
    %1528 = memref.load %arg5[%c12_278] : memref<144xf32, #tpu.memory_space<smem>>
    %1529 = vector.broadcast %1528 : f32 to vector<1x256xf32>
    %1530 = arith.mulf %1529, %1527 : vector<1x256xf32>
    %1531 = arith.addf %1514, %1530 : vector<1x256xf32>
    %c13_279 = arith.constant 13 : index
    %1532 = memref.load %arg5[%c13_279] : memref<144xf32, #tpu.memory_space<smem>>
    %1533 = vector.broadcast %1532 : f32 to vector<1x256xf32>
    %1534 = arith.mulf %1533, %1527 : vector<1x256xf32>
    %1535 = arith.addf %1518, %1534 : vector<1x256xf32>
    %c14_280 = arith.constant 14 : index
    %1536 = memref.load %arg5[%c14_280] : memref<144xf32, #tpu.memory_space<smem>>
    %1537 = vector.broadcast %1536 : f32 to vector<1x256xf32>
    %1538 = arith.mulf %1537, %1527 : vector<1x256xf32>
    %1539 = arith.addf %1522, %1538 : vector<1x256xf32>
    %c15_281 = arith.constant 15 : index
    %1540 = memref.load %arg5[%c15_281] : memref<144xf32, #tpu.memory_space<smem>>
    %1541 = vector.broadcast %1540 : f32 to vector<1x256xf32>
    %1542 = arith.mulf %1541, %1527 : vector<1x256xf32>
    %1543 = arith.addf %1526, %1542 : vector<1x256xf32>
    %c16_i32_282 = arith.constant 16 : i32
    %1544 = tpu.dynamic_rotate %1474 by %c16_i32_282 dim 1 : vector<8x256xf32>, i32 -> vector<8x256xf32>
    %c1_283 = arith.constant 1 : index
    %c0_284 = arith.constant 0 : index
    %c0_285 = arith.constant 0 : index
    %1545 = vector.load %arg1[%c1_283, %c0_284, %c0_285] : memref<9x1x256xf32, #tpu.memory_space<vmem>>, vector<1x1x256xf32>
    %1546 = vector.shape_cast %1545 : vector<1x1x256xf32> to vector<1x256xf32>
    %1547 = vector.broadcast %1546 : vector<1x256xf32> to vector<8x256xf32>
    %1548 = arith.mulf %1544, %1547 : vector<8x256xf32>
    %1549 = vector.extract_strided_slice %1548 {offsets = [0, 0], sizes = [1, 256], strides = [1, 1]} : vector<8x256xf32> to vector<1x256xf32>
    %c16_286 = arith.constant 16 : index
    %1550 = memref.load %arg5[%c16_286] : memref<144xf32, #tpu.memory_space<smem>>
    %1551 = vector.broadcast %1550 : f32 to vector<1x256xf32>
    %1552 = arith.mulf %1551, %1549 : vector<1x256xf32>
    %1553 = arith.addf %1531, %1552 : vector<1x256xf32>
    %c17_287 = arith.constant 17 : index
    %1554 = memref.load %arg5[%c17_287] : memref<144xf32, #tpu.memory_space<smem>>
    %1555 = vector.broadcast %1554 : f32 to vector<1x256xf32>
    %1556 = arith.mulf %1555, %1549 : vector<1x256xf32>
    %1557 = arith.addf %1535, %1556 : vector<1x256xf32>
    %c18_288 = arith.constant 18 : index
    %1558 = memref.load %arg5[%c18_288] : memref<144xf32, #tpu.memory_space<smem>>
    %1559 = vector.broadcast %1558 : f32 to vector<1x256xf32>
    %1560 = arith.mulf %1559, %1549 : vector<1x256xf32>
    %1561 = arith.addf %1539, %1560 : vector<1x256xf32>
    %c19_289 = arith.constant 19 : index
    %1562 = memref.load %arg5[%c19_289] : memref<144xf32, #tpu.memory_space<smem>>
    %1563 = vector.broadcast %1562 : f32 to vector<1x256xf32>
    %1564 = arith.mulf %1563, %1549 : vector<1x256xf32>
    %1565 = arith.addf %1543, %1564 : vector<1x256xf32>
    %1566 = vector.extract_strided_slice %1548 {offsets = [1, 0], sizes = [1, 256], strides = [1, 1]} : vector<8x256xf32> to vector<1x256xf32>
    %c20_290 = arith.constant 20 : index
    %1567 = memref.load %arg5[%c20_290] : memref<144xf32, #tpu.memory_space<smem>>
    %1568 = vector.broadcast %1567 : f32 to vector<1x256xf32>
    %1569 = arith.mulf %1568, %1566 : vector<1x256xf32>
    %1570 = arith.addf %1553, %1569 : vector<1x256xf32>
    %c21_291 = arith.constant 21 : index
    %1571 = memref.load %arg5[%c21_291] : memref<144xf32, #tpu.memory_space<smem>>
    %1572 = vector.broadcast %1571 : f32 to vector<1x256xf32>
    %1573 = arith.mulf %1572, %1566 : vector<1x256xf32>
    %1574 = arith.addf %1557, %1573 : vector<1x256xf32>
    %c22_292 = arith.constant 22 : index
    %1575 = memref.load %arg5[%c22_292] : memref<144xf32, #tpu.memory_space<smem>>
    %1576 = vector.broadcast %1575 : f32 to vector<1x256xf32>
    %1577 = arith.mulf %1576, %1566 : vector<1x256xf32>
    %1578 = arith.addf %1561, %1577 : vector<1x256xf32>
    %c23_293 = arith.constant 23 : index
    %1579 = memref.load %arg5[%c23_293] : memref<144xf32, #tpu.memory_space<smem>>
    %1580 = vector.broadcast %1579 : f32 to vector<1x256xf32>
    %1581 = arith.mulf %1580, %1566 : vector<1x256xf32>
    %1582 = arith.addf %1565, %1581 : vector<1x256xf32>
    %1583 = vector.extract_strided_slice %1548 {offsets = [2, 0], sizes = [1, 256], strides = [1, 1]} : vector<8x256xf32> to vector<1x256xf32>
    %c24_294 = arith.constant 24 : index
    %1584 = memref.load %arg5[%c24_294] : memref<144xf32, #tpu.memory_space<smem>>
    %1585 = vector.broadcast %1584 : f32 to vector<1x256xf32>
    %1586 = arith.mulf %1585, %1583 : vector<1x256xf32>
    %1587 = arith.addf %1570, %1586 : vector<1x256xf32>
    %c25_295 = arith.constant 25 : index
    %1588 = memref.load %arg5[%c25_295] : memref<144xf32, #tpu.memory_space<smem>>
    %1589 = vector.broadcast %1588 : f32 to vector<1x256xf32>
    %1590 = arith.mulf %1589, %1583 : vector<1x256xf32>
    %1591 = arith.addf %1574, %1590 : vector<1x256xf32>
    %c26_296 = arith.constant 26 : index
    %1592 = memref.load %arg5[%c26_296] : memref<144xf32, #tpu.memory_space<smem>>
    %1593 = vector.broadcast %1592 : f32 to vector<1x256xf32>
    %1594 = arith.mulf %1593, %1583 : vector<1x256xf32>
    %1595 = arith.addf %1578, %1594 : vector<1x256xf32>
    %c27_297 = arith.constant 27 : index
    %1596 = memref.load %arg5[%c27_297] : memref<144xf32, #tpu.memory_space<smem>>
    %1597 = vector.broadcast %1596 : f32 to vector<1x256xf32>
    %1598 = arith.mulf %1597, %1583 : vector<1x256xf32>
    %1599 = arith.addf %1582, %1598 : vector<1x256xf32>
    %1600 = vector.extract_strided_slice %1548 {offsets = [3, 0], sizes = [1, 256], strides = [1, 1]} : vector<8x256xf32> to vector<1x256xf32>
    %c28_298 = arith.constant 28 : index
    %1601 = memref.load %arg5[%c28_298] : memref<144xf32, #tpu.memory_space<smem>>
    %1602 = vector.broadcast %1601 : f32 to vector<1x256xf32>
    %1603 = arith.mulf %1602, %1600 : vector<1x256xf32>
    %1604 = arith.addf %1587, %1603 : vector<1x256xf32>
    %c29_299 = arith.constant 29 : index
    %1605 = memref.load %arg5[%c29_299] : memref<144xf32, #tpu.memory_space<smem>>
    %1606 = vector.broadcast %1605 : f32 to vector<1x256xf32>
    %1607 = arith.mulf %1606, %1600 : vector<1x256xf32>
    %1608 = arith.addf %1591, %1607 : vector<1x256xf32>
    %c30_300 = arith.constant 30 : index
    %1609 = memref.load %arg5[%c30_300] : memref<144xf32, #tpu.memory_space<smem>>
    %1610 = vector.broadcast %1609 : f32 to vector<1x256xf32>
    %1611 = arith.mulf %1610, %1600 : vector<1x256xf32>
    %1612 = arith.addf %1595, %1611 : vector<1x256xf32>
    %c31_301 = arith.constant 31 : index
    %1613 = memref.load %arg5[%c31_301] : memref<144xf32, #tpu.memory_space<smem>>
    %1614 = vector.broadcast %1613 : f32 to vector<1x256xf32>
    %1615 = arith.mulf %1614, %1600 : vector<1x256xf32>
    %1616 = arith.addf %1599, %1615 : vector<1x256xf32>
    %c15_i32_302 = arith.constant 15 : i32
    %1617 = tpu.dynamic_rotate %1474 by %c15_i32_302 dim 1 : vector<8x256xf32>, i32 -> vector<8x256xf32>
    %c2_303 = arith.constant 2 : index
    %c0_304 = arith.constant 0 : index
    %c0_305 = arith.constant 0 : index
    %1618 = vector.load %arg1[%c2_303, %c0_304, %c0_305] : memref<9x1x256xf32, #tpu.memory_space<vmem>>, vector<1x1x256xf32>
    %1619 = vector.shape_cast %1618 : vector<1x1x256xf32> to vector<1x256xf32>
    %1620 = vector.broadcast %1619 : vector<1x256xf32> to vector<8x256xf32>
    %1621 = arith.mulf %1617, %1620 : vector<8x256xf32>
    %1622 = vector.extract_strided_slice %1621 {offsets = [0, 0], sizes = [1, 256], strides = [1, 1]} : vector<8x256xf32> to vector<1x256xf32>
    %c32_306 = arith.constant 32 : index
    %1623 = memref.load %arg5[%c32_306] : memref<144xf32, #tpu.memory_space<smem>>
    %1624 = vector.broadcast %1623 : f32 to vector<1x256xf32>
    %1625 = arith.mulf %1624, %1622 : vector<1x256xf32>
    %1626 = arith.addf %1604, %1625 : vector<1x256xf32>
    %c33_307 = arith.constant 33 : index
    %1627 = memref.load %arg5[%c33_307] : memref<144xf32, #tpu.memory_space<smem>>
    %1628 = vector.broadcast %1627 : f32 to vector<1x256xf32>
    %1629 = arith.mulf %1628, %1622 : vector<1x256xf32>
    %1630 = arith.addf %1608, %1629 : vector<1x256xf32>
    %c34_308 = arith.constant 34 : index
    %1631 = memref.load %arg5[%c34_308] : memref<144xf32, #tpu.memory_space<smem>>
    %1632 = vector.broadcast %1631 : f32 to vector<1x256xf32>
    %1633 = arith.mulf %1632, %1622 : vector<1x256xf32>
    %1634 = arith.addf %1612, %1633 : vector<1x256xf32>
    %c35_309 = arith.constant 35 : index
    %1635 = memref.load %arg5[%c35_309] : memref<144xf32, #tpu.memory_space<smem>>
    %1636 = vector.broadcast %1635 : f32 to vector<1x256xf32>
    %1637 = arith.mulf %1636, %1622 : vector<1x256xf32>
    %1638 = arith.addf %1616, %1637 : vector<1x256xf32>
    %1639 = vector.extract_strided_slice %1621 {offsets = [1, 0], sizes = [1, 256], strides = [1, 1]} : vector<8x256xf32> to vector<1x256xf32>
    %c36_310 = arith.constant 36 : index
    %1640 = memref.load %arg5[%c36_310] : memref<144xf32, #tpu.memory_space<smem>>
    %1641 = vector.broadcast %1640 : f32 to vector<1x256xf32>
    %1642 = arith.mulf %1641, %1639 : vector<1x256xf32>
    %1643 = arith.addf %1626, %1642 : vector<1x256xf32>
    %c37_311 = arith.constant 37 : index
    %1644 = memref.load %arg5[%c37_311] : memref<144xf32, #tpu.memory_space<smem>>
    %1645 = vector.broadcast %1644 : f32 to vector<1x256xf32>
    %1646 = arith.mulf %1645, %1639 : vector<1x256xf32>
    %1647 = arith.addf %1630, %1646 : vector<1x256xf32>
    %c38_312 = arith.constant 38 : index
    %1648 = memref.load %arg5[%c38_312] : memref<144xf32, #tpu.memory_space<smem>>
    %1649 = vector.broadcast %1648 : f32 to vector<1x256xf32>
    %1650 = arith.mulf %1649, %1639 : vector<1x256xf32>
    %1651 = arith.addf %1634, %1650 : vector<1x256xf32>
    %c39_313 = arith.constant 39 : index
    %1652 = memref.load %arg5[%c39_313] : memref<144xf32, #tpu.memory_space<smem>>
    %1653 = vector.broadcast %1652 : f32 to vector<1x256xf32>
    %1654 = arith.mulf %1653, %1639 : vector<1x256xf32>
    %1655 = arith.addf %1638, %1654 : vector<1x256xf32>
    %1656 = vector.extract_strided_slice %1621 {offsets = [2, 0], sizes = [1, 256], strides = [1, 1]} : vector<8x256xf32> to vector<1x256xf32>
    %c40_314 = arith.constant 40 : index
    %1657 = memref.load %arg5[%c40_314] : memref<144xf32, #tpu.memory_space<smem>>
    %1658 = vector.broadcast %1657 : f32 to vector<1x256xf32>
    %1659 = arith.mulf %1658, %1656 : vector<1x256xf32>
    %1660 = arith.addf %1643, %1659 : vector<1x256xf32>
    %c41_315 = arith.constant 41 : index
    %1661 = memref.load %arg5[%c41_315] : memref<144xf32, #tpu.memory_space<smem>>
    %1662 = vector.broadcast %1661 : f32 to vector<1x256xf32>
    %1663 = arith.mulf %1662, %1656 : vector<1x256xf32>
    %1664 = arith.addf %1647, %1663 : vector<1x256xf32>
    %c42_316 = arith.constant 42 : index
    %1665 = memref.load %arg5[%c42_316] : memref<144xf32, #tpu.memory_space<smem>>
    %1666 = vector.broadcast %1665 : f32 to vector<1x256xf32>
    %1667 = arith.mulf %1666, %1656 : vector<1x256xf32>
    %1668 = arith.addf %1651, %1667 : vector<1x256xf32>
    %c43_317 = arith.constant 43 : index
    %1669 = memref.load %arg5[%c43_317] : memref<144xf32, #tpu.memory_space<smem>>
    %1670 = vector.broadcast %1669 : f32 to vector<1x256xf32>
    %1671 = arith.mulf %1670, %1656 : vector<1x256xf32>
    %1672 = arith.addf %1655, %1671 : vector<1x256xf32>
    %1673 = vector.extract_strided_slice %1621 {offsets = [3, 0], sizes = [1, 256], strides = [1, 1]} : vector<8x256xf32> to vector<1x256xf32>
    %c44_318 = arith.constant 44 : index
    %1674 = memref.load %arg5[%c44_318] : memref<144xf32, #tpu.memory_space<smem>>
    %1675 = vector.broadcast %1674 : f32 to vector<1x256xf32>
    %1676 = arith.mulf %1675, %1673 : vector<1x256xf32>
    %1677 = arith.addf %1660, %1676 : vector<1x256xf32>
    %c45_319 = arith.constant 45 : index
    %1678 = memref.load %arg5[%c45_319] : memref<144xf32, #tpu.memory_space<smem>>
    %1679 = vector.broadcast %1678 : f32 to vector<1x256xf32>
    %1680 = arith.mulf %1679, %1673 : vector<1x256xf32>
    %1681 = arith.addf %1664, %1680 : vector<1x256xf32>
    %c46_320 = arith.constant 46 : index
    %1682 = memref.load %arg5[%c46_320] : memref<144xf32, #tpu.memory_space<smem>>
    %1683 = vector.broadcast %1682 : f32 to vector<1x256xf32>
    %1684 = arith.mulf %1683, %1673 : vector<1x256xf32>
    %1685 = arith.addf %1668, %1684 : vector<1x256xf32>
    %c47_321 = arith.constant 47 : index
    %1686 = memref.load %arg5[%c47_321] : memref<144xf32, #tpu.memory_space<smem>>
    %1687 = vector.broadcast %1686 : f32 to vector<1x256xf32>
    %1688 = arith.mulf %1687, %1673 : vector<1x256xf32>
    %1689 = arith.addf %1672, %1688 : vector<1x256xf32>
    %c1_i32_322 = arith.constant 1 : i32
    %1690 = tpu.dynamic_rotate %1474 by %c1_i32_322 dim 1 : vector<8x256xf32>, i32 -> vector<8x256xf32>
    %c3_323 = arith.constant 3 : index
    %c0_324 = arith.constant 0 : index
    %c0_325 = arith.constant 0 : index
    %1691 = vector.load %arg1[%c3_323, %c0_324, %c0_325] : memref<9x1x256xf32, #tpu.memory_space<vmem>>, vector<1x1x256xf32>
    %1692 = vector.shape_cast %1691 : vector<1x1x256xf32> to vector<1x256xf32>
    %1693 = vector.broadcast %1692 : vector<1x256xf32> to vector<8x256xf32>
    %1694 = arith.mulf %1690, %1693 : vector<8x256xf32>
    %1695 = vector.extract_strided_slice %1694 {offsets = [0, 0], sizes = [1, 256], strides = [1, 1]} : vector<8x256xf32> to vector<1x256xf32>
    %c48_326 = arith.constant 48 : index
    %1696 = memref.load %arg5[%c48_326] : memref<144xf32, #tpu.memory_space<smem>>
    %1697 = vector.broadcast %1696 : f32 to vector<1x256xf32>
    %1698 = arith.mulf %1697, %1695 : vector<1x256xf32>
    %1699 = arith.addf %1677, %1698 : vector<1x256xf32>
    %c49_327 = arith.constant 49 : index
    %1700 = memref.load %arg5[%c49_327] : memref<144xf32, #tpu.memory_space<smem>>
    %1701 = vector.broadcast %1700 : f32 to vector<1x256xf32>
    %1702 = arith.mulf %1701, %1695 : vector<1x256xf32>
    %1703 = arith.addf %1681, %1702 : vector<1x256xf32>
    %c50_328 = arith.constant 50 : index
    %1704 = memref.load %arg5[%c50_328] : memref<144xf32, #tpu.memory_space<smem>>
    %1705 = vector.broadcast %1704 : f32 to vector<1x256xf32>
    %1706 = arith.mulf %1705, %1695 : vector<1x256xf32>
    %1707 = arith.addf %1685, %1706 : vector<1x256xf32>
    %c51_329 = arith.constant 51 : index
    %1708 = memref.load %arg5[%c51_329] : memref<144xf32, #tpu.memory_space<smem>>
    %1709 = vector.broadcast %1708 : f32 to vector<1x256xf32>
    %1710 = arith.mulf %1709, %1695 : vector<1x256xf32>
    %1711 = arith.addf %1689, %1710 : vector<1x256xf32>
    %1712 = vector.extract_strided_slice %1694 {offsets = [1, 0], sizes = [1, 256], strides = [1, 1]} : vector<8x256xf32> to vector<1x256xf32>
    %c52_330 = arith.constant 52 : index
    %1713 = memref.load %arg5[%c52_330] : memref<144xf32, #tpu.memory_space<smem>>
    %1714 = vector.broadcast %1713 : f32 to vector<1x256xf32>
    %1715 = arith.mulf %1714, %1712 : vector<1x256xf32>
    %1716 = arith.addf %1699, %1715 : vector<1x256xf32>
    %c53_331 = arith.constant 53 : index
    %1717 = memref.load %arg5[%c53_331] : memref<144xf32, #tpu.memory_space<smem>>
    %1718 = vector.broadcast %1717 : f32 to vector<1x256xf32>
    %1719 = arith.mulf %1718, %1712 : vector<1x256xf32>
    %1720 = arith.addf %1703, %1719 : vector<1x256xf32>
    %c54_332 = arith.constant 54 : index
    %1721 = memref.load %arg5[%c54_332] : memref<144xf32, #tpu.memory_space<smem>>
    %1722 = vector.broadcast %1721 : f32 to vector<1x256xf32>
    %1723 = arith.mulf %1722, %1712 : vector<1x256xf32>
    %1724 = arith.addf %1707, %1723 : vector<1x256xf32>
    %c55_333 = arith.constant 55 : index
    %1725 = memref.load %arg5[%c55_333] : memref<144xf32, #tpu.memory_space<smem>>
    %1726 = vector.broadcast %1725 : f32 to vector<1x256xf32>
    %1727 = arith.mulf %1726, %1712 : vector<1x256xf32>
    %1728 = arith.addf %1711, %1727 : vector<1x256xf32>
    %1729 = vector.extract_strided_slice %1694 {offsets = [2, 0], sizes = [1, 256], strides = [1, 1]} : vector<8x256xf32> to vector<1x256xf32>
    %c56_334 = arith.constant 56 : index
    %1730 = memref.load %arg5[%c56_334] : memref<144xf32, #tpu.memory_space<smem>>
    %1731 = vector.broadcast %1730 : f32 to vector<1x256xf32>
    %1732 = arith.mulf %1731, %1729 : vector<1x256xf32>
    %1733 = arith.addf %1716, %1732 : vector<1x256xf32>
    %c57_335 = arith.constant 57 : index
    %1734 = memref.load %arg5[%c57_335] : memref<144xf32, #tpu.memory_space<smem>>
    %1735 = vector.broadcast %1734 : f32 to vector<1x256xf32>
    %1736 = arith.mulf %1735, %1729 : vector<1x256xf32>
    %1737 = arith.addf %1720, %1736 : vector<1x256xf32>
    %c58_336 = arith.constant 58 : index
    %1738 = memref.load %arg5[%c58_336] : memref<144xf32, #tpu.memory_space<smem>>
    %1739 = vector.broadcast %1738 : f32 to vector<1x256xf32>
    %1740 = arith.mulf %1739, %1729 : vector<1x256xf32>
    %1741 = arith.addf %1724, %1740 : vector<1x256xf32>
    %c59_337 = arith.constant 59 : index
    %1742 = memref.load %arg5[%c59_337] : memref<144xf32, #tpu.memory_space<smem>>
    %1743 = vector.broadcast %1742 : f32 to vector<1x256xf32>
    %1744 = arith.mulf %1743, %1729 : vector<1x256xf32>
    %1745 = arith.addf %1728, %1744 : vector<1x256xf32>
    %1746 = vector.extract_strided_slice %1694 {offsets = [3, 0], sizes = [1, 256], strides = [1, 1]} : vector<8x256xf32> to vector<1x256xf32>
    %c60_338 = arith.constant 60 : index
    %1747 = memref.load %arg5[%c60_338] : memref<144xf32, #tpu.memory_space<smem>>
    %1748 = vector.broadcast %1747 : f32 to vector<1x256xf32>
    %1749 = arith.mulf %1748, %1746 : vector<1x256xf32>
    %1750 = arith.addf %1733, %1749 : vector<1x256xf32>
    %c61_339 = arith.constant 61 : index
    %1751 = memref.load %arg5[%c61_339] : memref<144xf32, #tpu.memory_space<smem>>
    %1752 = vector.broadcast %1751 : f32 to vector<1x256xf32>
    %1753 = arith.mulf %1752, %1746 : vector<1x256xf32>
    %1754 = arith.addf %1737, %1753 : vector<1x256xf32>
    %c62_340 = arith.constant 62 : index
    %1755 = memref.load %arg5[%c62_340] : memref<144xf32, #tpu.memory_space<smem>>
    %1756 = vector.broadcast %1755 : f32 to vector<1x256xf32>
    %1757 = arith.mulf %1756, %1746 : vector<1x256xf32>
    %1758 = arith.addf %1741, %1757 : vector<1x256xf32>
    %c63_341 = arith.constant 63 : index
    %1759 = memref.load %arg5[%c63_341] : memref<144xf32, #tpu.memory_space<smem>>
    %1760 = vector.broadcast %1759 : f32 to vector<1x256xf32>
    %1761 = arith.mulf %1760, %1746 : vector<1x256xf32>
    %1762 = arith.addf %1745, %1761 : vector<1x256xf32>
    %1763 = vector.extract_strided_slice %1474 {offsets = [0, 0], sizes = [1, 256], strides = [1, 1]} : vector<8x256xf32> to vector<1x256xf32>
    %c64_342 = arith.constant 64 : index
    %1764 = memref.load %arg5[%c64_342] : memref<144xf32, #tpu.memory_space<smem>>
    %1765 = vector.broadcast %1764 : f32 to vector<1x256xf32>
    %1766 = arith.mulf %1765, %1763 : vector<1x256xf32>
    %1767 = arith.addf %1750, %1766 : vector<1x256xf32>
    %c65_343 = arith.constant 65 : index
    %1768 = memref.load %arg5[%c65_343] : memref<144xf32, #tpu.memory_space<smem>>
    %1769 = vector.broadcast %1768 : f32 to vector<1x256xf32>
    %1770 = arith.mulf %1769, %1763 : vector<1x256xf32>
    %1771 = arith.addf %1754, %1770 : vector<1x256xf32>
    %c66_344 = arith.constant 66 : index
    %1772 = memref.load %arg5[%c66_344] : memref<144xf32, #tpu.memory_space<smem>>
    %1773 = vector.broadcast %1772 : f32 to vector<1x256xf32>
    %1774 = arith.mulf %1773, %1763 : vector<1x256xf32>
    %1775 = arith.addf %1758, %1774 : vector<1x256xf32>
    %c67_345 = arith.constant 67 : index
    %1776 = memref.load %arg5[%c67_345] : memref<144xf32, #tpu.memory_space<smem>>
    %1777 = vector.broadcast %1776 : f32 to vector<1x256xf32>
    %1778 = arith.mulf %1777, %1763 : vector<1x256xf32>
    %1779 = arith.addf %1762, %1778 : vector<1x256xf32>
    %1780 = vector.extract_strided_slice %1474 {offsets = [1, 0], sizes = [1, 256], strides = [1, 1]} : vector<8x256xf32> to vector<1x256xf32>
    %c68_346 = arith.constant 68 : index
    %1781 = memref.load %arg5[%c68_346] : memref<144xf32, #tpu.memory_space<smem>>
    %1782 = vector.broadcast %1781 : f32 to vector<1x256xf32>
    %1783 = arith.mulf %1782, %1780 : vector<1x256xf32>
    %1784 = arith.addf %1767, %1783 : vector<1x256xf32>
    %c69_347 = arith.constant 69 : index
    %1785 = memref.load %arg5[%c69_347] : memref<144xf32, #tpu.memory_space<smem>>
    %1786 = vector.broadcast %1785 : f32 to vector<1x256xf32>
    %1787 = arith.mulf %1786, %1780 : vector<1x256xf32>
    %1788 = arith.addf %1771, %1787 : vector<1x256xf32>
    %c70_348 = arith.constant 70 : index
    %1789 = memref.load %arg5[%c70_348] : memref<144xf32, #tpu.memory_space<smem>>
    %1790 = vector.broadcast %1789 : f32 to vector<1x256xf32>
    %1791 = arith.mulf %1790, %1780 : vector<1x256xf32>
    %1792 = arith.addf %1775, %1791 : vector<1x256xf32>
    %c71_349 = arith.constant 71 : index
    %1793 = memref.load %arg5[%c71_349] : memref<144xf32, #tpu.memory_space<smem>>
    %1794 = vector.broadcast %1793 : f32 to vector<1x256xf32>
    %1795 = arith.mulf %1794, %1780 : vector<1x256xf32>
    %1796 = arith.addf %1779, %1795 : vector<1x256xf32>
    %1797 = vector.extract_strided_slice %1474 {offsets = [2, 0], sizes = [1, 256], strides = [1, 1]} : vector<8x256xf32> to vector<1x256xf32>
    %c72_350 = arith.constant 72 : index
    %1798 = memref.load %arg5[%c72_350] : memref<144xf32, #tpu.memory_space<smem>>
    %1799 = vector.broadcast %1798 : f32 to vector<1x256xf32>
    %1800 = arith.mulf %1799, %1797 : vector<1x256xf32>
    %1801 = arith.addf %1784, %1800 : vector<1x256xf32>
    %c73_351 = arith.constant 73 : index
    %1802 = memref.load %arg5[%c73_351] : memref<144xf32, #tpu.memory_space<smem>>
    %1803 = vector.broadcast %1802 : f32 to vector<1x256xf32>
    %1804 = arith.mulf %1803, %1797 : vector<1x256xf32>
    %1805 = arith.addf %1788, %1804 : vector<1x256xf32>
    %c74_352 = arith.constant 74 : index
    %1806 = memref.load %arg5[%c74_352] : memref<144xf32, #tpu.memory_space<smem>>
    %1807 = vector.broadcast %1806 : f32 to vector<1x256xf32>
    %1808 = arith.mulf %1807, %1797 : vector<1x256xf32>
    %1809 = arith.addf %1792, %1808 : vector<1x256xf32>
    %c75_353 = arith.constant 75 : index
    %1810 = memref.load %arg5[%c75_353] : memref<144xf32, #tpu.memory_space<smem>>
    %1811 = vector.broadcast %1810 : f32 to vector<1x256xf32>
    %1812 = arith.mulf %1811, %1797 : vector<1x256xf32>
    %1813 = arith.addf %1796, %1812 : vector<1x256xf32>
    %1814 = vector.extract_strided_slice %1474 {offsets = [3, 0], sizes = [1, 256], strides = [1, 1]} : vector<8x256xf32> to vector<1x256xf32>
    %c76_354 = arith.constant 76 : index
    %1815 = memref.load %arg5[%c76_354] : memref<144xf32, #tpu.memory_space<smem>>
    %1816 = vector.broadcast %1815 : f32 to vector<1x256xf32>
    %1817 = arith.mulf %1816, %1814 : vector<1x256xf32>
    %1818 = arith.addf %1801, %1817 : vector<1x256xf32>
    %c77_355 = arith.constant 77 : index
    %1819 = memref.load %arg5[%c77_355] : memref<144xf32, #tpu.memory_space<smem>>
    %1820 = vector.broadcast %1819 : f32 to vector<1x256xf32>
    %1821 = arith.mulf %1820, %1814 : vector<1x256xf32>
    %1822 = arith.addf %1805, %1821 : vector<1x256xf32>
    %c78_356 = arith.constant 78 : index
    %1823 = memref.load %arg5[%c78_356] : memref<144xf32, #tpu.memory_space<smem>>
    %1824 = vector.broadcast %1823 : f32 to vector<1x256xf32>
    %1825 = arith.mulf %1824, %1814 : vector<1x256xf32>
    %1826 = arith.addf %1809, %1825 : vector<1x256xf32>
    %c79_357 = arith.constant 79 : index
    %1827 = memref.load %arg5[%c79_357] : memref<144xf32, #tpu.memory_space<smem>>
    %1828 = vector.broadcast %1827 : f32 to vector<1x256xf32>
    %1829 = arith.mulf %1828, %1814 : vector<1x256xf32>
    %1830 = arith.addf %1813, %1829 : vector<1x256xf32>
    %c255_i32_358 = arith.constant 255 : i32
    %1831 = tpu.dynamic_rotate %1474 by %c255_i32_358 dim 1 : vector<8x256xf32>, i32 -> vector<8x256xf32>
    %c5_359 = arith.constant 5 : index
    %c0_360 = arith.constant 0 : index
    %c0_361 = arith.constant 0 : index
    %1832 = vector.load %arg1[%c5_359, %c0_360, %c0_361] : memref<9x1x256xf32, #tpu.memory_space<vmem>>, vector<1x1x256xf32>
    %1833 = vector.shape_cast %1832 : vector<1x1x256xf32> to vector<1x256xf32>
    %1834 = vector.broadcast %1833 : vector<1x256xf32> to vector<8x256xf32>
    %1835 = arith.mulf %1831, %1834 : vector<8x256xf32>
    %1836 = vector.extract_strided_slice %1835 {offsets = [0, 0], sizes = [1, 256], strides = [1, 1]} : vector<8x256xf32> to vector<1x256xf32>
    %c80_362 = arith.constant 80 : index
    %1837 = memref.load %arg5[%c80_362] : memref<144xf32, #tpu.memory_space<smem>>
    %1838 = vector.broadcast %1837 : f32 to vector<1x256xf32>
    %1839 = arith.mulf %1838, %1836 : vector<1x256xf32>
    %1840 = arith.addf %1818, %1839 : vector<1x256xf32>
    %c81_363 = arith.constant 81 : index
    %1841 = memref.load %arg5[%c81_363] : memref<144xf32, #tpu.memory_space<smem>>
    %1842 = vector.broadcast %1841 : f32 to vector<1x256xf32>
    %1843 = arith.mulf %1842, %1836 : vector<1x256xf32>
    %1844 = arith.addf %1822, %1843 : vector<1x256xf32>
    %c82_364 = arith.constant 82 : index
    %1845 = memref.load %arg5[%c82_364] : memref<144xf32, #tpu.memory_space<smem>>
    %1846 = vector.broadcast %1845 : f32 to vector<1x256xf32>
    %1847 = arith.mulf %1846, %1836 : vector<1x256xf32>
    %1848 = arith.addf %1826, %1847 : vector<1x256xf32>
    %c83_365 = arith.constant 83 : index
    %1849 = memref.load %arg5[%c83_365] : memref<144xf32, #tpu.memory_space<smem>>
    %1850 = vector.broadcast %1849 : f32 to vector<1x256xf32>
    %1851 = arith.mulf %1850, %1836 : vector<1x256xf32>
    %1852 = arith.addf %1830, %1851 : vector<1x256xf32>
    %1853 = vector.extract_strided_slice %1835 {offsets = [1, 0], sizes = [1, 256], strides = [1, 1]} : vector<8x256xf32> to vector<1x256xf32>
    %c84_366 = arith.constant 84 : index
    %1854 = memref.load %arg5[%c84_366] : memref<144xf32, #tpu.memory_space<smem>>
    %1855 = vector.broadcast %1854 : f32 to vector<1x256xf32>
    %1856 = arith.mulf %1855, %1853 : vector<1x256xf32>
    %1857 = arith.addf %1840, %1856 : vector<1x256xf32>
    %c85_367 = arith.constant 85 : index
    %1858 = memref.load %arg5[%c85_367] : memref<144xf32, #tpu.memory_space<smem>>
    %1859 = vector.broadcast %1858 : f32 to vector<1x256xf32>
    %1860 = arith.mulf %1859, %1853 : vector<1x256xf32>
    %1861 = arith.addf %1844, %1860 : vector<1x256xf32>
    %c86_368 = arith.constant 86 : index
    %1862 = memref.load %arg5[%c86_368] : memref<144xf32, #tpu.memory_space<smem>>
    %1863 = vector.broadcast %1862 : f32 to vector<1x256xf32>
    %1864 = arith.mulf %1863, %1853 : vector<1x256xf32>
    %1865 = arith.addf %1848, %1864 : vector<1x256xf32>
    %c87_369 = arith.constant 87 : index
    %1866 = memref.load %arg5[%c87_369] : memref<144xf32, #tpu.memory_space<smem>>
    %1867 = vector.broadcast %1866 : f32 to vector<1x256xf32>
    %1868 = arith.mulf %1867, %1853 : vector<1x256xf32>
    %1869 = arith.addf %1852, %1868 : vector<1x256xf32>
    %1870 = vector.extract_strided_slice %1835 {offsets = [2, 0], sizes = [1, 256], strides = [1, 1]} : vector<8x256xf32> to vector<1x256xf32>
    %c88_370 = arith.constant 88 : index
    %1871 = memref.load %arg5[%c88_370] : memref<144xf32, #tpu.memory_space<smem>>
    %1872 = vector.broadcast %1871 : f32 to vector<1x256xf32>
    %1873 = arith.mulf %1872, %1870 : vector<1x256xf32>
    %1874 = arith.addf %1857, %1873 : vector<1x256xf32>
    %c89_371 = arith.constant 89 : index
    %1875 = memref.load %arg5[%c89_371] : memref<144xf32, #tpu.memory_space<smem>>
    %1876 = vector.broadcast %1875 : f32 to vector<1x256xf32>
    %1877 = arith.mulf %1876, %1870 : vector<1x256xf32>
    %1878 = arith.addf %1861, %1877 : vector<1x256xf32>
    %c90_372 = arith.constant 90 : index
    %1879 = memref.load %arg5[%c90_372] : memref<144xf32, #tpu.memory_space<smem>>
    %1880 = vector.broadcast %1879 : f32 to vector<1x256xf32>
    %1881 = arith.mulf %1880, %1870 : vector<1x256xf32>
    %1882 = arith.addf %1865, %1881 : vector<1x256xf32>
    %c91_373 = arith.constant 91 : index
    %1883 = memref.load %arg5[%c91_373] : memref<144xf32, #tpu.memory_space<smem>>
    %1884 = vector.broadcast %1883 : f32 to vector<1x256xf32>
    %1885 = arith.mulf %1884, %1870 : vector<1x256xf32>
    %1886 = arith.addf %1869, %1885 : vector<1x256xf32>
    %1887 = vector.extract_strided_slice %1835 {offsets = [3, 0], sizes = [1, 256], strides = [1, 1]} : vector<8x256xf32> to vector<1x256xf32>
    %c92_374 = arith.constant 92 : index
    %1888 = memref.load %arg5[%c92_374] : memref<144xf32, #tpu.memory_space<smem>>
    %1889 = vector.broadcast %1888 : f32 to vector<1x256xf32>
    %1890 = arith.mulf %1889, %1887 : vector<1x256xf32>
    %1891 = arith.addf %1874, %1890 : vector<1x256xf32>
    %c93_375 = arith.constant 93 : index
    %1892 = memref.load %arg5[%c93_375] : memref<144xf32, #tpu.memory_space<smem>>
    %1893 = vector.broadcast %1892 : f32 to vector<1x256xf32>
    %1894 = arith.mulf %1893, %1887 : vector<1x256xf32>
    %1895 = arith.addf %1878, %1894 : vector<1x256xf32>
    %c94_376 = arith.constant 94 : index
    %1896 = memref.load %arg5[%c94_376] : memref<144xf32, #tpu.memory_space<smem>>
    %1897 = vector.broadcast %1896 : f32 to vector<1x256xf32>
    %1898 = arith.mulf %1897, %1887 : vector<1x256xf32>
    %1899 = arith.addf %1882, %1898 : vector<1x256xf32>
    %c95_377 = arith.constant 95 : index
    %1900 = memref.load %arg5[%c95_377] : memref<144xf32, #tpu.memory_space<smem>>
    %1901 = vector.broadcast %1900 : f32 to vector<1x256xf32>
    %1902 = arith.mulf %1901, %1887 : vector<1x256xf32>
    %1903 = arith.addf %1886, %1902 : vector<1x256xf32>
    %c241_i32_378 = arith.constant 241 : i32
    %1904 = tpu.dynamic_rotate %1474 by %c241_i32_378 dim 1 : vector<8x256xf32>, i32 -> vector<8x256xf32>
    %c6_379 = arith.constant 6 : index
    %c0_380 = arith.constant 0 : index
    %c0_381 = arith.constant 0 : index
    %1905 = vector.load %arg1[%c6_379, %c0_380, %c0_381] : memref<9x1x256xf32, #tpu.memory_space<vmem>>, vector<1x1x256xf32>
    %1906 = vector.shape_cast %1905 : vector<1x1x256xf32> to vector<1x256xf32>
    %1907 = vector.broadcast %1906 : vector<1x256xf32> to vector<8x256xf32>
    %1908 = arith.mulf %1904, %1907 : vector<8x256xf32>
    %1909 = vector.extract_strided_slice %1908 {offsets = [0, 0], sizes = [1, 256], strides = [1, 1]} : vector<8x256xf32> to vector<1x256xf32>
    %c96_382 = arith.constant 96 : index
    %1910 = memref.load %arg5[%c96_382] : memref<144xf32, #tpu.memory_space<smem>>
    %1911 = vector.broadcast %1910 : f32 to vector<1x256xf32>
    %1912 = arith.mulf %1911, %1909 : vector<1x256xf32>
    %1913 = arith.addf %1891, %1912 : vector<1x256xf32>
    %c97_383 = arith.constant 97 : index
    %1914 = memref.load %arg5[%c97_383] : memref<144xf32, #tpu.memory_space<smem>>
    %1915 = vector.broadcast %1914 : f32 to vector<1x256xf32>
    %1916 = arith.mulf %1915, %1909 : vector<1x256xf32>
    %1917 = arith.addf %1895, %1916 : vector<1x256xf32>
    %c98_384 = arith.constant 98 : index
    %1918 = memref.load %arg5[%c98_384] : memref<144xf32, #tpu.memory_space<smem>>
    %1919 = vector.broadcast %1918 : f32 to vector<1x256xf32>
    %1920 = arith.mulf %1919, %1909 : vector<1x256xf32>
    %1921 = arith.addf %1899, %1920 : vector<1x256xf32>
    %c99_385 = arith.constant 99 : index
    %1922 = memref.load %arg5[%c99_385] : memref<144xf32, #tpu.memory_space<smem>>
    %1923 = vector.broadcast %1922 : f32 to vector<1x256xf32>
    %1924 = arith.mulf %1923, %1909 : vector<1x256xf32>
    %1925 = arith.addf %1903, %1924 : vector<1x256xf32>
    %1926 = vector.extract_strided_slice %1908 {offsets = [1, 0], sizes = [1, 256], strides = [1, 1]} : vector<8x256xf32> to vector<1x256xf32>
    %c100_386 = arith.constant 100 : index
    %1927 = memref.load %arg5[%c100_386] : memref<144xf32, #tpu.memory_space<smem>>
    %1928 = vector.broadcast %1927 : f32 to vector<1x256xf32>
    %1929 = arith.mulf %1928, %1926 : vector<1x256xf32>
    %1930 = arith.addf %1913, %1929 : vector<1x256xf32>
    %c101_387 = arith.constant 101 : index
    %1931 = memref.load %arg5[%c101_387] : memref<144xf32, #tpu.memory_space<smem>>
    %1932 = vector.broadcast %1931 : f32 to vector<1x256xf32>
    %1933 = arith.mulf %1932, %1926 : vector<1x256xf32>
    %1934 = arith.addf %1917, %1933 : vector<1x256xf32>
    %c102_388 = arith.constant 102 : index
    %1935 = memref.load %arg5[%c102_388] : memref<144xf32, #tpu.memory_space<smem>>
    %1936 = vector.broadcast %1935 : f32 to vector<1x256xf32>
    %1937 = arith.mulf %1936, %1926 : vector<1x256xf32>
    %1938 = arith.addf %1921, %1937 : vector<1x256xf32>
    %c103_389 = arith.constant 103 : index
    %1939 = memref.load %arg5[%c103_389] : memref<144xf32, #tpu.memory_space<smem>>
    %1940 = vector.broadcast %1939 : f32 to vector<1x256xf32>
    %1941 = arith.mulf %1940, %1926 : vector<1x256xf32>
    %1942 = arith.addf %1925, %1941 : vector<1x256xf32>
    %1943 = vector.extract_strided_slice %1908 {offsets = [2, 0], sizes = [1, 256], strides = [1, 1]} : vector<8x256xf32> to vector<1x256xf32>
    %c104_390 = arith.constant 104 : index
    %1944 = memref.load %arg5[%c104_390] : memref<144xf32, #tpu.memory_space<smem>>
    %1945 = vector.broadcast %1944 : f32 to vector<1x256xf32>
    %1946 = arith.mulf %1945, %1943 : vector<1x256xf32>
    %1947 = arith.addf %1930, %1946 : vector<1x256xf32>
    %c105_391 = arith.constant 105 : index
    %1948 = memref.load %arg5[%c105_391] : memref<144xf32, #tpu.memory_space<smem>>
    %1949 = vector.broadcast %1948 : f32 to vector<1x256xf32>
    %1950 = arith.mulf %1949, %1943 : vector<1x256xf32>
    %1951 = arith.addf %1934, %1950 : vector<1x256xf32>
    %c106_392 = arith.constant 106 : index
    %1952 = memref.load %arg5[%c106_392] : memref<144xf32, #tpu.memory_space<smem>>
    %1953 = vector.broadcast %1952 : f32 to vector<1x256xf32>
    %1954 = arith.mulf %1953, %1943 : vector<1x256xf32>
    %1955 = arith.addf %1938, %1954 : vector<1x256xf32>
    %c107_393 = arith.constant 107 : index
    %1956 = memref.load %arg5[%c107_393] : memref<144xf32, #tpu.memory_space<smem>>
    %1957 = vector.broadcast %1956 : f32 to vector<1x256xf32>
    %1958 = arith.mulf %1957, %1943 : vector<1x256xf32>
    %1959 = arith.addf %1942, %1958 : vector<1x256xf32>
    %1960 = vector.extract_strided_slice %1908 {offsets = [3, 0], sizes = [1, 256], strides = [1, 1]} : vector<8x256xf32> to vector<1x256xf32>
    %c108_394 = arith.constant 108 : index
    %1961 = memref.load %arg5[%c108_394] : memref<144xf32, #tpu.memory_space<smem>>
    %1962 = vector.broadcast %1961 : f32 to vector<1x256xf32>
    %1963 = arith.mulf %1962, %1960 : vector<1x256xf32>
    %1964 = arith.addf %1947, %1963 : vector<1x256xf32>
    %c109_395 = arith.constant 109 : index
    %1965 = memref.load %arg5[%c109_395] : memref<144xf32, #tpu.memory_space<smem>>
    %1966 = vector.broadcast %1965 : f32 to vector<1x256xf32>
    %1967 = arith.mulf %1966, %1960 : vector<1x256xf32>
    %1968 = arith.addf %1951, %1967 : vector<1x256xf32>
    %c110_396 = arith.constant 110 : index
    %1969 = memref.load %arg5[%c110_396] : memref<144xf32, #tpu.memory_space<smem>>
    %1970 = vector.broadcast %1969 : f32 to vector<1x256xf32>
    %1971 = arith.mulf %1970, %1960 : vector<1x256xf32>
    %1972 = arith.addf %1955, %1971 : vector<1x256xf32>
    %c111_397 = arith.constant 111 : index
    %1973 = memref.load %arg5[%c111_397] : memref<144xf32, #tpu.memory_space<smem>>
    %1974 = vector.broadcast %1973 : f32 to vector<1x256xf32>
    %1975 = arith.mulf %1974, %1960 : vector<1x256xf32>
    %1976 = arith.addf %1959, %1975 : vector<1x256xf32>
    %c240_i32_398 = arith.constant 240 : i32
    %1977 = tpu.dynamic_rotate %1474 by %c240_i32_398 dim 1 : vector<8x256xf32>, i32 -> vector<8x256xf32>
    %c7_399 = arith.constant 7 : index
    %c0_400 = arith.constant 0 : index
    %c0_401 = arith.constant 0 : index
    %1978 = vector.load %arg1[%c7_399, %c0_400, %c0_401] : memref<9x1x256xf32, #tpu.memory_space<vmem>>, vector<1x1x256xf32>
    %1979 = vector.shape_cast %1978 : vector<1x1x256xf32> to vector<1x256xf32>
    %1980 = vector.broadcast %1979 : vector<1x256xf32> to vector<8x256xf32>
    %1981 = arith.mulf %1977, %1980 : vector<8x256xf32>
    %1982 = vector.extract_strided_slice %1981 {offsets = [0, 0], sizes = [1, 256], strides = [1, 1]} : vector<8x256xf32> to vector<1x256xf32>
    %c112_402 = arith.constant 112 : index
    %1983 = memref.load %arg5[%c112_402] : memref<144xf32, #tpu.memory_space<smem>>
    %1984 = vector.broadcast %1983 : f32 to vector<1x256xf32>
    %1985 = arith.mulf %1984, %1982 : vector<1x256xf32>
    %1986 = arith.addf %1964, %1985 : vector<1x256xf32>
    %c113_403 = arith.constant 113 : index
    %1987 = memref.load %arg5[%c113_403] : memref<144xf32, #tpu.memory_space<smem>>
    %1988 = vector.broadcast %1987 : f32 to vector<1x256xf32>
    %1989 = arith.mulf %1988, %1982 : vector<1x256xf32>
    %1990 = arith.addf %1968, %1989 : vector<1x256xf32>
    %c114_404 = arith.constant 114 : index
    %1991 = memref.load %arg5[%c114_404] : memref<144xf32, #tpu.memory_space<smem>>
    %1992 = vector.broadcast %1991 : f32 to vector<1x256xf32>
    %1993 = arith.mulf %1992, %1982 : vector<1x256xf32>
    %1994 = arith.addf %1972, %1993 : vector<1x256xf32>
    %c115_405 = arith.constant 115 : index
    %1995 = memref.load %arg5[%c115_405] : memref<144xf32, #tpu.memory_space<smem>>
    %1996 = vector.broadcast %1995 : f32 to vector<1x256xf32>
    %1997 = arith.mulf %1996, %1982 : vector<1x256xf32>
    %1998 = arith.addf %1976, %1997 : vector<1x256xf32>
    %1999 = vector.extract_strided_slice %1981 {offsets = [1, 0], sizes = [1, 256], strides = [1, 1]} : vector<8x256xf32> to vector<1x256xf32>
    %c116_406 = arith.constant 116 : index
    %2000 = memref.load %arg5[%c116_406] : memref<144xf32, #tpu.memory_space<smem>>
    %2001 = vector.broadcast %2000 : f32 to vector<1x256xf32>
    %2002 = arith.mulf %2001, %1999 : vector<1x256xf32>
    %2003 = arith.addf %1986, %2002 : vector<1x256xf32>
    %c117_407 = arith.constant 117 : index
    %2004 = memref.load %arg5[%c117_407] : memref<144xf32, #tpu.memory_space<smem>>
    %2005 = vector.broadcast %2004 : f32 to vector<1x256xf32>
    %2006 = arith.mulf %2005, %1999 : vector<1x256xf32>
    %2007 = arith.addf %1990, %2006 : vector<1x256xf32>
    %c118_408 = arith.constant 118 : index
    %2008 = memref.load %arg5[%c118_408] : memref<144xf32, #tpu.memory_space<smem>>
    %2009 = vector.broadcast %2008 : f32 to vector<1x256xf32>
    %2010 = arith.mulf %2009, %1999 : vector<1x256xf32>
    %2011 = arith.addf %1994, %2010 : vector<1x256xf32>
    %c119_409 = arith.constant 119 : index
    %2012 = memref.load %arg5[%c119_409] : memref<144xf32, #tpu.memory_space<smem>>
    %2013 = vector.broadcast %2012 : f32 to vector<1x256xf32>
    %2014 = arith.mulf %2013, %1999 : vector<1x256xf32>
    %2015 = arith.addf %1998, %2014 : vector<1x256xf32>
    %2016 = vector.extract_strided_slice %1981 {offsets = [2, 0], sizes = [1, 256], strides = [1, 1]} : vector<8x256xf32> to vector<1x256xf32>
    %c120_410 = arith.constant 120 : index
    %2017 = memref.load %arg5[%c120_410] : memref<144xf32, #tpu.memory_space<smem>>
    %2018 = vector.broadcast %2017 : f32 to vector<1x256xf32>
    %2019 = arith.mulf %2018, %2016 : vector<1x256xf32>
    %2020 = arith.addf %2003, %2019 : vector<1x256xf32>
    %c121_411 = arith.constant 121 : index
    %2021 = memref.load %arg5[%c121_411] : memref<144xf32, #tpu.memory_space<smem>>
    %2022 = vector.broadcast %2021 : f32 to vector<1x256xf32>
    %2023 = arith.mulf %2022, %2016 : vector<1x256xf32>
    %2024 = arith.addf %2007, %2023 : vector<1x256xf32>
    %c122_412 = arith.constant 122 : index
    %2025 = memref.load %arg5[%c122_412] : memref<144xf32, #tpu.memory_space<smem>>
    %2026 = vector.broadcast %2025 : f32 to vector<1x256xf32>
    %2027 = arith.mulf %2026, %2016 : vector<1x256xf32>
    %2028 = arith.addf %2011, %2027 : vector<1x256xf32>
    %c123_413 = arith.constant 123 : index
    %2029 = memref.load %arg5[%c123_413] : memref<144xf32, #tpu.memory_space<smem>>
    %2030 = vector.broadcast %2029 : f32 to vector<1x256xf32>
    %2031 = arith.mulf %2030, %2016 : vector<1x256xf32>
    %2032 = arith.addf %2015, %2031 : vector<1x256xf32>
    %2033 = vector.extract_strided_slice %1981 {offsets = [3, 0], sizes = [1, 256], strides = [1, 1]} : vector<8x256xf32> to vector<1x256xf32>
    %c124_414 = arith.constant 124 : index
    %2034 = memref.load %arg5[%c124_414] : memref<144xf32, #tpu.memory_space<smem>>
    %2035 = vector.broadcast %2034 : f32 to vector<1x256xf32>
    %2036 = arith.mulf %2035, %2033 : vector<1x256xf32>
    %2037 = arith.addf %2020, %2036 : vector<1x256xf32>
    %c125_415 = arith.constant 125 : index
    %2038 = memref.load %arg5[%c125_415] : memref<144xf32, #tpu.memory_space<smem>>
    %2039 = vector.broadcast %2038 : f32 to vector<1x256xf32>
    %2040 = arith.mulf %2039, %2033 : vector<1x256xf32>
    %2041 = arith.addf %2024, %2040 : vector<1x256xf32>
    %c126_416 = arith.constant 126 : index
    %2042 = memref.load %arg5[%c126_416] : memref<144xf32, #tpu.memory_space<smem>>
    %2043 = vector.broadcast %2042 : f32 to vector<1x256xf32>
    %2044 = arith.mulf %2043, %2033 : vector<1x256xf32>
    %2045 = arith.addf %2028, %2044 : vector<1x256xf32>
    %c127_417 = arith.constant 127 : index
    %2046 = memref.load %arg5[%c127_417] : memref<144xf32, #tpu.memory_space<smem>>
    %2047 = vector.broadcast %2046 : f32 to vector<1x256xf32>
    %2048 = arith.mulf %2047, %2033 : vector<1x256xf32>
    %2049 = arith.addf %2032, %2048 : vector<1x256xf32>
    %c239_i32_418 = arith.constant 239 : i32
    %2050 = tpu.dynamic_rotate %1474 by %c239_i32_418 dim 1 : vector<8x256xf32>, i32 -> vector<8x256xf32>
    %c8_419 = arith.constant 8 : index
    %c0_420 = arith.constant 0 : index
    %c0_421 = arith.constant 0 : index
    %2051 = vector.load %arg1[%c8_419, %c0_420, %c0_421] : memref<9x1x256xf32, #tpu.memory_space<vmem>>, vector<1x1x256xf32>
    %2052 = vector.shape_cast %2051 : vector<1x1x256xf32> to vector<1x256xf32>
    %2053 = vector.broadcast %2052 : vector<1x256xf32> to vector<8x256xf32>
    %2054 = arith.mulf %2050, %2053 : vector<8x256xf32>
    %2055 = vector.extract_strided_slice %2054 {offsets = [0, 0], sizes = [1, 256], strides = [1, 1]} : vector<8x256xf32> to vector<1x256xf32>
    %c128_422 = arith.constant 128 : index
    %2056 = memref.load %arg5[%c128_422] : memref<144xf32, #tpu.memory_space<smem>>
    %2057 = vector.broadcast %2056 : f32 to vector<1x256xf32>
    %2058 = arith.mulf %2057, %2055 : vector<1x256xf32>
    %2059 = arith.addf %2037, %2058 : vector<1x256xf32>
    %c129_423 = arith.constant 129 : index
    %2060 = memref.load %arg5[%c129_423] : memref<144xf32, #tpu.memory_space<smem>>
    %2061 = vector.broadcast %2060 : f32 to vector<1x256xf32>
    %2062 = arith.mulf %2061, %2055 : vector<1x256xf32>
    %2063 = arith.addf %2041, %2062 : vector<1x256xf32>
    %c130_424 = arith.constant 130 : index
    %2064 = memref.load %arg5[%c130_424] : memref<144xf32, #tpu.memory_space<smem>>
    %2065 = vector.broadcast %2064 : f32 to vector<1x256xf32>
    %2066 = arith.mulf %2065, %2055 : vector<1x256xf32>
    %2067 = arith.addf %2045, %2066 : vector<1x256xf32>
    %c131_425 = arith.constant 131 : index
    %2068 = memref.load %arg5[%c131_425] : memref<144xf32, #tpu.memory_space<smem>>
    %2069 = vector.broadcast %2068 : f32 to vector<1x256xf32>
    %2070 = arith.mulf %2069, %2055 : vector<1x256xf32>
    %2071 = arith.addf %2049, %2070 : vector<1x256xf32>
    %2072 = vector.extract_strided_slice %2054 {offsets = [1, 0], sizes = [1, 256], strides = [1, 1]} : vector<8x256xf32> to vector<1x256xf32>
    %c132_426 = arith.constant 132 : index
    %2073 = memref.load %arg5[%c132_426] : memref<144xf32, #tpu.memory_space<smem>>
    %2074 = vector.broadcast %2073 : f32 to vector<1x256xf32>
    %2075 = arith.mulf %2074, %2072 : vector<1x256xf32>
    %2076 = arith.addf %2059, %2075 : vector<1x256xf32>
    %c133_427 = arith.constant 133 : index
    %2077 = memref.load %arg5[%c133_427] : memref<144xf32, #tpu.memory_space<smem>>
    %2078 = vector.broadcast %2077 : f32 to vector<1x256xf32>
    %2079 = arith.mulf %2078, %2072 : vector<1x256xf32>
    %2080 = arith.addf %2063, %2079 : vector<1x256xf32>
    %c134_428 = arith.constant 134 : index
    %2081 = memref.load %arg5[%c134_428] : memref<144xf32, #tpu.memory_space<smem>>
    %2082 = vector.broadcast %2081 : f32 to vector<1x256xf32>
    %2083 = arith.mulf %2082, %2072 : vector<1x256xf32>
    %2084 = arith.addf %2067, %2083 : vector<1x256xf32>
    %c135_429 = arith.constant 135 : index
    %2085 = memref.load %arg5[%c135_429] : memref<144xf32, #tpu.memory_space<smem>>
    %2086 = vector.broadcast %2085 : f32 to vector<1x256xf32>
    %2087 = arith.mulf %2086, %2072 : vector<1x256xf32>
    %2088 = arith.addf %2071, %2087 : vector<1x256xf32>
    %2089 = vector.extract_strided_slice %2054 {offsets = [2, 0], sizes = [1, 256], strides = [1, 1]} : vector<8x256xf32> to vector<1x256xf32>
    %c136_430 = arith.constant 136 : index
    %2090 = memref.load %arg5[%c136_430] : memref<144xf32, #tpu.memory_space<smem>>
    %2091 = vector.broadcast %2090 : f32 to vector<1x256xf32>
    %2092 = arith.mulf %2091, %2089 : vector<1x256xf32>
    %2093 = arith.addf %2076, %2092 : vector<1x256xf32>
    %c137_431 = arith.constant 137 : index
    %2094 = memref.load %arg5[%c137_431] : memref<144xf32, #tpu.memory_space<smem>>
    %2095 = vector.broadcast %2094 : f32 to vector<1x256xf32>
    %2096 = arith.mulf %2095, %2089 : vector<1x256xf32>
    %2097 = arith.addf %2080, %2096 : vector<1x256xf32>
    %c138_432 = arith.constant 138 : index
    %2098 = memref.load %arg5[%c138_432] : memref<144xf32, #tpu.memory_space<smem>>
    %2099 = vector.broadcast %2098 : f32 to vector<1x256xf32>
    %2100 = arith.mulf %2099, %2089 : vector<1x256xf32>
    %2101 = arith.addf %2084, %2100 : vector<1x256xf32>
    %c139_433 = arith.constant 139 : index
    %2102 = memref.load %arg5[%c139_433] : memref<144xf32, #tpu.memory_space<smem>>
    %2103 = vector.broadcast %2102 : f32 to vector<1x256xf32>
    %2104 = arith.mulf %2103, %2089 : vector<1x256xf32>
    %2105 = arith.addf %2088, %2104 : vector<1x256xf32>
    %2106 = vector.extract_strided_slice %2054 {offsets = [3, 0], sizes = [1, 256], strides = [1, 1]} : vector<8x256xf32> to vector<1x256xf32>
    %c140_434 = arith.constant 140 : index
    %2107 = memref.load %arg5[%c140_434] : memref<144xf32, #tpu.memory_space<smem>>
    %2108 = vector.broadcast %2107 : f32 to vector<1x256xf32>
    %2109 = arith.mulf %2108, %2106 : vector<1x256xf32>
    %2110 = arith.addf %2093, %2109 : vector<1x256xf32>
    %c141_435 = arith.constant 141 : index
    %2111 = memref.load %arg5[%c141_435] : memref<144xf32, #tpu.memory_space<smem>>
    %2112 = vector.broadcast %2111 : f32 to vector<1x256xf32>
    %2113 = arith.mulf %2112, %2106 : vector<1x256xf32>
    %2114 = arith.addf %2097, %2113 : vector<1x256xf32>
    %c142_436 = arith.constant 142 : index
    %2115 = memref.load %arg5[%c142_436] : memref<144xf32, #tpu.memory_space<smem>>
    %2116 = vector.broadcast %2115 : f32 to vector<1x256xf32>
    %2117 = arith.mulf %2116, %2106 : vector<1x256xf32>
    %2118 = arith.addf %2101, %2117 : vector<1x256xf32>
    %c143_437 = arith.constant 143 : index
    %2119 = memref.load %arg5[%c143_437] : memref<144xf32, #tpu.memory_space<smem>>
    %2120 = vector.broadcast %2119 : f32 to vector<1x256xf32>
    %2121 = arith.mulf %2120, %2106 : vector<1x256xf32>
    %2122 = arith.addf %2105, %2121 : vector<1x256xf32>
    %c0_438 = arith.constant 0 : index
    %c0_439 = arith.constant 0 : index
    %2123 = vector.load %arg9[%c0_438, %c0_439] : memref<8x256xf32, #tpu.memory_space<vmem>>, vector<1x256xf32>
    tpu.vector_store %arg9[%c0_438, %c0_439], %1341 {strides = array<i32>} : memref<8x256xf32, #tpu.memory_space<vmem>>, vector<1x256xf32>,
    %c1_440 = arith.constant 1 : index
    %c0_441 = arith.constant 0 : index
    %2124 = vector.load %arg9[%c1_440, %c0_441] : memref<8x256xf32, #tpu.memory_space<vmem>>, vector<1x256xf32>
    tpu.vector_store %arg9[%c1_440, %c0_441], %1383 {strides = array<i32>} : memref<8x256xf32, #tpu.memory_space<vmem>>, vector<1x256xf32>,
    %c2_442 = arith.constant 2 : index
    %c0_443 = arith.constant 0 : index
    %2125 = vector.load %arg9[%c2_442, %c0_443] : memref<8x256xf32, #tpu.memory_space<vmem>>, vector<1x256xf32>
    tpu.vector_store %arg9[%c2_442, %c0_443], %1425 {strides = array<i32>} : memref<8x256xf32, #tpu.memory_space<vmem>>, vector<1x256xf32>,
    %c3_444 = arith.constant 3 : index
    %c0_445 = arith.constant 0 : index
    %2126 = vector.load %arg9[%c3_444, %c0_445] : memref<8x256xf32, #tpu.memory_space<vmem>>, vector<1x256xf32>
    tpu.vector_store %arg9[%c3_444, %c0_445], %1467 {strides = array<i32>} : memref<8x256xf32, #tpu.memory_space<vmem>>, vector<1x256xf32>,
    %c0_446 = arith.constant 0 : index
    %c0_447 = arith.constant 0 : index
    %2127 = vector.load %arg9[%c0_446, %c0_447] : memref<8x256xf32, #tpu.memory_space<vmem>>, vector<8x256xf32>
    %c17_i32_448 = arith.constant 17 : i32
    %2128 = tpu.dynamic_rotate %2127 by %c17_i32_448 dim 1 : vector<8x256xf32>, i32 -> vector<8x256xf32>
    %c0_449 = arith.constant 0 : index
    %c0_450 = arith.constant 0 : index
    %c0_451 = arith.constant 0 : index
    %2129 = vector.load %arg1[%c0_449, %c0_450, %c0_451] : memref<9x1x256xf32, #tpu.memory_space<vmem>>, vector<1x1x256xf32>
    %2130 = vector.shape_cast %2129 : vector<1x1x256xf32> to vector<1x256xf32>
    %2131 = vector.broadcast %2130 : vector<1x256xf32> to vector<8x256xf32>
    %2132 = arith.mulf %2128, %2131 : vector<8x256xf32>
    %2133 = vector.extract_strided_slice %2132 {offsets = [0, 0], sizes = [1, 256], strides = [1, 1]} : vector<8x256xf32> to vector<1x256xf32>
    %c0_452 = arith.constant 0 : index
    %2134 = memref.load %arg5[%c0_452] : memref<144xf32, #tpu.memory_space<smem>>
    %2135 = vector.broadcast %2134 : f32 to vector<1x256xf32>
    %2136 = arith.mulf %2135, %2133 : vector<1x256xf32>
    %c1_453 = arith.constant 1 : index
    %2137 = memref.load %arg5[%c1_453] : memref<144xf32, #tpu.memory_space<smem>>
    %2138 = vector.broadcast %2137 : f32 to vector<1x256xf32>
    %2139 = arith.mulf %2138, %2133 : vector<1x256xf32>
    %c2_454 = arith.constant 2 : index
    %2140 = memref.load %arg5[%c2_454] : memref<144xf32, #tpu.memory_space<smem>>
    %2141 = vector.broadcast %2140 : f32 to vector<1x256xf32>
    %2142 = arith.mulf %2141, %2133 : vector<1x256xf32>
    %c3_455 = arith.constant 3 : index
    %2143 = memref.load %arg5[%c3_455] : memref<144xf32, #tpu.memory_space<smem>>
    %2144 = vector.broadcast %2143 : f32 to vector<1x256xf32>
    %2145 = arith.mulf %2144, %2133 : vector<1x256xf32>
    %2146 = vector.extract_strided_slice %2132 {offsets = [1, 0], sizes = [1, 256], strides = [1, 1]} : vector<8x256xf32> to vector<1x256xf32>
    %c4_456 = arith.constant 4 : index
    %2147 = memref.load %arg5[%c4_456] : memref<144xf32, #tpu.memory_space<smem>>
    %2148 = vector.broadcast %2147 : f32 to vector<1x256xf32>
    %2149 = arith.mulf %2148, %2146 : vector<1x256xf32>
    %2150 = arith.addf %2136, %2149 : vector<1x256xf32>
    %c5_457 = arith.constant 5 : index
    %2151 = memref.load %arg5[%c5_457] : memref<144xf32, #tpu.memory_space<smem>>
    %2152 = vector.broadcast %2151 : f32 to vector<1x256xf32>
    %2153 = arith.mulf %2152, %2146 : vector<1x256xf32>
    %2154 = arith.addf %2139, %2153 : vector<1x256xf32>
    %c6_458 = arith.constant 6 : index
    %2155 = memref.load %arg5[%c6_458] : memref<144xf32, #tpu.memory_space<smem>>
    %2156 = vector.broadcast %2155 : f32 to vector<1x256xf32>
    %2157 = arith.mulf %2156, %2146 : vector<1x256xf32>
    %2158 = arith.addf %2142, %2157 : vector<1x256xf32>
    %c7_459 = arith.constant 7 : index
    %2159 = memref.load %arg5[%c7_459] : memref<144xf32, #tpu.memory_space<smem>>
    %2160 = vector.broadcast %2159 : f32 to vector<1x256xf32>
    %2161 = arith.mulf %2160, %2146 : vector<1x256xf32>
    %2162 = arith.addf %2145, %2161 : vector<1x256xf32>
    %2163 = vector.extract_strided_slice %2132 {offsets = [2, 0], sizes = [1, 256], strides = [1, 1]} : vector<8x256xf32> to vector<1x256xf32>
    %c8_460 = arith.constant 8 : index
    %2164 = memref.load %arg5[%c8_460] : memref<144xf32, #tpu.memory_space<smem>>
    %2165 = vector.broadcast %2164 : f32 to vector<1x256xf32>
    %2166 = arith.mulf %2165, %2163 : vector<1x256xf32>
    %2167 = arith.addf %2150, %2166 : vector<1x256xf32>
    %c9_461 = arith.constant 9 : index
    %2168 = memref.load %arg5[%c9_461] : memref<144xf32, #tpu.memory_space<smem>>
    %2169 = vector.broadcast %2168 : f32 to vector<1x256xf32>
    %2170 = arith.mulf %2169, %2163 : vector<1x256xf32>
    %2171 = arith.addf %2154, %2170 : vector<1x256xf32>
    %c10_462 = arith.constant 10 : index
    %2172 = memref.load %arg5[%c10_462] : memref<144xf32, #tpu.memory_space<smem>>
    %2173 = vector.broadcast %2172 : f32 to vector<1x256xf32>
    %2174 = arith.mulf %2173, %2163 : vector<1x256xf32>
    %2175 = arith.addf %2158, %2174 : vector<1x256xf32>
    %c11_463 = arith.constant 11 : index
    %2176 = memref.load %arg5[%c11_463] : memref<144xf32, #tpu.memory_space<smem>>
    %2177 = vector.broadcast %2176 : f32 to vector<1x256xf32>
    %2178 = arith.mulf %2177, %2163 : vector<1x256xf32>
    %2179 = arith.addf %2162, %2178 : vector<1x256xf32>
    %2180 = vector.extract_strided_slice %2132 {offsets = [3, 0], sizes = [1, 256], strides = [1, 1]} : vector<8x256xf32> to vector<1x256xf32>
    %c12_464 = arith.constant 12 : index
    %2181 = memref.load %arg5[%c12_464] : memref<144xf32, #tpu.memory_space<smem>>
    %2182 = vector.broadcast %2181 : f32 to vector<1x256xf32>
    %2183 = arith.mulf %2182, %2180 : vector<1x256xf32>
    %2184 = arith.addf %2167, %2183 : vector<1x256xf32>
    %c13_465 = arith.constant 13 : index
    %2185 = memref.load %arg5[%c13_465] : memref<144xf32, #tpu.memory_space<smem>>
    %2186 = vector.broadcast %2185 : f32 to vector<1x256xf32>
    %2187 = arith.mulf %2186, %2180 : vector<1x256xf32>
    %2188 = arith.addf %2171, %2187 : vector<1x256xf32>
    %c14_466 = arith.constant 14 : index
    %2189 = memref.load %arg5[%c14_466] : memref<144xf32, #tpu.memory_space<smem>>
    %2190 = vector.broadcast %2189 : f32 to vector<1x256xf32>
    %2191 = arith.mulf %2190, %2180 : vector<1x256xf32>
    %2192 = arith.addf %2175, %2191 : vector<1x256xf32>
    %c15_467 = arith.constant 15 : index
    %2193 = memref.load %arg5[%c15_467] : memref<144xf32, #tpu.memory_space<smem>>
    %2194 = vector.broadcast %2193 : f32 to vector<1x256xf32>
    %2195 = arith.mulf %2194, %2180 : vector<1x256xf32>
    %2196 = arith.addf %2179, %2195 : vector<1x256xf32>
    %c16_i32_468 = arith.constant 16 : i32
    %2197 = tpu.dynamic_rotate %2127 by %c16_i32_468 dim 1 : vector<8x256xf32>, i32 -> vector<8x256xf32>
    %c1_469 = arith.constant 1 : index
    %c0_470 = arith.constant 0 : index
    %c0_471 = arith.constant 0 : index
    %2198 = vector.load %arg1[%c1_469, %c0_470, %c0_471] : memref<9x1x256xf32, #tpu.memory_space<vmem>>, vector<1x1x256xf32>
    %2199 = vector.shape_cast %2198 : vector<1x1x256xf32> to vector<1x256xf32>
    %2200 = vector.broadcast %2199 : vector<1x256xf32> to vector<8x256xf32>
    %2201 = arith.mulf %2197, %2200 : vector<8x256xf32>
    %2202 = vector.extract_strided_slice %2201 {offsets = [0, 0], sizes = [1, 256], strides = [1, 1]} : vector<8x256xf32> to vector<1x256xf32>
    %c16_472 = arith.constant 16 : index
    %2203 = memref.load %arg5[%c16_472] : memref<144xf32, #tpu.memory_space<smem>>
    %2204 = vector.broadcast %2203 : f32 to vector<1x256xf32>
    %2205 = arith.mulf %2204, %2202 : vector<1x256xf32>
    %2206 = arith.addf %2184, %2205 : vector<1x256xf32>
    %c17_473 = arith.constant 17 : index
    %2207 = memref.load %arg5[%c17_473] : memref<144xf32, #tpu.memory_space<smem>>
    %2208 = vector.broadcast %2207 : f32 to vector<1x256xf32>
    %2209 = arith.mulf %2208, %2202 : vector<1x256xf32>
    %2210 = arith.addf %2188, %2209 : vector<1x256xf32>
    %c18_474 = arith.constant 18 : index
    %2211 = memref.load %arg5[%c18_474] : memref<144xf32, #tpu.memory_space<smem>>
    %2212 = vector.broadcast %2211 : f32 to vector<1x256xf32>
    %2213 = arith.mulf %2212, %2202 : vector<1x256xf32>
    %2214 = arith.addf %2192, %2213 : vector<1x256xf32>
    %c19_475 = arith.constant 19 : index
    %2215 = memref.load %arg5[%c19_475] : memref<144xf32, #tpu.memory_space<smem>>
    %2216 = vector.broadcast %2215 : f32 to vector<1x256xf32>
    %2217 = arith.mulf %2216, %2202 : vector<1x256xf32>
    %2218 = arith.addf %2196, %2217 : vector<1x256xf32>
    %2219 = vector.extract_strided_slice %2201 {offsets = [1, 0], sizes = [1, 256], strides = [1, 1]} : vector<8x256xf32> to vector<1x256xf32>
    %c20_476 = arith.constant 20 : index
    %2220 = memref.load %arg5[%c20_476] : memref<144xf32, #tpu.memory_space<smem>>
    %2221 = vector.broadcast %2220 : f32 to vector<1x256xf32>
    %2222 = arith.mulf %2221, %2219 : vector<1x256xf32>
    %2223 = arith.addf %2206, %2222 : vector<1x256xf32>
    %c21_477 = arith.constant 21 : index
    %2224 = memref.load %arg5[%c21_477] : memref<144xf32, #tpu.memory_space<smem>>
    %2225 = vector.broadcast %2224 : f32 to vector<1x256xf32>
    %2226 = arith.mulf %2225, %2219 : vector<1x256xf32>
    %2227 = arith.addf %2210, %2226 : vector<1x256xf32>
    %c22_478 = arith.constant 22 : index
    %2228 = memref.load %arg5[%c22_478] : memref<144xf32, #tpu.memory_space<smem>>
    %2229 = vector.broadcast %2228 : f32 to vector<1x256xf32>
    %2230 = arith.mulf %2229, %2219 : vector<1x256xf32>
    %2231 = arith.addf %2214, %2230 : vector<1x256xf32>
    %c23_479 = arith.constant 23 : index
    %2232 = memref.load %arg5[%c23_479] : memref<144xf32, #tpu.memory_space<smem>>
    %2233 = vector.broadcast %2232 : f32 to vector<1x256xf32>
    %2234 = arith.mulf %2233, %2219 : vector<1x256xf32>
    %2235 = arith.addf %2218, %2234 : vector<1x256xf32>
    %2236 = vector.extract_strided_slice %2201 {offsets = [2, 0], sizes = [1, 256], strides = [1, 1]} : vector<8x256xf32> to vector<1x256xf32>
    %c24_480 = arith.constant 24 : index
    %2237 = memref.load %arg5[%c24_480] : memref<144xf32, #tpu.memory_space<smem>>
    %2238 = vector.broadcast %2237 : f32 to vector<1x256xf32>
    %2239 = arith.mulf %2238, %2236 : vector<1x256xf32>
    %2240 = arith.addf %2223, %2239 : vector<1x256xf32>
    %c25_481 = arith.constant 25 : index
    %2241 = memref.load %arg5[%c25_481] : memref<144xf32, #tpu.memory_space<smem>>
    %2242 = vector.broadcast %2241 : f32 to vector<1x256xf32>
    %2243 = arith.mulf %2242, %2236 : vector<1x256xf32>
    %2244 = arith.addf %2227, %2243 : vector<1x256xf32>
    %c26_482 = arith.constant 26 : index
    %2245 = memref.load %arg5[%c26_482] : memref<144xf32, #tpu.memory_space<smem>>
    %2246 = vector.broadcast %2245 : f32 to vector<1x256xf32>
    %2247 = arith.mulf %2246, %2236 : vector<1x256xf32>
    %2248 = arith.addf %2231, %2247 : vector<1x256xf32>
    %c27_483 = arith.constant 27 : index
    %2249 = memref.load %arg5[%c27_483] : memref<144xf32, #tpu.memory_space<smem>>
    %2250 = vector.broadcast %2249 : f32 to vector<1x256xf32>
    %2251 = arith.mulf %2250, %2236 : vector<1x256xf32>
    %2252 = arith.addf %2235, %2251 : vector<1x256xf32>
    %2253 = vector.extract_strided_slice %2201 {offsets = [3, 0], sizes = [1, 256], strides = [1, 1]} : vector<8x256xf32> to vector<1x256xf32>
    %c28_484 = arith.constant 28 : index
    %2254 = memref.load %arg5[%c28_484] : memref<144xf32, #tpu.memory_space<smem>>
    %2255 = vector.broadcast %2254 : f32 to vector<1x256xf32>
    %2256 = arith.mulf %2255, %2253 : vector<1x256xf32>
    %2257 = arith.addf %2240, %2256 : vector<1x256xf32>
    %c29_485 = arith.constant 29 : index
    %2258 = memref.load %arg5[%c29_485] : memref<144xf32, #tpu.memory_space<smem>>
    %2259 = vector.broadcast %2258 : f32 to vector<1x256xf32>
    %2260 = arith.mulf %2259, %2253 : vector<1x256xf32>
    %2261 = arith.addf %2244, %2260 : vector<1x256xf32>
    %c30_486 = arith.constant 30 : index
    %2262 = memref.load %arg5[%c30_486] : memref<144xf32, #tpu.memory_space<smem>>
    %2263 = vector.broadcast %2262 : f32 to vector<1x256xf32>
    %2264 = arith.mulf %2263, %2253 : vector<1x256xf32>
    %2265 = arith.addf %2248, %2264 : vector<1x256xf32>
    %c31_487 = arith.constant 31 : index
    %2266 = memref.load %arg5[%c31_487] : memref<144xf32, #tpu.memory_space<smem>>
    %2267 = vector.broadcast %2266 : f32 to vector<1x256xf32>
    %2268 = arith.mulf %2267, %2253 : vector<1x256xf32>
    %2269 = arith.addf %2252, %2268 : vector<1x256xf32>
    %c15_i32_488 = arith.constant 15 : i32
    %2270 = tpu.dynamic_rotate %2127 by %c15_i32_488 dim 1 : vector<8x256xf32>, i32 -> vector<8x256xf32>
    %c2_489 = arith.constant 2 : index
    %c0_490 = arith.constant 0 : index
    %c0_491 = arith.constant 0 : index
    %2271 = vector.load %arg1[%c2_489, %c0_490, %c0_491] : memref<9x1x256xf32, #tpu.memory_space<vmem>>, vector<1x1x256xf32>
    %2272 = vector.shape_cast %2271 : vector<1x1x256xf32> to vector<1x256xf32>
    %2273 = vector.broadcast %2272 : vector<1x256xf32> to vector<8x256xf32>
    %2274 = arith.mulf %2270, %2273 : vector<8x256xf32>
    %2275 = vector.extract_strided_slice %2274 {offsets = [0, 0], sizes = [1, 256], strides = [1, 1]} : vector<8x256xf32> to vector<1x256xf32>
    %c32_492 = arith.constant 32 : index
    %2276 = memref.load %arg5[%c32_492] : memref<144xf32, #tpu.memory_space<smem>>
    %2277 = vector.broadcast %2276 : f32 to vector<1x256xf32>
    %2278 = arith.mulf %2277, %2275 : vector<1x256xf32>
    %2279 = arith.addf %2257, %2278 : vector<1x256xf32>
    %c33_493 = arith.constant 33 : index
    %2280 = memref.load %arg5[%c33_493] : memref<144xf32, #tpu.memory_space<smem>>
    %2281 = vector.broadcast %2280 : f32 to vector<1x256xf32>
    %2282 = arith.mulf %2281, %2275 : vector<1x256xf32>
    %2283 = arith.addf %2261, %2282 : vector<1x256xf32>
    %c34_494 = arith.constant 34 : index
    %2284 = memref.load %arg5[%c34_494] : memref<144xf32, #tpu.memory_space<smem>>
    %2285 = vector.broadcast %2284 : f32 to vector<1x256xf32>
    %2286 = arith.mulf %2285, %2275 : vector<1x256xf32>
    %2287 = arith.addf %2265, %2286 : vector<1x256xf32>
    %c35_495 = arith.constant 35 : index
    %2288 = memref.load %arg5[%c35_495] : memref<144xf32, #tpu.memory_space<smem>>
    %2289 = vector.broadcast %2288 : f32 to vector<1x256xf32>
    %2290 = arith.mulf %2289, %2275 : vector<1x256xf32>
    %2291 = arith.addf %2269, %2290 : vector<1x256xf32>
    %2292 = vector.extract_strided_slice %2274 {offsets = [1, 0], sizes = [1, 256], strides = [1, 1]} : vector<8x256xf32> to vector<1x256xf32>
    %c36_496 = arith.constant 36 : index
    %2293 = memref.load %arg5[%c36_496] : memref<144xf32, #tpu.memory_space<smem>>
    %2294 = vector.broadcast %2293 : f32 to vector<1x256xf32>
    %2295 = arith.mulf %2294, %2292 : vector<1x256xf32>
    %2296 = arith.addf %2279, %2295 : vector<1x256xf32>
    %c37_497 = arith.constant 37 : index
    %2297 = memref.load %arg5[%c37_497] : memref<144xf32, #tpu.memory_space<smem>>
    %2298 = vector.broadcast %2297 : f32 to vector<1x256xf32>
    %2299 = arith.mulf %2298, %2292 : vector<1x256xf32>
    %2300 = arith.addf %2283, %2299 : vector<1x256xf32>
    %c38_498 = arith.constant 38 : index
    %2301 = memref.load %arg5[%c38_498] : memref<144xf32, #tpu.memory_space<smem>>
    %2302 = vector.broadcast %2301 : f32 to vector<1x256xf32>
    %2303 = arith.mulf %2302, %2292 : vector<1x256xf32>
    %2304 = arith.addf %2287, %2303 : vector<1x256xf32>
    %c39_499 = arith.constant 39 : index
    %2305 = memref.load %arg5[%c39_499] : memref<144xf32, #tpu.memory_space<smem>>
    %2306 = vector.broadcast %2305 : f32 to vector<1x256xf32>
    %2307 = arith.mulf %2306, %2292 : vector<1x256xf32>
    %2308 = arith.addf %2291, %2307 : vector<1x256xf32>
    %2309 = vector.extract_strided_slice %2274 {offsets = [2, 0], sizes = [1, 256], strides = [1, 1]} : vector<8x256xf32> to vector<1x256xf32>
    %c40_500 = arith.constant 40 : index
    %2310 = memref.load %arg5[%c40_500] : memref<144xf32, #tpu.memory_space<smem>>
    %2311 = vector.broadcast %2310 : f32 to vector<1x256xf32>
    %2312 = arith.mulf %2311, %2309 : vector<1x256xf32>
    %2313 = arith.addf %2296, %2312 : vector<1x256xf32>
    %c41_501 = arith.constant 41 : index
    %2314 = memref.load %arg5[%c41_501] : memref<144xf32, #tpu.memory_space<smem>>
    %2315 = vector.broadcast %2314 : f32 to vector<1x256xf32>
    %2316 = arith.mulf %2315, %2309 : vector<1x256xf32>
    %2317 = arith.addf %2300, %2316 : vector<1x256xf32>
    %c42_502 = arith.constant 42 : index
    %2318 = memref.load %arg5[%c42_502] : memref<144xf32, #tpu.memory_space<smem>>
    %2319 = vector.broadcast %2318 : f32 to vector<1x256xf32>
    %2320 = arith.mulf %2319, %2309 : vector<1x256xf32>
    %2321 = arith.addf %2304, %2320 : vector<1x256xf32>
    %c43_503 = arith.constant 43 : index
    %2322 = memref.load %arg5[%c43_503] : memref<144xf32, #tpu.memory_space<smem>>
    %2323 = vector.broadcast %2322 : f32 to vector<1x256xf32>
    %2324 = arith.mulf %2323, %2309 : vector<1x256xf32>
    %2325 = arith.addf %2308, %2324 : vector<1x256xf32>
    %2326 = vector.extract_strided_slice %2274 {offsets = [3, 0], sizes = [1, 256], strides = [1, 1]} : vector<8x256xf32> to vector<1x256xf32>
    %c44_504 = arith.constant 44 : index
    %2327 = memref.load %arg5[%c44_504] : memref<144xf32, #tpu.memory_space<smem>>
    %2328 = vector.broadcast %2327 : f32 to vector<1x256xf32>
    %2329 = arith.mulf %2328, %2326 : vector<1x256xf32>
    %2330 = arith.addf %2313, %2329 : vector<1x256xf32>
    %c45_505 = arith.constant 45 : index
    %2331 = memref.load %arg5[%c45_505] : memref<144xf32, #tpu.memory_space<smem>>
    %2332 = vector.broadcast %2331 : f32 to vector<1x256xf32>
    %2333 = arith.mulf %2332, %2326 : vector<1x256xf32>
    %2334 = arith.addf %2317, %2333 : vector<1x256xf32>
    %c46_506 = arith.constant 46 : index
    %2335 = memref.load %arg5[%c46_506] : memref<144xf32, #tpu.memory_space<smem>>
    %2336 = vector.broadcast %2335 : f32 to vector<1x256xf32>
    %2337 = arith.mulf %2336, %2326 : vector<1x256xf32>
    %2338 = arith.addf %2321, %2337 : vector<1x256xf32>
    %c47_507 = arith.constant 47 : index
    %2339 = memref.load %arg5[%c47_507] : memref<144xf32, #tpu.memory_space<smem>>
    %2340 = vector.broadcast %2339 : f32 to vector<1x256xf32>
    %2341 = arith.mulf %2340, %2326 : vector<1x256xf32>
    %2342 = arith.addf %2325, %2341 : vector<1x256xf32>
    %c1_i32_508 = arith.constant 1 : i32
    %2343 = tpu.dynamic_rotate %2127 by %c1_i32_508 dim 1 : vector<8x256xf32>, i32 -> vector<8x256xf32>
    %c3_509 = arith.constant 3 : index
    %c0_510 = arith.constant 0 : index
    %c0_511 = arith.constant 0 : index
    %2344 = vector.load %arg1[%c3_509, %c0_510, %c0_511] : memref<9x1x256xf32, #tpu.memory_space<vmem>>, vector<1x1x256xf32>
    %2345 = vector.shape_cast %2344 : vector<1x1x256xf32> to vector<1x256xf32>
    %2346 = vector.broadcast %2345 : vector<1x256xf32> to vector<8x256xf32>
    %2347 = arith.mulf %2343, %2346 : vector<8x256xf32>
    %2348 = vector.extract_strided_slice %2347 {offsets = [0, 0], sizes = [1, 256], strides = [1, 1]} : vector<8x256xf32> to vector<1x256xf32>
    %c48_512 = arith.constant 48 : index
    %2349 = memref.load %arg5[%c48_512] : memref<144xf32, #tpu.memory_space<smem>>
    %2350 = vector.broadcast %2349 : f32 to vector<1x256xf32>
    %2351 = arith.mulf %2350, %2348 : vector<1x256xf32>
    %2352 = arith.addf %2330, %2351 : vector<1x256xf32>
    %c49_513 = arith.constant 49 : index
    %2353 = memref.load %arg5[%c49_513] : memref<144xf32, #tpu.memory_space<smem>>
    %2354 = vector.broadcast %2353 : f32 to vector<1x256xf32>
    %2355 = arith.mulf %2354, %2348 : vector<1x256xf32>
    %2356 = arith.addf %2334, %2355 : vector<1x256xf32>
    %c50_514 = arith.constant 50 : index
    %2357 = memref.load %arg5[%c50_514] : memref<144xf32, #tpu.memory_space<smem>>
    %2358 = vector.broadcast %2357 : f32 to vector<1x256xf32>
    %2359 = arith.mulf %2358, %2348 : vector<1x256xf32>
    %2360 = arith.addf %2338, %2359 : vector<1x256xf32>
    %c51_515 = arith.constant 51 : index
    %2361 = memref.load %arg5[%c51_515] : memref<144xf32, #tpu.memory_space<smem>>
    %2362 = vector.broadcast %2361 : f32 to vector<1x256xf32>
    %2363 = arith.mulf %2362, %2348 : vector<1x256xf32>
    %2364 = arith.addf %2342, %2363 : vector<1x256xf32>
    %2365 = vector.extract_strided_slice %2347 {offsets = [1, 0], sizes = [1, 256], strides = [1, 1]} : vector<8x256xf32> to vector<1x256xf32>
    %c52_516 = arith.constant 52 : index
    %2366 = memref.load %arg5[%c52_516] : memref<144xf32, #tpu.memory_space<smem>>
    %2367 = vector.broadcast %2366 : f32 to vector<1x256xf32>
    %2368 = arith.mulf %2367, %2365 : vector<1x256xf32>
    %2369 = arith.addf %2352, %2368 : vector<1x256xf32>
    %c53_517 = arith.constant 53 : index
    %2370 = memref.load %arg5[%c53_517] : memref<144xf32, #tpu.memory_space<smem>>
    %2371 = vector.broadcast %2370 : f32 to vector<1x256xf32>
    %2372 = arith.mulf %2371, %2365 : vector<1x256xf32>
    %2373 = arith.addf %2356, %2372 : vector<1x256xf32>
    %c54_518 = arith.constant 54 : index
    %2374 = memref.load %arg5[%c54_518] : memref<144xf32, #tpu.memory_space<smem>>
    %2375 = vector.broadcast %2374 : f32 to vector<1x256xf32>
    %2376 = arith.mulf %2375, %2365 : vector<1x256xf32>
    %2377 = arith.addf %2360, %2376 : vector<1x256xf32>
    %c55_519 = arith.constant 55 : index
    %2378 = memref.load %arg5[%c55_519] : memref<144xf32, #tpu.memory_space<smem>>
    %2379 = vector.broadcast %2378 : f32 to vector<1x256xf32>
    %2380 = arith.mulf %2379, %2365 : vector<1x256xf32>
    %2381 = arith.addf %2364, %2380 : vector<1x256xf32>
    %2382 = vector.extract_strided_slice %2347 {offsets = [2, 0], sizes = [1, 256], strides = [1, 1]} : vector<8x256xf32> to vector<1x256xf32>
    %c56_520 = arith.constant 56 : index
    %2383 = memref.load %arg5[%c56_520] : memref<144xf32, #tpu.memory_space<smem>>
    %2384 = vector.broadcast %2383 : f32 to vector<1x256xf32>
    %2385 = arith.mulf %2384, %2382 : vector<1x256xf32>
    %2386 = arith.addf %2369, %2385 : vector<1x256xf32>
    %c57_521 = arith.constant 57 : index
    %2387 = memref.load %arg5[%c57_521] : memref<144xf32, #tpu.memory_space<smem>>
    %2388 = vector.broadcast %2387 : f32 to vector<1x256xf32>
    %2389 = arith.mulf %2388, %2382 : vector<1x256xf32>
    %2390 = arith.addf %2373, %2389 : vector<1x256xf32>
    %c58_522 = arith.constant 58 : index
    %2391 = memref.load %arg5[%c58_522] : memref<144xf32, #tpu.memory_space<smem>>
    %2392 = vector.broadcast %2391 : f32 to vector<1x256xf32>
    %2393 = arith.mulf %2392, %2382 : vector<1x256xf32>
    %2394 = arith.addf %2377, %2393 : vector<1x256xf32>
    %c59_523 = arith.constant 59 : index
    %2395 = memref.load %arg5[%c59_523] : memref<144xf32, #tpu.memory_space<smem>>
    %2396 = vector.broadcast %2395 : f32 to vector<1x256xf32>
    %2397 = arith.mulf %2396, %2382 : vector<1x256xf32>
    %2398 = arith.addf %2381, %2397 : vector<1x256xf32>
    %2399 = vector.extract_strided_slice %2347 {offsets = [3, 0], sizes = [1, 256], strides = [1, 1]} : vector<8x256xf32> to vector<1x256xf32>
    %c60_524 = arith.constant 60 : index
    %2400 = memref.load %arg5[%c60_524] : memref<144xf32, #tpu.memory_space<smem>>
    %2401 = vector.broadcast %2400 : f32 to vector<1x256xf32>
    %2402 = arith.mulf %2401, %2399 : vector<1x256xf32>
    %2403 = arith.addf %2386, %2402 : vector<1x256xf32>
    %c61_525 = arith.constant 61 : index
    %2404 = memref.load %arg5[%c61_525] : memref<144xf32, #tpu.memory_space<smem>>
    %2405 = vector.broadcast %2404 : f32 to vector<1x256xf32>
    %2406 = arith.mulf %2405, %2399 : vector<1x256xf32>
    %2407 = arith.addf %2390, %2406 : vector<1x256xf32>
    %c62_526 = arith.constant 62 : index
    %2408 = memref.load %arg5[%c62_526] : memref<144xf32, #tpu.memory_space<smem>>
    %2409 = vector.broadcast %2408 : f32 to vector<1x256xf32>
    %2410 = arith.mulf %2409, %2399 : vector<1x256xf32>
    %2411 = arith.addf %2394, %2410 : vector<1x256xf32>
    %c63_527 = arith.constant 63 : index
    %2412 = memref.load %arg5[%c63_527] : memref<144xf32, #tpu.memory_space<smem>>
    %2413 = vector.broadcast %2412 : f32 to vector<1x256xf32>
    %2414 = arith.mulf %2413, %2399 : vector<1x256xf32>
    %2415 = arith.addf %2398, %2414 : vector<1x256xf32>
    %2416 = vector.extract_strided_slice %2127 {offsets = [0, 0], sizes = [1, 256], strides = [1, 1]} : vector<8x256xf32> to vector<1x256xf32>
    %c64_528 = arith.constant 64 : index
    %2417 = memref.load %arg5[%c64_528] : memref<144xf32, #tpu.memory_space<smem>>
    %2418 = vector.broadcast %2417 : f32 to vector<1x256xf32>
    %2419 = arith.mulf %2418, %2416 : vector<1x256xf32>
    %2420 = arith.addf %2403, %2419 : vector<1x256xf32>
    %c65_529 = arith.constant 65 : index
    %2421 = memref.load %arg5[%c65_529] : memref<144xf32, #tpu.memory_space<smem>>
    %2422 = vector.broadcast %2421 : f32 to vector<1x256xf32>
    %2423 = arith.mulf %2422, %2416 : vector<1x256xf32>
    %2424 = arith.addf %2407, %2423 : vector<1x256xf32>
    %c66_530 = arith.constant 66 : index
    %2425 = memref.load %arg5[%c66_530] : memref<144xf32, #tpu.memory_space<smem>>
    %2426 = vector.broadcast %2425 : f32 to vector<1x256xf32>
    %2427 = arith.mulf %2426, %2416 : vector<1x256xf32>
    %2428 = arith.addf %2411, %2427 : vector<1x256xf32>
    %c67_531 = arith.constant 67 : index
    %2429 = memref.load %arg5[%c67_531] : memref<144xf32, #tpu.memory_space<smem>>
    %2430 = vector.broadcast %2429 : f32 to vector<1x256xf32>
    %2431 = arith.mulf %2430, %2416 : vector<1x256xf32>
    %2432 = arith.addf %2415, %2431 : vector<1x256xf32>
    %2433 = vector.extract_strided_slice %2127 {offsets = [1, 0], sizes = [1, 256], strides = [1, 1]} : vector<8x256xf32> to vector<1x256xf32>
    %c68_532 = arith.constant 68 : index
    %2434 = memref.load %arg5[%c68_532] : memref<144xf32, #tpu.memory_space<smem>>
    %2435 = vector.broadcast %2434 : f32 to vector<1x256xf32>
    %2436 = arith.mulf %2435, %2433 : vector<1x256xf32>
    %2437 = arith.addf %2420, %2436 : vector<1x256xf32>
    %c69_533 = arith.constant 69 : index
    %2438 = memref.load %arg5[%c69_533] : memref<144xf32, #tpu.memory_space<smem>>
    %2439 = vector.broadcast %2438 : f32 to vector<1x256xf32>
    %2440 = arith.mulf %2439, %2433 : vector<1x256xf32>
    %2441 = arith.addf %2424, %2440 : vector<1x256xf32>
    %c70_534 = arith.constant 70 : index
    %2442 = memref.load %arg5[%c70_534] : memref<144xf32, #tpu.memory_space<smem>>
    %2443 = vector.broadcast %2442 : f32 to vector<1x256xf32>
    %2444 = arith.mulf %2443, %2433 : vector<1x256xf32>
    %2445 = arith.addf %2428, %2444 : vector<1x256xf32>
    %c71_535 = arith.constant 71 : index
    %2446 = memref.load %arg5[%c71_535] : memref<144xf32, #tpu.memory_space<smem>>
    %2447 = vector.broadcast %2446 : f32 to vector<1x256xf32>
    %2448 = arith.mulf %2447, %2433 : vector<1x256xf32>
    %2449 = arith.addf %2432, %2448 : vector<1x256xf32>
    %2450 = vector.extract_strided_slice %2127 {offsets = [2, 0], sizes = [1, 256], strides = [1, 1]} : vector<8x256xf32> to vector<1x256xf32>
    %c72_536 = arith.constant 72 : index
    %2451 = memref.load %arg5[%c72_536] : memref<144xf32, #tpu.memory_space<smem>>
    %2452 = vector.broadcast %2451 : f32 to vector<1x256xf32>
    %2453 = arith.mulf %2452, %2450 : vector<1x256xf32>
    %2454 = arith.addf %2437, %2453 : vector<1x256xf32>
    %c73_537 = arith.constant 73 : index
    %2455 = memref.load %arg5[%c73_537] : memref<144xf32, #tpu.memory_space<smem>>
    %2456 = vector.broadcast %2455 : f32 to vector<1x256xf32>
    %2457 = arith.mulf %2456, %2450 : vector<1x256xf32>
    %2458 = arith.addf %2441, %2457 : vector<1x256xf32>
    %c74_538 = arith.constant 74 : index
    %2459 = memref.load %arg5[%c74_538] : memref<144xf32, #tpu.memory_space<smem>>
    %2460 = vector.broadcast %2459 : f32 to vector<1x256xf32>
    %2461 = arith.mulf %2460, %2450 : vector<1x256xf32>
    %2462 = arith.addf %2445, %2461 : vector<1x256xf32>
    %c75_539 = arith.constant 75 : index
    %2463 = memref.load %arg5[%c75_539] : memref<144xf32, #tpu.memory_space<smem>>
    %2464 = vector.broadcast %2463 : f32 to vector<1x256xf32>
    %2465 = arith.mulf %2464, %2450 : vector<1x256xf32>
    %2466 = arith.addf %2449, %2465 : vector<1x256xf32>
    %2467 = vector.extract_strided_slice %2127 {offsets = [3, 0], sizes = [1, 256], strides = [1, 1]} : vector<8x256xf32> to vector<1x256xf32>
    %c76_540 = arith.constant 76 : index
    %2468 = memref.load %arg5[%c76_540] : memref<144xf32, #tpu.memory_space<smem>>
    %2469 = vector.broadcast %2468 : f32 to vector<1x256xf32>
    %2470 = arith.mulf %2469, %2467 : vector<1x256xf32>
    %2471 = arith.addf %2454, %2470 : vector<1x256xf32>
    %c77_541 = arith.constant 77 : index
    %2472 = memref.load %arg5[%c77_541] : memref<144xf32, #tpu.memory_space<smem>>
    %2473 = vector.broadcast %2472 : f32 to vector<1x256xf32>
    %2474 = arith.mulf %2473, %2467 : vector<1x256xf32>
    %2475 = arith.addf %2458, %2474 : vector<1x256xf32>
    %c78_542 = arith.constant 78 : index
    %2476 = memref.load %arg5[%c78_542] : memref<144xf32, #tpu.memory_space<smem>>
    %2477 = vector.broadcast %2476 : f32 to vector<1x256xf32>
    %2478 = arith.mulf %2477, %2467 : vector<1x256xf32>
    %2479 = arith.addf %2462, %2478 : vector<1x256xf32>
    %c79_543 = arith.constant 79 : index
    %2480 = memref.load %arg5[%c79_543] : memref<144xf32, #tpu.memory_space<smem>>
    %2481 = vector.broadcast %2480 : f32 to vector<1x256xf32>
    %2482 = arith.mulf %2481, %2467 : vector<1x256xf32>
    %2483 = arith.addf %2466, %2482 : vector<1x256xf32>
    %c255_i32_544 = arith.constant 255 : i32
    %2484 = tpu.dynamic_rotate %2127 by %c255_i32_544 dim 1 : vector<8x256xf32>, i32 -> vector<8x256xf32>
    %c5_545 = arith.constant 5 : index
    %c0_546 = arith.constant 0 : index
    %c0_547 = arith.constant 0 : index
    %2485 = vector.load %arg1[%c5_545, %c0_546, %c0_547] : memref<9x1x256xf32, #tpu.memory_space<vmem>>, vector<1x1x256xf32>
    %2486 = vector.shape_cast %2485 : vector<1x1x256xf32> to vector<1x256xf32>
    %2487 = vector.broadcast %2486 : vector<1x256xf32> to vector<8x256xf32>
    %2488 = arith.mulf %2484, %2487 : vector<8x256xf32>
    %2489 = vector.extract_strided_slice %2488 {offsets = [0, 0], sizes = [1, 256], strides = [1, 1]} : vector<8x256xf32> to vector<1x256xf32>
    %c80_548 = arith.constant 80 : index
    %2490 = memref.load %arg5[%c80_548] : memref<144xf32, #tpu.memory_space<smem>>
    %2491 = vector.broadcast %2490 : f32 to vector<1x256xf32>
    %2492 = arith.mulf %2491, %2489 : vector<1x256xf32>
    %2493 = arith.addf %2471, %2492 : vector<1x256xf32>
    %c81_549 = arith.constant 81 : index
    %2494 = memref.load %arg5[%c81_549] : memref<144xf32, #tpu.memory_space<smem>>
    %2495 = vector.broadcast %2494 : f32 to vector<1x256xf32>
    %2496 = arith.mulf %2495, %2489 : vector<1x256xf32>
    %2497 = arith.addf %2475, %2496 : vector<1x256xf32>
    %c82_550 = arith.constant 82 : index
    %2498 = memref.load %arg5[%c82_550] : memref<144xf32, #tpu.memory_space<smem>>
    %2499 = vector.broadcast %2498 : f32 to vector<1x256xf32>
    %2500 = arith.mulf %2499, %2489 : vector<1x256xf32>
    %2501 = arith.addf %2479, %2500 : vector<1x256xf32>
    %c83_551 = arith.constant 83 : index
    %2502 = memref.load %arg5[%c83_551] : memref<144xf32, #tpu.memory_space<smem>>
    %2503 = vector.broadcast %2502 : f32 to vector<1x256xf32>
    %2504 = arith.mulf %2503, %2489 : vector<1x256xf32>
    %2505 = arith.addf %2483, %2504 : vector<1x256xf32>
    %2506 = vector.extract_strided_slice %2488 {offsets = [1, 0], sizes = [1, 256], strides = [1, 1]} : vector<8x256xf32> to vector<1x256xf32>
    %c84_552 = arith.constant 84 : index
    %2507 = memref.load %arg5[%c84_552] : memref<144xf32, #tpu.memory_space<smem>>
    %2508 = vector.broadcast %2507 : f32 to vector<1x256xf32>
    %2509 = arith.mulf %2508, %2506 : vector<1x256xf32>
    %2510 = arith.addf %2493, %2509 : vector<1x256xf32>
    %c85_553 = arith.constant 85 : index
    %2511 = memref.load %arg5[%c85_553] : memref<144xf32, #tpu.memory_space<smem>>
    %2512 = vector.broadcast %2511 : f32 to vector<1x256xf32>
    %2513 = arith.mulf %2512, %2506 : vector<1x256xf32>
    %2514 = arith.addf %2497, %2513 : vector<1x256xf32>
    %c86_554 = arith.constant 86 : index
    %2515 = memref.load %arg5[%c86_554] : memref<144xf32, #tpu.memory_space<smem>>
    %2516 = vector.broadcast %2515 : f32 to vector<1x256xf32>
    %2517 = arith.mulf %2516, %2506 : vector<1x256xf32>
    %2518 = arith.addf %2501, %2517 : vector<1x256xf32>
    %c87_555 = arith.constant 87 : index
    %2519 = memref.load %arg5[%c87_555] : memref<144xf32, #tpu.memory_space<smem>>
    %2520 = vector.broadcast %2519 : f32 to vector<1x256xf32>
    %2521 = arith.mulf %2520, %2506 : vector<1x256xf32>
    %2522 = arith.addf %2505, %2521 : vector<1x256xf32>
    %2523 = vector.extract_strided_slice %2488 {offsets = [2, 0], sizes = [1, 256], strides = [1, 1]} : vector<8x256xf32> to vector<1x256xf32>
    %c88_556 = arith.constant 88 : index
    %2524 = memref.load %arg5[%c88_556] : memref<144xf32, #tpu.memory_space<smem>>
    %2525 = vector.broadcast %2524 : f32 to vector<1x256xf32>
    %2526 = arith.mulf %2525, %2523 : vector<1x256xf32>
    %2527 = arith.addf %2510, %2526 : vector<1x256xf32>
    %c89_557 = arith.constant 89 : index
    %2528 = memref.load %arg5[%c89_557] : memref<144xf32, #tpu.memory_space<smem>>
    %2529 = vector.broadcast %2528 : f32 to vector<1x256xf32>
    %2530 = arith.mulf %2529, %2523 : vector<1x256xf32>
    %2531 = arith.addf %2514, %2530 : vector<1x256xf32>
    %c90_558 = arith.constant 90 : index
    %2532 = memref.load %arg5[%c90_558] : memref<144xf32, #tpu.memory_space<smem>>
    %2533 = vector.broadcast %2532 : f32 to vector<1x256xf32>
    %2534 = arith.mulf %2533, %2523 : vector<1x256xf32>
    %2535 = arith.addf %2518, %2534 : vector<1x256xf32>
    %c91_559 = arith.constant 91 : index
    %2536 = memref.load %arg5[%c91_559] : memref<144xf32, #tpu.memory_space<smem>>
    %2537 = vector.broadcast %2536 : f32 to vector<1x256xf32>
    %2538 = arith.mulf %2537, %2523 : vector<1x256xf32>
    %2539 = arith.addf %2522, %2538 : vector<1x256xf32>
    %2540 = vector.extract_strided_slice %2488 {offsets = [3, 0], sizes = [1, 256], strides = [1, 1]} : vector<8x256xf32> to vector<1x256xf32>
    %c92_560 = arith.constant 92 : index
    %2541 = memref.load %arg5[%c92_560] : memref<144xf32, #tpu.memory_space<smem>>
    %2542 = vector.broadcast %2541 : f32 to vector<1x256xf32>
    %2543 = arith.mulf %2542, %2540 : vector<1x256xf32>
    %2544 = arith.addf %2527, %2543 : vector<1x256xf32>
    %c93_561 = arith.constant 93 : index
    %2545 = memref.load %arg5[%c93_561] : memref<144xf32, #tpu.memory_space<smem>>
    %2546 = vector.broadcast %2545 : f32 to vector<1x256xf32>
    %2547 = arith.mulf %2546, %2540 : vector<1x256xf32>
    %2548 = arith.addf %2531, %2547 : vector<1x256xf32>
    %c94_562 = arith.constant 94 : index
    %2549 = memref.load %arg5[%c94_562] : memref<144xf32, #tpu.memory_space<smem>>
    %2550 = vector.broadcast %2549 : f32 to vector<1x256xf32>
    %2551 = arith.mulf %2550, %2540 : vector<1x256xf32>
    %2552 = arith.addf %2535, %2551 : vector<1x256xf32>
    %c95_563 = arith.constant 95 : index
    %2553 = memref.load %arg5[%c95_563] : memref<144xf32, #tpu.memory_space<smem>>
    %2554 = vector.broadcast %2553 : f32 to vector<1x256xf32>
    %2555 = arith.mulf %2554, %2540 : vector<1x256xf32>
    %2556 = arith.addf %2539, %2555 : vector<1x256xf32>
    %c241_i32_564 = arith.constant 241 : i32
    %2557 = tpu.dynamic_rotate %2127 by %c241_i32_564 dim 1 : vector<8x256xf32>, i32 -> vector<8x256xf32>
    %c6_565 = arith.constant 6 : index
    %c0_566 = arith.constant 0 : index
    %c0_567 = arith.constant 0 : index
    %2558 = vector.load %arg1[%c6_565, %c0_566, %c0_567] : memref<9x1x256xf32, #tpu.memory_space<vmem>>, vector<1x1x256xf32>
    %2559 = vector.shape_cast %2558 : vector<1x1x256xf32> to vector<1x256xf32>
    %2560 = vector.broadcast %2559 : vector<1x256xf32> to vector<8x256xf32>
    %2561 = arith.mulf %2557, %2560 : vector<8x256xf32>
    %2562 = vector.extract_strided_slice %2561 {offsets = [0, 0], sizes = [1, 256], strides = [1, 1]} : vector<8x256xf32> to vector<1x256xf32>
    %c96_568 = arith.constant 96 : index
    %2563 = memref.load %arg5[%c96_568] : memref<144xf32, #tpu.memory_space<smem>>
    %2564 = vector.broadcast %2563 : f32 to vector<1x256xf32>
    %2565 = arith.mulf %2564, %2562 : vector<1x256xf32>
    %2566 = arith.addf %2544, %2565 : vector<1x256xf32>
    %c97_569 = arith.constant 97 : index
    %2567 = memref.load %arg5[%c97_569] : memref<144xf32, #tpu.memory_space<smem>>
    %2568 = vector.broadcast %2567 : f32 to vector<1x256xf32>
    %2569 = arith.mulf %2568, %2562 : vector<1x256xf32>
    %2570 = arith.addf %2548, %2569 : vector<1x256xf32>
    %c98_570 = arith.constant 98 : index
    %2571 = memref.load %arg5[%c98_570] : memref<144xf32, #tpu.memory_space<smem>>
    %2572 = vector.broadcast %2571 : f32 to vector<1x256xf32>
    %2573 = arith.mulf %2572, %2562 : vector<1x256xf32>
    %2574 = arith.addf %2552, %2573 : vector<1x256xf32>
    %c99_571 = arith.constant 99 : index
    %2575 = memref.load %arg5[%c99_571] : memref<144xf32, #tpu.memory_space<smem>>
    %2576 = vector.broadcast %2575 : f32 to vector<1x256xf32>
    %2577 = arith.mulf %2576, %2562 : vector<1x256xf32>
    %2578 = arith.addf %2556, %2577 : vector<1x256xf32>
    %2579 = vector.extract_strided_slice %2561 {offsets = [1, 0], sizes = [1, 256], strides = [1, 1]} : vector<8x256xf32> to vector<1x256xf32>
    %c100_572 = arith.constant 100 : index
    %2580 = memref.load %arg5[%c100_572] : memref<144xf32, #tpu.memory_space<smem>>
    %2581 = vector.broadcast %2580 : f32 to vector<1x256xf32>
    %2582 = arith.mulf %2581, %2579 : vector<1x256xf32>
    %2583 = arith.addf %2566, %2582 : vector<1x256xf32>
    %c101_573 = arith.constant 101 : index
    %2584 = memref.load %arg5[%c101_573] : memref<144xf32, #tpu.memory_space<smem>>
    %2585 = vector.broadcast %2584 : f32 to vector<1x256xf32>
    %2586 = arith.mulf %2585, %2579 : vector<1x256xf32>
    %2587 = arith.addf %2570, %2586 : vector<1x256xf32>
    %c102_574 = arith.constant 102 : index
    %2588 = memref.load %arg5[%c102_574] : memref<144xf32, #tpu.memory_space<smem>>
    %2589 = vector.broadcast %2588 : f32 to vector<1x256xf32>
    %2590 = arith.mulf %2589, %2579 : vector<1x256xf32>
    %2591 = arith.addf %2574, %2590 : vector<1x256xf32>
    %c103_575 = arith.constant 103 : index
    %2592 = memref.load %arg5[%c103_575] : memref<144xf32, #tpu.memory_space<smem>>
    %2593 = vector.broadcast %2592 : f32 to vector<1x256xf32>
    %2594 = arith.mulf %2593, %2579 : vector<1x256xf32>
    %2595 = arith.addf %2578, %2594 : vector<1x256xf32>
    %2596 = vector.extract_strided_slice %2561 {offsets = [2, 0], sizes = [1, 256], strides = [1, 1]} : vector<8x256xf32> to vector<1x256xf32>
    %c104_576 = arith.constant 104 : index
    %2597 = memref.load %arg5[%c104_576] : memref<144xf32, #tpu.memory_space<smem>>
    %2598 = vector.broadcast %2597 : f32 to vector<1x256xf32>
    %2599 = arith.mulf %2598, %2596 : vector<1x256xf32>
    %2600 = arith.addf %2583, %2599 : vector<1x256xf32>
    %c105_577 = arith.constant 105 : index
    %2601 = memref.load %arg5[%c105_577] : memref<144xf32, #tpu.memory_space<smem>>
    %2602 = vector.broadcast %2601 : f32 to vector<1x256xf32>
    %2603 = arith.mulf %2602, %2596 : vector<1x256xf32>
    %2604 = arith.addf %2587, %2603 : vector<1x256xf32>
    %c106_578 = arith.constant 106 : index
    %2605 = memref.load %arg5[%c106_578] : memref<144xf32, #tpu.memory_space<smem>>
    %2606 = vector.broadcast %2605 : f32 to vector<1x256xf32>
    %2607 = arith.mulf %2606, %2596 : vector<1x256xf32>
    %2608 = arith.addf %2591, %2607 : vector<1x256xf32>
    %c107_579 = arith.constant 107 : index
    %2609 = memref.load %arg5[%c107_579] : memref<144xf32, #tpu.memory_space<smem>>
    %2610 = vector.broadcast %2609 : f32 to vector<1x256xf32>
    %2611 = arith.mulf %2610, %2596 : vector<1x256xf32>
    %2612 = arith.addf %2595, %2611 : vector<1x256xf32>
    %2613 = vector.extract_strided_slice %2561 {offsets = [3, 0], sizes = [1, 256], strides = [1, 1]} : vector<8x256xf32> to vector<1x256xf32>
    %c108_580 = arith.constant 108 : index
    %2614 = memref.load %arg5[%c108_580] : memref<144xf32, #tpu.memory_space<smem>>
    %2615 = vector.broadcast %2614 : f32 to vector<1x256xf32>
    %2616 = arith.mulf %2615, %2613 : vector<1x256xf32>
    %2617 = arith.addf %2600, %2616 : vector<1x256xf32>
    %c109_581 = arith.constant 109 : index
    %2618 = memref.load %arg5[%c109_581] : memref<144xf32, #tpu.memory_space<smem>>
    %2619 = vector.broadcast %2618 : f32 to vector<1x256xf32>
    %2620 = arith.mulf %2619, %2613 : vector<1x256xf32>
    %2621 = arith.addf %2604, %2620 : vector<1x256xf32>
    %c110_582 = arith.constant 110 : index
    %2622 = memref.load %arg5[%c110_582] : memref<144xf32, #tpu.memory_space<smem>>
    %2623 = vector.broadcast %2622 : f32 to vector<1x256xf32>
    %2624 = arith.mulf %2623, %2613 : vector<1x256xf32>
    %2625 = arith.addf %2608, %2624 : vector<1x256xf32>
    %c111_583 = arith.constant 111 : index
    %2626 = memref.load %arg5[%c111_583] : memref<144xf32, #tpu.memory_space<smem>>
    %2627 = vector.broadcast %2626 : f32 to vector<1x256xf32>
    %2628 = arith.mulf %2627, %2613 : vector<1x256xf32>
    %2629 = arith.addf %2612, %2628 : vector<1x256xf32>
    %c240_i32_584 = arith.constant 240 : i32
    %2630 = tpu.dynamic_rotate %2127 by %c240_i32_584 dim 1 : vector<8x256xf32>, i32 -> vector<8x256xf32>
    %c7_585 = arith.constant 7 : index
    %c0_586 = arith.constant 0 : index
    %c0_587 = arith.constant 0 : index
    %2631 = vector.load %arg1[%c7_585, %c0_586, %c0_587] : memref<9x1x256xf32, #tpu.memory_space<vmem>>, vector<1x1x256xf32>
    %2632 = vector.shape_cast %2631 : vector<1x1x256xf32> to vector<1x256xf32>
    %2633 = vector.broadcast %2632 : vector<1x256xf32> to vector<8x256xf32>
    %2634 = arith.mulf %2630, %2633 : vector<8x256xf32>
    %2635 = vector.extract_strided_slice %2634 {offsets = [0, 0], sizes = [1, 256], strides = [1, 1]} : vector<8x256xf32> to vector<1x256xf32>
    %c112_588 = arith.constant 112 : index
    %2636 = memref.load %arg5[%c112_588] : memref<144xf32, #tpu.memory_space<smem>>
    %2637 = vector.broadcast %2636 : f32 to vector<1x256xf32>
    %2638 = arith.mulf %2637, %2635 : vector<1x256xf32>
    %2639 = arith.addf %2617, %2638 : vector<1x256xf32>
    %c113_589 = arith.constant 113 : index
    %2640 = memref.load %arg5[%c113_589] : memref<144xf32, #tpu.memory_space<smem>>
    %2641 = vector.broadcast %2640 : f32 to vector<1x256xf32>
    %2642 = arith.mulf %2641, %2635 : vector<1x256xf32>
    %2643 = arith.addf %2621, %2642 : vector<1x256xf32>
    %c114_590 = arith.constant 114 : index
    %2644 = memref.load %arg5[%c114_590] : memref<144xf32, #tpu.memory_space<smem>>
    %2645 = vector.broadcast %2644 : f32 to vector<1x256xf32>
    %2646 = arith.mulf %2645, %2635 : vector<1x256xf32>
    %2647 = arith.addf %2625, %2646 : vector<1x256xf32>
    %c115_591 = arith.constant 115 : index
    %2648 = memref.load %arg5[%c115_591] : memref<144xf32, #tpu.memory_space<smem>>
    %2649 = vector.broadcast %2648 : f32 to vector<1x256xf32>
    %2650 = arith.mulf %2649, %2635 : vector<1x256xf32>
    %2651 = arith.addf %2629, %2650 : vector<1x256xf32>
    %2652 = vector.extract_strided_slice %2634 {offsets = [1, 0], sizes = [1, 256], strides = [1, 1]} : vector<8x256xf32> to vector<1x256xf32>
    %c116_592 = arith.constant 116 : index
    %2653 = memref.load %arg5[%c116_592] : memref<144xf32, #tpu.memory_space<smem>>
    %2654 = vector.broadcast %2653 : f32 to vector<1x256xf32>
    %2655 = arith.mulf %2654, %2652 : vector<1x256xf32>
    %2656 = arith.addf %2639, %2655 : vector<1x256xf32>
    %c117_593 = arith.constant 117 : index
    %2657 = memref.load %arg5[%c117_593] : memref<144xf32, #tpu.memory_space<smem>>
    %2658 = vector.broadcast %2657 : f32 to vector<1x256xf32>
    %2659 = arith.mulf %2658, %2652 : vector<1x256xf32>
    %2660 = arith.addf %2643, %2659 : vector<1x256xf32>
    %c118_594 = arith.constant 118 : index
    %2661 = memref.load %arg5[%c118_594] : memref<144xf32, #tpu.memory_space<smem>>
    %2662 = vector.broadcast %2661 : f32 to vector<1x256xf32>
    %2663 = arith.mulf %2662, %2652 : vector<1x256xf32>
    %2664 = arith.addf %2647, %2663 : vector<1x256xf32>
    %c119_595 = arith.constant 119 : index
    %2665 = memref.load %arg5[%c119_595] : memref<144xf32, #tpu.memory_space<smem>>
    %2666 = vector.broadcast %2665 : f32 to vector<1x256xf32>
    %2667 = arith.mulf %2666, %2652 : vector<1x256xf32>
    %2668 = arith.addf %2651, %2667 : vector<1x256xf32>
    %2669 = vector.extract_strided_slice %2634 {offsets = [2, 0], sizes = [1, 256], strides = [1, 1]} : vector<8x256xf32> to vector<1x256xf32>
    %c120_596 = arith.constant 120 : index
    %2670 = memref.load %arg5[%c120_596] : memref<144xf32, #tpu.memory_space<smem>>
    %2671 = vector.broadcast %2670 : f32 to vector<1x256xf32>
    %2672 = arith.mulf %2671, %2669 : vector<1x256xf32>
    %2673 = arith.addf %2656, %2672 : vector<1x256xf32>
    %c121_597 = arith.constant 121 : index
    %2674 = memref.load %arg5[%c121_597] : memref<144xf32, #tpu.memory_space<smem>>
    %2675 = vector.broadcast %2674 : f32 to vector<1x256xf32>
    %2676 = arith.mulf %2675, %2669 : vector<1x256xf32>
    %2677 = arith.addf %2660, %2676 : vector<1x256xf32>
    %c122_598 = arith.constant 122 : index
    %2678 = memref.load %arg5[%c122_598] : memref<144xf32, #tpu.memory_space<smem>>
    %2679 = vector.broadcast %2678 : f32 to vector<1x256xf32>
    %2680 = arith.mulf %2679, %2669 : vector<1x256xf32>
    %2681 = arith.addf %2664, %2680 : vector<1x256xf32>
    %c123_599 = arith.constant 123 : index
    %2682 = memref.load %arg5[%c123_599] : memref<144xf32, #tpu.memory_space<smem>>
    %2683 = vector.broadcast %2682 : f32 to vector<1x256xf32>
    %2684 = arith.mulf %2683, %2669 : vector<1x256xf32>
    %2685 = arith.addf %2668, %2684 : vector<1x256xf32>
    %2686 = vector.extract_strided_slice %2634 {offsets = [3, 0], sizes = [1, 256], strides = [1, 1]} : vector<8x256xf32> to vector<1x256xf32>
    %c124_600 = arith.constant 124 : index
    %2687 = memref.load %arg5[%c124_600] : memref<144xf32, #tpu.memory_space<smem>>
    %2688 = vector.broadcast %2687 : f32 to vector<1x256xf32>
    %2689 = arith.mulf %2688, %2686 : vector<1x256xf32>
    %2690 = arith.addf %2673, %2689 : vector<1x256xf32>
    %c125_601 = arith.constant 125 : index
    %2691 = memref.load %arg5[%c125_601] : memref<144xf32, #tpu.memory_space<smem>>
    %2692 = vector.broadcast %2691 : f32 to vector<1x256xf32>
    %2693 = arith.mulf %2692, %2686 : vector<1x256xf32>
    %2694 = arith.addf %2677, %2693 : vector<1x256xf32>
    %c126_602 = arith.constant 126 : index
    %2695 = memref.load %arg5[%c126_602] : memref<144xf32, #tpu.memory_space<smem>>
    %2696 = vector.broadcast %2695 : f32 to vector<1x256xf32>
    %2697 = arith.mulf %2696, %2686 : vector<1x256xf32>
    %2698 = arith.addf %2681, %2697 : vector<1x256xf32>
    %c127_603 = arith.constant 127 : index
    %2699 = memref.load %arg5[%c127_603] : memref<144xf32, #tpu.memory_space<smem>>
    %2700 = vector.broadcast %2699 : f32 to vector<1x256xf32>
    %2701 = arith.mulf %2700, %2686 : vector<1x256xf32>
    %2702 = arith.addf %2685, %2701 : vector<1x256xf32>
    %c239_i32_604 = arith.constant 239 : i32
    %2703 = tpu.dynamic_rotate %2127 by %c239_i32_604 dim 1 : vector<8x256xf32>, i32 -> vector<8x256xf32>
    %c8_605 = arith.constant 8 : index
    %c0_606 = arith.constant 0 : index
    %c0_607 = arith.constant 0 : index
    %2704 = vector.load %arg1[%c8_605, %c0_606, %c0_607] : memref<9x1x256xf32, #tpu.memory_space<vmem>>, vector<1x1x256xf32>
    %2705 = vector.shape_cast %2704 : vector<1x1x256xf32> to vector<1x256xf32>
    %2706 = vector.broadcast %2705 : vector<1x256xf32> to vector<8x256xf32>
    %2707 = arith.mulf %2703, %2706 : vector<8x256xf32>
    %2708 = vector.extract_strided_slice %2707 {offsets = [0, 0], sizes = [1, 256], strides = [1, 1]} : vector<8x256xf32> to vector<1x256xf32>
    %c128_608 = arith.constant 128 : index
    %2709 = memref.load %arg5[%c128_608] : memref<144xf32, #tpu.memory_space<smem>>
    %2710 = vector.broadcast %2709 : f32 to vector<1x256xf32>
    %2711 = arith.mulf %2710, %2708 : vector<1x256xf32>
    %2712 = arith.addf %2690, %2711 : vector<1x256xf32>
    %c129_609 = arith.constant 129 : index
    %2713 = memref.load %arg5[%c129_609] : memref<144xf32, #tpu.memory_space<smem>>
    %2714 = vector.broadcast %2713 : f32 to vector<1x256xf32>
    %2715 = arith.mulf %2714, %2708 : vector<1x256xf32>
    %2716 = arith.addf %2694, %2715 : vector<1x256xf32>
    %c130_610 = arith.constant 130 : index
    %2717 = memref.load %arg5[%c130_610] : memref<144xf32, #tpu.memory_space<smem>>
    %2718 = vector.broadcast %2717 : f32 to vector<1x256xf32>
    %2719 = arith.mulf %2718, %2708 : vector<1x256xf32>
    %2720 = arith.addf %2698, %2719 : vector<1x256xf32>
    %c131_611 = arith.constant 131 : index
    %2721 = memref.load %arg5[%c131_611] : memref<144xf32, #tpu.memory_space<smem>>
    %2722 = vector.broadcast %2721 : f32 to vector<1x256xf32>
    %2723 = arith.mulf %2722, %2708 : vector<1x256xf32>
    %2724 = arith.addf %2702, %2723 : vector<1x256xf32>
    %2725 = vector.extract_strided_slice %2707 {offsets = [1, 0], sizes = [1, 256], strides = [1, 1]} : vector<8x256xf32> to vector<1x256xf32>
    %c132_612 = arith.constant 132 : index
    %2726 = memref.load %arg5[%c132_612] : memref<144xf32, #tpu.memory_space<smem>>
    %2727 = vector.broadcast %2726 : f32 to vector<1x256xf32>
    %2728 = arith.mulf %2727, %2725 : vector<1x256xf32>
    %2729 = arith.addf %2712, %2728 : vector<1x256xf32>
    %c133_613 = arith.constant 133 : index
    %2730 = memref.load %arg5[%c133_613] : memref<144xf32, #tpu.memory_space<smem>>
    %2731 = vector.broadcast %2730 : f32 to vector<1x256xf32>
    %2732 = arith.mulf %2731, %2725 : vector<1x256xf32>
    %2733 = arith.addf %2716, %2732 : vector<1x256xf32>
    %c134_614 = arith.constant 134 : index
    %2734 = memref.load %arg5[%c134_614] : memref<144xf32, #tpu.memory_space<smem>>
    %2735 = vector.broadcast %2734 : f32 to vector<1x256xf32>
    %2736 = arith.mulf %2735, %2725 : vector<1x256xf32>
    %2737 = arith.addf %2720, %2736 : vector<1x256xf32>
    %c135_615 = arith.constant 135 : index
    %2738 = memref.load %arg5[%c135_615] : memref<144xf32, #tpu.memory_space<smem>>
    %2739 = vector.broadcast %2738 : f32 to vector<1x256xf32>
    %2740 = arith.mulf %2739, %2725 : vector<1x256xf32>
    %2741 = arith.addf %2724, %2740 : vector<1x256xf32>
    %2742 = vector.extract_strided_slice %2707 {offsets = [2, 0], sizes = [1, 256], strides = [1, 1]} : vector<8x256xf32> to vector<1x256xf32>
    %c136_616 = arith.constant 136 : index
    %2743 = memref.load %arg5[%c136_616] : memref<144xf32, #tpu.memory_space<smem>>
    %2744 = vector.broadcast %2743 : f32 to vector<1x256xf32>
    %2745 = arith.mulf %2744, %2742 : vector<1x256xf32>
    %2746 = arith.addf %2729, %2745 : vector<1x256xf32>
    %c137_617 = arith.constant 137 : index
    %2747 = memref.load %arg5[%c137_617] : memref<144xf32, #tpu.memory_space<smem>>
    %2748 = vector.broadcast %2747 : f32 to vector<1x256xf32>
    %2749 = arith.mulf %2748, %2742 : vector<1x256xf32>
    %2750 = arith.addf %2733, %2749 : vector<1x256xf32>
    %c138_618 = arith.constant 138 : index
    %2751 = memref.load %arg5[%c138_618] : memref<144xf32, #tpu.memory_space<smem>>
    %2752 = vector.broadcast %2751 : f32 to vector<1x256xf32>
    %2753 = arith.mulf %2752, %2742 : vector<1x256xf32>
    %2754 = arith.addf %2737, %2753 : vector<1x256xf32>
    %c139_619 = arith.constant 139 : index
    %2755 = memref.load %arg5[%c139_619] : memref<144xf32, #tpu.memory_space<smem>>
    %2756 = vector.broadcast %2755 : f32 to vector<1x256xf32>
    %2757 = arith.mulf %2756, %2742 : vector<1x256xf32>
    %2758 = arith.addf %2741, %2757 : vector<1x256xf32>
    %2759 = vector.extract_strided_slice %2707 {offsets = [3, 0], sizes = [1, 256], strides = [1, 1]} : vector<8x256xf32> to vector<1x256xf32>
    %c140_620 = arith.constant 140 : index
    %2760 = memref.load %arg5[%c140_620] : memref<144xf32, #tpu.memory_space<smem>>
    %2761 = vector.broadcast %2760 : f32 to vector<1x256xf32>
    %2762 = arith.mulf %2761, %2759 : vector<1x256xf32>
    %2763 = arith.addf %2746, %2762 : vector<1x256xf32>
    %c141_621 = arith.constant 141 : index
    %2764 = memref.load %arg5[%c141_621] : memref<144xf32, #tpu.memory_space<smem>>
    %2765 = vector.broadcast %2764 : f32 to vector<1x256xf32>
    %2766 = arith.mulf %2765, %2759 : vector<1x256xf32>
    %2767 = arith.addf %2750, %2766 : vector<1x256xf32>
    %c142_622 = arith.constant 142 : index
    %2768 = memref.load %arg5[%c142_622] : memref<144xf32, #tpu.memory_space<smem>>
    %2769 = vector.broadcast %2768 : f32 to vector<1x256xf32>
    %2770 = arith.mulf %2769, %2759 : vector<1x256xf32>
    %2771 = arith.addf %2754, %2770 : vector<1x256xf32>
    %c143_623 = arith.constant 143 : index
    %2772 = memref.load %arg5[%c143_623] : memref<144xf32, #tpu.memory_space<smem>>
    %2773 = vector.broadcast %2772 : f32 to vector<1x256xf32>
    %2774 = arith.mulf %2773, %2759 : vector<1x256xf32>
    %2775 = arith.addf %2758, %2774 : vector<1x256xf32>
    %cst_624 = arith.constant dense<0.000000e+00> : vector<1xf32>
    %2776 = vector.multi_reduction <add>, %2110, %cst_624 [1] : vector<1x256xf32> to vector<1xf32>
    %2777 = vector.shape_cast %2776 : vector<1xf32> to vector<1x1xf32>
    %cst_625 = arith.constant dense<0.000000e+00> : vector<1xf32>
    %2778 = vector.multi_reduction <add>, %2763, %cst_625 [1] : vector<1x256xf32> to vector<1xf32>
    %2779 = vector.shape_cast %2778 : vector<1xf32> to vector<1x1xf32>
    %2780 = arith.addf %2777, %2779 : vector<1x1xf32>
    %cst_626 = arith.constant 0.001953125 : f32
    %2781 = vector.broadcast %cst_626 : f32 to vector<1x1xf32>
    %2782 = arith.mulf %2780, %2781 : vector<1x1xf32>
    %2783 = vector.broadcast %2782 : vector<1x1xf32> to vector<1x256xf32>
    %2784 = arith.subf %2110, %2783 : vector<1x256xf32>
    %2785 = arith.mulf %2784, %2784 : vector<1x256xf32>
    %cst_627 = arith.constant dense<0.000000e+00> : vector<1xf32>
    %2786 = vector.multi_reduction <add>, %2785, %cst_627 [1] : vector<1x256xf32> to vector<1xf32>
    %2787 = vector.shape_cast %2786 : vector<1xf32> to vector<1x1xf32>
    %2788 = vector.broadcast %2782 : vector<1x1xf32> to vector<1x256xf32>
    %2789 = arith.subf %2763, %2788 : vector<1x256xf32>
    %2790 = arith.mulf %2789, %2789 : vector<1x256xf32>
    %cst_628 = arith.constant dense<0.000000e+00> : vector<1xf32>
    %2791 = vector.multi_reduction <add>, %2790, %cst_628 [1] : vector<1x256xf32> to vector<1xf32>
    %2792 = vector.shape_cast %2791 : vector<1xf32> to vector<1x1xf32>
    %2793 = arith.addf %2787, %2792 : vector<1x1xf32>
    %cst_629 = arith.constant 0.001953125 : f32
    %2794 = vector.broadcast %cst_629 : f32 to vector<1x1xf32>
    %2795 = arith.mulf %2793, %2794 : vector<1x1xf32>
    %c0_630 = arith.constant 0 : index
    %2796 = memref.load %arg6[%c0_630] : memref<4xf32, #tpu.memory_space<smem>>
    %cst_631 = arith.constant 9.99999974E-6 : f32
    %2797 = vector.broadcast %cst_631 : f32 to vector<1x1xf32>
    %2798 = arith.addf %2795, %2797 : vector<1x1xf32>
    %2799 = math.rsqrt %2798 : vector<1x1xf32>
    %2800 = vector.broadcast %2796 : f32 to vector<1x1xf32>
    %2801 = arith.mulf %2800, %2799 : vector<1x1xf32>
    %c0_632 = arith.constant 0 : index
    %2802 = memref.load %arg7[%c0_632] : memref<4xf32, #tpu.memory_space<smem>>
    %2803 = arith.mulf %2782, %2801 : vector<1x1xf32>
    %2804 = vector.broadcast %2802 : f32 to vector<1x1xf32>
    %2805 = arith.subf %2804, %2803 : vector<1x1xf32>
    %2806 = vector.broadcast %2801 : vector<1x1xf32> to vector<1x256xf32>
    %2807 = arith.mulf %2110, %2806 : vector<1x256xf32>
    %2808 = vector.broadcast %2805 : vector<1x1xf32> to vector<1x256xf32>
    %2809 = arith.addf %2807, %2808 : vector<1x256xf32>
    %c0_633 = arith.constant 0 : index
    %c0_634 = arith.constant 0 : index
    %c0_635 = arith.constant 0 : index
    %2810 = vector.load %arg0[%c0_633, %c0_634, %c0_635] : memref<2x8x256xf32, #tpu.memory_space<vmem>>, vector<1x1x256xf32>
    %2811 = vector.shape_cast %2810 : vector<1x1x256xf32> to vector<1x256xf32>
    %2812 = arith.addf %2809, %2811 : vector<1x256xf32>
    %cst_636 = arith.constant 0.000000e+00 : f32
    %2813 = vector.broadcast %cst_636 : f32 to vector<1x256xf32>
    %2814 = arith.maximumf %2812, %2813 : vector<1x256xf32>
    %c0_637 = arith.constant 0 : index
    %c0_638 = arith.constant 0 : index
    %c0_639 = arith.constant 0 : index
    %2815 = vector.load %arg8[%c0_637, %c0_638, %c0_639] : memref<2x4x256xf32, #tpu.memory_space<vmem>>, vector<1x1x256xf32>
    %2816 = vector.shape_cast %2815 : vector<1x1x256xf32> to vector<1x256xf32>
    %2817 = vector.shape_cast %2814 : vector<1x256xf32> to vector<1x1x256xf32>
    tpu.vector_store %arg8[%c0_637, %c0_638, %c0_639], %2817 {strides = array<i32>} : memref<2x4x256xf32, #tpu.memory_space<vmem>>, vector<1x1x256xf32>,
    %2818 = vector.broadcast %2801 : vector<1x1xf32> to vector<1x256xf32>
    %2819 = arith.mulf %2763, %2818 : vector<1x256xf32>
    %2820 = vector.broadcast %2805 : vector<1x1xf32> to vector<1x256xf32>
    %2821 = arith.addf %2819, %2820 : vector<1x256xf32>
    %c1_640 = arith.constant 1 : index
    %c0_641 = arith.constant 0 : index
    %c0_642 = arith.constant 0 : index
    %2822 = vector.load %arg0[%c1_640, %c0_641, %c0_642] : memref<2x8x256xf32, #tpu.memory_space<vmem>>, vector<1x1x256xf32>
    %2823 = vector.shape_cast %2822 : vector<1x1x256xf32> to vector<1x256xf32>
    %2824 = arith.addf %2821, %2823 : vector<1x256xf32>
    %cst_643 = arith.constant 0.000000e+00 : f32
    %2825 = vector.broadcast %cst_643 : f32 to vector<1x256xf32>
    %2826 = arith.maximumf %2824, %2825 : vector<1x256xf32>
    %c1_644 = arith.constant 1 : index
    %c0_645 = arith.constant 0 : index
    %c0_646 = arith.constant 0 : index
    %2827 = vector.load %arg8[%c1_644, %c0_645, %c0_646] : memref<2x4x256xf32, #tpu.memory_space<vmem>>, vector<1x1x256xf32>
    %2828 = vector.shape_cast %2827 : vector<1x1x256xf32> to vector<1x256xf32>
    %2829 = vector.shape_cast %2826 : vector<1x256xf32> to vector<1x1x256xf32>
    tpu.vector_store %arg8[%c1_644, %c0_645, %c0_646], %2829 {strides = array<i32>} : memref<2x4x256xf32, #tpu.memory_space<vmem>>, vector<1x1x256xf32>,
    %cst_647 = arith.constant dense<0.000000e+00> : vector<1xf32>
    %2830 = vector.multi_reduction <add>, %2114, %cst_647 [1] : vector<1x256xf32> to vector<1xf32>
    %2831 = vector.shape_cast %2830 : vector<1xf32> to vector<1x1xf32>
    %cst_648 = arith.constant dense<0.000000e+00> : vector<1xf32>
    %2832 = vector.multi_reduction <add>, %2767, %cst_648 [1] : vector<1x256xf32> to vector<1xf32>
    %2833 = vector.shape_cast %2832 : vector<1xf32> to vector<1x1xf32>
    %2834 = arith.addf %2831, %2833 : vector<1x1xf32>
    %cst_649 = arith.constant 0.001953125 : f32
    %2835 = vector.broadcast %cst_649 : f32 to vector<1x1xf32>
    %2836 = arith.mulf %2834, %2835 : vector<1x1xf32>
    %2837 = vector.broadcast %2836 : vector<1x1xf32> to vector<1x256xf32>
    %2838 = arith.subf %2114, %2837 : vector<1x256xf32>
    %2839 = arith.mulf %2838, %2838 : vector<1x256xf32>
    %cst_650 = arith.constant dense<0.000000e+00> : vector<1xf32>
    %2840 = vector.multi_reduction <add>, %2839, %cst_650 [1] : vector<1x256xf32> to vector<1xf32>
    %2841 = vector.shape_cast %2840 : vector<1xf32> to vector<1x1xf32>
    %2842 = vector.broadcast %2836 : vector<1x1xf32> to vector<1x256xf32>
    %2843 = arith.subf %2767, %2842 : vector<1x256xf32>
    %2844 = arith.mulf %2843, %2843 : vector<1x256xf32>
    %cst_651 = arith.constant dense<0.000000e+00> : vector<1xf32>
    %2845 = vector.multi_reduction <add>, %2844, %cst_651 [1] : vector<1x256xf32> to vector<1xf32>
    %2846 = vector.shape_cast %2845 : vector<1xf32> to vector<1x1xf32>
    %2847 = arith.addf %2841, %2846 : vector<1x1xf32>
    %cst_652 = arith.constant 0.001953125 : f32
    %2848 = vector.broadcast %cst_652 : f32 to vector<1x1xf32>
    %2849 = arith.mulf %2847, %2848 : vector<1x1xf32>
    %c1_653 = arith.constant 1 : index
    %2850 = memref.load %arg6[%c1_653] : memref<4xf32, #tpu.memory_space<smem>>
    %cst_654 = arith.constant 9.99999974E-6 : f32
    %2851 = vector.broadcast %cst_654 : f32 to vector<1x1xf32>
    %2852 = arith.addf %2849, %2851 : vector<1x1xf32>
    %2853 = math.rsqrt %2852 : vector<1x1xf32>
    %2854 = vector.broadcast %2850 : f32 to vector<1x1xf32>
    %2855 = arith.mulf %2854, %2853 : vector<1x1xf32>
    %c1_655 = arith.constant 1 : index
    %2856 = memref.load %arg7[%c1_655] : memref<4xf32, #tpu.memory_space<smem>>
    %2857 = arith.mulf %2836, %2855 : vector<1x1xf32>
    %2858 = vector.broadcast %2856 : f32 to vector<1x1xf32>
    %2859 = arith.subf %2858, %2857 : vector<1x1xf32>
    %2860 = vector.broadcast %2855 : vector<1x1xf32> to vector<1x256xf32>
    %2861 = arith.mulf %2114, %2860 : vector<1x256xf32>
    %2862 = vector.broadcast %2859 : vector<1x1xf32> to vector<1x256xf32>
    %2863 = arith.addf %2861, %2862 : vector<1x256xf32>
    %c0_656 = arith.constant 0 : index
    %c1_657 = arith.constant 1 : index
    %c0_658 = arith.constant 0 : index
    %2864 = vector.load %arg0[%c0_656, %c1_657, %c0_658] : memref<2x8x256xf32, #tpu.memory_space<vmem>>, vector<1x1x256xf32>
    %2865 = vector.shape_cast %2864 : vector<1x1x256xf32> to vector<1x256xf32>
    %2866 = arith.addf %2863, %2865 : vector<1x256xf32>
    %cst_659 = arith.constant 0.000000e+00 : f32
    %2867 = vector.broadcast %cst_659 : f32 to vector<1x256xf32>
    %2868 = arith.maximumf %2866, %2867 : vector<1x256xf32>
    %c0_660 = arith.constant 0 : index
    %c1_661 = arith.constant 1 : index
    %c0_662 = arith.constant 0 : index
    %2869 = vector.load %arg8[%c0_660, %c1_661, %c0_662] : memref<2x4x256xf32, #tpu.memory_space<vmem>>, vector<1x1x256xf32>
    %2870 = vector.shape_cast %2869 : vector<1x1x256xf32> to vector<1x256xf32>
    %2871 = vector.shape_cast %2868 : vector<1x256xf32> to vector<1x1x256xf32>
    tpu.vector_store %arg8[%c0_660, %c1_661, %c0_662], %2871 {strides = array<i32>} : memref<2x4x256xf32, #tpu.memory_space<vmem>>, vector<1x1x256xf32>,
    %2872 = vector.broadcast %2855 : vector<1x1xf32> to vector<1x256xf32>
    %2873 = arith.mulf %2767, %2872 : vector<1x256xf32>
    %2874 = vector.broadcast %2859 : vector<1x1xf32> to vector<1x256xf32>
    %2875 = arith.addf %2873, %2874 : vector<1x256xf32>
    %c1_663 = arith.constant 1 : index
    %c1_664 = arith.constant 1 : index
    %c0_665 = arith.constant 0 : index
    %2876 = vector.load %arg0[%c1_663, %c1_664, %c0_665] : memref<2x8x256xf32, #tpu.memory_space<vmem>>, vector<1x1x256xf32>
    %2877 = vector.shape_cast %2876 : vector<1x1x256xf32> to vector<1x256xf32>
    %2878 = arith.addf %2875, %2877 : vector<1x256xf32>
    %cst_666 = arith.constant 0.000000e+00 : f32
    %2879 = vector.broadcast %cst_666 : f32 to vector<1x256xf32>
    %2880 = arith.maximumf %2878, %2879 : vector<1x256xf32>
    %c1_667 = arith.constant 1 : index
    %c1_668 = arith.constant 1 : index
    %c0_669 = arith.constant 0 : index
    %2881 = vector.load %arg8[%c1_667, %c1_668, %c0_669] : memref<2x4x256xf32, #tpu.memory_space<vmem>>, vector<1x1x256xf32>
    %2882 = vector.shape_cast %2881 : vector<1x1x256xf32> to vector<1x256xf32>
    %2883 = vector.shape_cast %2880 : vector<1x256xf32> to vector<1x1x256xf32>
    tpu.vector_store %arg8[%c1_667, %c1_668, %c0_669], %2883 {strides = array<i32>} : memref<2x4x256xf32, #tpu.memory_space<vmem>>, vector<1x1x256xf32>,
    %cst_670 = arith.constant dense<0.000000e+00> : vector<1xf32>
    %2884 = vector.multi_reduction <add>, %2118, %cst_670 [1] : vector<1x256xf32> to vector<1xf32>
    %2885 = vector.shape_cast %2884 : vector<1xf32> to vector<1x1xf32>
    %cst_671 = arith.constant dense<0.000000e+00> : vector<1xf32>
    %2886 = vector.multi_reduction <add>, %2771, %cst_671 [1] : vector<1x256xf32> to vector<1xf32>
    %2887 = vector.shape_cast %2886 : vector<1xf32> to vector<1x1xf32>
    %2888 = arith.addf %2885, %2887 : vector<1x1xf32>
    %cst_672 = arith.constant 0.001953125 : f32
    %2889 = vector.broadcast %cst_672 : f32 to vector<1x1xf32>
    %2890 = arith.mulf %2888, %2889 : vector<1x1xf32>
    %2891 = vector.broadcast %2890 : vector<1x1xf32> to vector<1x256xf32>
    %2892 = arith.subf %2118, %2891 : vector<1x256xf32>
    %2893 = arith.mulf %2892, %2892 : vector<1x256xf32>
    %cst_673 = arith.constant dense<0.000000e+00> : vector<1xf32>
    %2894 = vector.multi_reduction <add>, %2893, %cst_673 [1] : vector<1x256xf32> to vector<1xf32>
    %2895 = vector.shape_cast %2894 : vector<1xf32> to vector<1x1xf32>
    %2896 = vector.broadcast %2890 : vector<1x1xf32> to vector<1x256xf32>
    %2897 = arith.subf %2771, %2896 : vector<1x256xf32>
    %2898 = arith.mulf %2897, %2897 : vector<1x256xf32>
    %cst_674 = arith.constant dense<0.000000e+00> : vector<1xf32>
    %2899 = vector.multi_reduction <add>, %2898, %cst_674 [1] : vector<1x256xf32> to vector<1xf32>
    %2900 = vector.shape_cast %2899 : vector<1xf32> to vector<1x1xf32>
    %2901 = arith.addf %2895, %2900 : vector<1x1xf32>
    %cst_675 = arith.constant 0.001953125 : f32
    %2902 = vector.broadcast %cst_675 : f32 to vector<1x1xf32>
    %2903 = arith.mulf %2901, %2902 : vector<1x1xf32>
    %c2_676 = arith.constant 2 : index
    %2904 = memref.load %arg6[%c2_676] : memref<4xf32, #tpu.memory_space<smem>>
    %cst_677 = arith.constant 9.99999974E-6 : f32
    %2905 = vector.broadcast %cst_677 : f32 to vector<1x1xf32>
    %2906 = arith.addf %2903, %2905 : vector<1x1xf32>
    %2907 = math.rsqrt %2906 : vector<1x1xf32>
    %2908 = vector.broadcast %2904 : f32 to vector<1x1xf32>
    %2909 = arith.mulf %2908, %2907 : vector<1x1xf32>
    %c2_678 = arith.constant 2 : index
    %2910 = memref.load %arg7[%c2_678] : memref<4xf32, #tpu.memory_space<smem>>
    %2911 = arith.mulf %2890, %2909 : vector<1x1xf32>
    %2912 = vector.broadcast %2910 : f32 to vector<1x1xf32>
    %2913 = arith.subf %2912, %2911 : vector<1x1xf32>
    %2914 = vector.broadcast %2909 : vector<1x1xf32> to vector<1x256xf32>
    %2915 = arith.mulf %2118, %2914 : vector<1x256xf32>
    %2916 = vector.broadcast %2913 : vector<1x1xf32> to vector<1x256xf32>
    %2917 = arith.addf %2915, %2916 : vector<1x256xf32>
    %c0_679 = arith.constant 0 : index
    %c2_680 = arith.constant 2 : index
    %c0_681 = arith.constant 0 : index
    %2918 = vector.load %arg0[%c0_679, %c2_680, %c0_681] : memref<2x8x256xf32, #tpu.memory_space<vmem>>, vector<1x1x256xf32>
    %2919 = vector.shape_cast %2918 : vector<1x1x256xf32> to vector<1x256xf32>
    %2920 = arith.addf %2917, %2919 : vector<1x256xf32>
    %cst_682 = arith.constant 0.000000e+00 : f32
    %2921 = vector.broadcast %cst_682 : f32 to vector<1x256xf32>
    %2922 = arith.maximumf %2920, %2921 : vector<1x256xf32>
    %c0_683 = arith.constant 0 : index
    %c2_684 = arith.constant 2 : index
    %c0_685 = arith.constant 0 : index
    %2923 = vector.load %arg8[%c0_683, %c2_684, %c0_685] : memref<2x4x256xf32, #tpu.memory_space<vmem>>, vector<1x1x256xf32>
    %2924 = vector.shape_cast %2923 : vector<1x1x256xf32> to vector<1x256xf32>
    %2925 = vector.shape_cast %2922 : vector<1x256xf32> to vector<1x1x256xf32>
    tpu.vector_store %arg8[%c0_683, %c2_684, %c0_685], %2925 {strides = array<i32>} : memref<2x4x256xf32, #tpu.memory_space<vmem>>, vector<1x1x256xf32>,
    %2926 = vector.broadcast %2909 : vector<1x1xf32> to vector<1x256xf32>
    %2927 = arith.mulf %2771, %2926 : vector<1x256xf32>
    %2928 = vector.broadcast %2913 : vector<1x1xf32> to vector<1x256xf32>
    %2929 = arith.addf %2927, %2928 : vector<1x256xf32>
    %c1_686 = arith.constant 1 : index
    %c2_687 = arith.constant 2 : index
    %c0_688 = arith.constant 0 : index
    %2930 = vector.load %arg0[%c1_686, %c2_687, %c0_688] : memref<2x8x256xf32, #tpu.memory_space<vmem>>, vector<1x1x256xf32>
    %2931 = vector.shape_cast %2930 : vector<1x1x256xf32> to vector<1x256xf32>
    %2932 = arith.addf %2929, %2931 : vector<1x256xf32>
    %cst_689 = arith.constant 0.000000e+00 : f32
    %2933 = vector.broadcast %cst_689 : f32 to vector<1x256xf32>
    %2934 = arith.maximumf %2932, %2933 : vector<1x256xf32>
    %c1_690 = arith.constant 1 : index
    %c2_691 = arith.constant 2 : index
    %c0_692 = arith.constant 0 : index
    %2935 = vector.load %arg8[%c1_690, %c2_691, %c0_692] : memref<2x4x256xf32, #tpu.memory_space<vmem>>, vector<1x1x256xf32>
    %2936 = vector.shape_cast %2935 : vector<1x1x256xf32> to vector<1x256xf32>
    %2937 = vector.shape_cast %2934 : vector<1x256xf32> to vector<1x1x256xf32>
    tpu.vector_store %arg8[%c1_690, %c2_691, %c0_692], %2937 {strides = array<i32>} : memref<2x4x256xf32, #tpu.memory_space<vmem>>, vector<1x1x256xf32>,
    %cst_693 = arith.constant dense<0.000000e+00> : vector<1xf32>
    %2938 = vector.multi_reduction <add>, %2122, %cst_693 [1] : vector<1x256xf32> to vector<1xf32>
    %2939 = vector.shape_cast %2938 : vector<1xf32> to vector<1x1xf32>
    %cst_694 = arith.constant dense<0.000000e+00> : vector<1xf32>
    %2940 = vector.multi_reduction <add>, %2775, %cst_694 [1] : vector<1x256xf32> to vector<1xf32>
    %2941 = vector.shape_cast %2940 : vector<1xf32> to vector<1x1xf32>
    %2942 = arith.addf %2939, %2941 : vector<1x1xf32>
    %cst_695 = arith.constant 0.001953125 : f32
    %2943 = vector.broadcast %cst_695 : f32 to vector<1x1xf32>
    %2944 = arith.mulf %2942, %2943 : vector<1x1xf32>
    %2945 = vector.broadcast %2944 : vector<1x1xf32> to vector<1x256xf32>
    %2946 = arith.subf %2122, %2945 : vector<1x256xf32>
    %2947 = arith.mulf %2946, %2946 : vector<1x256xf32>
    %cst_696 = arith.constant dense<0.000000e+00> : vector<1xf32>
    %2948 = vector.multi_reduction <add>, %2947, %cst_696 [1] : vector<1x256xf32> to vector<1xf32>
    %2949 = vector.shape_cast %2948 : vector<1xf32> to vector<1x1xf32>
    %2950 = vector.broadcast %2944 : vector<1x1xf32> to vector<1x256xf32>
    %2951 = arith.subf %2775, %2950 : vector<1x256xf32>
    %2952 = arith.mulf %2951, %2951 : vector<1x256xf32>
    %cst_697 = arith.constant dense<0.000000e+00> : vector<1xf32>
    %2953 = vector.multi_reduction <add>, %2952, %cst_697 [1] : vector<1x256xf32> to vector<1xf32>
    %2954 = vector.shape_cast %2953 : vector<1xf32> to vector<1x1xf32>
    %2955 = arith.addf %2949, %2954 : vector<1x1xf32>
    %cst_698 = arith.constant 0.001953125 : f32
    %2956 = vector.broadcast %cst_698 : f32 to vector<1x1xf32>
    %2957 = arith.mulf %2955, %2956 : vector<1x1xf32>
    %c3_699 = arith.constant 3 : index
    %2958 = memref.load %arg6[%c3_699] : memref<4xf32, #tpu.memory_space<smem>>
    %cst_700 = arith.constant 9.99999974E-6 : f32
    %2959 = vector.broadcast %cst_700 : f32 to vector<1x1xf32>
    %2960 = arith.addf %2957, %2959 : vector<1x1xf32>
    %2961 = math.rsqrt %2960 : vector<1x1xf32>
    %2962 = vector.broadcast %2958 : f32 to vector<1x1xf32>
    %2963 = arith.mulf %2962, %2961 : vector<1x1xf32>
    %c3_701 = arith.constant 3 : index
    %2964 = memref.load %arg7[%c3_701] : memref<4xf32, #tpu.memory_space<smem>>
    %2965 = arith.mulf %2944, %2963 : vector<1x1xf32>
    %2966 = vector.broadcast %2964 : f32 to vector<1x1xf32>
    %2967 = arith.subf %2966, %2965 : vector<1x1xf32>
    %2968 = vector.broadcast %2963 : vector<1x1xf32> to vector<1x256xf32>
    %2969 = arith.mulf %2122, %2968 : vector<1x256xf32>
    %2970 = vector.broadcast %2967 : vector<1x1xf32> to vector<1x256xf32>
    %2971 = arith.addf %2969, %2970 : vector<1x256xf32>
    %c0_702 = arith.constant 0 : index
    %c3_703 = arith.constant 3 : index
    %c0_704 = arith.constant 0 : index
    %2972 = vector.load %arg0[%c0_702, %c3_703, %c0_704] : memref<2x8x256xf32, #tpu.memory_space<vmem>>, vector<1x1x256xf32>
    %2973 = vector.shape_cast %2972 : vector<1x1x256xf32> to vector<1x256xf32>
    %2974 = arith.addf %2971, %2973 : vector<1x256xf32>
    %cst_705 = arith.constant 0.000000e+00 : f32
    %2975 = vector.broadcast %cst_705 : f32 to vector<1x256xf32>
    %2976 = arith.maximumf %2974, %2975 : vector<1x256xf32>
    %c0_706 = arith.constant 0 : index
    %c3_707 = arith.constant 3 : index
    %c0_708 = arith.constant 0 : index
    %2977 = vector.load %arg8[%c0_706, %c3_707, %c0_708] : memref<2x4x256xf32, #tpu.memory_space<vmem>>, vector<1x1x256xf32>
    %2978 = vector.shape_cast %2977 : vector<1x1x256xf32> to vector<1x256xf32>
    %2979 = vector.shape_cast %2976 : vector<1x256xf32> to vector<1x1x256xf32>
    tpu.vector_store %arg8[%c0_706, %c3_707, %c0_708], %2979 {strides = array<i32>} : memref<2x4x256xf32, #tpu.memory_space<vmem>>, vector<1x1x256xf32>,
    %2980 = vector.broadcast %2963 : vector<1x1xf32> to vector<1x256xf32>
    %2981 = arith.mulf %2775, %2980 : vector<1x256xf32>
    %2982 = vector.broadcast %2967 : vector<1x1xf32> to vector<1x256xf32>
    %2983 = arith.addf %2981, %2982 : vector<1x256xf32>
    %c1_709 = arith.constant 1 : index
    %c3_710 = arith.constant 3 : index
    %c0_711 = arith.constant 0 : index
    %2984 = vector.load %arg0[%c1_709, %c3_710, %c0_711] : memref<2x8x256xf32, #tpu.memory_space<vmem>>, vector<1x1x256xf32>
    %2985 = vector.shape_cast %2984 : vector<1x1x256xf32> to vector<1x256xf32>
    %2986 = arith.addf %2983, %2985 : vector<1x256xf32>
    %cst_712 = arith.constant 0.000000e+00 : f32
    %2987 = vector.broadcast %cst_712 : f32 to vector<1x256xf32>
    %2988 = arith.maximumf %2986, %2987 : vector<1x256xf32>
    %c1_713 = arith.constant 1 : index
    %c3_714 = arith.constant 3 : index
    %c0_715 = arith.constant 0 : index
    %2989 = vector.load %arg8[%c1_713, %c3_714, %c0_715] : memref<2x4x256xf32, #tpu.memory_space<vmem>>, vector<1x1x256xf32>
    %2990 = vector.shape_cast %2989 : vector<1x1x256xf32> to vector<1x256xf32>
    %2991 = vector.shape_cast %2988 : vector<1x256xf32> to vector<1x1x256xf32>
    tpu.vector_store %arg8[%c1_713, %c3_714, %c0_715], %2991 {strides = array<i32>} : memref<2x4x256xf32, #tpu.memory_space<vmem>>, vector<1x1x256xf32>,
    return
  }
}

</mosaic_0001>

<llo_original>
// kernel: tpu_custom_call.1
$region0: #{tpu_custom_call.1}
  #allocation0 [shape = 'u32[]', space=smem, size = 0x4, offset = 0x4, fixed_abs, tag = 'smem constant byte address 0x4 - core index']
  #allocation1 [shape = 'u32[144,128]{1,0:T(1,128)}', space=vmem, size = 0x12000, scoped, tag = 'internal scratch']
  #allocation2 [shape = 'f32[8,256]{1,0:T(8,128)}', space=vmem, size = 0x2000, scoped, tag = 'scratch operand']
  %s0 = inlined_call_operand.hbm [shape: f32[2,8,256], index: 0, kind: input, shape index: {}]
  %s1 = inlined_call_operand.hbm [shape: f32[9,1,256], index: 1, kind: input, shape index: {}]
  %s2 = inlined_call_operand.vmem [shape: f32[144], index: 2, kind: input, shape index: {}]
  %s3 = inlined_call_operand.vmem [shape: f32[4], index: 3, kind: input, shape index: {}]
  %s4 = inlined_call_operand.vmem [shape: f32[4], index: 4, kind: input, shape index: {}]
  %s5 = inlined_call_operand.vmem [shape: f32[144], index: 5, kind: input, shape index: {}]
  %s6 = inlined_call_operand.vmem [shape: f32[4], index: 6, kind: input, shape index: {}]
  %s7 = inlined_call_operand.vmem [shape: f32[4], index: 7, kind: input, shape index: {}]
  %s8 = inlined_call_operand.hbm [shape: f32[2,4,256], index: 8, kind: output, shape index: {}]
  %s9 = sld [smem:[#allocation0]]
  $region74: #{tpu_custom_call.1} parent=0
    _
  %s11 = ssub.s32 1, %s9
  %s12 = scalar_select 0, %s11, %s9
  $region1: #{tpu_custom_call.1} parent=0
    #allocation3 [shape = 'u8[16384]{0}', space=vmem, size = 0x4000, scoped, tag = 'input window, operand 0, single buffered']
    #allocation4 [shape = 's32[1]{0}', space=sflag, size = 0x4, scoped, tag = 'scoped memory for tpu_custom_call.1']
    #allocation5 [shape = 's32[1]{0}', space=sflag, size = 0x4, scoped, tag = 'scoped memory for tpu_custom_call.1']
    #allocation6 [shape = 's32[1]{0}', space=sflag, size = 0x4, scoped, tag = 'scoped memory for tpu_custom_call.1']
    #allocation7 [shape = 'u8[9216]{0}', space=vmem, size = 0x2400, scoped, tag = 'input window, operand 1, single buffered']
    #allocation8 [shape = 's32[1]{0}', space=sflag, size = 0x4, scoped, tag = 'scoped memory for tpu_custom_call.1']
    #allocation9 [shape = 'u8[1024]{0}', space=smem, size = 0x400, scoped, tag = 'input window, operand 2, single buffered']
    #allocation10 [shape = 'u8[512]{0}', space=smem, size = 0x200, scoped, tag = 'input window, operand 3, single buffered']
    #allocation11 [shape = 's32[1]{0}', space=sflag, size = 0x4, scoped, tag = 'scoped memory for tpu_custom_call.1']
    #allocation12 [shape = 'u8[512]{0}', space=smem, size = 0x200, scoped, tag = 'input window, operand 4, single buffered']
    #allocation13 [shape = 'u8[1024]{0}', space=smem, size = 0x400, scoped, tag = 'input window, operand 5, single buffered']
    #allocation14 [shape = 's32[1]{0}', space=sflag, size = 0x4, scoped, tag = 'scoped memory for tpu_custom_call.1']
    #allocation15 [shape = 'u8[512]{0}', space=smem, size = 0x200, scoped, tag = 'input window, operand 6, single buffered']
    #allocation16 [shape = 'u8[512]{0}', space=smem, size = 0x200, scoped, tag = 'input window, operand 7, single buffered']
    #allocation17 [shape = 's32[1]{0}', space=sflag, size = 0x4, scoped, tag = 'scoped memory for tpu_custom_call.1']
    #allocation18 [shape = 'u8[8192]{0}', space=vmem, size = 0x2000, scoped, tag = 'output window, operand 0, single buffered']
    %13 = vsyncpa [#allocation4], 0
    %14 = vsyncpa [#allocation8], 0
    %15 = vsyncpa [#allocation6], 0
    %16 = vsyncpa [#allocation11], 0
    %17 = vsyncpa [#allocation14], 0
    %18 = vsyncpa [#allocation17], 0
    %19 = vsyncpa [#allocation5], 0
    // Predicated region
    $region2: #{tpu_custom_call.1} parent=1 // pred_check
      _
    $region3: #{tpu_custom_call.1} parent=1 // pred_check_branch
      %21 = sbr.rel (0) target = $region5
    $region4: #{tpu_custom_call.1} parent=1 // pred_region
      %s23 = ssub.s32 512, 512
      %24 = vsyncadd [#allocation4], %s23
      %s25 = sshll.u32 [#allocation3], 4
      %s26 = int_to_ptr.vmem [resolvable:$true] %s25
      %31 = dma.hbm_to_vmem [thread:$0]  %s0, 512, %s26, [#allocation4], 256, 256, 16
    $region5: #{tpu_custom_call.1} parent=1 // pred_fallthru
      _
    // Predicated region
    $region6: #{tpu_custom_call.1} parent=1 // pred_check
      _
    $region7: #{tpu_custom_call.1} parent=1 // pred_check_branch
      %33 = sbr.rel (0) target = $region9
    $region8: #{tpu_custom_call.1} parent=1 // pred_region
      %s35 = ssub.s32 288, 288
      %36 = vsyncadd [#allocation8], %s35
      %s37 = sshll.u32 [#allocation7], 4
      %s38 = int_to_ptr.vmem [resolvable:$true] %s37
      %43 = dma.hbm_to_vmem [thread:$0]  %s1, 288, %s38, [#allocation8], 32, 32, 2
    $region9: #{tpu_custom_call.1} parent=1 // pred_fallthru
      _
    // Predicated region
    $region10: #{tpu_custom_call.1} parent=1 // pred_check
      _
    $region11: #{tpu_custom_call.1} parent=1 // pred_check_branch
      %45 = sbr.rel (0) target = $region13
    $region12: #{tpu_custom_call.1} parent=1 // pred_region
      %s47 = ssub.s32 32, 32
      %48 = vsyncadd [#allocation6], %s47
      %s50 = sshll.u32 %s2, 4
      %s51 = int_to_ptr.vmem [resolvable:$true] %s50
      %53 = dma.vmem_to_smem %s51, 32, [#allocation9], [#allocation6]
    $region13: #{tpu_custom_call.1} parent=1 // pred_fallthru
      _
    // Predicated region
    $region14: #{tpu_custom_call.1} parent=1 // pred_check
      _
    $region15: #{tpu_custom_call.1} parent=1 // pred_check_branch
      %55 = sbr.rel (0) target = $region17
    $region16: #{tpu_custom_call.1} parent=1 // pred_region
      %s57 = ssub.s32 16, 16
      %58 = vsyncadd [#allocation11], %s57
      %s60 = sshll.u32 %s3, 4
      %s61 = int_to_ptr.vmem [resolvable:$true] %s60
      %63 = dma.vmem_to_smem %s61, 16, [#allocation10], [#allocation11]
    $region17: #{tpu_custom_call.1} parent=1 // pred_fallthru
      _
    // Predicated region
    $region18: #{tpu_custom_call.1} parent=1 // pred_check
      _
    $region19: #{tpu_custom_call.1} parent=1 // pred_check_branch
      %65 = sbr.rel (0) target = $region21
    $region20: #{tpu_custom_call.1} parent=1 // pred_region
      %s67 = ssub.s32 16, 16
      %68 = vsyncadd [#allocation11], %s67
      %s70 = sshll.u32 %s4, 4
      %s71 = int_to_ptr.vmem [resolvable:$true] %s70
      %73 = dma.vmem_to_smem %s71, 16, [#allocation12], [#allocation11]
    $region21: #{tpu_custom_call.1} parent=1 // pred_fallthru
      _
    // Predicated region
    $region22: #{tpu_custom_call.1} parent=1 // pred_check
      _
    $region23: #{tpu_custom_call.1} parent=1 // pred_check_branch
      %75 = sbr.rel (0) target = $region25
    $region24: #{tpu_custom_call.1} parent=1 // pred_region
      %s77 = ssub.s32 32, 32
      %78 = vsyncadd [#allocation14], %s77
      %s80 = sshll.u32 %s5, 4
      %s81 = int_to_ptr.vmem [resolvable:$true] %s80
      %83 = dma.vmem_to_smem %s81, 32, [#allocation13], [#allocation14]
    $region25: #{tpu_custom_call.1} parent=1 // pred_fallthru
      _
    // Predicated region
    $region26: #{tpu_custom_call.1} parent=1 // pred_check
      _
    $region27: #{tpu_custom_call.1} parent=1 // pred_check_branch
      %85 = sbr.rel (0) target = $region29
    $region28: #{tpu_custom_call.1} parent=1 // pred_region
      %s87 = ssub.s32 16, 16
      %88 = vsyncadd [#allocation14], %s87
      %s90 = sshll.u32 %s6, 4
      %s91 = int_to_ptr.vmem [resolvable:$true] %s90
      %93 = dma.vmem_to_smem %s91, 16, [#allocation15], [#allocation14]
    $region29: #{tpu_custom_call.1} parent=1 // pred_fallthru
      _
    // Predicated region
    $region30: #{tpu_custom_call.1} parent=1 // pred_check
      _
    $region31: #{tpu_custom_call.1} parent=1 // pred_check_branch
      %95 = sbr.rel (0) target = $region33
    $region32: #{tpu_custom_call.1} parent=1 // pred_region
      %s97 = ssub.s32 16, 16
      %98 = vsyncadd [#allocation17], %s97
      %s100 = sshll.u32 %s7, 4
      %s101 = int_to_ptr.vmem [resolvable:$true] %s100
      %103 = dma.vmem_to_smem %s101, 16, [#allocation16], [#allocation17]
    $region33: #{tpu_custom_call.1} parent=1 // pred_fallthru
      _
    // Predicated region
    $region34: #{tpu_custom_call.1} parent=1 // pred_check
      _
    $region35: #{tpu_custom_call.1} parent=1 // pred_check_branch
      %105 = sbr.rel (0) target = $region37
    $region36: #{tpu_custom_call.1} parent=1 // pred_region
      %106 = dma.done [#allocation4], 512
    $region37: #{tpu_custom_call.1} parent=1 // pred_fallthru
      _
    // Predicated region
    $region38: #{tpu_custom_call.1} parent=1 // pred_check
      _
    $region39: #{tpu_custom_call.1} parent=1 // pred_check_branch
      %108 = sbr.rel (0) target = $region41
    $region40: #{tpu_custom_call.1} parent=1 // pred_region
      %109 = dma.done [#allocation8], 288
    $region41: #{tpu_custom_call.1} parent=1 // pred_fallthru
      _
    // Predicated region
    $region42: #{tpu_custom_call.1} parent=1 // pred_check
      _
    $region43: #{tpu_custom_call.1} parent=1 // pred_check_branch
      %111 = sbr.rel (0) target = $region45
    $region44: #{tpu_custom_call.1} parent=1 // pred_region
      %112 = dma.done [#allocation6], 32
    $region45: #{tpu_custom_call.1} parent=1 // pred_fallthru
      _
    // Predicated region
    $region46: #{tpu_custom_call.1} parent=1 // pred_check
      _
    $region47: #{tpu_custom_call.1} parent=1 // pred_check_branch
      %114 = sbr.rel (0) target = $region49
    $region48: #{tpu_custom_call.1} parent=1 // pred_region
      %115 = dma.done [#allocation11], 16
    $region49: #{tpu_custom_call.1} parent=1 // pred_fallthru
      _
    // Predicated region
    $region50: #{tpu_custom_call.1} parent=1 // pred_check
      _
    $region51: #{tpu_custom_call.1} parent=1 // pred_check_branch
      %117 = sbr.rel (0) target = $region53
    $region52: #{tpu_custom_call.1} parent=1 // pred_region
      %118 = dma.done [#allocation11], 16
    $region53: #{tpu_custom_call.1} parent=1 // pred_fallthru
      _
    // Predicated region
    $region54: #{tpu_custom_call.1} parent=1 // pred_check
      _
    $region55: #{tpu_custom_call.1} parent=1 // pred_check_branch
      %120 = sbr.rel (0) target = $region57
    $region56: #{tpu_custom_call.1} parent=1 // pred_region
      %121 = dma.done [#allocation14], 32
    $region57: #{tpu_custom_call.1} parent=1 // pred_fallthru
      _
    // Predicated region
    $region58: #{tpu_custom_call.1} parent=1 // pred_check
      _
    $region59: #{tpu_custom_call.1} parent=1 // pred_check_branch
      %123 = sbr.rel (0) target = $region61
    $region60: #{tpu_custom_call.1} parent=1 // pred_region
      %124 = dma.done [#allocation14], 16
    $region61: #{tpu_custom_call.1} parent=1 // pred_fallthru
      _
    // Predicated region
    $region62: #{tpu_custom_call.1} parent=1 // pred_check
      _
    $region63: #{tpu_custom_call.1} parent=1 // pred_check_branch
      %126 = sbr.rel (0) target = $region65
    $region64: #{tpu_custom_call.1} parent=1 // pred_region
      %127 = dma.done [#allocation17], 16
    $region65: #{tpu_custom_call.1} parent=1 // pred_fallthru
      _
    %128 = sfence
    %v129 = vld [vmem:[#allocation3] sm:$0xff]
    %v130 = vld [vmem:[#allocation3 + $0x8] sm:$0xff]
    %131 = vrot.lane.b32.xlu0 %v129, 17
    %v132 = vpop.permute.xlu0 %131
    %133 = vrot.lane.b32.xlu0 %v130, 17
    %v134 = vpop.permute.xlu0 %133
    %v135 = vlaneseq
    %v136 = vand.u32 %v135, 127
    %vm137 = vcmp.lt.s32.totalorder %v136, 17
    %v138 = vsel %vm137, %v132, %v134
    %v139 = vsel %vm137, %v134, %v132
    %v140 = vld [vmem:[#allocation7] sm:$0x3]
    %v142 = vlaneseq
    %v143 = vshrl.u32 %v142, 7
    %v144 = vsub.s32 0, %v143
    %v145 = vrot.slane %v140, %v144
    %v146 = vlaneseq
    %v147 = vshrl.u32 %v146, 7
    %v148 = vsub.s32 1, %v147
    %v149 = vrot.slane %v140, %v148
    %v152 = vmul.f32 %v139, %v145
    %v153 = vmul.f32 %v138, %v149
    %s154 = sld [smem:[#allocation9]]
    %v155 = vstv %s154
    %v156 = vmul.f32 %v155, %v152
    %v157 = vmul.f32 %v155, %v153
    %s158 = sld [smem:[#allocation9 + $0x1]]
    %v159 = vstv %s158
    %v160 = vmul.f32 %v159, %v152
    %v161 = vmul.f32 %v159, %v153
    %s162 = sld [smem:[#allocation9 + $0x2]]
    %v163 = vstv %s162
    %v164 = vmul.f32 %v163, %v152
    %v165 = vmul.f32 %v163, %v153
    %s166 = sld [smem:[#allocation9 + $0x3]]
    %v167 = vstv %s166
    %v168 = vmul.f32 %v167, %v152
    %v169 = vmul.f32 %v167, %v153
    %s170 = sld [smem:[#allocation9 + $0x4]]
    %v171 = vstv %s170
    %v172 = vmul.f32 %v171, %v152
    %v173 = vmul.f32 %v171, %v153
    %v176 = vrot.slane %v172, 1
    %v177 = vrot.slane %v173, 1
    %v180 = vadd.f32 %v156, %v176
    %v181 = vadd.f32 %v157, %v177
    %s182 = sld [smem:[#allocation9 + $0x5]]
    %v183 = vstv %s182
    %v184 = vmul.f32 %v183, %v152
    %v185 = vmul.f32 %v183, %v153
    %v188 = vrot.slane %v184, 1
    %v189 = vrot.slane %v185, 1
    %v192 = vadd.f32 %v160, %v188
    %v193 = vadd.f32 %v161, %v189
    %s194 = sld [smem:[#allocation9 + $0x6]]
    %v195 = vstv %s194
    %v196 = vmul.f32 %v195, %v152
    %v197 = vmul.f32 %v195, %v153
    %v200 = vrot.slane %v196, 1
    %v201 = vrot.slane %v197, 1
    %v204 = vadd.f32 %v164, %v200
    %v205 = vadd.f32 %v165, %v201
    %s206 = sld [smem:[#allocation9 + $0x7]]
    %v207 = vstv %s206
    %v208 = vmul.f32 %v207, %v152
    %v209 = vmul.f32 %v207, %v153
    %v212 = vrot.slane %v208, 1
    %v213 = vrot.slane %v209, 1
    %v216 = vadd.f32 %v168, %v212
    %v217 = vadd.f32 %v169, %v213
    %s218 = sld [smem:[#allocation9 + $0x8]]
    %v219 = vstv %s218
    %v220 = vmul.f32 %v219, %v152
    %v221 = vmul.f32 %v219, %v153
    %v224 = vrot.slane %v220, 2
    %v225 = vrot.slane %v221, 2
    %v228 = vadd.f32 %v180, %v224
    %v229 = vadd.f32 %v181, %v225
    %s230 = sld [smem:[#allocation9 + $0x9]]
    %v231 = vstv %s230
    %v232 = vmul.f32 %v231, %v152
    %v233 = vmul.f32 %v231, %v153
    %v236 = vrot.slane %v232, 2
    %v237 = vrot.slane %v233, 2
    %v240 = vadd.f32 %v192, %v236
    %v241 = vadd.f32 %v193, %v237
    %s242 = sld [smem:[#allocation9 + $0xa]]
    %v243 = vstv %s242
    %v244 = vmul.f32 %v243, %v152
    %v245 = vmul.f32 %v243, %v153
    %v248 = vrot.slane %v244, 2
    %v249 = vrot.slane %v245, 2
    %v252 = vadd.f32 %v204, %v248
    %v253 = vadd.f32 %v205, %v249
    %s254 = sld [smem:[#allocation9 + $0xb]]
    %v255 = vstv %s254
    %v256 = vmul.f32 %v255, %v152
    %v257 = vmul.f32 %v255, %v153
    %v260 = vrot.slane %v256, 2
    %v261 = vrot.slane %v257, 2
    %v264 = vadd.f32 %v216, %v260
    %v265 = vadd.f32 %v217, %v261
    %s266 = sld [smem:[#allocation9 + $0xc]]
    %v267 = vstv %s266
    %v268 = vmul.f32 %v267, %v152
    %v269 = vmul.f32 %v267, %v153
    %v272 = vrot.slane %v268, 3
    %v273 = vrot.slane %v269, 3
    %v276 = vadd.f32 %v228, %v272
    %v277 = vadd.f32 %v229, %v273
    %s278 = sld [smem:[#allocation9 + $0xd]]
    %v279 = vstv %s278
    %v280 = vmul.f32 %v279, %v152
    %v281 = vmul.f32 %v279, %v153
    %v284 = vrot.slane %v280, 3
    %v285 = vrot.slane %v281, 3
    %v288 = vadd.f32 %v240, %v284
    %v289 = vadd.f32 %v241, %v285
    %s290 = sld [smem:[#allocation9 + $0xe]]
    %v291 = vstv %s290
    %v292 = vmul.f32 %v291, %v152
    %v293 = vmul.f32 %v291, %v153
    %v296 = vrot.slane %v292, 3
    %v297 = vrot.slane %v293, 3
    %v300 = vadd.f32 %v252, %v296
    %v301 = vadd.f32 %v253, %v297
    %s302 = sld [smem:[#allocation9 + $0xf]]
    %v303 = vstv %s302
    %v304 = vmul.f32 %v303, %v152
    %v305 = vmul.f32 %v303, %v153
    %v308 = vrot.slane %v304, 3
    %v309 = vrot.slane %v305, 3
    %v312 = vadd.f32 %v264, %v308
    %v313 = vadd.f32 %v265, %v309
    %314 = vrot.lane.b32.xlu0 %v129, 16
    %v315 = vpop.permute.xlu0 %314
    %316 = vrot.lane.b32.xlu0 %v130, 16
    %v317 = vpop.permute.xlu0 %316
    %vm318 = vcmp.lt.s32.totalorder %v136, 16
    %v319 = vsel %vm318, %v315, %v317
    %v320 = vsel %vm318, %v317, %v315
    %s321 = scalar_lea.vmem [#allocation7], 2
    %v322 = vld [vmem:[%s321] sm:$0x3]
    %v324 = vlaneseq
    %v325 = vshrl.u32 %v324, 7
    %v326 = vsub.s32 0, %v325
    %v327 = vrot.slane %v322, %v326
    %v328 = vlaneseq
    %v329 = vshrl.u32 %v328, 7
    %v330 = vsub.s32 1, %v329
    %v331 = vrot.slane %v322, %v330
    %v334 = vmul.f32 %v320, %v327
    %v335 = vmul.f32 %v319, %v331
    %s336 = sld [smem:[#allocation9 + $0x10]]
    %v337 = vstv %s336
    %v338 = vmul.f32 %v337, %v334
    %v339 = vmul.f32 %v337, %v335
    %v340 = vadd.f32 %v276, %v338
    %v341 = vadd.f32 %v277, %v339
    %s342 = sld [smem:[#allocation9 + $0x11]]
    %v343 = vstv %s342
    %v344 = vmul.f32 %v343, %v334
    %v345 = vmul.f32 %v343, %v335
    %v346 = vadd.f32 %v288, %v344
    %v347 = vadd.f32 %v289, %v345
    %s348 = sld [smem:[#allocation9 + $0x12]]
    %v349 = vstv %s348
    %v350 = vmul.f32 %v349, %v334
    %v351 = vmul.f32 %v349, %v335
    %v352 = vadd.f32 %v300, %v350
    %v353 = vadd.f32 %v301, %v351
    %s354 = sld [smem:[#allocation9 + $0x13]]
    %v355 = vstv %s354
    %v356 = vmul.f32 %v355, %v334
    %v357 = vmul.f32 %v355, %v335
    %v358 = vadd.f32 %v312, %v356
    %v359 = vadd.f32 %v313, %v357
    %s360 = sld [smem:[#allocation9 + $0x14]]
    %v361 = vstv %s360
    %v362 = vmul.f32 %v361, %v334
    %v363 = vmul.f32 %v361, %v335
    %v366 = vrot.slane %v362, 1
    %v367 = vrot.slane %v363, 1
    %v370 = vadd.f32 %v340, %v366
    %v371 = vadd.f32 %v341, %v367
    %s372 = sld [smem:[#allocation9 + $0x15]]
    %v373 = vstv %s372
    %v374 = vmul.f32 %v373, %v334
    %v375 = vmul.f32 %v373, %v335
    %v378 = vrot.slane %v374, 1
    %v379 = vrot.slane %v375, 1
    %v382 = vadd.f32 %v346, %v378
    %v383 = vadd.f32 %v347, %v379
    %s384 = sld [smem:[#allocation9 + $0x16]]
    %v385 = vstv %s384
    %v386 = vmul.f32 %v385, %v334
    %v387 = vmul.f32 %v385, %v335
    %v390 = vrot.slane %v386, 1
    %v391 = vrot.slane %v387, 1
    %v394 = vadd.f32 %v352, %v390
    %v395 = vadd.f32 %v353, %v391
    %s396 = sld [smem:[#allocation9 + $0x17]]
    %v397 = vstv %s396
    %v398 = vmul.f32 %v397, %v334
    %v399 = vmul.f32 %v397, %v335
    %v402 = vrot.slane %v398, 1
    %v403 = vrot.slane %v399, 1
    %v406 = vadd.f32 %v358, %v402
    %v407 = vadd.f32 %v359, %v403
    %s408 = sld [smem:[#allocation9 + $0x18]]
    %v409 = vstv %s408
    %v410 = vmul.f32 %v409, %v334
    %v411 = vmul.f32 %v409, %v335
    %v414 = vrot.slane %v410, 2
    %v415 = vrot.slane %v411, 2
    %v418 = vadd.f32 %v370, %v414
    %v419 = vadd.f32 %v371, %v415
    %s420 = sld [smem:[#allocation9 + $0x19]]
    %v421 = vstv %s420
    %v422 = vmul.f32 %v421, %v334
    %v423 = vmul.f32 %v421, %v335
    %v426 = vrot.slane %v422, 2
    %v427 = vrot.slane %v423, 2
    %v430 = vadd.f32 %v382, %v426
    %v431 = vadd.f32 %v383, %v427
    %s432 = sld [smem:[#allocation9 + $0x1a]]
    %v433 = vstv %s432
    %v434 = vmul.f32 %v433, %v334
    %v435 = vmul.f32 %v433, %v335
    %v438 = vrot.slane %v434, 2
    %v439 = vrot.slane %v435, 2
    %v442 = vadd.f32 %v394, %v438
    %v443 = vadd.f32 %v395, %v439
    %s444 = sld [smem:[#allocation9 + $0x1b]]
    %v445 = vstv %s444
    %v446 = vmul.f32 %v445, %v334
    %v447 = vmul.f32 %v445, %v335
    %v450 = vrot.slane %v446, 2
    %v451 = vrot.slane %v447, 2
    %v454 = vadd.f32 %v406, %v450
    %v455 = vadd.f32 %v407, %v451
    %s456 = sld [smem:[#allocation9 + $0x1c]]
    %v457 = vstv %s456
    %v458 = vmul.f32 %v457, %v334
    %v459 = vmul.f32 %v457, %v335
    %v462 = vrot.slane %v458, 3
    %v463 = vrot.slane %v459, 3
    %v466 = vadd.f32 %v418, %v462
    %v467 = vadd.f32 %v419, %v463
    %s468 = sld [smem:[#allocation9 + $0x1d]]
    %v469 = vstv %s468
    %v470 = vmul.f32 %v469, %v334
    %v471 = vmul.f32 %v469, %v335
    %v474 = vrot.slane %v470, 3
    %v475 = vrot.slane %v471, 3
    %v478 = vadd.f32 %v430, %v474
    %v479 = vadd.f32 %v431, %v475
    %s480 = sld [smem:[#allocation9 + $0x1e]]
    %v481 = vstv %s480
    %v482 = vmul.f32 %v481, %v334
    %v483 = vmul.f32 %v481, %v335
    %v486 = vrot.slane %v482, 3
    %v487 = vrot.slane %v483, 3
    %v490 = vadd.f32 %v442, %v486
    %v491 = vadd.f32 %v443, %v487
    %s492 = sld [smem:[#allocation9 + $0x1f]]
    %v493 = vstv %s492
    %v494 = vmul.f32 %v493, %v334
    %v495 = vmul.f32 %v493, %v335
    %v498 = vrot.slane %v494, 3
    %v499 = vrot.slane %v495, 3
    %v502 = vadd.f32 %v454, %v498
    %v503 = vadd.f32 %v455, %v499
    %504 = vrot.lane.b32.xlu0 %v129, 15
    %v505 = vpop.permute.xlu0 %504
    %506 = vrot.lane.b32.xlu0 %v130, 15
    %v507 = vpop.permute.xlu0 %506
    %vm508 = vcmp.lt.s32.totalorder %v136, 15
    %v509 = vsel %vm508, %v505, %v507
    %v510 = vsel %vm508, %v507, %v505
    %s511 = scalar_lea.vmem [#allocation7], 4
    %v512 = vld [vmem:[%s511] sm:$0x3]
    %v514 = vlaneseq
    %v515 = vshrl.u32 %v514, 7
    %v516 = vsub.s32 0, %v515
    %v517 = vrot.slane %v512, %v516
    %v518 = vlaneseq
    %v519 = vshrl.u32 %v518, 7
    %v520 = vsub.s32 1, %v519
    %v521 = vrot.slane %v512, %v520
    %v524 = vmul.f32 %v510, %v517
    %v525 = vmul.f32 %v509, %v521
    %s526 = sld [smem:[#allocation9 + $0x20]]
    %v527 = vstv %s526
    %v528 = vmul.f32 %v527, %v524
    %v529 = vmul.f32 %v527, %v525
    %v530 = vadd.f32 %v466, %v528
    %v531 = vadd.f32 %v467, %v529
    %s532 = sld [smem:[#allocation9 + $0x21]]
    %v533 = vstv %s532
    %v534 = vmul.f32 %v533, %v524
    %v535 = vmul.f32 %v533, %v525
    %v536 = vadd.f32 %v478, %v534
    %v537 = vadd.f32 %v479, %v535
    %s538 = sld [smem:[#allocation9 + $0x22]]
    %v539 = vstv %s538
    %v540 = vmul.f32 %v539, %v524
    %v541 = vmul.f32 %v539, %v525
    %v542 = vadd.f32 %v490, %v540
    %v543 = vadd.f32 %v491, %v541
    %s544 = sld [smem:[#allocation9 + $0x23]]
    %v545 = vstv %s544
    %v546 = vmul.f32 %v545, %v524
    %v547 = vmul.f32 %v545, %v525
    %v548 = vadd.f32 %v502, %v546
    %v549 = vadd.f32 %v503, %v547
    %s550 = sld [smem:[#allocation9 + $0x24]]
    %v551 = vstv %s550
    %v552 = vmul.f32 %v551, %v524
    %v553 = vmul.f32 %v551, %v525
    %v556 = vrot.slane %v552, 1
    %v557 = vrot.slane %v553, 1
    %v560 = vadd.f32 %v530, %v556
    %v561 = vadd.f32 %v531, %v557
    %s562 = sld [smem:[#allocation9 + $0x25]]
    %v563 = vstv %s562
    %v564 = vmul.f32 %v563, %v524
    %v565 = vmul.f32 %v563, %v525
    %v568 = vrot.slane %v564, 1
    %v569 = vrot.slane %v565, 1
    %v572 = vadd.f32 %v536, %v568
    %v573 = vadd.f32 %v537, %v569
    %s574 = sld [smem:[#allocation9 + $0x26]]
    %v575 = vstv %s574
    %v576 = vmul.f32 %v575, %v524
    %v577 = vmul.f32 %v575, %v525
    %v580 = vrot.slane %v576, 1
    %v581 = vrot.slane %v577, 1
    %v584 = vadd.f32 %v542, %v580
    %v585 = vadd.f32 %v543, %v581
    %s586 = sld [smem:[#allocation9 + $0x27]]
    %v587 = vstv %s586
    %v588 = vmul.f32 %v587, %v524
    %v589 = vmul.f32 %v587, %v525
    %v592 = vrot.slane %v588, 1
    %v593 = vrot.slane %v589, 1
    %v596 = vadd.f32 %v548, %v592
    %v597 = vadd.f32 %v549, %v593
    %s598 = sld [smem:[#allocation9 + $0x28]]
    %v599 = vstv %s598
    %v600 = vmul.f32 %v599, %v524
    %v601 = vmul.f32 %v599, %v525
    %v604 = vrot.slane %v600, 2
    %v605 = vrot.slane %v601, 2
    %v608 = vadd.f32 %v560, %v604
    %v609 = vadd.f32 %v561, %v605
    %s610 = sld [smem:[#allocation9 + $0x29]]
    %v611 = vstv %s610
    %v612 = vmul.f32 %v611, %v524
    %v613 = vmul.f32 %v611, %v525
    %v616 = vrot.slane %v612, 2
    %v617 = vrot.slane %v613, 2
    %v620 = vadd.f32 %v572, %v616
    %v621 = vadd.f32 %v573, %v617
    %s622 = sld [smem:[#allocation9 + $0x2a]]
    %v623 = vstv %s622
    %v624 = vmul.f32 %v623, %v524
    %v625 = vmul.f32 %v623, %v525
    %v628 = vrot.slane %v624, 2
    %v629 = vrot.slane %v625, 2
    %v632 = vadd.f32 %v584, %v628
    %v633 = vadd.f32 %v585, %v629
    %s634 = sld [smem:[#allocation9 + $0x2b]]
    %v635 = vstv %s634
    %v636 = vmul.f32 %v635, %v524
    %v637 = vmul.f32 %v635, %v525
    %v640 = vrot.slane %v636, 2
    %v641 = vrot.slane %v637, 2
    %v644 = vadd.f32 %v596, %v640
    %v645 = vadd.f32 %v597, %v641
    %s646 = sld [smem:[#allocation9 + $0x2c]]
    %v647 = vstv %s646
    %v648 = vmul.f32 %v647, %v524
    %v649 = vmul.f32 %v647, %v525
    %v652 = vrot.slane %v648, 3
    %v653 = vrot.slane %v649, 3
    %v656 = vadd.f32 %v608, %v652
    %v657 = vadd.f32 %v609, %v653
    %s658 = sld [smem:[#allocation9 + $0x2d]]
    %v659 = vstv %s658
    %v660 = vmul.f32 %v659, %v524
    %v661 = vmul.f32 %v659, %v525
    %v664 = vrot.slane %v660, 3
    %v665 = vrot.slane %v661, 3
    %v668 = vadd.f32 %v620, %v664
    %v669 = vadd.f32 %v621, %v665
    %s670 = sld [smem:[#allocation9 + $0x2e]]
    %v671 = vstv %s670
    %v672 = vmul.f32 %v671, %v524
    %v673 = vmul.f32 %v671, %v525
    %v676 = vrot.slane %v672, 3
    %v677 = vrot.slane %v673, 3
    %v680 = vadd.f32 %v632, %v676
    %v681 = vadd.f32 %v633, %v677
    %s682 = sld [smem:[#allocation9 + $0x2f]]
    %v683 = vstv %s682
    %v684 = vmul.f32 %v683, %v524
    %v685 = vmul.f32 %v683, %v525
    %v688 = vrot.slane %v684, 3
    %v689 = vrot.slane %v685, 3
    %v692 = vadd.f32 %v644, %v688
    %v693 = vadd.f32 %v645, %v689
    %694 = vrot.lane.b32.xlu0 %v129, 1
    %v695 = vpop.permute.xlu0 %694
    %696 = vrot.lane.b32.xlu0 %v130, 1
    %v697 = vpop.permute.xlu0 %696
    %vm698 = vcmp.lt.s32.totalorder %v136, 1
    %v699 = vsel %vm698, %v695, %v697
    %v700 = vsel %vm698, %v697, %v695
    %s701 = scalar_lea.vmem [#allocation7], 6
    %v702 = vld [vmem:[%s701] sm:$0x3]
    %v704 = vlaneseq
    %v705 = vshrl.u32 %v704, 7
    %v706 = vsub.s32 0, %v705
    %v707 = vrot.slane %v702, %v706
    %v708 = vlaneseq
    %v709 = vshrl.u32 %v708, 7
    %v710 = vsub.s32 1, %v709
    %v711 = vrot.slane %v702, %v710
    %v714 = vmul.f32 %v700, %v707
    %v715 = vmul.f32 %v699, %v711
    %s716 = sld [smem:[#allocation9 + $0x30]]
    %v717 = vstv %s716
    %v718 = vmul.f32 %v717, %v714
    %v719 = vmul.f32 %v717, %v715
    %v720 = vadd.f32 %v656, %v718
    %v721 = vadd.f32 %v657, %v719
    %s722 = sld [smem:[#allocation9 + $0x31]]
    %v723 = vstv %s722
    %v724 = vmul.f32 %v723, %v714
    %v725 = vmul.f32 %v723, %v715
    %v726 = vadd.f32 %v668, %v724
    %v727 = vadd.f32 %v669, %v725
    %s728 = sld [smem:[#allocation9 + $0x32]]
    %v729 = vstv %s728
    %v730 = vmul.f32 %v729, %v714
    %v731 = vmul.f32 %v729, %v715
    %v732 = vadd.f32 %v680, %v730
    %v733 = vadd.f32 %v681, %v731
    %s734 = sld [smem:[#allocation9 + $0x33]]
    %v735 = vstv %s734
    %v736 = vmul.f32 %v735, %v714
    %v737 = vmul.f32 %v735, %v715
    %v738 = vadd.f32 %v692, %v736
    %v739 = vadd.f32 %v693, %v737
    %s740 = sld [smem:[#allocation9 + $0x34]]
    %v741 = vstv %s740
    %v742 = vmul.f32 %v741, %v714
    %v743 = vmul.f32 %v741, %v715
    %v746 = vrot.slane %v742, 1
    %v747 = vrot.slane %v743, 1
    %v750 = vadd.f32 %v720, %v746
    %v751 = vadd.f32 %v721, %v747
    %s752 = sld [smem:[#allocation9 + $0x35]]
    %v753 = vstv %s752
    %v754 = vmul.f32 %v753, %v714
    %v755 = vmul.f32 %v753, %v715
    %v758 = vrot.slane %v754, 1
    %v759 = vrot.slane %v755, 1
    %v762 = vadd.f32 %v726, %v758
    %v763 = vadd.f32 %v727, %v759
    %s764 = sld [smem:[#allocation9 + $0x36]]
    %v765 = vstv %s764
    %v766 = vmul.f32 %v765, %v714
    %v767 = vmul.f32 %v765, %v715
    %v770 = vrot.slane %v766, 1
    %v771 = vrot.slane %v767, 1
    %v774 = vadd.f32 %v732, %v770
    %v775 = vadd.f32 %v733, %v771
    %s776 = sld [smem:[#allocation9 + $0x37]]
    %v777 = vstv %s776
    %v778 = vmul.f32 %v777, %v714
    %v779 = vmul.f32 %v777, %v715
    %v782 = vrot.slane %v778, 1
    %v783 = vrot.slane %v779, 1
    %v786 = vadd.f32 %v738, %v782
    %v787 = vadd.f32 %v739, %v783
    %s788 = sld [smem:[#allocation9 + $0x38]]
    %v789 = vstv %s788
    %v790 = vmul.f32 %v789, %v714
    %v791 = vmul.f32 %v789, %v715
    %v794 = vrot.slane %v790, 2
    %v795 = vrot.slane %v791, 2
    %v798 = vadd.f32 %v750, %v794
    %v799 = vadd.f32 %v751, %v795
    %s800 = sld [smem:[#allocation9 + $0x39]]
    %v801 = vstv %s800
    %v802 = vmul.f32 %v801, %v714
    %v803 = vmul.f32 %v801, %v715
    %v806 = vrot.slane %v802, 2
    %v807 = vrot.slane %v803, 2
    %v810 = vadd.f32 %v762, %v806
    %v811 = vadd.f32 %v763, %v807
    %s812 = sld [smem:[#allocation9 + $0x3a]]
    %v813 = vstv %s812
    %v814 = vmul.f32 %v813, %v714
    %v815 = vmul.f32 %v813, %v715
    %v818 = vrot.slane %v814, 2
    %v819 = vrot.slane %v815, 2
    %v822 = vadd.f32 %v774, %v818
    %v823 = vadd.f32 %v775, %v819
    %s824 = sld [smem:[#allocation9 + $0x3b]]
    %v825 = vstv %s824
    %v826 = vmul.f32 %v825, %v714
    %v827 = vmul.f32 %v825, %v715
    %v830 = vrot.slane %v826, 2
    %v831 = vrot.slane %v827, 2
    %v834 = vadd.f32 %v786, %v830
    %v835 = vadd.f32 %v787, %v831
    %s836 = sld [smem:[#allocation9 + $0x3c]]
    %v837 = vstv %s836
    %v838 = vmul.f32 %v837, %v714
    %v839 = vmul.f32 %v837, %v715
    %v842 = vrot.slane %v838, 3
    %v843 = vrot.slane %v839, 3
    %v846 = vadd.f32 %v798, %v842
    %v847 = vadd.f32 %v799, %v843
    %s848 = sld [smem:[#allocation9 + $0x3d]]
    %v849 = vstv %s848
    %v850 = vmul.f32 %v849, %v714
    %v851 = vmul.f32 %v849, %v715
    %v854 = vrot.slane %v850, 3
    %v855 = vrot.slane %v851, 3
    %v858 = vadd.f32 %v810, %v854
    %v859 = vadd.f32 %v811, %v855
    %s860 = sld [smem:[#allocation9 + $0x3e]]
    %v861 = vstv %s860
    %v862 = vmul.f32 %v861, %v714
    %v863 = vmul.f32 %v861, %v715
    %v866 = vrot.slane %v862, 3
    %v867 = vrot.slane %v863, 3
    %v870 = vadd.f32 %v822, %v866
    %v871 = vadd.f32 %v823, %v867
    %s872 = sld [smem:[#allocation9 + $0x3f]]
    %v873 = vstv %s872
    %v874 = vmul.f32 %v873, %v714
    %v875 = vmul.f32 %v873, %v715
    %v878 = vrot.slane %v874, 3
    %v879 = vrot.slane %v875, 3
    %v882 = vadd.f32 %v834, %v878
    %v883 = vadd.f32 %v835, %v879
    %s884 = sld [smem:[#allocation9 + $0x40]]
    %v885 = vstv %s884
    %v886 = vmul.f32 %v885, %v129
    %v887 = vmul.f32 %v885, %v130
    %v888 = vadd.f32 %v846, %v886
    %v889 = vadd.f32 %v847, %v887
    %s890 = sld [smem:[#allocation9 + $0x41]]
    %v891 = vstv %s890
    %v892 = vmul.f32 %v891, %v129
    %v893 = vmul.f32 %v891, %v130
    %v894 = vadd.f32 %v858, %v892
    %v895 = vadd.f32 %v859, %v893
    %s896 = sld [smem:[#allocation9 + $0x42]]
    %v897 = vstv %s896
    %v898 = vmul.f32 %v897, %v129
    %v899 = vmul.f32 %v897, %v130
    %v900 = vadd.f32 %v870, %v898
    %v901 = vadd.f32 %v871, %v899
    %s902 = sld [smem:[#allocation9 + $0x43]]
    %v903 = vstv %s902
    %v904 = vmul.f32 %v903, %v129
    %v905 = vmul.f32 %v903, %v130
    %v906 = vadd.f32 %v882, %v904
    %v907 = vadd.f32 %v883, %v905
    %s908 = sld [smem:[#allocation9 + $0x44]]
    %v909 = vstv %s908
    %v910 = vmul.f32 %v909, %v129
    %v911 = vmul.f32 %v909, %v130
    %v914 = vrot.slane %v910, 1
    %v915 = vrot.slane %v911, 1
    %v918 = vadd.f32 %v888, %v914
    %v919 = vadd.f32 %v889, %v915
    %s920 = sld [smem:[#allocation9 + $0x45]]
    %v921 = vstv %s920
    %v922 = vmul.f32 %v921, %v129
    %v923 = vmul.f32 %v921, %v130
    %v926 = vrot.slane %v922, 1
    %v927 = vrot.slane %v923, 1
    %v930 = vadd.f32 %v894, %v926
    %v931 = vadd.f32 %v895, %v927
    %s932 = sld [smem:[#allocation9 + $0x46]]
    %v933 = vstv %s932
    %v934 = vmul.f32 %v933, %v129
    %v935 = vmul.f32 %v933, %v130
    %v938 = vrot.slane %v934, 1
    %v939 = vrot.slane %v935, 1
    %v942 = vadd.f32 %v900, %v938
    %v943 = vadd.f32 %v901, %v939
    %s944 = sld [smem:[#allocation9 + $0x47]]
    %v945 = vstv %s944
    %v946 = vmul.f32 %v945, %v129
    %v947 = vmul.f32 %v945, %v130
    %v950 = vrot.slane %v946, 1
    %v951 = vrot.slane %v947, 1
    %v954 = vadd.f32 %v906, %v950
    %v955 = vadd.f32 %v907, %v951
    %s956 = sld [smem:[#allocation9 + $0x48]]
    %v957 = vstv %s956
    %v958 = vmul.f32 %v957, %v129
    %v959 = vmul.f32 %v957, %v130
    %v962 = vrot.slane %v958, 2
    %v963 = vrot.slane %v959, 2
    %v966 = vadd.f32 %v918, %v962
    %v967 = vadd.f32 %v919, %v963
    %s968 = sld [smem:[#allocation9 + $0x49]]
    %v969 = vstv %s968
    %v970 = vmul.f32 %v969, %v129
    %v971 = vmul.f32 %v969, %v130
    %v974 = vrot.slane %v970, 2
    %v975 = vrot.slane %v971, 2
    %v978 = vadd.f32 %v930, %v974
    %v979 = vadd.f32 %v931, %v975
    %s980 = sld [smem:[#allocation9 + $0x4a]]
    %v981 = vstv %s980
    %v982 = vmul.f32 %v981, %v129
    %v983 = vmul.f32 %v981, %v130
    %v986 = vrot.slane %v982, 2
    %v987 = vrot.slane %v983, 2
    %v990 = vadd.f32 %v942, %v986
    %v991 = vadd.f32 %v943, %v987
    %s992 = sld [smem:[#allocation9 + $0x4b]]
    %v993 = vstv %s992
    %v994 = vmul.f32 %v993, %v129
    %v995 = vmul.f32 %v993, %v130
    %v998 = vrot.slane %v994, 2
    %v999 = vrot.slane %v995, 2
    %v1002 = vadd.f32 %v954, %v998
    %v1003 = vadd.f32 %v955, %v999
    %s1004 = sld [smem:[#allocation9 + $0x4c]]
    %v1005 = vstv %s1004
    %v1006 = vmul.f32 %v1005, %v129
    %v1007 = vmul.f32 %v1005, %v130
    %v1010 = vrot.slane %v1006, 3
    %v1011 = vrot.slane %v1007, 3
    %v1014 = vadd.f32 %v966, %v1010
    %v1015 = vadd.f32 %v967, %v1011
    %s1016 = sld [smem:[#allocation9 + $0x4d]]
    %v1017 = vstv %s1016
    %v1018 = vmul.f32 %v1017, %v129
    %v1019 = vmul.f32 %v1017, %v130
    %v1022 = vrot.slane %v1018, 3
    %v1023 = vrot.slane %v1019, 3
    %v1026 = vadd.f32 %v978, %v1022
    %v1027 = vadd.f32 %v979, %v1023
    %s1028 = sld [smem:[#allocation9 + $0x4e]]
    %v1029 = vstv %s1028
    %v1030 = vmul.f32 %v1029, %v129
    %v1031 = vmul.f32 %v1029, %v130
    %v1034 = vrot.slane %v1030, 3
    %v1035 = vrot.slane %v1031, 3
    %v1038 = vadd.f32 %v990, %v1034
    %v1039 = vadd.f32 %v991, %v1035
    %s1040 = sld [smem:[#allocation9 + $0x4f]]
    %v1041 = vstv %s1040
    %v1042 = vmul.f32 %v1041, %v129
    %v1043 = vmul.f32 %v1041, %v130
    %v1046 = vrot.slane %v1042, 3
    %v1047 = vrot.slane %v1043, 3
    %v1050 = vadd.f32 %v1002, %v1046
    %v1051 = vadd.f32 %v1003, %v1047
    %1052 = vrot.lane.b32.xlu0 %v129, 127
    %v1053 = vpop.permute.xlu0 %1052
    %1054 = vrot.lane.b32.xlu0 %v130, 127
    %v1055 = vpop.permute.xlu0 %1054
    %vm1056 = vcmp.lt.s32.totalorder %v136, 127
    %v1057 = vsel %vm1056, %v1053, %v1055
    %v1058 = vsel %vm1056, %v1055, %v1053
    %s1059 = scalar_lea.vmem [#allocation7], 10
    %v1060 = vld [vmem:[%s1059] sm:$0x3]
    %v1062 = vlaneseq
    %v1063 = vshrl.u32 %v1062, 7
    %v1064 = vsub.s32 0, %v1063
    %v1065 = vrot.slane %v1060, %v1064
    %v1066 = vlaneseq
    %v1067 = vshrl.u32 %v1066, 7
    %v1068 = vsub.s32 1, %v1067
    %v1069 = vrot.slane %v1060, %v1068
    %v1072 = vmul.f32 %v1057, %v1065
    %v1073 = vmul.f32 %v1058, %v1069
    %s1074 = sld [smem:[#allocation9 + $0x50]]
    %v1075 = vstv %s1074
    %v1076 = vmul.f32 %v1075, %v1072
    %v1077 = vmul.f32 %v1075, %v1073
    %v1078 = vadd.f32 %v1014, %v1076
    %v1079 = vadd.f32 %v1015, %v1077
    %s1080 = sld [smem:[#allocation9 + $0x51]]
    %v1081 = vstv %s1080
    %v1082 = vmul.f32 %v1081, %v1072
    %v1083 = vmul.f32 %v1081, %v1073
    %v1084 = vadd.f32 %v1026, %v1082
    %v1085 = vadd.f32 %v1027, %v1083
    %s1086 = sld [smem:[#allocation9 + $0x52]]
    %v1087 = vstv %s1086
    %v1088 = vmul.f32 %v1087, %v1072
    %v1089 = vmul.f32 %v1087, %v1073
    %v1090 = vadd.f32 %v1038, %v1088
    %v1091 = vadd.f32 %v1039, %v1089
    %s1092 = sld [smem:[#allocation9 + $0x53]]
    %v1093 = vstv %s1092
    %v1094 = vmul.f32 %v1093, %v1072
    %v1095 = vmul.f32 %v1093, %v1073
    %v1096 = vadd.f32 %v1050, %v1094
    %v1097 = vadd.f32 %v1051, %v1095
    %s1098 = sld [smem:[#allocation9 + $0x54]]
    %v1099 = vstv %s1098
    %v1100 = vmul.f32 %v1099, %v1072
    %v1101 = vmul.f32 %v1099, %v1073
    %v1104 = vrot.slane %v1100, 1
    %v1105 = vrot.slane %v1101, 1
    %v1108 = vadd.f32 %v1078, %v1104
    %v1109 = vadd.f32 %v1079, %v1105
    %s1110 = sld [smem:[#allocation9 + $0x55]]
    %v1111 = vstv %s1110
    %v1112 = vmul.f32 %v1111, %v1072
    %v1113 = vmul.f32 %v1111, %v1073
    %v1116 = vrot.slane %v1112, 1
    %v1117 = vrot.slane %v1113, 1
    %v1120 = vadd.f32 %v1084, %v1116
    %v1121 = vadd.f32 %v1085, %v1117
    %s1122 = sld [smem:[#allocation9 + $0x56]]
    %v1123 = vstv %s1122
    %v1124 = vmul.f32 %v1123, %v1072
    %v1125 = vmul.f32 %v1123, %v1073
    %v1128 = vrot.slane %v1124, 1
    %v1129 = vrot.slane %v1125, 1
    %v1132 = vadd.f32 %v1090, %v1128
    %v1133 = vadd.f32 %v1091, %v1129
    %s1134 = sld [smem:[#allocation9 + $0x57]]
    %v1135 = vstv %s1134
    %v1136 = vmul.f32 %v1135, %v1072
    %v1137 = vmul.f32 %v1135, %v1073
    %v1140 = vrot.slane %v1136, 1
    %v1141 = vrot.slane %v1137, 1
    %v1144 = vadd.f32 %v1096, %v1140
    %v1145 = vadd.f32 %v1097, %v1141
    %s1146 = sld [smem:[#allocation9 + $0x58]]
    %v1147 = vstv %s1146
    %v1148 = vmul.f32 %v1147, %v1072
    %v1149 = vmul.f32 %v1147, %v1073
    %v1152 = vrot.slane %v1148, 2
    %v1153 = vrot.slane %v1149, 2
    %v1156 = vadd.f32 %v1108, %v1152
    %v1157 = vadd.f32 %v1109, %v1153
    %s1158 = sld [smem:[#allocation9 + $0x59]]
    %v1159 = vstv %s1158
    %v1160 = vmul.f32 %v1159, %v1072
    %v1161 = vmul.f32 %v1159, %v1073
    %v1164 = vrot.slane %v1160, 2
    %v1165 = vrot.slane %v1161, 2
    %v1168 = vadd.f32 %v1120, %v1164
    %v1169 = vadd.f32 %v1121, %v1165
    %s1170 = sld [smem:[#allocation9 + $0x5a]]
    %v1171 = vstv %s1170
    %v1172 = vmul.f32 %v1171, %v1072
    %v1173 = vmul.f32 %v1171, %v1073
    %v1176 = vrot.slane %v1172, 2
    %v1177 = vrot.slane %v1173, 2
    %v1180 = vadd.f32 %v1132, %v1176
    %v1181 = vadd.f32 %v1133, %v1177
    %s1182 = sld [smem:[#allocation9 + $0x5b]]
    %v1183 = vstv %s1182
    %v1184 = vmul.f32 %v1183, %v1072
    %v1185 = vmul.f32 %v1183, %v1073
    %v1188 = vrot.slane %v1184, 2
    %v1189 = vrot.slane %v1185, 2
    %v1192 = vadd.f32 %v1144, %v1188
    %v1193 = vadd.f32 %v1145, %v1189
    %s1194 = sld [smem:[#allocation9 + $0x5c]]
    %v1195 = vstv %s1194
    %v1196 = vmul.f32 %v1195, %v1072
    %v1197 = vmul.f32 %v1195, %v1073
    %v1200 = vrot.slane %v1196, 3
    %v1201 = vrot.slane %v1197, 3
    %v1204 = vadd.f32 %v1156, %v1200
    %v1205 = vadd.f32 %v1157, %v1201
    %s1206 = sld [smem:[#allocation9 + $0x5d]]
    %v1207 = vstv %s1206
    %v1208 = vmul.f32 %v1207, %v1072
    %v1209 = vmul.f32 %v1207, %v1073
    %v1212 = vrot.slane %v1208, 3
    %v1213 = vrot.slane %v1209, 3
    %v1216 = vadd.f32 %v1168, %v1212
    %v1217 = vadd.f32 %v1169, %v1213
    %s1218 = sld [smem:[#allocation9 + $0x5e]]
    %v1219 = vstv %s1218
    %v1220 = vmul.f32 %v1219, %v1072
    %v1221 = vmul.f32 %v1219, %v1073
    %v1224 = vrot.slane %v1220, 3
    %v1225 = vrot.slane %v1221, 3
    %v1228 = vadd.f32 %v1180, %v1224
    %v1229 = vadd.f32 %v1181, %v1225
    %s1230 = sld [smem:[#allocation9 + $0x5f]]
    %v1231 = vstv %s1230
    %v1232 = vmul.f32 %v1231, %v1072
    %v1233 = vmul.f32 %v1231, %v1073
    %v1236 = vrot.slane %v1232, 3
    %v1237 = vrot.slane %v1233, 3
    %v1240 = vadd.f32 %v1192, %v1236
    %v1241 = vadd.f32 %v1193, %v1237
    %1242 = vrot.lane.b32.xlu0 %v129, 113
    %v1243 = vpop.permute.xlu0 %1242
    %1244 = vrot.lane.b32.xlu0 %v130, 113
    %v1245 = vpop.permute.xlu0 %1244
    %vm1246 = vcmp.lt.s32.totalorder %v136, 113
    %v1247 = vsel %vm1246, %v1243, %v1245
    %v1248 = vsel %vm1246, %v1245, %v1243
    %s1249 = scalar_lea.vmem [#allocation7], 12
    %v1250 = vld [vmem:[%s1249] sm:$0x3]
    %v1252 = vlaneseq
    %v1253 = vshrl.u32 %v1252, 7
    %v1254 = vsub.s32 0, %v1253
    %v1255 = vrot.slane %v1250, %v1254
    %v1256 = vlaneseq
    %v1257 = vshrl.u32 %v1256, 7
    %v1258 = vsub.s32 1, %v1257
    %v1259 = vrot.slane %v1250, %v1258
    %v1262 = vmul.f32 %v1247, %v1255
    %v1263 = vmul.f32 %v1248, %v1259
    %s1264 = sld [smem:[#allocation9 + $0x60]]
    %v1265 = vstv %s1264
    %v1266 = vmul.f32 %v1265, %v1262
    %v1267 = vmul.f32 %v1265, %v1263
    %v1268 = vadd.f32 %v1204, %v1266
    %v1269 = vadd.f32 %v1205, %v1267
    %s1270 = sld [smem:[#allocation9 + $0x61]]
    %v1271 = vstv %s1270
    %v1272 = vmul.f32 %v1271, %v1262
    %v1273 = vmul.f32 %v1271, %v1263
    %v1274 = vadd.f32 %v1216, %v1272
    %v1275 = vadd.f32 %v1217, %v1273
    %s1276 = sld [smem:[#allocation9 + $0x62]]
    %v1277 = vstv %s1276
    %v1278 = vmul.f32 %v1277, %v1262
    %v1279 = vmul.f32 %v1277, %v1263
    %v1280 = vadd.f32 %v1228, %v1278
    %v1281 = vadd.f32 %v1229, %v1279
    %s1282 = sld [smem:[#allocation9 + $0x63]]
    %v1283 = vstv %s1282
    %v1284 = vmul.f32 %v1283, %v1262
    %v1285 = vmul.f32 %v1283, %v1263
    %v1286 = vadd.f32 %v1240, %v1284
    %v1287 = vadd.f32 %v1241, %v1285
    %s1288 = sld [smem:[#allocation9 + $0x64]]
    %v1289 = vstv %s1288
    %v1290 = vmul.f32 %v1289, %v1262
    %v1291 = vmul.f32 %v1289, %v1263
    %v1294 = vrot.slane %v1290, 1
    %v1295 = vrot.slane %v1291, 1
    %v1298 = vadd.f32 %v1268, %v1294
    %v1299 = vadd.f32 %v1269, %v1295
    %s1300 = sld [smem:[#allocation9 + $0x65]]
    %v1301 = vstv %s1300
    %v1302 = vmul.f32 %v1301, %v1262
    %v1303 = vmul.f32 %v1301, %v1263
    %v1306 = vrot.slane %v1302, 1
    %v1307 = vrot.slane %v1303, 1
    %v1310 = vadd.f32 %v1274, %v1306
    %v1311 = vadd.f32 %v1275, %v1307
    %s1312 = sld [smem:[#allocation9 + $0x66]]
    %v1313 = vstv %s1312
    %v1314 = vmul.f32 %v1313, %v1262
    %v1315 = vmul.f32 %v1313, %v1263
    %v1318 = vrot.slane %v1314, 1
    %v1319 = vrot.slane %v1315, 1
    %v1322 = vadd.f32 %v1280, %v1318
    %v1323 = vadd.f32 %v1281, %v1319
    %s1324 = sld [smem:[#allocation9 + $0x67]]
    %v1325 = vstv %s1324
    %v1326 = vmul.f32 %v1325, %v1262
    %v1327 = vmul.f32 %v1325, %v1263
    %v1330 = vrot.slane %v1326, 1
    %v1331 = vrot.slane %v1327, 1
    %v1334 = vadd.f32 %v1286, %v1330
    %v1335 = vadd.f32 %v1287, %v1331
    %s1336 = sld [smem:[#allocation9 + $0x68]]
    %v1337 = vstv %s1336
    %v1338 = vmul.f32 %v1337, %v1262
    %v1339 = vmul.f32 %v1337, %v1263
    %v1342 = vrot.slane %v1338, 2
    %v1343 = vrot.slane %v1339, 2
    %v1346 = vadd.f32 %v1298, %v1342
    %v1347 = vadd.f32 %v1299, %v1343
    %s1348 = sld [smem:[#allocation9 + $0x69]]
    %v1349 = vstv %s1348
    %v1350 = vmul.f32 %v1349, %v1262
    %v1351 = vmul.f32 %v1349, %v1263
    %v1354 = vrot.slane %v1350, 2
    %v1355 = vrot.slane %v1351, 2
    %v1358 = vadd.f32 %v1310, %v1354
    %v1359 = vadd.f32 %v1311, %v1355
    %s1360 = sld [smem:[#allocation9 + $0x6a]]
    %v1361 = vstv %s1360
    %v1362 = vmul.f32 %v1361, %v1262
    %v1363 = vmul.f32 %v1361, %v1263
    %v1366 = vrot.slane %v1362, 2
    %v1367 = vrot.slane %v1363, 2
    %v1370 = vadd.f32 %v1322, %v1366
    %v1371 = vadd.f32 %v1323, %v1367
    %s1372 = sld [smem:[#allocation9 + $0x6b]]
    %v1373 = vstv %s1372
    %v1374 = vmul.f32 %v1373, %v1262
    %v1375 = vmul.f32 %v1373, %v1263
    %v1378 = vrot.slane %v1374, 2
    %v1379 = vrot.slane %v1375, 2
    %v1382 = vadd.f32 %v1334, %v1378
    %v1383 = vadd.f32 %v1335, %v1379
    %s1384 = sld [smem:[#allocation9 + $0x6c]]
    %v1385 = vstv %s1384
    %v1386 = vmul.f32 %v1385, %v1262
    %v1387 = vmul.f32 %v1385, %v1263
    %v1390 = vrot.slane %v1386, 3
    %v1391 = vrot.slane %v1387, 3
    %v1394 = vadd.f32 %v1346, %v1390
    %v1395 = vadd.f32 %v1347, %v1391
    %s1396 = sld [smem:[#allocation9 + $0x6d]]
    %v1397 = vstv %s1396
    %v1398 = vmul.f32 %v1397, %v1262
    %v1399 = vmul.f32 %v1397, %v1263
    %v1402 = vrot.slane %v1398, 3
    %v1403 = vrot.slane %v1399, 3
    %v1406 = vadd.f32 %v1358, %v1402
    %v1407 = vadd.f32 %v1359, %v1403
    %s1408 = sld [smem:[#allocation9 + $0x6e]]
    %v1409 = vstv %s1408
    %v1410 = vmul.f32 %v1409, %v1262
    %v1411 = vmul.f32 %v1409, %v1263
    %v1414 = vrot.slane %v1410, 3
    %v1415 = vrot.slane %v1411, 3
    %v1418 = vadd.f32 %v1370, %v1414
    %v1419 = vadd.f32 %v1371, %v1415
    %s1420 = sld [smem:[#allocation9 + $0x6f]]
    %v1421 = vstv %s1420
    %v1422 = vmul.f32 %v1421, %v1262
    %v1423 = vmul.f32 %v1421, %v1263
    %v1426 = vrot.slane %v1422, 3
    %v1427 = vrot.slane %v1423, 3
    %v1430 = vadd.f32 %v1382, %v1426
    %v1431 = vadd.f32 %v1383, %v1427
    %1432 = vrot.lane.b32.xlu0 %v129, 112
    %v1433 = vpop.permute.xlu0 %1432
    %1434 = vrot.lane.b32.xlu0 %v130, 112
    %v1435 = vpop.permute.xlu0 %1434
    %vm1436 = vcmp.lt.s32.totalorder %v136, 112
    %v1437 = vsel %vm1436, %v1433, %v1435
    %v1438 = vsel %vm1436, %v1435, %v1433
    %s1439 = scalar_lea.vmem [#allocation7], 14
    %v1440 = vld [vmem:[%s1439] sm:$0x3]
    %v1442 = vlaneseq
    %v1443 = vshrl.u32 %v1442, 7
    %v1444 = vsub.s32 0, %v1443
    %v1445 = vrot.slane %v1440, %v1444
    %v1446 = vlaneseq
    %v1447 = vshrl.u32 %v1446, 7
    %v1448 = vsub.s32 1, %v1447
    %v1449 = vrot.slane %v1440, %v1448
    %v1452 = vmul.f32 %v1437, %v1445
    %v1453 = vmul.f32 %v1438, %v1449
    %s1454 = sld [smem:[#allocation9 + $0x70]]
    %v1455 = vstv %s1454
    %v1456 = vmul.f32 %v1455, %v1452
    %v1457 = vmul.f32 %v1455, %v1453
    %v1458 = vadd.f32 %v1394, %v1456
    %v1459 = vadd.f32 %v1395, %v1457
    %s1460 = sld [smem:[#allocation9 + $0x71]]
    %v1461 = vstv %s1460
    %v1462 = vmul.f32 %v1461, %v1452
    %v1463 = vmul.f32 %v1461, %v1453
    %v1464 = vadd.f32 %v1406, %v1462
    %v1465 = vadd.f32 %v1407, %v1463
    %s1466 = sld [smem:[#allocation9 + $0x72]]
    %v1467 = vstv %s1466
    %v1468 = vmul.f32 %v1467, %v1452
    %v1469 = vmul.f32 %v1467, %v1453
    %v1470 = vadd.f32 %v1418, %v1468
    %v1471 = vadd.f32 %v1419, %v1469
    %s1472 = sld [smem:[#allocation9 + $0x73]]
    %v1473 = vstv %s1472
    %v1474 = vmul.f32 %v1473, %v1452
    %v1475 = vmul.f32 %v1473, %v1453
    %v1476 = vadd.f32 %v1430, %v1474
    %v1477 = vadd.f32 %v1431, %v1475
    %s1478 = sld [smem:[#allocation9 + $0x74]]
    %v1479 = vstv %s1478
    %v1480 = vmul.f32 %v1479, %v1452
    %v1481 = vmul.f32 %v1479, %v1453
    %v1484 = vrot.slane %v1480, 1
    %v1485 = vrot.slane %v1481, 1
    %v1488 = vadd.f32 %v1458, %v1484
    %v1489 = vadd.f32 %v1459, %v1485
    %s1490 = sld [smem:[#allocation9 + $0x75]]
    %v1491 = vstv %s1490
    %v1492 = vmul.f32 %v1491, %v1452
    %v1493 = vmul.f32 %v1491, %v1453
    %v1496 = vrot.slane %v1492, 1
    %v1497 = vrot.slane %v1493, 1
    %v1500 = vadd.f32 %v1464, %v1496
    %v1501 = vadd.f32 %v1465, %v1497
    %s1502 = sld [smem:[#allocation9 + $0x76]]
    %v1503 = vstv %s1502
    %v1504 = vmul.f32 %v1503, %v1452
    %v1505 = vmul.f32 %v1503, %v1453
    %v1508 = vrot.slane %v1504, 1
    %v1509 = vrot.slane %v1505, 1
    %v1512 = vadd.f32 %v1470, %v1508
    %v1513 = vadd.f32 %v1471, %v1509
    %s1514 = sld [smem:[#allocation9 + $0x77]]
    %v1515 = vstv %s1514
    %v1516 = vmul.f32 %v1515, %v1452
    %v1517 = vmul.f32 %v1515, %v1453
    %v1520 = vrot.slane %v1516, 1
    %v1521 = vrot.slane %v1517, 1
    %v1524 = vadd.f32 %v1476, %v1520
    %v1525 = vadd.f32 %v1477, %v1521
    %s1526 = sld [smem:[#allocation9 + $0x78]]
    %v1527 = vstv %s1526
    %v1528 = vmul.f32 %v1527, %v1452
    %v1529 = vmul.f32 %v1527, %v1453
    %v1532 = vrot.slane %v1528, 2
    %v1533 = vrot.slane %v1529, 2
    %v1536 = vadd.f32 %v1488, %v1532
    %v1537 = vadd.f32 %v1489, %v1533
    %s1538 = sld [smem:[#allocation9 + $0x79]]
    %v1539 = vstv %s1538
    %v1540 = vmul.f32 %v1539, %v1452
    %v1541 = vmul.f32 %v1539, %v1453
    %v1544 = vrot.slane %v1540, 2
    %v1545 = vrot.slane %v1541, 2
    %v1548 = vadd.f32 %v1500, %v1544
    %v1549 = vadd.f32 %v1501, %v1545
    %s1550 = sld [smem:[#allocation9 + $0x7a]]
    %v1551 = vstv %s1550
    %v1552 = vmul.f32 %v1551, %v1452
    %v1553 = vmul.f32 %v1551, %v1453
    %v1556 = vrot.slane %v1552, 2
    %v1557 = vrot.slane %v1553, 2
    %v1560 = vadd.f32 %v1512, %v1556
    %v1561 = vadd.f32 %v1513, %v1557
    %s1562 = sld [smem:[#allocation9 + $0x7b]]
    %v1563 = vstv %s1562
    %v1564 = vmul.f32 %v1563, %v1452
    %v1565 = vmul.f32 %v1563, %v1453
    %v1568 = vrot.slane %v1564, 2
    %v1569 = vrot.slane %v1565, 2
    %v1572 = vadd.f32 %v1524, %v1568
    %v1573 = vadd.f32 %v1525, %v1569
    %s1574 = sld [smem:[#allocation9 + $0x7c]]
    %v1575 = vstv %s1574
    %v1576 = vmul.f32 %v1575, %v1452
    %v1577 = vmul.f32 %v1575, %v1453
    %v1580 = vrot.slane %v1576, 3
    %v1581 = vrot.slane %v1577, 3
    %v1584 = vadd.f32 %v1536, %v1580
    %v1585 = vadd.f32 %v1537, %v1581
    %s1586 = sld [smem:[#allocation9 + $0x7d]]
    %v1587 = vstv %s1586
    %v1588 = vmul.f32 %v1587, %v1452
    %v1589 = vmul.f32 %v1587, %v1453
    %v1592 = vrot.slane %v1588, 3
    %v1593 = vrot.slane %v1589, 3
    %v1596 = vadd.f32 %v1548, %v1592
    %v1597 = vadd.f32 %v1549, %v1593
    %s1598 = sld [smem:[#allocation9 + $0x7e]]
    %v1599 = vstv %s1598
    %v1600 = vmul.f32 %v1599, %v1452
    %v1601 = vmul.f32 %v1599, %v1453
    %v1604 = vrot.slane %v1600, 3
    %v1605 = vrot.slane %v1601, 3
    %v1608 = vadd.f32 %v1560, %v1604
    %v1609 = vadd.f32 %v1561, %v1605
    %s1610 = sld [smem:[#allocation9 + $0x7f]]
    %v1611 = vstv %s1610
    %v1612 = vmul.f32 %v1611, %v1452
    %v1613 = vmul.f32 %v1611, %v1453
    %v1616 = vrot.slane %v1612, 3
    %v1617 = vrot.slane %v1613, 3
    %v1620 = vadd.f32 %v1572, %v1616
    %v1621 = vadd.f32 %v1573, %v1617
    %1622 = vrot.lane.b32.xlu0 %v129, 111
    %v1623 = vpop.permute.xlu0 %1622
    %1624 = vrot.lane.b32.xlu0 %v130, 111
    %v1625 = vpop.permute.xlu0 %1624
    %vm1626 = vcmp.lt.s32.totalorder %v136, 111
    %v1627 = vsel %vm1626, %v1623, %v1625
    %v1628 = vsel %vm1626, %v1625, %v1623
    %s1629 = scalar_lea.vmem [#allocation7], 16
    %v1630 = vld [vmem:[%s1629] sm:$0x3]
    %v1632 = vlaneseq
    %v1633 = vshrl.u32 %v1632, 7
    %v1634 = vsub.s32 0, %v1633
    %v1635 = vrot.slane %v1630, %v1634
    %v1636 = vlaneseq
    %v1637 = vshrl.u32 %v1636, 7
    %v1638 = vsub.s32 1, %v1637
    %v1639 = vrot.slane %v1630, %v1638
    %v1642 = vmul.f32 %v1627, %v1635
    %v1643 = vmul.f32 %v1628, %v1639
    %s1644 = sld [smem:[#allocation9 + $0x80]]
    %v1645 = vstv %s1644
    %v1646 = vmul.f32 %v1645, %v1642
    %v1647 = vmul.f32 %v1645, %v1643
    %v1648 = vadd.f32 %v1584, %v1646
    %v1649 = vadd.f32 %v1585, %v1647
    %s1650 = sld [smem:[#allocation9 + $0x81]]
    %v1651 = vstv %s1650
    %v1652 = vmul.f32 %v1651, %v1642
    %v1653 = vmul.f32 %v1651, %v1643
    %v1654 = vadd.f32 %v1596, %v1652
    %v1655 = vadd.f32 %v1597, %v1653
    %s1656 = sld [smem:[#allocation9 + $0x82]]
    %v1657 = vstv %s1656
    %v1658 = vmul.f32 %v1657, %v1642
    %v1659 = vmul.f32 %v1657, %v1643
    %v1660 = vadd.f32 %v1608, %v1658
    %v1661 = vadd.f32 %v1609, %v1659
    %s1662 = sld [smem:[#allocation9 + $0x83]]
    %v1663 = vstv %s1662
    %v1664 = vmul.f32 %v1663, %v1642
    %v1665 = vmul.f32 %v1663, %v1643
    %v1666 = vadd.f32 %v1620, %v1664
    %v1667 = vadd.f32 %v1621, %v1665
    %s1668 = sld [smem:[#allocation9 + $0x84]]
    %v1669 = vstv %s1668
    %v1670 = vmul.f32 %v1669, %v1642
    %v1671 = vmul.f32 %v1669, %v1643
    %v1674 = vrot.slane %v1670, 1
    %v1675 = vrot.slane %v1671, 1
    %v1678 = vadd.f32 %v1648, %v1674
    %v1679 = vadd.f32 %v1649, %v1675
    %s1680 = sld [smem:[#allocation9 + $0x85]]
    %v1681 = vstv %s1680
    %v1682 = vmul.f32 %v1681, %v1642
    %v1683 = vmul.f32 %v1681, %v1643
    %v1686 = vrot.slane %v1682, 1
    %v1687 = vrot.slane %v1683, 1
    %v1690 = vadd.f32 %v1654, %v1686
    %v1691 = vadd.f32 %v1655, %v1687
    %s1692 = sld [smem:[#allocation9 + $0x86]]
    %v1693 = vstv %s1692
    %v1694 = vmul.f32 %v1693, %v1642
    %v1695 = vmul.f32 %v1693, %v1643
    %v1698 = vrot.slane %v1694, 1
    %v1699 = vrot.slane %v1695, 1
    %v1702 = vadd.f32 %v1660, %v1698
    %v1703 = vadd.f32 %v1661, %v1699
    %s1704 = sld [smem:[#allocation9 + $0x87]]
    %v1705 = vstv %s1704
    %v1706 = vmul.f32 %v1705, %v1642
    %v1707 = vmul.f32 %v1705, %v1643
    %v1710 = vrot.slane %v1706, 1
    %v1711 = vrot.slane %v1707, 1
    %v1714 = vadd.f32 %v1666, %v1710
    %v1715 = vadd.f32 %v1667, %v1711
    %s1716 = sld [smem:[#allocation9 + $0x88]]
    %v1717 = vstv %s1716
    %v1718 = vmul.f32 %v1717, %v1642
    %v1719 = vmul.f32 %v1717, %v1643
    %v1722 = vrot.slane %v1718, 2
    %v1723 = vrot.slane %v1719, 2
    %v1726 = vadd.f32 %v1678, %v1722
    %v1727 = vadd.f32 %v1679, %v1723
    %s1728 = sld [smem:[#allocation9 + $0x89]]
    %v1729 = vstv %s1728
    %v1730 = vmul.f32 %v1729, %v1642
    %v1731 = vmul.f32 %v1729, %v1643
    %v1734 = vrot.slane %v1730, 2
    %v1735 = vrot.slane %v1731, 2
    %v1738 = vadd.f32 %v1690, %v1734
    %v1739 = vadd.f32 %v1691, %v1735
    %s1740 = sld [smem:[#allocation9 + $0x8a]]
    %v1741 = vstv %s1740
    %v1742 = vmul.f32 %v1741, %v1642
    %v1743 = vmul.f32 %v1741, %v1643
    %v1746 = vrot.slane %v1742, 2
    %v1747 = vrot.slane %v1743, 2
    %v1750 = vadd.f32 %v1702, %v1746
    %v1751 = vadd.f32 %v1703, %v1747
    %s1752 = sld [smem:[#allocation9 + $0x8b]]
    %v1753 = vstv %s1752
    %v1754 = vmul.f32 %v1753, %v1642
    %v1755 = vmul.f32 %v1753, %v1643
    %v1758 = vrot.slane %v1754, 2
    %v1759 = vrot.slane %v1755, 2
    %v1762 = vadd.f32 %v1714, %v1758
    %v1763 = vadd.f32 %v1715, %v1759
    %s1764 = sld [smem:[#allocation9 + $0x8c]]
    %v1765 = vstv %s1764
    %v1766 = vmul.f32 %v1765, %v1642
    %v1767 = vmul.f32 %v1765, %v1643
    %v1770 = vrot.slane %v1766, 3
    %v1771 = vrot.slane %v1767, 3
    %v1774 = vadd.f32 %v1726, %v1770
    %v1775 = vadd.f32 %v1727, %v1771
    %s1776 = sld [smem:[#allocation9 + $0x8d]]
    %v1777 = vstv %s1776
    %v1778 = vmul.f32 %v1777, %v1642
    %v1779 = vmul.f32 %v1777, %v1643
    %v1782 = vrot.slane %v1778, 3
    %v1783 = vrot.slane %v1779, 3
    %v1786 = vadd.f32 %v1738, %v1782
    %v1787 = vadd.f32 %v1739, %v1783
    %s1788 = sld [smem:[#allocation9 + $0x8e]]
    %v1789 = vstv %s1788
    %v1790 = vmul.f32 %v1789, %v1642
    %v1791 = vmul.f32 %v1789, %v1643
    %v1794 = vrot.slane %v1790, 3
    %v1795 = vrot.slane %v1791, 3
    %v1798 = vadd.f32 %v1750, %v1794
    %v1799 = vadd.f32 %v1751, %v1795
    %s1800 = sld [smem:[#allocation9 + $0x8f]]
    %v1801 = vstv %s1800
    %v1802 = vmul.f32 %v1801, %v1642
    %v1803 = vmul.f32 %v1801, %v1643
    %v1806 = vrot.slane %v1802, 3
    %v1807 = vrot.slane %v1803, 3
    %v1810 = vadd.f32 %v1762, %v1806
    %v1811 = vadd.f32 %v1763, %v1807
    %s1812 = scalar_lea.vmem [#allocation3], 16
    %v1813 = vld [vmem:[%s1812] sm:$0xff]
    %v1814 = vld [vmem:[%s1812 + $0x8] sm:$0xff]
    %1815 = vrot.lane.b32.xlu0 %v1813, 17
    %v1816 = vpop.permute.xlu0 %1815
    %1817 = vrot.lane.b32.xlu0 %v1814, 17
    %v1818 = vpop.permute.xlu0 %1817
    %v1819 = vsel %vm137, %v1816, %v1818
    %v1820 = vsel %vm137, %v1818, %v1816
    %v1821 = vmul.f32 %v1820, %v145
    %v1822 = vmul.f32 %v1819, %v149
    %v1823 = vmul.f32 %v155, %v1821
    %v1824 = vmul.f32 %v155, %v1822
    %v1825 = vmul.f32 %v159, %v1821
    %v1826 = vmul.f32 %v159, %v1822
    %v1827 = vmul.f32 %v163, %v1821
    %v1828 = vmul.f32 %v163, %v1822
    %v1829 = vmul.f32 %v167, %v1821
    %v1830 = vmul.f32 %v167, %v1822
    %v1831 = vmul.f32 %v171, %v1821
    %v1832 = vmul.f32 %v171, %v1822
    %v1835 = vrot.slane %v1831, 1
    %v1836 = vrot.slane %v1832, 1
    %v1839 = vadd.f32 %v1823, %v1835
    %v1840 = vadd.f32 %v1824, %v1836
    %v1841 = vmul.f32 %v183, %v1821
    %v1842 = vmul.f32 %v183, %v1822
    %v1845 = vrot.slane %v1841, 1
    %v1846 = vrot.slane %v1842, 1
    %v1849 = vadd.f32 %v1825, %v1845
    %v1850 = vadd.f32 %v1826, %v1846
    %v1851 = vmul.f32 %v195, %v1821
    %v1852 = vmul.f32 %v195, %v1822
    %v1855 = vrot.slane %v1851, 1
    %v1856 = vrot.slane %v1852, 1
    %v1859 = vadd.f32 %v1827, %v1855
    %v1860 = vadd.f32 %v1828, %v1856
    %v1861 = vmul.f32 %v207, %v1821
    %v1862 = vmul.f32 %v207, %v1822
    %v1865 = vrot.slane %v1861, 1
    %v1866 = vrot.slane %v1862, 1
    %v1869 = vadd.f32 %v1829, %v1865
    %v1870 = vadd.f32 %v1830, %v1866
    %v1871 = vmul.f32 %v219, %v1821
    %v1872 = vmul.f32 %v219, %v1822
    %v1875 = vrot.slane %v1871, 2
    %v1876 = vrot.slane %v1872, 2
    %v1879 = vadd.f32 %v1839, %v1875
    %v1880 = vadd.f32 %v1840, %v1876
    %v1881 = vmul.f32 %v231, %v1821
    %v1882 = vmul.f32 %v231, %v1822
    %v1885 = vrot.slane %v1881, 2
    %v1886 = vrot.slane %v1882, 2
    %v1889 = vadd.f32 %v1849, %v1885
    %v1890 = vadd.f32 %v1850, %v1886
    %v1891 = vmul.f32 %v243, %v1821
    %v1892 = vmul.f32 %v243, %v1822
    %v1895 = vrot.slane %v1891, 2
    %v1896 = vrot.slane %v1892, 2
    %v1899 = vadd.f32 %v1859, %v1895
    %v1900 = vadd.f32 %v1860, %v1896
    %v1901 = vmul.f32 %v255, %v1821
    %v1902 = vmul.f32 %v255, %v1822
    %v1905 = vrot.slane %v1901, 2
    %v1906 = vrot.slane %v1902, 2
    %v1909 = vadd.f32 %v1869, %v1905
    %v1910 = vadd.f32 %v1870, %v1906
    %v1911 = vmul.f32 %v267, %v1821
    %v1912 = vmul.f32 %v267, %v1822
    %v1915 = vrot.slane %v1911, 3
    %v1916 = vrot.slane %v1912, 3
    %v1919 = vadd.f32 %v1879, %v1915
    %v1920 = vadd.f32 %v1880, %v1916
    %v1921 = vmul.f32 %v279, %v1821
    %v1922 = vmul.f32 %v279, %v1822
    %v1925 = vrot.slane %v1921, 3
    %v1926 = vrot.slane %v1922, 3
    %v1929 = vadd.f32 %v1889, %v1925
    %v1930 = vadd.f32 %v1890, %v1926
    %v1931 = vmul.f32 %v291, %v1821
    %v1932 = vmul.f32 %v291, %v1822
    %v1935 = vrot.slane %v1931, 3
    %v1936 = vrot.slane %v1932, 3
    %v1939 = vadd.f32 %v1899, %v1935
    %v1940 = vadd.f32 %v1900, %v1936
    %v1941 = vmul.f32 %v303, %v1821
    %v1942 = vmul.f32 %v303, %v1822
    %v1945 = vrot.slane %v1941, 3
    %v1946 = vrot.slane %v1942, 3
    %v1949 = vadd.f32 %v1909, %v1945
    %v1950 = vadd.f32 %v1910, %v1946
    %1951 = vrot.lane.b32.xlu0 %v1813, 16
    %v1952 = vpop.permute.xlu0 %1951
    %1953 = vrot.lane.b32.xlu0 %v1814, 16
    %v1954 = vpop.permute.xlu0 %1953
    %v1955 = vsel %vm318, %v1952, %v1954
    %v1956 = vsel %vm318, %v1954, %v1952
    %v1957 = vmul.f32 %v1956, %v327
    %v1958 = vmul.f32 %v1955, %v331
    %v1959 = vmul.f32 %v337, %v1957
    %v1960 = vmul.f32 %v337, %v1958
    %v1961 = vadd.f32 %v1919, %v1959
    %v1962 = vadd.f32 %v1920, %v1960
    %v1963 = vmul.f32 %v343, %v1957
    %v1964 = vmul.f32 %v343, %v1958
    %v1965 = vadd.f32 %v1929, %v1963
    %v1966 = vadd.f32 %v1930, %v1964
    %v1967 = vmul.f32 %v349, %v1957
    %v1968 = vmul.f32 %v349, %v1958
    %v1969 = vadd.f32 %v1939, %v1967
    %v1970 = vadd.f32 %v1940, %v1968
    %v1971 = vmul.f32 %v355, %v1957
    %v1972 = vmul.f32 %v355, %v1958
    %v1973 = vadd.f32 %v1949, %v1971
    %v1974 = vadd.f32 %v1950, %v1972
    %v1975 = vmul.f32 %v361, %v1957
    %v1976 = vmul.f32 %v361, %v1958
    %v1979 = vrot.slane %v1975, 1
    %v1980 = vrot.slane %v1976, 1
    %v1983 = vadd.f32 %v1961, %v1979
    %v1984 = vadd.f32 %v1962, %v1980
    %v1985 = vmul.f32 %v373, %v1957
    %v1986 = vmul.f32 %v373, %v1958
    %v1989 = vrot.slane %v1985, 1
    %v1990 = vrot.slane %v1986, 1
    %v1993 = vadd.f32 %v1965, %v1989
    %v1994 = vadd.f32 %v1966, %v1990
    %v1995 = vmul.f32 %v385, %v1957
    %v1996 = vmul.f32 %v385, %v1958
    %v1999 = vrot.slane %v1995, 1
    %v2000 = vrot.slane %v1996, 1
    %v2003 = vadd.f32 %v1969, %v1999
    %v2004 = vadd.f32 %v1970, %v2000
    %v2005 = vmul.f32 %v397, %v1957
    %v2006 = vmul.f32 %v397, %v1958
    %v2009 = vrot.slane %v2005, 1
    %v2010 = vrot.slane %v2006, 1
    %v2013 = vadd.f32 %v1973, %v2009
    %v2014 = vadd.f32 %v1974, %v2010
    %v2015 = vmul.f32 %v409, %v1957
    %v2016 = vmul.f32 %v409, %v1958
    %v2019 = vrot.slane %v2015, 2
    %v2020 = vrot.slane %v2016, 2
    %v2023 = vadd.f32 %v1983, %v2019
    %v2024 = vadd.f32 %v1984, %v2020
    %v2025 = vmul.f32 %v421, %v1957
    %v2026 = vmul.f32 %v421, %v1958
    %v2029 = vrot.slane %v2025, 2
    %v2030 = vrot.slane %v2026, 2
    %v2033 = vadd.f32 %v1993, %v2029
    %v2034 = vadd.f32 %v1994, %v2030
    %v2035 = vmul.f32 %v433, %v1957
    %v2036 = vmul.f32 %v433, %v1958
    %v2039 = vrot.slane %v2035, 2
    %v2040 = vrot.slane %v2036, 2
    %v2043 = vadd.f32 %v2003, %v2039
    %v2044 = vadd.f32 %v2004, %v2040
    %v2045 = vmul.f32 %v445, %v1957
    %v2046 = vmul.f32 %v445, %v1958
    %v2049 = vrot.slane %v2045, 2
    %v2050 = vrot.slane %v2046, 2
    %v2053 = vadd.f32 %v2013, %v2049
    %v2054 = vadd.f32 %v2014, %v2050
    %v2055 = vmul.f32 %v457, %v1957
    %v2056 = vmul.f32 %v457, %v1958
    %v2059 = vrot.slane %v2055, 3
    %v2060 = vrot.slane %v2056, 3
    %v2063 = vadd.f32 %v2023, %v2059
    %v2064 = vadd.f32 %v2024, %v2060
    %v2065 = vmul.f32 %v469, %v1957
    %v2066 = vmul.f32 %v469, %v1958
    %v2069 = vrot.slane %v2065, 3
    %v2070 = vrot.slane %v2066, 3
    %v2073 = vadd.f32 %v2033, %v2069
    %v2074 = vadd.f32 %v2034, %v2070
    %v2075 = vmul.f32 %v481, %v1957
    %v2076 = vmul.f32 %v481, %v1958
    %v2079 = vrot.slane %v2075, 3
    %v2080 = vrot.slane %v2076, 3
    %v2083 = vadd.f32 %v2043, %v2079
    %v2084 = vadd.f32 %v2044, %v2080
    %v2085 = vmul.f32 %v493, %v1957
    %v2086 = vmul.f32 %v493, %v1958
    %v2089 = vrot.slane %v2085, 3
    %v2090 = vrot.slane %v2086, 3
    %v2093 = vadd.f32 %v2053, %v2089
    %v2094 = vadd.f32 %v2054, %v2090
    %2095 = vrot.lane.b32.xlu0 %v1813, 15
    %v2096 = vpop.permute.xlu0 %2095
    %2097 = vrot.lane.b32.xlu0 %v1814, 15
    %v2098 = vpop.permute.xlu0 %2097
    %v2099 = vsel %vm508, %v2096, %v2098
    %v2100 = vsel %vm508, %v2098, %v2096
    %v2101 = vmul.f32 %v2100, %v517
    %v2102 = vmul.f32 %v2099, %v521
    %v2103 = vmul.f32 %v527, %v2101
    %v2104 = vmul.f32 %v527, %v2102
    %v2105 = vadd.f32 %v2063, %v2103
    %v2106 = vadd.f32 %v2064, %v2104
    %v2107 = vmul.f32 %v533, %v2101
    %v2108 = vmul.f32 %v533, %v2102
    %v2109 = vadd.f32 %v2073, %v2107
    %v2110 = vadd.f32 %v2074, %v2108
    %v2111 = vmul.f32 %v539, %v2101
    %v2112 = vmul.f32 %v539, %v2102
    %v2113 = vadd.f32 %v2083, %v2111
    %v2114 = vadd.f32 %v2084, %v2112
    %v2115 = vmul.f32 %v545, %v2101
    %v2116 = vmul.f32 %v545, %v2102
    %v2117 = vadd.f32 %v2093, %v2115
    %v2118 = vadd.f32 %v2094, %v2116
    %v2119 = vmul.f32 %v551, %v2101
    %v2120 = vmul.f32 %v551, %v2102
    %v2123 = vrot.slane %v2119, 1
    %v2124 = vrot.slane %v2120, 1
    %v2127 = vadd.f32 %v2105, %v2123
    %v2128 = vadd.f32 %v2106, %v2124
    %v2129 = vmul.f32 %v563, %v2101
    %v2130 = vmul.f32 %v563, %v2102
    %v2133 = vrot.slane %v2129, 1
    %v2134 = vrot.slane %v2130, 1
    %v2137 = vadd.f32 %v2109, %v2133
    %v2138 = vadd.f32 %v2110, %v2134
    %v2139 = vmul.f32 %v575, %v2101
    %v2140 = vmul.f32 %v575, %v2102
    %v2143 = vrot.slane %v2139, 1
    %v2144 = vrot.slane %v2140, 1
    %v2147 = vadd.f32 %v2113, %v2143
    %v2148 = vadd.f32 %v2114, %v2144
    %v2149 = vmul.f32 %v587, %v2101
    %v2150 = vmul.f32 %v587, %v2102
    %v2153 = vrot.slane %v2149, 1
    %v2154 = vrot.slane %v2150, 1
    %v2157 = vadd.f32 %v2117, %v2153
    %v2158 = vadd.f32 %v2118, %v2154
    %v2159 = vmul.f32 %v599, %v2101
    %v2160 = vmul.f32 %v599, %v2102
    %v2163 = vrot.slane %v2159, 2
    %v2164 = vrot.slane %v2160, 2
    %v2167 = vadd.f32 %v2127, %v2163
    %v2168 = vadd.f32 %v2128, %v2164
    %v2169 = vmul.f32 %v611, %v2101
    %v2170 = vmul.f32 %v611, %v2102
    %v2173 = vrot.slane %v2169, 2
    %v2174 = vrot.slane %v2170, 2
    %v2177 = vadd.f32 %v2137, %v2173
    %v2178 = vadd.f32 %v2138, %v2174
    %v2179 = vmul.f32 %v623, %v2101
    %v2180 = vmul.f32 %v623, %v2102
    %v2183 = vrot.slane %v2179, 2
    %v2184 = vrot.slane %v2180, 2
    %v2187 = vadd.f32 %v2147, %v2183
    %v2188 = vadd.f32 %v2148, %v2184
    %v2189 = vmul.f32 %v635, %v2101
    %v2190 = vmul.f32 %v635, %v2102
    %v2193 = vrot.slane %v2189, 2
    %v2194 = vrot.slane %v2190, 2
    %v2197 = vadd.f32 %v2157, %v2193
    %v2198 = vadd.f32 %v2158, %v2194
    %v2199 = vmul.f32 %v647, %v2101
    %v2200 = vmul.f32 %v647, %v2102
    %v2203 = vrot.slane %v2199, 3
    %v2204 = vrot.slane %v2200, 3
    %v2207 = vadd.f32 %v2167, %v2203
    %v2208 = vadd.f32 %v2168, %v2204
    %v2209 = vmul.f32 %v659, %v2101
    %v2210 = vmul.f32 %v659, %v2102
    %v2213 = vrot.slane %v2209, 3
    %v2214 = vrot.slane %v2210, 3
    %v2217 = vadd.f32 %v2177, %v2213
    %v2218 = vadd.f32 %v2178, %v2214
    %v2219 = vmul.f32 %v671, %v2101
    %v2220 = vmul.f32 %v671, %v2102
    %v2223 = vrot.slane %v2219, 3
    %v2224 = vrot.slane %v2220, 3
    %v2227 = vadd.f32 %v2187, %v2223
    %v2228 = vadd.f32 %v2188, %v2224
    %v2229 = vmul.f32 %v683, %v2101
    %v2230 = vmul.f32 %v683, %v2102
    %v2233 = vrot.slane %v2229, 3
    %v2234 = vrot.slane %v2230, 3
    %v2237 = vadd.f32 %v2197, %v2233
    %v2238 = vadd.f32 %v2198, %v2234
    %2239 = vrot.lane.b32.xlu0 %v1813, 1
    %v2240 = vpop.permute.xlu0 %2239
    %2241 = vrot.lane.b32.xlu0 %v1814, 1
    %v2242 = vpop.permute.xlu0 %2241
    %v2243 = vsel %vm698, %v2240, %v2242
    %v2244 = vsel %vm698, %v2242, %v2240
    %v2245 = vmul.f32 %v2244, %v707
    %v2246 = vmul.f32 %v2243, %v711
    %v2247 = vmul.f32 %v717, %v2245
    %v2248 = vmul.f32 %v717, %v2246
    %v2249 = vadd.f32 %v2207, %v2247
    %v2250 = vadd.f32 %v2208, %v2248
    %v2251 = vmul.f32 %v723, %v2245
    %v2252 = vmul.f32 %v723, %v2246
    %v2253 = vadd.f32 %v2217, %v2251
    %v2254 = vadd.f32 %v2218, %v2252
    %v2255 = vmul.f32 %v729, %v2245
    %v2256 = vmul.f32 %v729, %v2246
    %v2257 = vadd.f32 %v2227, %v2255
    %v2258 = vadd.f32 %v2228, %v2256
    %v2259 = vmul.f32 %v735, %v2245
    %v2260 = vmul.f32 %v735, %v2246
    %v2261 = vadd.f32 %v2237, %v2259
    %v2262 = vadd.f32 %v2238, %v2260
    %v2263 = vmul.f32 %v741, %v2245
    %v2264 = vmul.f32 %v741, %v2246
    %v2267 = vrot.slane %v2263, 1
    %v2268 = vrot.slane %v2264, 1
    %v2271 = vadd.f32 %v2249, %v2267
    %v2272 = vadd.f32 %v2250, %v2268
    %v2273 = vmul.f32 %v753, %v2245
    %v2274 = vmul.f32 %v753, %v2246
    %v2277 = vrot.slane %v2273, 1
    %v2278 = vrot.slane %v2274, 1
    %v2281 = vadd.f32 %v2253, %v2277
    %v2282 = vadd.f32 %v2254, %v2278
    %v2283 = vmul.f32 %v765, %v2245
    %v2284 = vmul.f32 %v765, %v2246
    %v2287 = vrot.slane %v2283, 1
    %v2288 = vrot.slane %v2284, 1
    %v2291 = vadd.f32 %v2257, %v2287
    %v2292 = vadd.f32 %v2258, %v2288
    %v2293 = vmul.f32 %v777, %v2245
    %v2294 = vmul.f32 %v777, %v2246
    %v2297 = vrot.slane %v2293, 1
    %v2298 = vrot.slane %v2294, 1
    %v2301 = vadd.f32 %v2261, %v2297
    %v2302 = vadd.f32 %v2262, %v2298
    %v2303 = vmul.f32 %v789, %v2245
    %v2304 = vmul.f32 %v789, %v2246
    %v2307 = vrot.slane %v2303, 2
    %v2308 = vrot.slane %v2304, 2
    %v2311 = vadd.f32 %v2271, %v2307
    %v2312 = vadd.f32 %v2272, %v2308
    %v2313 = vmul.f32 %v801, %v2245
    %v2314 = vmul.f32 %v801, %v2246
    %v2317 = vrot.slane %v2313, 2
    %v2318 = vrot.slane %v2314, 2
    %v2321 = vadd.f32 %v2281, %v2317
    %v2322 = vadd.f32 %v2282, %v2318
    %v2323 = vmul.f32 %v813, %v2245
    %v2324 = vmul.f32 %v813, %v2246
    %v2327 = vrot.slane %v2323, 2
    %v2328 = vrot.slane %v2324, 2
    %v2331 = vadd.f32 %v2291, %v2327
    %v2332 = vadd.f32 %v2292, %v2328
    %v2333 = vmul.f32 %v825, %v2245
    %v2334 = vmul.f32 %v825, %v2246
    %v2337 = vrot.slane %v2333, 2
    %v2338 = vrot.slane %v2334, 2
    %v2341 = vadd.f32 %v2301, %v2337
    %v2342 = vadd.f32 %v2302, %v2338
    %v2343 = vmul.f32 %v837, %v2245
    %v2344 = vmul.f32 %v837, %v2246
    %v2347 = vrot.slane %v2343, 3
    %v2348 = vrot.slane %v2344, 3
    %v2351 = vadd.f32 %v2311, %v2347
    %v2352 = vadd.f32 %v2312, %v2348
    %v2353 = vmul.f32 %v849, %v2245
    %v2354 = vmul.f32 %v849, %v2246
    %v2357 = vrot.slane %v2353, 3
    %v2358 = vrot.slane %v2354, 3
    %v2361 = vadd.f32 %v2321, %v2357
    %v2362 = vadd.f32 %v2322, %v2358
    %v2363 = vmul.f32 %v861, %v2245
    %v2364 = vmul.f32 %v861, %v2246
    %v2367 = vrot.slane %v2363, 3
    %v2368 = vrot.slane %v2364, 3
    %v2371 = vadd.f32 %v2331, %v2367
    %v2372 = vadd.f32 %v2332, %v2368
    %v2373 = vmul.f32 %v873, %v2245
    %v2374 = vmul.f32 %v873, %v2246
    %v2377 = vrot.slane %v2373, 3
    %v2378 = vrot.slane %v2374, 3
    %v2381 = vadd.f32 %v2341, %v2377
    %v2382 = vadd.f32 %v2342, %v2378
    %v2383 = vmul.f32 %v885, %v1813
    %v2384 = vmul.f32 %v885, %v1814
    %v2385 = vadd.f32 %v2351, %v2383
    %v2386 = vadd.f32 %v2352, %v2384
    %v2387 = vmul.f32 %v891, %v1813
    %v2388 = vmul.f32 %v891, %v1814
    %v2389 = vadd.f32 %v2361, %v2387
    %v2390 = vadd.f32 %v2362, %v2388
    %v2391 = vmul.f32 %v897, %v1813
    %v2392 = vmul.f32 %v897, %v1814
    %v2393 = vadd.f32 %v2371, %v2391
    %v2394 = vadd.f32 %v2372, %v2392
    %v2395 = vmul.f32 %v903, %v1813
    %v2396 = vmul.f32 %v903, %v1814
    %v2397 = vadd.f32 %v2381, %v2395
    %v2398 = vadd.f32 %v2382, %v2396
    %v2399 = vmul.f32 %v909, %v1813
    %v2400 = vmul.f32 %v909, %v1814
    %v2403 = vrot.slane %v2399, 1
    %v2404 = vrot.slane %v2400, 1
    %v2407 = vadd.f32 %v2385, %v2403
    %v2408 = vadd.f32 %v2386, %v2404
    %v2409 = vmul.f32 %v921, %v1813
    %v2410 = vmul.f32 %v921, %v1814
    %v2413 = vrot.slane %v2409, 1
    %v2414 = vrot.slane %v2410, 1
    %v2417 = vadd.f32 %v2389, %v2413
    %v2418 = vadd.f32 %v2390, %v2414
    %v2419 = vmul.f32 %v933, %v1813
    %v2420 = vmul.f32 %v933, %v1814
    %v2423 = vrot.slane %v2419, 1
    %v2424 = vrot.slane %v2420, 1
    %v2427 = vadd.f32 %v2393, %v2423
    %v2428 = vadd.f32 %v2394, %v2424
    %v2429 = vmul.f32 %v945, %v1813
    %v2430 = vmul.f32 %v945, %v1814
    %v2433 = vrot.slane %v2429, 1
    %v2434 = vrot.slane %v2430, 1
    %v2437 = vadd.f32 %v2397, %v2433
    %v2438 = vadd.f32 %v2398, %v2434
    %v2439 = vmul.f32 %v957, %v1813
    %v2440 = vmul.f32 %v957, %v1814
    %v2443 = vrot.slane %v2439, 2
    %v2444 = vrot.slane %v2440, 2
    %v2447 = vadd.f32 %v2407, %v2443
    %v2448 = vadd.f32 %v2408, %v2444
    %v2449 = vmul.f32 %v969, %v1813
    %v2450 = vmul.f32 %v969, %v1814
    %v2453 = vrot.slane %v2449, 2
    %v2454 = vrot.slane %v2450, 2
    %v2457 = vadd.f32 %v2417, %v2453
    %v2458 = vadd.f32 %v2418, %v2454
    %v2459 = vmul.f32 %v981, %v1813
    %v2460 = vmul.f32 %v981, %v1814
    %v2463 = vrot.slane %v2459, 2
    %v2464 = vrot.slane %v2460, 2
    %v2467 = vadd.f32 %v2427, %v2463
    %v2468 = vadd.f32 %v2428, %v2464
    %v2469 = vmul.f32 %v993, %v1813
    %v2470 = vmul.f32 %v993, %v1814
    %v2473 = vrot.slane %v2469, 2
    %v2474 = vrot.slane %v2470, 2
    %v2477 = vadd.f32 %v2437, %v2473
    %v2478 = vadd.f32 %v2438, %v2474
    %v2479 = vmul.f32 %v1005, %v1813
    %v2480 = vmul.f32 %v1005, %v1814
    %v2483 = vrot.slane %v2479, 3
    %v2484 = vrot.slane %v2480, 3
    %v2487 = vadd.f32 %v2447, %v2483
    %v2488 = vadd.f32 %v2448, %v2484
    %v2489 = vmul.f32 %v1017, %v1813
    %v2490 = vmul.f32 %v1017, %v1814
    %v2493 = vrot.slane %v2489, 3
    %v2494 = vrot.slane %v2490, 3
    %v2497 = vadd.f32 %v2457, %v2493
    %v2498 = vadd.f32 %v2458, %v2494
    %v2499 = vmul.f32 %v1029, %v1813
    %v2500 = vmul.f32 %v1029, %v1814
    %v2503 = vrot.slane %v2499, 3
    %v2504 = vrot.slane %v2500, 3
    %v2507 = vadd.f32 %v2467, %v2503
    %v2508 = vadd.f32 %v2468, %v2504
    %v2509 = vmul.f32 %v1041, %v1813
    %v2510 = vmul.f32 %v1041, %v1814
    %v2513 = vrot.slane %v2509, 3
    %v2514 = vrot.slane %v2510, 3
    %v2517 = vadd.f32 %v2477, %v2513
    %v2518 = vadd.f32 %v2478, %v2514
    %2519 = vrot.lane.b32.xlu0 %v1813, 127
    %v2520 = vpop.permute.xlu0 %2519
    %2521 = vrot.lane.b32.xlu0 %v1814, 127
    %v2522 = vpop.permute.xlu0 %2521
    %v2523 = vsel %vm1056, %v2520, %v2522
    %v2524 = vsel %vm1056, %v2522, %v2520
    %v2525 = vmul.f32 %v2523, %v1065
    %v2526 = vmul.f32 %v2524, %v1069
    %v2527 = vmul.f32 %v1075, %v2525
    %v2528 = vmul.f32 %v1075, %v2526
    %v2529 = vadd.f32 %v2487, %v2527
    %v2530 = vadd.f32 %v2488, %v2528
    %v2531 = vmul.f32 %v1081, %v2525
    %v2532 = vmul.f32 %v1081, %v2526
    %v2533 = vadd.f32 %v2497, %v2531
    %v2534 = vadd.f32 %v2498, %v2532
    %v2535 = vmul.f32 %v1087, %v2525
    %v2536 = vmul.f32 %v1087, %v2526
    %v2537 = vadd.f32 %v2507, %v2535
    %v2538 = vadd.f32 %v2508, %v2536
    %v2539 = vmul.f32 %v1093, %v2525
    %v2540 = vmul.f32 %v1093, %v2526
    %v2541 = vadd.f32 %v2517, %v2539
    %v2542 = vadd.f32 %v2518, %v2540
    %v2543 = vmul.f32 %v1099, %v2525
    %v2544 = vmul.f32 %v1099, %v2526
    %v2547 = vrot.slane %v2543, 1
    %v2548 = vrot.slane %v2544, 1
    %v2551 = vadd.f32 %v2529, %v2547
    %v2552 = vadd.f32 %v2530, %v2548
    %v2553 = vmul.f32 %v1111, %v2525
    %v2554 = vmul.f32 %v1111, %v2526
    %v2557 = vrot.slane %v2553, 1
    %v2558 = vrot.slane %v2554, 1
    %v2561 = vadd.f32 %v2533, %v2557
    %v2562 = vadd.f32 %v2534, %v2558
    %v2563 = vmul.f32 %v1123, %v2525
    %v2564 = vmul.f32 %v1123, %v2526
    %v2567 = vrot.slane %v2563, 1
    %v2568 = vrot.slane %v2564, 1
    %v2571 = vadd.f32 %v2537, %v2567
    %v2572 = vadd.f32 %v2538, %v2568
    %v2573 = vmul.f32 %v1135, %v2525
    %v2574 = vmul.f32 %v1135, %v2526
    %v2577 = vrot.slane %v2573, 1
    %v2578 = vrot.slane %v2574, 1
    %v2581 = vadd.f32 %v2541, %v2577
    %v2582 = vadd.f32 %v2542, %v2578
    %v2583 = vmul.f32 %v1147, %v2525
    %v2584 = vmul.f32 %v1147, %v2526
    %v2587 = vrot.slane %v2583, 2
    %v2588 = vrot.slane %v2584, 2
    %v2591 = vadd.f32 %v2551, %v2587
    %v2592 = vadd.f32 %v2552, %v2588
    %v2593 = vmul.f32 %v1159, %v2525
    %v2594 = vmul.f32 %v1159, %v2526
    %v2597 = vrot.slane %v2593, 2
    %v2598 = vrot.slane %v2594, 2
    %v2601 = vadd.f32 %v2561, %v2597
    %v2602 = vadd.f32 %v2562, %v2598
    %v2603 = vmul.f32 %v1171, %v2525
    %v2604 = vmul.f32 %v1171, %v2526
    %v2607 = vrot.slane %v2603, 2
    %v2608 = vrot.slane %v2604, 2
    %v2611 = vadd.f32 %v2571, %v2607
    %v2612 = vadd.f32 %v2572, %v2608
    %v2613 = vmul.f32 %v1183, %v2525
    %v2614 = vmul.f32 %v1183, %v2526
    %v2617 = vrot.slane %v2613, 2
    %v2618 = vrot.slane %v2614, 2
    %v2621 = vadd.f32 %v2581, %v2617
    %v2622 = vadd.f32 %v2582, %v2618
    %v2623 = vmul.f32 %v1195, %v2525
    %v2624 = vmul.f32 %v1195, %v2526
    %v2627 = vrot.slane %v2623, 3
    %v2628 = vrot.slane %v2624, 3
    %v2631 = vadd.f32 %v2591, %v2627
    %v2632 = vadd.f32 %v2592, %v2628
    %v2633 = vmul.f32 %v1207, %v2525
    %v2634 = vmul.f32 %v1207, %v2526
    %v2637 = vrot.slane %v2633, 3
    %v2638 = vrot.slane %v2634, 3
    %v2641 = vadd.f32 %v2601, %v2637
    %v2642 = vadd.f32 %v2602, %v2638
    %v2643 = vmul.f32 %v1219, %v2525
    %v2644 = vmul.f32 %v1219, %v2526
    %v2647 = vrot.slane %v2643, 3
    %v2648 = vrot.slane %v2644, 3
    %v2651 = vadd.f32 %v2611, %v2647
    %v2652 = vadd.f32 %v2612, %v2648
    %v2653 = vmul.f32 %v1231, %v2525
    %v2654 = vmul.f32 %v1231, %v2526
    %v2657 = vrot.slane %v2653, 3
    %v2658 = vrot.slane %v2654, 3
    %v2661 = vadd.f32 %v2621, %v2657
    %v2662 = vadd.f32 %v2622, %v2658
    %2663 = vrot.lane.b32.xlu0 %v1813, 113
    %v2664 = vpop.permute.xlu0 %2663
    %2665 = vrot.lane.b32.xlu0 %v1814, 113
    %v2666 = vpop.permute.xlu0 %2665
    %v2667 = vsel %vm1246, %v2664, %v2666
    %v2668 = vsel %vm1246, %v2666, %v2664
    %v2669 = vmul.f32 %v2667, %v1255
    %v2670 = vmul.f32 %v2668, %v1259
    %v2671 = vmul.f32 %v1265, %v2669
    %v2672 = vmul.f32 %v1265, %v2670
    %v2673 = vadd.f32 %v2631, %v2671
    %v2674 = vadd.f32 %v2632, %v2672
    %v2675 = vmul.f32 %v1271, %v2669
    %v2676 = vmul.f32 %v1271, %v2670
    %v2677 = vadd.f32 %v2641, %v2675
    %v2678 = vadd.f32 %v2642, %v2676
    %v2679 = vmul.f32 %v1277, %v2669
    %v2680 = vmul.f32 %v1277, %v2670
    %v2681 = vadd.f32 %v2651, %v2679
    %v2682 = vadd.f32 %v2652, %v2680
    %v2683 = vmul.f32 %v1283, %v2669
    %v2684 = vmul.f32 %v1283, %v2670
    %v2685 = vadd.f32 %v2661, %v2683
    %v2686 = vadd.f32 %v2662, %v2684
    %v2687 = vmul.f32 %v1289, %v2669
    %v2688 = vmul.f32 %v1289, %v2670
    %v2691 = vrot.slane %v2687, 1
    %v2692 = vrot.slane %v2688, 1
    %v2695 = vadd.f32 %v2673, %v2691
    %v2696 = vadd.f32 %v2674, %v2692
    %v2697 = vmul.f32 %v1301, %v2669
    %v2698 = vmul.f32 %v1301, %v2670
    %v2701 = vrot.slane %v2697, 1
    %v2702 = vrot.slane %v2698, 1
    %v2705 = vadd.f32 %v2677, %v2701
    %v2706 = vadd.f32 %v2678, %v2702
    %v2707 = vmul.f32 %v1313, %v2669
    %v2708 = vmul.f32 %v1313, %v2670
    %v2711 = vrot.slane %v2707, 1
    %v2712 = vrot.slane %v2708, 1
    %v2715 = vadd.f32 %v2681, %v2711
    %v2716 = vadd.f32 %v2682, %v2712
    %v2717 = vmul.f32 %v1325, %v2669
    %v2718 = vmul.f32 %v1325, %v2670
    %v2721 = vrot.slane %v2717, 1
    %v2722 = vrot.slane %v2718, 1
    %v2725 = vadd.f32 %v2685, %v2721
    %v2726 = vadd.f32 %v2686, %v2722
    %v2727 = vmul.f32 %v1337, %v2669
    %v2728 = vmul.f32 %v1337, %v2670
    %v2731 = vrot.slane %v2727, 2
    %v2732 = vrot.slane %v2728, 2
    %v2735 = vadd.f32 %v2695, %v2731
    %v2736 = vadd.f32 %v2696, %v2732
    %v2737 = vmul.f32 %v1349, %v2669
    %v2738 = vmul.f32 %v1349, %v2670
    %v2741 = vrot.slane %v2737, 2
    %v2742 = vrot.slane %v2738, 2
    %v2745 = vadd.f32 %v2705, %v2741
    %v2746 = vadd.f32 %v2706, %v2742
    %v2747 = vmul.f32 %v1361, %v2669
    %v2748 = vmul.f32 %v1361, %v2670
    %v2751 = vrot.slane %v2747, 2
    %v2752 = vrot.slane %v2748, 2
    %v2755 = vadd.f32 %v2715, %v2751
    %v2756 = vadd.f32 %v2716, %v2752
    %v2757 = vmul.f32 %v1373, %v2669
    %v2758 = vmul.f32 %v1373, %v2670
    %v2761 = vrot.slane %v2757, 2
    %v2762 = vrot.slane %v2758, 2
    %v2765 = vadd.f32 %v2725, %v2761
    %v2766 = vadd.f32 %v2726, %v2762
    %v2767 = vmul.f32 %v1385, %v2669
    %v2768 = vmul.f32 %v1385, %v2670
    %v2771 = vrot.slane %v2767, 3
    %v2772 = vrot.slane %v2768, 3
    %v2775 = vadd.f32 %v2735, %v2771
    %v2776 = vadd.f32 %v2736, %v2772
    %v2777 = vmul.f32 %v1397, %v2669
    %v2778 = vmul.f32 %v1397, %v2670
    %v2781 = vrot.slane %v2777, 3
    %v2782 = vrot.slane %v2778, 3
    %v2785 = vadd.f32 %v2745, %v2781
    %v2786 = vadd.f32 %v2746, %v2782
    %v2787 = vmul.f32 %v1409, %v2669
    %v2788 = vmul.f32 %v1409, %v2670
    %v2791 = vrot.slane %v2787, 3
    %v2792 = vrot.slane %v2788, 3
    %v2795 = vadd.f32 %v2755, %v2791
    %v2796 = vadd.f32 %v2756, %v2792
    %v2797 = vmul.f32 %v1421, %v2669
    %v2798 = vmul.f32 %v1421, %v2670
    %v2801 = vrot.slane %v2797, 3
    %v2802 = vrot.slane %v2798, 3
    %v2805 = vadd.f32 %v2765, %v2801
    %v2806 = vadd.f32 %v2766, %v2802
    %2807 = vrot.lane.b32.xlu0 %v1813, 112
    %v2808 = vpop.permute.xlu0 %2807
    %2809 = vrot.lane.b32.xlu0 %v1814, 112
    %v2810 = vpop.permute.xlu0 %2809
    %v2811 = vsel %vm1436, %v2808, %v2810
    %v2812 = vsel %vm1436, %v2810, %v2808
    %v2813 = vmul.f32 %v2811, %v1445
    %v2814 = vmul.f32 %v2812, %v1449
    %v2815 = vmul.f32 %v1455, %v2813
    %v2816 = vmul.f32 %v1455, %v2814
    %v2817 = vadd.f32 %v2775, %v2815
    %v2818 = vadd.f32 %v2776, %v2816
    %v2819 = vmul.f32 %v1461, %v2813
    %v2820 = vmul.f32 %v1461, %v2814
    %v2821 = vadd.f32 %v2785, %v2819
    %v2822 = vadd.f32 %v2786, %v2820
    %v2823 = vmul.f32 %v1467, %v2813
    %v2824 = vmul.f32 %v1467, %v2814
    %v2825 = vadd.f32 %v2795, %v2823
    %v2826 = vadd.f32 %v2796, %v2824
    %v2827 = vmul.f32 %v1473, %v2813
    %v2828 = vmul.f32 %v1473, %v2814
    %v2829 = vadd.f32 %v2805, %v2827
    %v2830 = vadd.f32 %v2806, %v2828
    %v2831 = vmul.f32 %v1479, %v2813
    %v2832 = vmul.f32 %v1479, %v2814
    %v2835 = vrot.slane %v2831, 1
    %v2836 = vrot.slane %v2832, 1
    %v2839 = vadd.f32 %v2817, %v2835
    %v2840 = vadd.f32 %v2818, %v2836
    %v2841 = vmul.f32 %v1491, %v2813
    %v2842 = vmul.f32 %v1491, %v2814
    %v2845 = vrot.slane %v2841, 1
    %v2846 = vrot.slane %v2842, 1
    %v2849 = vadd.f32 %v2821, %v2845
    %v2850 = vadd.f32 %v2822, %v2846
    %v2851 = vmul.f32 %v1503, %v2813
    %v2852 = vmul.f32 %v1503, %v2814
    %v2855 = vrot.slane %v2851, 1
    %v2856 = vrot.slane %v2852, 1
    %v2859 = vadd.f32 %v2825, %v2855
    %v2860 = vadd.f32 %v2826, %v2856
    %v2861 = vmul.f32 %v1515, %v2813
    %v2862 = vmul.f32 %v1515, %v2814
    %v2865 = vrot.slane %v2861, 1
    %v2866 = vrot.slane %v2862, 1
    %v2869 = vadd.f32 %v2829, %v2865
    %v2870 = vadd.f32 %v2830, %v2866
    %v2871 = vmul.f32 %v1527, %v2813
    %v2872 = vmul.f32 %v1527, %v2814
    %v2875 = vrot.slane %v2871, 2
    %v2876 = vrot.slane %v2872, 2
    %v2879 = vadd.f32 %v2839, %v2875
    %v2880 = vadd.f32 %v2840, %v2876
    %v2881 = vmul.f32 %v1539, %v2813
    %v2882 = vmul.f32 %v1539, %v2814
    %v2885 = vrot.slane %v2881, 2
    %v2886 = vrot.slane %v2882, 2
    %v2889 = vadd.f32 %v2849, %v2885
    %v2890 = vadd.f32 %v2850, %v2886
    %v2891 = vmul.f32 %v1551, %v2813
    %v2892 = vmul.f32 %v1551, %v2814
    %v2895 = vrot.slane %v2891, 2
    %v2896 = vrot.slane %v2892, 2
    %v2899 = vadd.f32 %v2859, %v2895
    %v2900 = vadd.f32 %v2860, %v2896
    %v2901 = vmul.f32 %v1563, %v2813
    %v2902 = vmul.f32 %v1563, %v2814
    %v2905 = vrot.slane %v2901, 2
    %v2906 = vrot.slane %v2902, 2
    %v2909 = vadd.f32 %v2869, %v2905
    %v2910 = vadd.f32 %v2870, %v2906
    %v2911 = vmul.f32 %v1575, %v2813
    %v2912 = vmul.f32 %v1575, %v2814
    %v2915 = vrot.slane %v2911, 3
    %v2916 = vrot.slane %v2912, 3
    %v2919 = vadd.f32 %v2879, %v2915
    %v2920 = vadd.f32 %v2880, %v2916
    %v2921 = vmul.f32 %v1587, %v2813
    %v2922 = vmul.f32 %v1587, %v2814
    %v2925 = vrot.slane %v2921, 3
    %v2926 = vrot.slane %v2922, 3
    %v2929 = vadd.f32 %v2889, %v2925
    %v2930 = vadd.f32 %v2890, %v2926
    %v2931 = vmul.f32 %v1599, %v2813
    %v2932 = vmul.f32 %v1599, %v2814
    %v2935 = vrot.slane %v2931, 3
    %v2936 = vrot.slane %v2932, 3
    %v2939 = vadd.f32 %v2899, %v2935
    %v2940 = vadd.f32 %v2900, %v2936
    %v2941 = vmul.f32 %v1611, %v2813
    %v2942 = vmul.f32 %v1611, %v2814
    %v2945 = vrot.slane %v2941, 3
    %v2946 = vrot.slane %v2942, 3
    %v2949 = vadd.f32 %v2909, %v2945
    %v2950 = vadd.f32 %v2910, %v2946
    %2951 = vrot.lane.b32.xlu0 %v1813, 111
    %v2952 = vpop.permute.xlu0 %2951
    %2953 = vrot.lane.b32.xlu0 %v1814, 111
    %v2954 = vpop.permute.xlu0 %2953
    %v2955 = vsel %vm1626, %v2952, %v2954
    %v2956 = vsel %vm1626, %v2954, %v2952
    %v2957 = vmul.f32 %v2955, %v1635
    %v2958 = vmul.f32 %v2956, %v1639
    %v2959 = vmul.f32 %v1645, %v2957
    %v2960 = vmul.f32 %v1645, %v2958
    %v2961 = vadd.f32 %v2919, %v2959
    %v2962 = vadd.f32 %v2920, %v2960
    %v2963 = vmul.f32 %v1651, %v2957
    %v2964 = vmul.f32 %v1651, %v2958
    %v2965 = vadd.f32 %v2929, %v2963
    %v2966 = vadd.f32 %v2930, %v2964
    %v2967 = vmul.f32 %v1657, %v2957
    %v2968 = vmul.f32 %v1657, %v2958
    %v2969 = vadd.f32 %v2939, %v2967
    %v2970 = vadd.f32 %v2940, %v2968
    %v2971 = vmul.f32 %v1663, %v2957
    %v2972 = vmul.f32 %v1663, %v2958
    %v2973 = vadd.f32 %v2949, %v2971
    %v2974 = vadd.f32 %v2950, %v2972
    %v2975 = vmul.f32 %v1669, %v2957
    %v2976 = vmul.f32 %v1669, %v2958
    %v2979 = vrot.slane %v2975, 1
    %v2980 = vrot.slane %v2976, 1
    %v2983 = vadd.f32 %v2961, %v2979
    %v2984 = vadd.f32 %v2962, %v2980
    %v2985 = vmul.f32 %v1681, %v2957
    %v2986 = vmul.f32 %v1681, %v2958
    %v2989 = vrot.slane %v2985, 1
    %v2990 = vrot.slane %v2986, 1
    %v2993 = vadd.f32 %v2965, %v2989
    %v2994 = vadd.f32 %v2966, %v2990
    %v2995 = vmul.f32 %v1693, %v2957
    %v2996 = vmul.f32 %v1693, %v2958
    %v2999 = vrot.slane %v2995, 1
    %v3000 = vrot.slane %v2996, 1
    %v3003 = vadd.f32 %v2969, %v2999
    %v3004 = vadd.f32 %v2970, %v3000
    %v3005 = vmul.f32 %v1705, %v2957
    %v3006 = vmul.f32 %v1705, %v2958
    %v3009 = vrot.slane %v3005, 1
    %v3010 = vrot.slane %v3006, 1
    %v3013 = vadd.f32 %v2973, %v3009
    %v3014 = vadd.f32 %v2974, %v3010
    %v3015 = vmul.f32 %v1717, %v2957
    %v3016 = vmul.f32 %v1717, %v2958
    %v3019 = vrot.slane %v3015, 2
    %v3020 = vrot.slane %v3016, 2
    %v3023 = vadd.f32 %v2983, %v3019
    %v3024 = vadd.f32 %v2984, %v3020
    %v3025 = vmul.f32 %v1729, %v2957
    %v3026 = vmul.f32 %v1729, %v2958
    %v3029 = vrot.slane %v3025, 2
    %v3030 = vrot.slane %v3026, 2
    %v3033 = vadd.f32 %v2993, %v3029
    %v3034 = vadd.f32 %v2994, %v3030
    %v3035 = vmul.f32 %v1741, %v2957
    %v3036 = vmul.f32 %v1741, %v2958
    %v3039 = vrot.slane %v3035, 2
    %v3040 = vrot.slane %v3036, 2
    %v3043 = vadd.f32 %v3003, %v3039
    %v3044 = vadd.f32 %v3004, %v3040
    %v3045 = vmul.f32 %v1753, %v2957
    %v3046 = vmul.f32 %v1753, %v2958
    %v3049 = vrot.slane %v3045, 2
    %v3050 = vrot.slane %v3046, 2
    %v3053 = vadd.f32 %v3013, %v3049
    %v3054 = vadd.f32 %v3014, %v3050
    %v3055 = vmul.f32 %v1765, %v2957
    %v3056 = vmul.f32 %v1765, %v2958
    %v3059 = vrot.slane %v3055, 3
    %v3060 = vrot.slane %v3056, 3
    %v3063 = vadd.f32 %v3023, %v3059
    %v3064 = vadd.f32 %v3024, %v3060
    %v3065 = vmul.f32 %v1777, %v2957
    %v3066 = vmul.f32 %v1777, %v2958
    %v3069 = vrot.slane %v3065, 3
    %v3070 = vrot.slane %v3066, 3
    %v3073 = vadd.f32 %v3033, %v3069
    %v3074 = vadd.f32 %v3034, %v3070
    %v3075 = vmul.f32 %v1789, %v2957
    %v3076 = vmul.f32 %v1789, %v2958
    %v3079 = vrot.slane %v3075, 3
    %v3080 = vrot.slane %v3076, 3
    %v3083 = vadd.f32 %v3043, %v3079
    %v3084 = vadd.f32 %v3044, %v3080
    %v3085 = vmul.f32 %v1801, %v2957
    %v3086 = vmul.f32 %v1801, %v2958
    %v3089 = vrot.slane %v3085, 3
    %v3090 = vrot.slane %v3086, 3
    %v3093 = vadd.f32 %v3053, %v3089
    %v3094 = vadd.f32 %v3054, %v3090
    %vm3095 = vcmask 1040384
    %v3096 = vsel %vm3095, %v1774, 0.0
    %v3097 = vsel %vm3095, %v1775, 0.0
    %v3098 = vadd.f32 %v3096, %v3097
    %3099 = vadd.xlane.f32.xlu0 %v3098
    %v3100 = vpop.xlane.xlu0 %3099
    %v3101 = vsel %vm3095, %v3063, 0.0
    %v3102 = vsel %vm3095, %v3064, 0.0
    %v3103 = vadd.f32 %v3101, %v3102
    %3104 = vadd.xlane.f32.xlu0 %v3103
    %v3105 = vpop.xlane.xlu0 %3104
    %v3106 = vadd.f32 %v3100, %v3105
    %v3107 = vmul.f32 %v3106, 0.001953125
    %v3108 = vsub.f32 %v1774, %v3107
    %v3109 = vsub.f32 %v1775, %v3107
    %v3110 = vmul.f32 %v3108, %v3108
    %v3111 = vmul.f32 %v3109, %v3109
    %v3112 = vsel %vm3095, %v3110, 0.0
    %v3113 = vsel %vm3095, %v3111, 0.0
    %v3114 = vadd.f32 %v3112, %v3113
    %3115 = vadd.xlane.f32.xlu0 %v3114
    %v3116 = vpop.xlane.xlu0 %3115
    %v3117 = vsub.f32 %v3063, %v3107
    %v3118 = vsub.f32 %v3064, %v3107
    %v3119 = vmul.f32 %v3117, %v3117
    %v3120 = vmul.f32 %v3118, %v3118
    %v3121 = vsel %vm3095, %v3119, 0.0
    %v3122 = vsel %vm3095, %v3120, 0.0
    %v3123 = vadd.f32 %v3121, %v3122
    %3124 = vadd.xlane.f32.xlu0 %v3123
    %v3125 = vpop.xlane.xlu0 %3124
    %v3126 = vadd.f32 %v3116, %v3125
    %v3127 = vmul.f32 %v3126, 0.001953125
    %s3128 = sld [smem:[#allocation10]]
    %v3129 = vadd.f32 %v3127, 1e-05
    %v3130 = vrsqrt.pop %v3129
    %v3131 = vstv %s3128
    %v3132 = vmul.f32 %v3131, %v3130
    %s3133 = sld [smem:[#allocation12]]
    %v3134 = vmul.f32 %v3107, %v3132
    %v3135 = vstv %s3133
    %v3136 = vsub.f32 %v3135, %v3134
    %v3137 = vmul.f32 %v1774, %v3132
    %v3138 = vmul.f32 %v1775, %v3132
    %v3139 = vadd.f32 %v3137, %v3136
    %v3140 = vadd.f32 %v3138, %v3136
    %v3141 = vmax.f32 %v3139, 0.0
    %v3142 = vmax.f32 %v3140, 0.0
    %v3143 = vmul.f32 %v3063, %v3132
    %v3144 = vmul.f32 %v3064, %v3132
    %v3145 = vadd.f32 %v3143, %v3136
    %v3146 = vadd.f32 %v3144, %v3136
    %v3147 = vmax.f32 %v3145, 0.0
    %v3148 = vmax.f32 %v3146, 0.0
    %v3149 = vsel %vm3095, %v1786, 0.0
    %v3150 = vsel %vm3095, %v1787, 0.0
    %v3151 = vadd.f32 %v3149, %v3150
    %3152 = vadd.xlane.f32.xlu0 %v3151
    %v3153 = vpop.xlane.xlu0 %3152
    %v3154 = vsel %vm3095, %v3073, 0.0
    %v3155 = vsel %vm3095, %v3074, 0.0
    %v3156 = vadd.f32 %v3154, %v3155
    %3157 = vadd.xlane.f32.xlu0 %v3156
    %v3158 = vpop.xlane.xlu0 %3157
    %v3159 = vadd.f32 %v3153, %v3158
    %v3160 = vmul.f32 %v3159, 0.001953125
    %v3161 = vsub.f32 %v1786, %v3160
    %v3162 = vsub.f32 %v1787, %v3160
    %v3163 = vmul.f32 %v3161, %v3161
    %v3164 = vmul.f32 %v3162, %v3162
    %v3165 = vsel %vm3095, %v3163, 0.0
    %v3166 = vsel %vm3095, %v3164, 0.0
    %v3167 = vadd.f32 %v3165, %v3166
    %3168 = vadd.xlane.f32.xlu0 %v3167
    %v3169 = vpop.xlane.xlu0 %3168
    %v3170 = vsub.f32 %v3073, %v3160
    %v3171 = vsub.f32 %v3074, %v3160
    %v3172 = vmul.f32 %v3170, %v3170
    %v3173 = vmul.f32 %v3171, %v3171
    %v3174 = vsel %vm3095, %v3172, 0.0
    %v3175 = vsel %vm3095, %v3173, 0.0
    %v3176 = vadd.f32 %v3174, %v3175
    %3177 = vadd.xlane.f32.xlu0 %v3176
    %v3178 = vpop.xlane.xlu0 %3177
    %v3179 = vadd.f32 %v3169, %v3178
    %v3180 = vmul.f32 %v3179, 0.001953125
    %s3181 = sld [smem:[#allocation10 + $0x1]]
    %v3182 = vadd.f32 %v3180, 1e-05
    %v3183 = vrsqrt.pop %v3182
    %v3184 = vstv %s3181
    %v3185 = vmul.f32 %v3184, %v3183
    %s3186 = sld [smem:[#allocation12 + $0x1]]
    %v3187 = vmul.f32 %v3160, %v3185
    %v3188 = vstv %s3186
    %v3189 = vsub.f32 %v3188, %v3187
    %v3190 = vmul.f32 %v1786, %v3185
    %v3191 = vmul.f32 %v1787, %v3185
    %v3192 = vadd.f32 %v3190, %v3189
    %v3193 = vadd.f32 %v3191, %v3189
    %v3194 = vmax.f32 %v3192, 0.0
    %v3195 = vmax.f32 %v3193, 0.0
    %v3196 = vmul.f32 %v3073, %v3185
    %v3197 = vmul.f32 %v3074, %v3185
    %v3198 = vadd.f32 %v3196, %v3189
    %v3199 = vadd.f32 %v3197, %v3189
    %v3200 = vmax.f32 %v3198, 0.0
    %v3201 = vmax.f32 %v3199, 0.0
    %v3202 = vsel %vm3095, %v1798, 0.0
    %v3203 = vsel %vm3095, %v1799, 0.0
    %v3204 = vadd.f32 %v3202, %v3203
    %3205 = vadd.xlane.f32.xlu0 %v3204
    %v3206 = vpop.xlane.xlu0 %3205
    %v3207 = vsel %vm3095, %v3083, 0.0
    %v3208 = vsel %vm3095, %v3084, 0.0
    %v3209 = vadd.f32 %v3207, %v3208
    %3210 = vadd.xlane.f32.xlu0 %v3209
    %v3211 = vpop.xlane.xlu0 %3210
    %v3212 = vadd.f32 %v3206, %v3211
    %v3213 = vmul.f32 %v3212, 0.001953125
    %v3214 = vsub.f32 %v1798, %v3213
    %v3215 = vsub.f32 %v1799, %v3213
    %v3216 = vmul.f32 %v3214, %v3214
    %v3217 = vmul.f32 %v3215, %v3215
    %v3218 = vsel %vm3095, %v3216, 0.0
    %v3219 = vsel %vm3095, %v3217, 0.0
    %v3220 = vadd.f32 %v3218, %v3219
    %3221 = vadd.xlane.f32.xlu0 %v3220
    %v3222 = vpop.xlane.xlu0 %3221
    %v3223 = vsub.f32 %v3083, %v3213
    %v3224 = vsub.f32 %v3084, %v3213
    %v3225 = vmul.f32 %v3223, %v3223
    %v3226 = vmul.f32 %v3224, %v3224
    %v3227 = vsel %vm3095, %v3225, 0.0
    %v3228 = vsel %vm3095, %v3226, 0.0
    %v3229 = vadd.f32 %v3227, %v3228
    %3230 = vadd.xlane.f32.xlu0 %v3229
    %v3231 = vpop.xlane.xlu0 %3230
    %v3232 = vadd.f32 %v3222, %v3231
    %v3233 = vmul.f32 %v3232, 0.001953125
    %s3234 = sld [smem:[#allocation10 + $0x2]]
    %v3235 = vadd.f32 %v3233, 1e-05
    %v3236 = vrsqrt.pop %v3235
    %v3237 = vstv %s3234
    %v3238 = vmul.f32 %v3237, %v3236
    %s3239 = sld [smem:[#allocation12 + $0x2]]
    %v3240 = vmul.f32 %v3213, %v3238
    %v3241 = vstv %s3239
    %v3242 = vsub.f32 %v3241, %v3240
    %v3243 = vmul.f32 %v1798, %v3238
    %v3244 = vmul.f32 %v1799, %v3238
    %v3245 = vadd.f32 %v3243, %v3242
    %v3246 = vadd.f32 %v3244, %v3242
    %v3247 = vmax.f32 %v3245, 0.0
    %v3248 = vmax.f32 %v3246, 0.0
    %v3249 = vmul.f32 %v3083, %v3238
    %v3250 = vmul.f32 %v3084, %v3238
    %v3251 = vadd.f32 %v3249, %v3242
    %v3252 = vadd.f32 %v3250, %v3242
    %v3253 = vmax.f32 %v3251, 0.0
    %v3254 = vmax.f32 %v3252, 0.0
    %v3255 = vsel %vm3095, %v1810, 0.0
    %v3256 = vsel %vm3095, %v1811, 0.0
    %v3257 = vadd.f32 %v3255, %v3256
    %3258 = vadd.xlane.f32.xlu0 %v3257
    %v3259 = vpop.xlane.xlu0 %3258
    %v3260 = vsel %vm3095, %v3093, 0.0
    %v3261 = vsel %vm3095, %v3094, 0.0
    %v3262 = vadd.f32 %v3260, %v3261
    %3263 = vadd.xlane.f32.xlu0 %v3262
    %v3264 = vpop.xlane.xlu0 %3263
    %v3265 = vadd.f32 %v3259, %v3264
    %v3266 = vmul.f32 %v3265, 0.001953125
    %v3267 = vsub.f32 %v1810, %v3266
    %v3268 = vsub.f32 %v1811, %v3266
    %v3269 = vmul.f32 %v3267, %v3267
    %v3270 = vmul.f32 %v3268, %v3268
    %v3271 = vsel %vm3095, %v3269, 0.0
    %v3272 = vsel %vm3095, %v3270, 0.0
    %v3273 = vadd.f32 %v3271, %v3272
    %3274 = vadd.xlane.f32.xlu0 %v3273
    %v3275 = vpop.xlane.xlu0 %3274
    %v3276 = vsub.f32 %v3093, %v3266
    %v3277 = vsub.f32 %v3094, %v3266
    %v3278 = vmul.f32 %v3276, %v3276
    %v3279 = vmul.f32 %v3277, %v3277
    %v3280 = vsel %vm3095, %v3278, 0.0
    %v3281 = vsel %vm3095, %v3279, 0.0
    %v3282 = vadd.f32 %v3280, %v3281
    %3283 = vadd.xlane.f32.xlu0 %v3282
    %v3284 = vpop.xlane.xlu0 %3283
    %v3285 = vadd.f32 %v3275, %v3284
    %v3286 = vmul.f32 %v3285, 0.001953125
    %s3287 = sld [smem:[#allocation10 + $0x3]]
    %v3288 = vadd.f32 %v3286, 1e-05
    %v3289 = vrsqrt.pop %v3288
    %v3290 = vstv %s3287
    %v3291 = vmul.f32 %v3290, %v3289
    %s3292 = sld [smem:[#allocation12 + $0x3]]
    %v3293 = vmul.f32 %v3266, %v3291
    %v3294 = vstv %s3292
    %v3295 = vsub.f32 %v3294, %v3293
    %v3296 = vmul.f32 %v1810, %v3291
    %v3297 = vmul.f32 %v1811, %v3291
    %v3298 = vadd.f32 %v3296, %v3295
    %v3299 = vadd.f32 %v3297, %v3295
    %v3300 = vmax.f32 %v3298, 0.0
    %v3301 = vmax.f32 %v3299, 0.0
    %v3302 = vmul.f32 %v3093, %v3291
    %v3303 = vmul.f32 %v3094, %v3291
    %v3304 = vadd.f32 %v3302, %v3295
    %v3305 = vadd.f32 %v3303, %v3295
    %v3306 = vmax.f32 %v3304, 0.0
    %v3307 = vmax.f32 %v3305, 0.0
    %3308 = vst [vmem:[#allocation2] sm:$0xf0] 0.0
    %3309 = vst [vmem:[#allocation2 + $0x8] sm:$0xf0] 0.0
    %v3312 = vcombine.low %v3141, %v3142
    %v3314 = vunpack.c.l.s4 1966171168
    %v3315 = vunpack.c.0.s8 %v3314
    %v3316 = vlaneseq
    %v3317 = vshrl.u32 %v3316, 7
    %v3318 = vsub.s32 %v3315, %v3317
    %v3319 = vrot.slane %v3312, %v3318
    %v3321 = vunpack.c.l.s4 1966171168
    %v3322 = vunpack.c.0.s8 %v3321
    %v3323 = vlaneseq
    %v3324 = vshrl.u32 %v3323, 7
    %v3325 = vsub.s32 %v3322, %v3324
    %v3326 = vrot.slane %v3319, %v3325
    %v3328 = vlaneseq
    %vm3329 = vcmp.ge.s32.totalorder %v3328, 0
    %vm3330 = vcmp.lt.s32.totalorder %v3328, 256
    %vm3331 = vmand %vm3329, %vm3330
    %3332 = vst.msk [vmem:[#allocation2] ss:$8 sm:$0x3] %vm3331, %v3326
    %3333 = vst.msk [vmem:[#allocation2] ss:$8 sm:$0x0] %vm3331, %v3326
    %v3336 = vcombine.low %v3194, %v3195
    %v3338 = vunpack.c.l.s4 1966171168
    %v3339 = vunpack.c.0.s8 %v3338
    %v3340 = vlaneseq
    %v3341 = vshrl.u32 %v3340, 7
    %v3342 = vsub.s32 %v3339, %v3341
    %v3343 = vrot.slane %v3336, %v3342
    %v3345 = vunpack.c.l.s4 1966171168
    %v3346 = vunpack.c.0.s8 %v3345
    %v3347 = vlaneseq
    %v3348 = vshrl.u32 %v3347, 7
    %v3349 = vsub.s32 %v3346, %v3348
    %v3350 = vrot.slane %v3343, %v3349
    %s3352 = scalar_lea.vmem [#allocation2], 1
    %3353 = vst.msk [vmem:[%s3352] ss:$8 sm:$0x3] %vm3331, %v3350
    %3354 = vst.msk [vmem:[%s3352] ss:$8 sm:$0x0] %vm3331, %v3350
    %v3357 = vcombine.low %v3247, %v3248
    %v3359 = vunpack.c.l.s4 1966171168
    %v3360 = vunpack.c.0.s8 %v3359
    %v3361 = vlaneseq
    %v3362 = vshrl.u32 %v3361, 7
    %v3363 = vsub.s32 %v3360, %v3362
    %v3364 = vrot.slane %v3357, %v3363
    %v3366 = vunpack.c.l.s4 1966171168
    %v3367 = vunpack.c.0.s8 %v3366
    %v3368 = vlaneseq
    %v3369 = vshrl.u32 %v3368, 7
    %v3370 = vsub.s32 %v3367, %v3369
    %v3371 = vrot.slane %v3364, %v3370
    %s3373 = scalar_lea.vmem [#allocation2], 2
    %3374 = vst.msk [vmem:[%s3373] ss:$8 sm:$0x3] %vm3331, %v3371
    %3375 = vst.msk [vmem:[%s3373] ss:$8 sm:$0x0] %vm3331, %v3371
    %v3378 = vcombine.low %v3300, %v3301
    %v3380 = vunpack.c.l.s4 1966171168
    %v3381 = vunpack.c.0.s8 %v3380
    %v3382 = vlaneseq
    %v3383 = vshrl.u32 %v3382, 7
    %v3384 = vsub.s32 %v3381, %v3383
    %v3385 = vrot.slane %v3378, %v3384
    %v3387 = vunpack.c.l.s4 1966171168
    %v3388 = vunpack.c.0.s8 %v3387
    %v3389 = vlaneseq
    %v3390 = vshrl.u32 %v3389, 7
    %v3391 = vsub.s32 %v3388, %v3390
    %v3392 = vrot.slane %v3385, %v3391
    %s3394 = scalar_lea.vmem [#allocation2], 3
    %3395 = vst.msk [vmem:[%s3394] ss:$8 sm:$0x3] %vm3331, %v3392
    %3396 = vst.msk [vmem:[%s3394] ss:$8 sm:$0x0] %vm3331, %v3392
    %v3397 = vld [vmem:[#allocation2] sm:$0xff]
    %v3398 = vld [vmem:[#allocation2 + $0x8] sm:$0xff]
    %3399 = vrot.lane.b32.xlu0 %v3397, 17
    %v3400 = vpop.permute.xlu0 %3399
    %3401 = vrot.lane.b32.xlu0 %v3398, 17
    %v3402 = vpop.permute.xlu0 %3401
    %v3403 = vsel %vm137, %v3400, %v3402
    %v3404 = vsel %vm137, %v3402, %v3400
    %v3405 = vld [vmem:[#allocation7] sm:$0x3]
    %v3407 = vlaneseq
    %v3408 = vshrl.u32 %v3407, 7
    %v3409 = vsub.s32 0, %v3408
    %v3410 = vrot.slane %v3405, %v3409
    %v3411 = vlaneseq
    %v3412 = vshrl.u32 %v3411, 7
    %v3413 = vsub.s32 1, %v3412
    %v3414 = vrot.slane %v3405, %v3413
    %v3417 = vmul.f32 %v3404, %v3410
    %v3418 = vmul.f32 %v3403, %v3414
    %s3419 = sld [smem:[#allocation13]]
    %v3420 = vstv %s3419
    %v3421 = vmul.f32 %v3420, %v3417
    %v3422 = vmul.f32 %v3420, %v3418
    %s3423 = sld [smem:[#allocation13 + $0x1]]
    %v3424 = vstv %s3423
    %v3425 = vmul.f32 %v3424, %v3417
    %v3426 = vmul.f32 %v3424, %v3418
    %s3427 = sld [smem:[#allocation13 + $0x2]]
    %v3428 = vstv %s3427
    %v3429 = vmul.f32 %v3428, %v3417
    %v3430 = vmul.f32 %v3428, %v3418
    %s3431 = sld [smem:[#allocation13 + $0x3]]
    %v3432 = vstv %s3431
    %v3433 = vmul.f32 %v3432, %v3417
    %v3434 = vmul.f32 %v3432, %v3418
    %s3435 = sld [smem:[#allocation13 + $0x4]]
    %v3436 = vstv %s3435
    %v3437 = vmul.f32 %v3436, %v3417
    %v3438 = vmul.f32 %v3436, %v3418
    %v3441 = vrot.slane %v3437, 1
    %v3442 = vrot.slane %v3438, 1
    %v3445 = vadd.f32 %v3421, %v3441
    %v3446 = vadd.f32 %v3422, %v3442
    %s3447 = sld [smem:[#allocation13 + $0x5]]
    %v3448 = vstv %s3447
    %v3449 = vmul.f32 %v3448, %v3417
    %v3450 = vmul.f32 %v3448, %v3418
    %v3453 = vrot.slane %v3449, 1
    %v3454 = vrot.slane %v3450, 1
    %v3457 = vadd.f32 %v3425, %v3453
    %v3458 = vadd.f32 %v3426, %v3454
    %s3459 = sld [smem:[#allocation13 + $0x6]]
    %v3460 = vstv %s3459
    %v3461 = vmul.f32 %v3460, %v3417
    %v3462 = vmul.f32 %v3460, %v3418
    %v3465 = vrot.slane %v3461, 1
    %v3466 = vrot.slane %v3462, 1
    %v3469 = vadd.f32 %v3429, %v3465
    %v3470 = vadd.f32 %v3430, %v3466
    %s3471 = sld [smem:[#allocation13 + $0x7]]
    %v3472 = vstv %s3471
    %v3473 = vmul.f32 %v3472, %v3417
    %v3474 = vmul.f32 %v3472, %v3418
    %v3477 = vrot.slane %v3473, 1
    %v3478 = vrot.slane %v3474, 1
    %v3481 = vadd.f32 %v3433, %v3477
    %v3482 = vadd.f32 %v3434, %v3478
    %s3483 = sld [smem:[#allocation13 + $0x8]]
    %v3484 = vstv %s3483
    %v3485 = vmul.f32 %v3484, %v3417
    %v3486 = vmul.f32 %v3484, %v3418
    %v3489 = vrot.slane %v3485, 2
    %v3490 = vrot.slane %v3486, 2
    %v3493 = vadd.f32 %v3445, %v3489
    %v3494 = vadd.f32 %v3446, %v3490
    %s3495 = sld [smem:[#allocation13 + $0x9]]
    %v3496 = vstv %s3495
    %v3497 = vmul.f32 %v3496, %v3417
    %v3498 = vmul.f32 %v3496, %v3418
    %v3501 = vrot.slane %v3497, 2
    %v3502 = vrot.slane %v3498, 2
    %v3505 = vadd.f32 %v3457, %v3501
    %v3506 = vadd.f32 %v3458, %v3502
    %s3507 = sld [smem:[#allocation13 + $0xa]]
    %v3508 = vstv %s3507
    %v3509 = vmul.f32 %v3508, %v3417
    %v3510 = vmul.f32 %v3508, %v3418
    %v3513 = vrot.slane %v3509, 2
    %v3514 = vrot.slane %v3510, 2
    %v3517 = vadd.f32 %v3469, %v3513
    %v3518 = vadd.f32 %v3470, %v3514
    %s3519 = sld [smem:[#allocation13 + $0xb]]
    %v3520 = vstv %s3519
    %v3521 = vmul.f32 %v3520, %v3417
    %v3522 = vmul.f32 %v3520, %v3418
    %v3525 = vrot.slane %v3521, 2
    %v3526 = vrot.slane %v3522, 2
    %v3529 = vadd.f32 %v3481, %v3525
    %v3530 = vadd.f32 %v3482, %v3526
    %s3531 = sld [smem:[#allocation13 + $0xc]]
    %v3532 = vstv %s3531
    %v3533 = vmul.f32 %v3532, %v3417
    %v3534 = vmul.f32 %v3532, %v3418
    %v3537 = vrot.slane %v3533, 3
    %v3538 = vrot.slane %v3534, 3
    %v3541 = vadd.f32 %v3493, %v3537
    %v3542 = vadd.f32 %v3494, %v3538
    %s3543 = sld [smem:[#allocation13 + $0xd]]
    %v3544 = vstv %s3543
    %v3545 = vmul.f32 %v3544, %v3417
    %v3546 = vmul.f32 %v3544, %v3418
    %v3549 = vrot.slane %v3545, 3
    %v3550 = vrot.slane %v3546, 3
    %v3553 = vadd.f32 %v3505, %v3549
    %v3554 = vadd.f32 %v3506, %v3550
    %s3555 = sld [smem:[#allocation13 + $0xe]]
    %v3556 = vstv %s3555
    %v3557 = vmul.f32 %v3556, %v3417
    %v3558 = vmul.f32 %v3556, %v3418
    %v3561 = vrot.slane %v3557, 3
    %v3562 = vrot.slane %v3558, 3
    %v3565 = vadd.f32 %v3517, %v3561
    %v3566 = vadd.f32 %v3518, %v3562
    %s3567 = sld [smem:[#allocation13 + $0xf]]
    %v3568 = vstv %s3567
    %v3569 = vmul.f32 %v3568, %v3417
    %v3570 = vmul.f32 %v3568, %v3418
    %v3573 = vrot.slane %v3569, 3
    %v3574 = vrot.slane %v3570, 3
    %v3577 = vadd.f32 %v3529, %v3573
    %v3578 = vadd.f32 %v3530, %v3574
    %3579 = vrot.lane.b32.xlu0 %v3397, 16
    %v3580 = vpop.permute.xlu0 %3579
    %3581 = vrot.lane.b32.xlu0 %v3398, 16
    %v3582 = vpop.permute.xlu0 %3581
    %v3583 = vsel %vm318, %v3580, %v3582
    %v3584 = vsel %vm318, %v3582, %v3580
    %v3585 = vld [vmem:[%s321] sm:$0x3]
    %v3587 = vlaneseq
    %v3588 = vshrl.u32 %v3587, 7
    %v3589 = vsub.s32 0, %v3588
    %v3590 = vrot.slane %v3585, %v3589
    %v3591 = vlaneseq
    %v3592 = vshrl.u32 %v3591, 7
    %v3593 = vsub.s32 1, %v3592
    %v3594 = vrot.slane %v3585, %v3593
    %v3597 = vmul.f32 %v3584, %v3590
    %v3598 = vmul.f32 %v3583, %v3594
    %s3599 = sld [smem:[#allocation13 + $0x10]]
    %v3600 = vstv %s3599
    %v3601 = vmul.f32 %v3600, %v3597
    %v3602 = vmul.f32 %v3600, %v3598
    %v3603 = vadd.f32 %v3541, %v3601
    %v3604 = vadd.f32 %v3542, %v3602
    %s3605 = sld [smem:[#allocation13 + $0x11]]
    %v3606 = vstv %s3605
    %v3607 = vmul.f32 %v3606, %v3597
    %v3608 = vmul.f32 %v3606, %v3598
    %v3609 = vadd.f32 %v3553, %v3607
    %v3610 = vadd.f32 %v3554, %v3608
    %s3611 = sld [smem:[#allocation13 + $0x12]]
    %v3612 = vstv %s3611
    %v3613 = vmul.f32 %v3612, %v3597
    %v3614 = vmul.f32 %v3612, %v3598
    %v3615 = vadd.f32 %v3565, %v3613
    %v3616 = vadd.f32 %v3566, %v3614
    %s3617 = sld [smem:[#allocation13 + $0x13]]
    %v3618 = vstv %s3617
    %v3619 = vmul.f32 %v3618, %v3597
    %v3620 = vmul.f32 %v3618, %v3598
    %v3621 = vadd.f32 %v3577, %v3619
    %v3622 = vadd.f32 %v3578, %v3620
    %s3623 = sld [smem:[#allocation13 + $0x14]]
    %v3624 = vstv %s3623
    %v3625 = vmul.f32 %v3624, %v3597
    %v3626 = vmul.f32 %v3624, %v3598
    %v3629 = vrot.slane %v3625, 1
    %v3630 = vrot.slane %v3626, 1
    %v3633 = vadd.f32 %v3603, %v3629
    %v3634 = vadd.f32 %v3604, %v3630
    %s3635 = sld [smem:[#allocation13 + $0x15]]
    %v3636 = vstv %s3635
    %v3637 = vmul.f32 %v3636, %v3597
    %v3638 = vmul.f32 %v3636, %v3598
    %v3641 = vrot.slane %v3637, 1
    %v3642 = vrot.slane %v3638, 1
    %v3645 = vadd.f32 %v3609, %v3641
    %v3646 = vadd.f32 %v3610, %v3642
    %s3647 = sld [smem:[#allocation13 + $0x16]]
    %v3648 = vstv %s3647
    %v3649 = vmul.f32 %v3648, %v3597
    %v3650 = vmul.f32 %v3648, %v3598
    %v3653 = vrot.slane %v3649, 1
    %v3654 = vrot.slane %v3650, 1
    %v3657 = vadd.f32 %v3615, %v3653
    %v3658 = vadd.f32 %v3616, %v3654
    %s3659 = sld [smem:[#allocation13 + $0x17]]
    %v3660 = vstv %s3659
    %v3661 = vmul.f32 %v3660, %v3597
    %v3662 = vmul.f32 %v3660, %v3598
    %v3665 = vrot.slane %v3661, 1
    %v3666 = vrot.slane %v3662, 1
    %v3669 = vadd.f32 %v3621, %v3665
    %v3670 = vadd.f32 %v3622, %v3666
    %s3671 = sld [smem:[#allocation13 + $0x18]]
    %v3672 = vstv %s3671
    %v3673 = vmul.f32 %v3672, %v3597
    %v3674 = vmul.f32 %v3672, %v3598
    %v3677 = vrot.slane %v3673, 2
    %v3678 = vrot.slane %v3674, 2
    %v3681 = vadd.f32 %v3633, %v3677
    %v3682 = vadd.f32 %v3634, %v3678
    %s3683 = sld [smem:[#allocation13 + $0x19]]
    %v3684 = vstv %s3683
    %v3685 = vmul.f32 %v3684, %v3597
    %v3686 = vmul.f32 %v3684, %v3598
    %v3689 = vrot.slane %v3685, 2
    %v3690 = vrot.slane %v3686, 2
    %v3693 = vadd.f32 %v3645, %v3689
    %v3694 = vadd.f32 %v3646, %v3690
    %s3695 = sld [smem:[#allocation13 + $0x1a]]
    %v3696 = vstv %s3695
    %v3697 = vmul.f32 %v3696, %v3597
    %v3698 = vmul.f32 %v3696, %v3598
    %v3701 = vrot.slane %v3697, 2
    %v3702 = vrot.slane %v3698, 2
    %v3705 = vadd.f32 %v3657, %v3701
    %v3706 = vadd.f32 %v3658, %v3702
    %s3707 = sld [smem:[#allocation13 + $0x1b]]
    %v3708 = vstv %s3707
    %v3709 = vmul.f32 %v3708, %v3597
    %v3710 = vmul.f32 %v3708, %v3598
    %v3713 = vrot.slane %v3709, 2
    %v3714 = vrot.slane %v3710, 2
    %v3717 = vadd.f32 %v3669, %v3713
    %v3718 = vadd.f32 %v3670, %v3714
    %s3719 = sld [smem:[#allocation13 + $0x1c]]
    %v3720 = vstv %s3719
    %v3721 = vmul.f32 %v3720, %v3597
    %v3722 = vmul.f32 %v3720, %v3598
    %v3725 = vrot.slane %v3721, 3
    %v3726 = vrot.slane %v3722, 3
    %v3729 = vadd.f32 %v3681, %v3725
    %v3730 = vadd.f32 %v3682, %v3726
    %s3731 = sld [smem:[#allocation13 + $0x1d]]
    %v3732 = vstv %s3731
    %v3733 = vmul.f32 %v3732, %v3597
    %v3734 = vmul.f32 %v3732, %v3598
    %v3737 = vrot.slane %v3733, 3
    %v3738 = vrot.slane %v3734, 3
    %v3741 = vadd.f32 %v3693, %v3737
    %v3742 = vadd.f32 %v3694, %v3738
    %s3743 = sld [smem:[#allocation13 + $0x1e]]
    %v3744 = vstv %s3743
    %v3745 = vmul.f32 %v3744, %v3597
    %v3746 = vmul.f32 %v3744, %v3598
    %v3749 = vrot.slane %v3745, 3
    %v3750 = vrot.slane %v3746, 3
    %v3753 = vadd.f32 %v3705, %v3749
    %v3754 = vadd.f32 %v3706, %v3750
    %s3755 = sld [smem:[#allocation13 + $0x1f]]
    %v3756 = vstv %s3755
    %v3757 = vmul.f32 %v3756, %v3597
    %v3758 = vmul.f32 %v3756, %v3598
    %v3761 = vrot.slane %v3757, 3
    %v3762 = vrot.slane %v3758, 3
    %v3765 = vadd.f32 %v3717, %v3761
    %v3766 = vadd.f32 %v3718, %v3762
    %3767 = vrot.lane.b32.xlu0 %v3397, 15
    %v3768 = vpop.permute.xlu0 %3767
    %3769 = vrot.lane.b32.xlu0 %v3398, 15
    %v3770 = vpop.permute.xlu0 %3769
    %v3771 = vsel %vm508, %v3768, %v3770
    %v3772 = vsel %vm508, %v3770, %v3768
    %v3773 = vld [vmem:[%s511] sm:$0x3]
    %v3775 = vlaneseq
    %v3776 = vshrl.u32 %v3775, 7
    %v3777 = vsub.s32 0, %v3776
    %v3778 = vrot.slane %v3773, %v3777
    %v3779 = vlaneseq
    %v3780 = vshrl.u32 %v3779, 7
    %v3781 = vsub.s32 1, %v3780
    %v3782 = vrot.slane %v3773, %v3781
    %v3785 = vmul.f32 %v3772, %v3778
    %v3786 = vmul.f32 %v3771, %v3782
    %s3787 = sld [smem:[#allocation13 + $0x20]]
    %v3788 = vstv %s3787
    %v3789 = vmul.f32 %v3788, %v3785
    %v3790 = vmul.f32 %v3788, %v3786
    %v3791 = vadd.f32 %v3729, %v3789
    %v3792 = vadd.f32 %v3730, %v3790
    %s3793 = sld [smem:[#allocation13 + $0x21]]
    %v3794 = vstv %s3793
    %v3795 = vmul.f32 %v3794, %v3785
    %v3796 = vmul.f32 %v3794, %v3786
    %v3797 = vadd.f32 %v3741, %v3795
    %v3798 = vadd.f32 %v3742, %v3796
    %s3799 = sld [smem:[#allocation13 + $0x22]]
    %v3800 = vstv %s3799
    %v3801 = vmul.f32 %v3800, %v3785
    %v3802 = vmul.f32 %v3800, %v3786
    %v3803 = vadd.f32 %v3753, %v3801
    %v3804 = vadd.f32 %v3754, %v3802
    %s3805 = sld [smem:[#allocation13 + $0x23]]
    %v3806 = vstv %s3805
    %v3807 = vmul.f32 %v3806, %v3785
    %v3808 = vmul.f32 %v3806, %v3786
    %v3809 = vadd.f32 %v3765, %v3807
    %v3810 = vadd.f32 %v3766, %v3808
    %s3811 = sld [smem:[#allocation13 + $0x24]]
    %v3812 = vstv %s3811
    %v3813 = vmul.f32 %v3812, %v3785
    %v3814 = vmul.f32 %v3812, %v3786
    %v3817 = vrot.slane %v3813, 1
    %v3818 = vrot.slane %v3814, 1
    %v3821 = vadd.f32 %v3791, %v3817
    %v3822 = vadd.f32 %v3792, %v3818
    %s3823 = sld [smem:[#allocation13 + $0x25]]
    %v3824 = vstv %s3823
    %v3825 = vmul.f32 %v3824, %v3785
    %v3826 = vmul.f32 %v3824, %v3786
    %v3829 = vrot.slane %v3825, 1
    %v3830 = vrot.slane %v3826, 1
    %v3833 = vadd.f32 %v3797, %v3829
    %v3834 = vadd.f32 %v3798, %v3830
    %s3835 = sld [smem:[#allocation13 + $0x26]]
    %v3836 = vstv %s3835
    %v3837 = vmul.f32 %v3836, %v3785
    %v3838 = vmul.f32 %v3836, %v3786
    %v3841 = vrot.slane %v3837, 1
    %v3842 = vrot.slane %v3838, 1
    %v3845 = vadd.f32 %v3803, %v3841
    %v3846 = vadd.f32 %v3804, %v3842
    %s3847 = sld [smem:[#allocation13 + $0x27]]
    %v3848 = vstv %s3847
    %v3849 = vmul.f32 %v3848, %v3785
    %v3850 = vmul.f32 %v3848, %v3786
    %v3853 = vrot.slane %v3849, 1
    %v3854 = vrot.slane %v3850, 1
    %v3857 = vadd.f32 %v3809, %v3853
    %v3858 = vadd.f32 %v3810, %v3854
    %s3859 = sld [smem:[#allocation13 + $0x28]]
    %v3860 = vstv %s3859
    %v3861 = vmul.f32 %v3860, %v3785
    %v3862 = vmul.f32 %v3860, %v3786
    %v3865 = vrot.slane %v3861, 2
    %v3866 = vrot.slane %v3862, 2
    %v3869 = vadd.f32 %v3821, %v3865
    %v3870 = vadd.f32 %v3822, %v3866
    %s3871 = sld [smem:[#allocation13 + $0x29]]
    %v3872 = vstv %s3871
    %v3873 = vmul.f32 %v3872, %v3785
    %v3874 = vmul.f32 %v3872, %v3786
    %v3877 = vrot.slane %v3873, 2
    %v3878 = vrot.slane %v3874, 2
    %v3881 = vadd.f32 %v3833, %v3877
    %v3882 = vadd.f32 %v3834, %v3878
    %s3883 = sld [smem:[#allocation13 + $0x2a]]
    %v3884 = vstv %s3883
    %v3885 = vmul.f32 %v3884, %v3785
    %v3886 = vmul.f32 %v3884, %v3786
    %v3889 = vrot.slane %v3885, 2
    %v3890 = vrot.slane %v3886, 2
    %v3893 = vadd.f32 %v3845, %v3889
    %v3894 = vadd.f32 %v3846, %v3890
    %s3895 = sld [smem:[#allocation13 + $0x2b]]
    %v3896 = vstv %s3895
    %v3897 = vmul.f32 %v3896, %v3785
    %v3898 = vmul.f32 %v3896, %v3786
    %v3901 = vrot.slane %v3897, 2
    %v3902 = vrot.slane %v3898, 2
    %v3905 = vadd.f32 %v3857, %v3901
    %v3906 = vadd.f32 %v3858, %v3902
    %s3907 = sld [smem:[#allocation13 + $0x2c]]
    %v3908 = vstv %s3907
    %v3909 = vmul.f32 %v3908, %v3785
    %v3910 = vmul.f32 %v3908, %v3786
    %v3913 = vrot.slane %v3909, 3
    %v3914 = vrot.slane %v3910, 3
    %v3917 = vadd.f32 %v3869, %v3913
    %v3918 = vadd.f32 %v3870, %v3914
    %s3919 = sld [smem:[#allocation13 + $0x2d]]
    %v3920 = vstv %s3919
    %v3921 = vmul.f32 %v3920, %v3785
    %v3922 = vmul.f32 %v3920, %v3786
    %v3925 = vrot.slane %v3921, 3
    %v3926 = vrot.slane %v3922, 3
    %v3929 = vadd.f32 %v3881, %v3925
    %v3930 = vadd.f32 %v3882, %v3926
    %s3931 = sld [smem:[#allocation13 + $0x2e]]
    %v3932 = vstv %s3931
    %v3933 = vmul.f32 %v3932, %v3785
    %v3934 = vmul.f32 %v3932, %v3786
    %v3937 = vrot.slane %v3933, 3
    %v3938 = vrot.slane %v3934, 3
    %v3941 = vadd.f32 %v3893, %v3937
    %v3942 = vadd.f32 %v3894, %v3938
    %s3943 = sld [smem:[#allocation13 + $0x2f]]
    %v3944 = vstv %s3943
    %v3945 = vmul.f32 %v3944, %v3785
    %v3946 = vmul.f32 %v3944, %v3786
    %v3949 = vrot.slane %v3945, 3
    %v3950 = vrot.slane %v3946, 3
    %v3953 = vadd.f32 %v3905, %v3949
    %v3954 = vadd.f32 %v3906, %v3950
    %3955 = vrot.lane.b32.xlu0 %v3397, 1
    %v3956 = vpop.permute.xlu0 %3955
    %3957 = vrot.lane.b32.xlu0 %v3398, 1
    %v3958 = vpop.permute.xlu0 %3957
    %v3959 = vsel %vm698, %v3956, %v3958
    %v3960 = vsel %vm698, %v3958, %v3956
    %v3961 = vld [vmem:[%s701] sm:$0x3]
    %v3963 = vlaneseq
    %v3964 = vshrl.u32 %v3963, 7
    %v3965 = vsub.s32 0, %v3964
    %v3966 = vrot.slane %v3961, %v3965
    %v3967 = vlaneseq
    %v3968 = vshrl.u32 %v3967, 7
    %v3969 = vsub.s32 1, %v3968
    %v3970 = vrot.slane %v3961, %v3969
    %v3973 = vmul.f32 %v3960, %v3966
    %v3974 = vmul.f32 %v3959, %v3970
    %s3975 = sld [smem:[#allocation13 + $0x30]]
    %v3976 = vstv %s3975
    %v3977 = vmul.f32 %v3976, %v3973
    %v3978 = vmul.f32 %v3976, %v3974
    %v3979 = vadd.f32 %v3917, %v3977
    %v3980 = vadd.f32 %v3918, %v3978
    %s3981 = sld [smem:[#allocation13 + $0x31]]
    %v3982 = vstv %s3981
    %v3983 = vmul.f32 %v3982, %v3973
    %v3984 = vmul.f32 %v3982, %v3974
    %v3985 = vadd.f32 %v3929, %v3983
    %v3986 = vadd.f32 %v3930, %v3984
    %s3987 = sld [smem:[#allocation13 + $0x32]]
    %v3988 = vstv %s3987
    %v3989 = vmul.f32 %v3988, %v3973
    %v3990 = vmul.f32 %v3988, %v3974
    %v3991 = vadd.f32 %v3941, %v3989
    %v3992 = vadd.f32 %v3942, %v3990
    %s3993 = sld [smem:[#allocation13 + $0x33]]
    %v3994 = vstv %s3993
    %v3995 = vmul.f32 %v3994, %v3973
    %v3996 = vmul.f32 %v3994, %v3974
    %v3997 = vadd.f32 %v3953, %v3995
    %v3998 = vadd.f32 %v3954, %v3996
    %s3999 = sld [smem:[#allocation13 + $0x34]]
    %v4000 = vstv %s3999
    %v4001 = vmul.f32 %v4000, %v3973
    %v4002 = vmul.f32 %v4000, %v3974
    %v4005 = vrot.slane %v4001, 1
    %v4006 = vrot.slane %v4002, 1
    %v4009 = vadd.f32 %v3979, %v4005
    %v4010 = vadd.f32 %v3980, %v4006
    %s4011 = sld [smem:[#allocation13 + $0x35]]
    %v4012 = vstv %s4011
    %v4013 = vmul.f32 %v4012, %v3973
    %v4014 = vmul.f32 %v4012, %v3974
    %v4017 = vrot.slane %v4013, 1
    %v4018 = vrot.slane %v4014, 1
    %v4021 = vadd.f32 %v3985, %v4017
    %v4022 = vadd.f32 %v3986, %v4018
    %s4023 = sld [smem:[#allocation13 + $0x36]]
    %v4024 = vstv %s4023
    %v4025 = vmul.f32 %v4024, %v3973
    %v4026 = vmul.f32 %v4024, %v3974
    %v4029 = vrot.slane %v4025, 1
    %v4030 = vrot.slane %v4026, 1
    %v4033 = vadd.f32 %v3991, %v4029
    %v4034 = vadd.f32 %v3992, %v4030
    %s4035 = sld [smem:[#allocation13 + $0x37]]
    %v4036 = vstv %s4035
    %v4037 = vmul.f32 %v4036, %v3973
    %v4038 = vmul.f32 %v4036, %v3974
    %v4041 = vrot.slane %v4037, 1
    %v4042 = vrot.slane %v4038, 1
    %v4045 = vadd.f32 %v3997, %v4041
    %v4046 = vadd.f32 %v3998, %v4042
    %s4047 = sld [smem:[#allocation13 + $0x38]]
    %v4048 = vstv %s4047
    %v4049 = vmul.f32 %v4048, %v3973
    %v4050 = vmul.f32 %v4048, %v3974
    %v4053 = vrot.slane %v4049, 2
    %v4054 = vrot.slane %v4050, 2
    %v4057 = vadd.f32 %v4009, %v4053
    %v4058 = vadd.f32 %v4010, %v4054
    %s4059 = sld [smem:[#allocation13 + $0x39]]
    %v4060 = vstv %s4059
    %v4061 = vmul.f32 %v4060, %v3973
    %v4062 = vmul.f32 %v4060, %v3974
    %v4065 = vrot.slane %v4061, 2
    %v4066 = vrot.slane %v4062, 2
    %v4069 = vadd.f32 %v4021, %v4065
    %v4070 = vadd.f32 %v4022, %v4066
    %s4071 = sld [smem:[#allocation13 + $0x3a]]
    %v4072 = vstv %s4071
    %v4073 = vmul.f32 %v4072, %v3973
    %v4074 = vmul.f32 %v4072, %v3974
    %v4077 = vrot.slane %v4073, 2
    %v4078 = vrot.slane %v4074, 2
    %v4081 = vadd.f32 %v4033, %v4077
    %v4082 = vadd.f32 %v4034, %v4078
    %s4083 = sld [smem:[#allocation13 + $0x3b]]
    %v4084 = vstv %s4083
    %v4085 = vmul.f32 %v4084, %v3973
    %v4086 = vmul.f32 %v4084, %v3974
    %v4089 = vrot.slane %v4085, 2
    %v4090 = vrot.slane %v4086, 2
    %v4093 = vadd.f32 %v4045, %v4089
    %v4094 = vadd.f32 %v4046, %v4090
    %s4095 = sld [smem:[#allocation13 + $0x3c]]
    %v4096 = vstv %s4095
    %v4097 = vmul.f32 %v4096, %v3973
    %v4098 = vmul.f32 %v4096, %v3974
    %v4101 = vrot.slane %v4097, 3
    %v4102 = vrot.slane %v4098, 3
    %v4105 = vadd.f32 %v4057, %v4101
    %v4106 = vadd.f32 %v4058, %v4102
    %s4107 = sld [smem:[#allocation13 + $0x3d]]
    %v4108 = vstv %s4107
    %v4109 = vmul.f32 %v4108, %v3973
    %v4110 = vmul.f32 %v4108, %v3974
    %v4113 = vrot.slane %v4109, 3
    %v4114 = vrot.slane %v4110, 3
    %v4117 = vadd.f32 %v4069, %v4113
    %v4118 = vadd.f32 %v4070, %v4114
    %s4119 = sld [smem:[#allocation13 + $0x3e]]
    %v4120 = vstv %s4119
    %v4121 = vmul.f32 %v4120, %v3973
    %v4122 = vmul.f32 %v4120, %v3974
    %v4125 = vrot.slane %v4121, 3
    %v4126 = vrot.slane %v4122, 3
    %v4129 = vadd.f32 %v4081, %v4125
    %v4130 = vadd.f32 %v4082, %v4126
    %s4131 = sld [smem:[#allocation13 + $0x3f]]
    %v4132 = vstv %s4131
    %v4133 = vmul.f32 %v4132, %v3973
    %v4134 = vmul.f32 %v4132, %v3974
    %v4137 = vrot.slane %v4133, 3
    %v4138 = vrot.slane %v4134, 3
    %v4141 = vadd.f32 %v4093, %v4137
    %v4142 = vadd.f32 %v4094, %v4138
    %s4143 = sld [smem:[#allocation13 + $0x40]]
    %v4144 = vstv %s4143
    %v4145 = vmul.f32 %v4144, %v3397
    %v4146 = vmul.f32 %v4144, %v3398
    %v4147 = vadd.f32 %v4105, %v4145
    %v4148 = vadd.f32 %v4106, %v4146
    %s4149 = sld [smem:[#allocation13 + $0x41]]
    %v4150 = vstv %s4149
    %v4151 = vmul.f32 %v4150, %v3397
    %v4152 = vmul.f32 %v4150, %v3398
    %v4153 = vadd.f32 %v4117, %v4151
    %v4154 = vadd.f32 %v4118, %v4152
    %s4155 = sld [smem:[#allocation13 + $0x42]]
    %v4156 = vstv %s4155
    %v4157 = vmul.f32 %v4156, %v3397
    %v4158 = vmul.f32 %v4156, %v3398
    %v4159 = vadd.f32 %v4129, %v4157
    %v4160 = vadd.f32 %v4130, %v4158
    %s4161 = sld [smem:[#allocation13 + $0x43]]
    %v4162 = vstv %s4161
    %v4163 = vmul.f32 %v4162, %v3397
    %v4164 = vmul.f32 %v4162, %v3398
    %v4165 = vadd.f32 %v4141, %v4163
    %v4166 = vadd.f32 %v4142, %v4164
    %s4167 = sld [smem:[#allocation13 + $0x44]]
    %v4168 = vstv %s4167
    %v4169 = vmul.f32 %v4168, %v3397
    %v4170 = vmul.f32 %v4168, %v3398
    %v4173 = vrot.slane %v4169, 1
    %v4174 = vrot.slane %v4170, 1
    %v4177 = vadd.f32 %v4147, %v4173
    %v4178 = vadd.f32 %v4148, %v4174
    %s4179 = sld [smem:[#allocation13 + $0x45]]
    %v4180 = vstv %s4179
    %v4181 = vmul.f32 %v4180, %v3397
    %v4182 = vmul.f32 %v4180, %v3398
    %v4185 = vrot.slane %v4181, 1
    %v4186 = vrot.slane %v4182, 1
    %v4189 = vadd.f32 %v4153, %v4185
    %v4190 = vadd.f32 %v4154, %v4186
    %s4191 = sld [smem:[#allocation13 + $0x46]]
    %v4192 = vstv %s4191
    %v4193 = vmul.f32 %v4192, %v3397
    %v4194 = vmul.f32 %v4192, %v3398
    %v4197 = vrot.slane %v4193, 1
    %v4198 = vrot.slane %v4194, 1
    %v4201 = vadd.f32 %v4159, %v4197
    %v4202 = vadd.f32 %v4160, %v4198
    %s4203 = sld [smem:[#allocation13 + $0x47]]
    %v4204 = vstv %s4203
    %v4205 = vmul.f32 %v4204, %v3397
    %v4206 = vmul.f32 %v4204, %v3398
    %v4209 = vrot.slane %v4205, 1
    %v4210 = vrot.slane %v4206, 1
    %v4213 = vadd.f32 %v4165, %v4209
    %v4214 = vadd.f32 %v4166, %v4210
    %s4215 = sld [smem:[#allocation13 + $0x48]]
    %v4216 = vstv %s4215
    %v4217 = vmul.f32 %v4216, %v3397
    %v4218 = vmul.f32 %v4216, %v3398
    %v4221 = vrot.slane %v4217, 2
    %v4222 = vrot.slane %v4218, 2
    %v4225 = vadd.f32 %v4177, %v4221
    %v4226 = vadd.f32 %v4178, %v4222
    %s4227 = sld [smem:[#allocation13 + $0x49]]
    %v4228 = vstv %s4227
    %v4229 = vmul.f32 %v4228, %v3397
    %v4230 = vmul.f32 %v4228, %v3398
    %v4233 = vrot.slane %v4229, 2
    %v4234 = vrot.slane %v4230, 2
    %v4237 = vadd.f32 %v4189, %v4233
    %v4238 = vadd.f32 %v4190, %v4234
    %s4239 = sld [smem:[#allocation13 + $0x4a]]
    %v4240 = vstv %s4239
    %v4241 = vmul.f32 %v4240, %v3397
    %v4242 = vmul.f32 %v4240, %v3398
    %v4245 = vrot.slane %v4241, 2
    %v4246 = vrot.slane %v4242, 2
    %v4249 = vadd.f32 %v4201, %v4245
    %v4250 = vadd.f32 %v4202, %v4246
    %s4251 = sld [smem:[#allocation13 + $0x4b]]
    %v4252 = vstv %s4251
    %v4253 = vmul.f32 %v4252, %v3397
    %v4254 = vmul.f32 %v4252, %v3398
    %v4257 = vrot.slane %v4253, 2
    %v4258 = vrot.slane %v4254, 2
    %v4261 = vadd.f32 %v4213, %v4257
    %v4262 = vadd.f32 %v4214, %v4258
    %s4263 = sld [smem:[#allocation13 + $0x4c]]
    %v4264 = vstv %s4263
    %v4265 = vmul.f32 %v4264, %v3397
    %v4266 = vmul.f32 %v4264, %v3398
    %v4269 = vrot.slane %v4265, 3
    %v4270 = vrot.slane %v4266, 3
    %v4273 = vadd.f32 %v4225, %v4269
    %v4274 = vadd.f32 %v4226, %v4270
    %s4275 = sld [smem:[#allocation13 + $0x4d]]
    %v4276 = vstv %s4275
    %v4277 = vmul.f32 %v4276, %v3397
    %v4278 = vmul.f32 %v4276, %v3398
    %v4281 = vrot.slane %v4277, 3
    %v4282 = vrot.slane %v4278, 3
    %v4285 = vadd.f32 %v4237, %v4281
    %v4286 = vadd.f32 %v4238, %v4282
    %s4287 = sld [smem:[#allocation13 + $0x4e]]
    %v4288 = vstv %s4287
    %v4289 = vmul.f32 %v4288, %v3397
    %v4290 = vmul.f32 %v4288, %v3398
    %v4293 = vrot.slane %v4289, 3
    %v4294 = vrot.slane %v4290, 3
    %v4297 = vadd.f32 %v4249, %v4293
    %v4298 = vadd.f32 %v4250, %v4294
    %s4299 = sld [smem:[#allocation13 + $0x4f]]
    %v4300 = vstv %s4299
    %v4301 = vmul.f32 %v4300, %v3397
    %v4302 = vmul.f32 %v4300, %v3398
    %v4305 = vrot.slane %v4301, 3
    %v4306 = vrot.slane %v4302, 3
    %v4309 = vadd.f32 %v4261, %v4305
    %v4310 = vadd.f32 %v4262, %v4306
    %4311 = vrot.lane.b32.xlu0 %v3397, 127
    %v4312 = vpop.permute.xlu0 %4311
    %4313 = vrot.lane.b32.xlu0 %v3398, 127
    %v4314 = vpop.permute.xlu0 %4313
    %v4315 = vsel %vm1056, %v4312, %v4314
    %v4316 = vsel %vm1056, %v4314, %v4312
    %v4317 = vld [vmem:[%s1059] sm:$0x3]
    %v4319 = vlaneseq
    %v4320 = vshrl.u32 %v4319, 7
    %v4321 = vsub.s32 0, %v4320
    %v4322 = vrot.slane %v4317, %v4321
    %v4323 = vlaneseq
    %v4324 = vshrl.u32 %v4323, 7
    %v4325 = vsub.s32 1, %v4324
    %v4326 = vrot.slane %v4317, %v4325
    %v4329 = vmul.f32 %v4315, %v4322
    %v4330 = vmul.f32 %v4316, %v4326
    %s4331 = sld [smem:[#allocation13 + $0x50]]
    %v4332 = vstv %s4331
    %v4333 = vmul.f32 %v4332, %v4329
    %v4334 = vmul.f32 %v4332, %v4330
    %v4335 = vadd.f32 %v4273, %v4333
    %v4336 = vadd.f32 %v4274, %v4334
    %s4337 = sld [smem:[#allocation13 + $0x51]]
    %v4338 = vstv %s4337
    %v4339 = vmul.f32 %v4338, %v4329
    %v4340 = vmul.f32 %v4338, %v4330
    %v4341 = vadd.f32 %v4285, %v4339
    %v4342 = vadd.f32 %v4286, %v4340
    %s4343 = sld [smem:[#allocation13 + $0x52]]
    %v4344 = vstv %s4343
    %v4345 = vmul.f32 %v4344, %v4329
    %v4346 = vmul.f32 %v4344, %v4330
    %v4347 = vadd.f32 %v4297, %v4345
    %v4348 = vadd.f32 %v4298, %v4346
    %s4349 = sld [smem:[#allocation13 + $0x53]]
    %v4350 = vstv %s4349
    %v4351 = vmul.f32 %v4350, %v4329
    %v4352 = vmul.f32 %v4350, %v4330
    %v4353 = vadd.f32 %v4309, %v4351
    %v4354 = vadd.f32 %v4310, %v4352
    %s4355 = sld [smem:[#allocation13 + $0x54]]
    %v4356 = vstv %s4355
    %v4357 = vmul.f32 %v4356, %v4329
    %v4358 = vmul.f32 %v4356, %v4330
    %v4361 = vrot.slane %v4357, 1
    %v4362 = vrot.slane %v4358, 1
    %v4365 = vadd.f32 %v4335, %v4361
    %v4366 = vadd.f32 %v4336, %v4362
    %s4367 = sld [smem:[#allocation13 + $0x55]]
    %v4368 = vstv %s4367
    %v4369 = vmul.f32 %v4368, %v4329
    %v4370 = vmul.f32 %v4368, %v4330
    %v4373 = vrot.slane %v4369, 1
    %v4374 = vrot.slane %v4370, 1
    %v4377 = vadd.f32 %v4341, %v4373
    %v4378 = vadd.f32 %v4342, %v4374
    %s4379 = sld [smem:[#allocation13 + $0x56]]
    %v4380 = vstv %s4379
    %v4381 = vmul.f32 %v4380, %v4329
    %v4382 = vmul.f32 %v4380, %v4330
    %v4385 = vrot.slane %v4381, 1
    %v4386 = vrot.slane %v4382, 1
    %v4389 = vadd.f32 %v4347, %v4385
    %v4390 = vadd.f32 %v4348, %v4386
    %s4391 = sld [smem:[#allocation13 + $0x57]]
    %v4392 = vstv %s4391
    %v4393 = vmul.f32 %v4392, %v4329
    %v4394 = vmul.f32 %v4392, %v4330
    %v4397 = vrot.slane %v4393, 1
    %v4398 = vrot.slane %v4394, 1
    %v4401 = vadd.f32 %v4353, %v4397
    %v4402 = vadd.f32 %v4354, %v4398
    %s4403 = sld [smem:[#allocation13 + $0x58]]
    %v4404 = vstv %s4403
    %v4405 = vmul.f32 %v4404, %v4329
    %v4406 = vmul.f32 %v4404, %v4330
    %v4409 = vrot.slane %v4405, 2
    %v4410 = vrot.slane %v4406, 2
    %v4413 = vadd.f32 %v4365, %v4409
    %v4414 = vadd.f32 %v4366, %v4410
    %s4415 = sld [smem:[#allocation13 + $0x59]]
    %v4416 = vstv %s4415
    %v4417 = vmul.f32 %v4416, %v4329
    %v4418 = vmul.f32 %v4416, %v4330
    %v4421 = vrot.slane %v4417, 2
    %v4422 = vrot.slane %v4418, 2
    %v4425 = vadd.f32 %v4377, %v4421
    %v4426 = vadd.f32 %v4378, %v4422
    %s4427 = sld [smem:[#allocation13 + $0x5a]]
    %v4428 = vstv %s4427
    %v4429 = vmul.f32 %v4428, %v4329
    %v4430 = vmul.f32 %v4428, %v4330
    %v4433 = vrot.slane %v4429, 2
    %v4434 = vrot.slane %v4430, 2
    %v4437 = vadd.f32 %v4389, %v4433
    %v4438 = vadd.f32 %v4390, %v4434
    %s4439 = sld [smem:[#allocation13 + $0x5b]]
    %v4440 = vstv %s4439
    %v4441 = vmul.f32 %v4440, %v4329
    %v4442 = vmul.f32 %v4440, %v4330
    %v4445 = vrot.slane %v4441, 2
    %v4446 = vrot.slane %v4442, 2
    %v4449 = vadd.f32 %v4401, %v4445
    %v4450 = vadd.f32 %v4402, %v4446
    %s4451 = sld [smem:[#allocation13 + $0x5c]]
    %v4452 = vstv %s4451
    %v4453 = vmul.f32 %v4452, %v4329
    %v4454 = vmul.f32 %v4452, %v4330
    %v4457 = vrot.slane %v4453, 3
    %v4458 = vrot.slane %v4454, 3
    %v4461 = vadd.f32 %v4413, %v4457
    %v4462 = vadd.f32 %v4414, %v4458
    %s4463 = sld [smem:[#allocation13 + $0x5d]]
    %v4464 = vstv %s4463
    %v4465 = vmul.f32 %v4464, %v4329
    %v4466 = vmul.f32 %v4464, %v4330
    %v4469 = vrot.slane %v4465, 3
    %v4470 = vrot.slane %v4466, 3
    %v4473 = vadd.f32 %v4425, %v4469
    %v4474 = vadd.f32 %v4426, %v4470
    %s4475 = sld [smem:[#allocation13 + $0x5e]]
    %v4476 = vstv %s4475
    %v4477 = vmul.f32 %v4476, %v4329
    %v4478 = vmul.f32 %v4476, %v4330
    %v4481 = vrot.slane %v4477, 3
    %v4482 = vrot.slane %v4478, 3
    %v4485 = vadd.f32 %v4437, %v4481
    %v4486 = vadd.f32 %v4438, %v4482
    %s4487 = sld [smem:[#allocation13 + $0x5f]]
    %v4488 = vstv %s4487
    %v4489 = vmul.f32 %v4488, %v4329
    %v4490 = vmul.f32 %v4488, %v4330
    %v4493 = vrot.slane %v4489, 3
    %v4494 = vrot.slane %v4490, 3
    %v4497 = vadd.f32 %v4449, %v4493
    %v4498 = vadd.f32 %v4450, %v4494
    %4499 = vrot.lane.b32.xlu0 %v3397, 113
    %v4500 = vpop.permute.xlu0 %4499
    %4501 = vrot.lane.b32.xlu0 %v3398, 113
    %v4502 = vpop.permute.xlu0 %4501
    %v4503 = vsel %vm1246, %v4500, %v4502
    %v4504 = vsel %vm1246, %v4502, %v4500
    %v4505 = vld [vmem:[%s1249] sm:$0x3]
    %v4507 = vlaneseq
    %v4508 = vshrl.u32 %v4507, 7
    %v4509 = vsub.s32 0, %v4508
    %v4510 = vrot.slane %v4505, %v4509
    %v4511 = vlaneseq
    %v4512 = vshrl.u32 %v4511, 7
    %v4513 = vsub.s32 1, %v4512
    %v4514 = vrot.slane %v4505, %v4513
    %v4517 = vmul.f32 %v4503, %v4510
    %v4518 = vmul.f32 %v4504, %v4514
    %s4519 = sld [smem:[#allocation13 + $0x60]]
    %v4520 = vstv %s4519
    %v4521 = vmul.f32 %v4520, %v4517
    %v4522 = vmul.f32 %v4520, %v4518
    %v4523 = vadd.f32 %v4461, %v4521
    %v4524 = vadd.f32 %v4462, %v4522
    %s4525 = sld [smem:[#allocation13 + $0x61]]
    %v4526 = vstv %s4525
    %v4527 = vmul.f32 %v4526, %v4517
    %v4528 = vmul.f32 %v4526, %v4518
    %v4529 = vadd.f32 %v4473, %v4527
    %v4530 = vadd.f32 %v4474, %v4528
    %s4531 = sld [smem:[#allocation13 + $0x62]]
    %v4532 = vstv %s4531
    %v4533 = vmul.f32 %v4532, %v4517
    %v4534 = vmul.f32 %v4532, %v4518
    %v4535 = vadd.f32 %v4485, %v4533
    %v4536 = vadd.f32 %v4486, %v4534
    %s4537 = sld [smem:[#allocation13 + $0x63]]
    %v4538 = vstv %s4537
    %v4539 = vmul.f32 %v4538, %v4517
    %v4540 = vmul.f32 %v4538, %v4518
    %v4541 = vadd.f32 %v4497, %v4539
    %v4542 = vadd.f32 %v4498, %v4540
    %s4543 = sld [smem:[#allocation13 + $0x64]]
    %v4544 = vstv %s4543
    %v4545 = vmul.f32 %v4544, %v4517
    %v4546 = vmul.f32 %v4544, %v4518
    %v4549 = vrot.slane %v4545, 1
    %v4550 = vrot.slane %v4546, 1
    %v4553 = vadd.f32 %v4523, %v4549
    %v4554 = vadd.f32 %v4524, %v4550
    %s4555 = sld [smem:[#allocation13 + $0x65]]
    %v4556 = vstv %s4555
    %v4557 = vmul.f32 %v4556, %v4517
    %v4558 = vmul.f32 %v4556, %v4518
    %v4561 = vrot.slane %v4557, 1
    %v4562 = vrot.slane %v4558, 1
    %v4565 = vadd.f32 %v4529, %v4561
    %v4566 = vadd.f32 %v4530, %v4562
    %s4567 = sld [smem:[#allocation13 + $0x66]]
    %v4568 = vstv %s4567
    %v4569 = vmul.f32 %v4568, %v4517
    %v4570 = vmul.f32 %v4568, %v4518
    %v4573 = vrot.slane %v4569, 1
    %v4574 = vrot.slane %v4570, 1
    %v4577 = vadd.f32 %v4535, %v4573
    %v4578 = vadd.f32 %v4536, %v4574
    %s4579 = sld [smem:[#allocation13 + $0x67]]
    %v4580 = vstv %s4579
    %v4581 = vmul.f32 %v4580, %v4517
    %v4582 = vmul.f32 %v4580, %v4518
    %v4585 = vrot.slane %v4581, 1
    %v4586 = vrot.slane %v4582, 1
    %v4589 = vadd.f32 %v4541, %v4585
    %v4590 = vadd.f32 %v4542, %v4586
    %s4591 = sld [smem:[#allocation13 + $0x68]]
    %v4592 = vstv %s4591
    %v4593 = vmul.f32 %v4592, %v4517
    %v4594 = vmul.f32 %v4592, %v4518
    %v4597 = vrot.slane %v4593, 2
    %v4598 = vrot.slane %v4594, 2
    %v4601 = vadd.f32 %v4553, %v4597
    %v4602 = vadd.f32 %v4554, %v4598
    %s4603 = sld [smem:[#allocation13 + $0x69]]
    %v4604 = vstv %s4603
    %v4605 = vmul.f32 %v4604, %v4517
    %v4606 = vmul.f32 %v4604, %v4518
    %v4609 = vrot.slane %v4605, 2
    %v4610 = vrot.slane %v4606, 2
    %v4613 = vadd.f32 %v4565, %v4609
    %v4614 = vadd.f32 %v4566, %v4610
    %s4615 = sld [smem:[#allocation13 + $0x6a]]
    %v4616 = vstv %s4615
    %v4617 = vmul.f32 %v4616, %v4517
    %v4618 = vmul.f32 %v4616, %v4518
    %v4621 = vrot.slane %v4617, 2
    %v4622 = vrot.slane %v4618, 2
    %v4625 = vadd.f32 %v4577, %v4621
    %v4626 = vadd.f32 %v4578, %v4622
    %s4627 = sld [smem:[#allocation13 + $0x6b]]
    %v4628 = vstv %s4627
    %v4629 = vmul.f32 %v4628, %v4517
    %v4630 = vmul.f32 %v4628, %v4518
    %v4633 = vrot.slane %v4629, 2
    %v4634 = vrot.slane %v4630, 2
    %v4637 = vadd.f32 %v4589, %v4633
    %v4638 = vadd.f32 %v4590, %v4634
    %s4639 = sld [smem:[#allocation13 + $0x6c]]
    %v4640 = vstv %s4639
    %v4641 = vmul.f32 %v4640, %v4517
    %v4642 = vmul.f32 %v4640, %v4518
    %v4645 = vrot.slane %v4641, 3
    %v4646 = vrot.slane %v4642, 3
    %v4649 = vadd.f32 %v4601, %v4645
    %v4650 = vadd.f32 %v4602, %v4646
    %s4651 = sld [smem:[#allocation13 + $0x6d]]
    %v4652 = vstv %s4651
    %v4653 = vmul.f32 %v4652, %v4517
    %v4654 = vmul.f32 %v4652, %v4518
    %v4657 = vrot.slane %v4653, 3
    %v4658 = vrot.slane %v4654, 3
    %v4661 = vadd.f32 %v4613, %v4657
    %v4662 = vadd.f32 %v4614, %v4658
    %s4663 = sld [smem:[#allocation13 + $0x6e]]
    %v4664 = vstv %s4663
    %v4665 = vmul.f32 %v4664, %v4517
    %v4666 = vmul.f32 %v4664, %v4518
    %v4669 = vrot.slane %v4665, 3
    %v4670 = vrot.slane %v4666, 3
    %v4673 = vadd.f32 %v4625, %v4669
    %v4674 = vadd.f32 %v4626, %v4670
    %s4675 = sld [smem:[#allocation13 + $0x6f]]
    %v4676 = vstv %s4675
    %v4677 = vmul.f32 %v4676, %v4517
    %v4678 = vmul.f32 %v4676, %v4518
    %v4681 = vrot.slane %v4677, 3
    %v4682 = vrot.slane %v4678, 3
    %v4685 = vadd.f32 %v4637, %v4681
    %v4686 = vadd.f32 %v4638, %v4682
    %4687 = vrot.lane.b32.xlu0 %v3397, 112
    %v4688 = vpop.permute.xlu0 %4687
    %4689 = vrot.lane.b32.xlu0 %v3398, 112
    %v4690 = vpop.permute.xlu0 %4689
    %v4691 = vsel %vm1436, %v4688, %v4690
    %v4692 = vsel %vm1436, %v4690, %v4688
    %v4693 = vld [vmem:[%s1439] sm:$0x3]
    %v4695 = vlaneseq
    %v4696 = vshrl.u32 %v4695, 7
    %v4697 = vsub.s32 0, %v4696
    %v4698 = vrot.slane %v4693, %v4697
    %v4699 = vlaneseq
    %v4700 = vshrl.u32 %v4699, 7
    %v4701 = vsub.s32 1, %v4700
    %v4702 = vrot.slane %v4693, %v4701
    %v4705 = vmul.f32 %v4691, %v4698
    %v4706 = vmul.f32 %v4692, %v4702
    %s4707 = sld [smem:[#allocation13 + $0x70]]
    %v4708 = vstv %s4707
    %v4709 = vmul.f32 %v4708, %v4705
    %v4710 = vmul.f32 %v4708, %v4706
    %v4711 = vadd.f32 %v4649, %v4709
    %v4712 = vadd.f32 %v4650, %v4710
    %s4713 = sld [smem:[#allocation13 + $0x71]]
    %v4714 = vstv %s4713
    %v4715 = vmul.f32 %v4714, %v4705
    %v4716 = vmul.f32 %v4714, %v4706
    %v4717 = vadd.f32 %v4661, %v4715
    %v4718 = vadd.f32 %v4662, %v4716
    %s4719 = sld [smem:[#allocation13 + $0x72]]
    %v4720 = vstv %s4719
    %v4721 = vmul.f32 %v4720, %v4705
    %v4722 = vmul.f32 %v4720, %v4706
    %v4723 = vadd.f32 %v4673, %v4721
    %v4724 = vadd.f32 %v4674, %v4722
    %s4725 = sld [smem:[#allocation13 + $0x73]]
    %v4726 = vstv %s4725
    %v4727 = vmul.f32 %v4726, %v4705
    %v4728 = vmul.f32 %v4726, %v4706
    %v4729 = vadd.f32 %v4685, %v4727
    %v4730 = vadd.f32 %v4686, %v4728
    %s4731 = sld [smem:[#allocation13 + $0x74]]
    %v4732 = vstv %s4731
    %v4733 = vmul.f32 %v4732, %v4705
    %v4734 = vmul.f32 %v4732, %v4706
    %v4737 = vrot.slane %v4733, 1
    %v4738 = vrot.slane %v4734, 1
    %v4741 = vadd.f32 %v4711, %v4737
    %v4742 = vadd.f32 %v4712, %v4738
    %s4743 = sld [smem:[#allocation13 + $0x75]]
    %v4744 = vstv %s4743
    %v4745 = vmul.f32 %v4744, %v4705
    %v4746 = vmul.f32 %v4744, %v4706
    %v4749 = vrot.slane %v4745, 1
    %v4750 = vrot.slane %v4746, 1
    %v4753 = vadd.f32 %v4717, %v4749
    %v4754 = vadd.f32 %v4718, %v4750
    %s4755 = sld [smem:[#allocation13 + $0x76]]
    %v4756 = vstv %s4755
    %v4757 = vmul.f32 %v4756, %v4705
    %v4758 = vmul.f32 %v4756, %v4706
    %v4761 = vrot.slane %v4757, 1
    %v4762 = vrot.slane %v4758, 1
    %v4765 = vadd.f32 %v4723, %v4761
    %v4766 = vadd.f32 %v4724, %v4762
    %s4767 = sld [smem:[#allocation13 + $0x77]]
    %v4768 = vstv %s4767
    %v4769 = vmul.f32 %v4768, %v4705
    %v4770 = vmul.f32 %v4768, %v4706
    %v4773 = vrot.slane %v4769, 1
    %v4774 = vrot.slane %v4770, 1
    %v4777 = vadd.f32 %v4729, %v4773
    %v4778 = vadd.f32 %v4730, %v4774
    %s4779 = sld [smem:[#allocation13 + $0x78]]
    %v4780 = vstv %s4779
    %v4781 = vmul.f32 %v4780, %v4705
    %v4782 = vmul.f32 %v4780, %v4706
    %v4785 = vrot.slane %v4781, 2
    %v4786 = vrot.slane %v4782, 2
    %v4789 = vadd.f32 %v4741, %v4785
    %v4790 = vadd.f32 %v4742, %v4786
    %s4791 = sld [smem:[#allocation13 + $0x79]]
    %v4792 = vstv %s4791
    %v4793 = vmul.f32 %v4792, %v4705
    %v4794 = vmul.f32 %v4792, %v4706
    %v4797 = vrot.slane %v4793, 2
    %v4798 = vrot.slane %v4794, 2
    %v4801 = vadd.f32 %v4753, %v4797
    %v4802 = vadd.f32 %v4754, %v4798
    %s4803 = sld [smem:[#allocation13 + $0x7a]]
    %v4804 = vstv %s4803
    %v4805 = vmul.f32 %v4804, %v4705
    %v4806 = vmul.f32 %v4804, %v4706
    %v4809 = vrot.slane %v4805, 2
    %v4810 = vrot.slane %v4806, 2
    %v4813 = vadd.f32 %v4765, %v4809
    %v4814 = vadd.f32 %v4766, %v4810
    %s4815 = sld [smem:[#allocation13 + $0x7b]]
    %v4816 = vstv %s4815
    %v4817 = vmul.f32 %v4816, %v4705
    %v4818 = vmul.f32 %v4816, %v4706
    %v4821 = vrot.slane %v4817, 2
    %v4822 = vrot.slane %v4818, 2
    %v4825 = vadd.f32 %v4777, %v4821
    %v4826 = vadd.f32 %v4778, %v4822
    %s4827 = sld [smem:[#allocation13 + $0x7c]]
    %v4828 = vstv %s4827
    %v4829 = vmul.f32 %v4828, %v4705
    %v4830 = vmul.f32 %v4828, %v4706
    %v4833 = vrot.slane %v4829, 3
    %v4834 = vrot.slane %v4830, 3
    %v4837 = vadd.f32 %v4789, %v4833
    %v4838 = vadd.f32 %v4790, %v4834
    %s4839 = sld [smem:[#allocation13 + $0x7d]]
    %v4840 = vstv %s4839
    %v4841 = vmul.f32 %v4840, %v4705
    %v4842 = vmul.f32 %v4840, %v4706
    %v4845 = vrot.slane %v4841, 3
    %v4846 = vrot.slane %v4842, 3
    %v4849 = vadd.f32 %v4801, %v4845
    %v4850 = vadd.f32 %v4802, %v4846
    %s4851 = sld [smem:[#allocation13 + $0x7e]]
    %v4852 = vstv %s4851
    %v4853 = vmul.f32 %v4852, %v4705
    %v4854 = vmul.f32 %v4852, %v4706
    %v4857 = vrot.slane %v4853, 3
    %v4858 = vrot.slane %v4854, 3
    %v4861 = vadd.f32 %v4813, %v4857
    %v4862 = vadd.f32 %v4814, %v4858
    %s4863 = sld [smem:[#allocation13 + $0x7f]]
    %v4864 = vstv %s4863
    %v4865 = vmul.f32 %v4864, %v4705
    %v4866 = vmul.f32 %v4864, %v4706
    %v4869 = vrot.slane %v4865, 3
    %v4870 = vrot.slane %v4866, 3
    %v4873 = vadd.f32 %v4825, %v4869
    %v4874 = vadd.f32 %v4826, %v4870
    %4875 = vrot.lane.b32.xlu0 %v3397, 111
    %v4876 = vpop.permute.xlu0 %4875
    %4877 = vrot.lane.b32.xlu0 %v3398, 111
    %v4878 = vpop.permute.xlu0 %4877
    %v4879 = vsel %vm1626, %v4876, %v4878
    %v4880 = vsel %vm1626, %v4878, %v4876
    %v4881 = vld [vmem:[%s1629] sm:$0x3]
    %v4883 = vlaneseq
    %v4884 = vshrl.u32 %v4883, 7
    %v4885 = vsub.s32 0, %v4884
    %v4886 = vrot.slane %v4881, %v4885
    %v4887 = vlaneseq
    %v4888 = vshrl.u32 %v4887, 7
    %v4889 = vsub.s32 1, %v4888
    %v4890 = vrot.slane %v4881, %v4889
    %v4893 = vmul.f32 %v4879, %v4886
    %v4894 = vmul.f32 %v4880, %v4890
    %s4895 = sld [smem:[#allocation13 + $0x80]]
    %v4896 = vstv %s4895
    %v4897 = vmul.f32 %v4896, %v4893
    %v4898 = vmul.f32 %v4896, %v4894
    %v4899 = vadd.f32 %v4837, %v4897
    %v4900 = vadd.f32 %v4838, %v4898
    %s4901 = sld [smem:[#allocation13 + $0x81]]
    %v4902 = vstv %s4901
    %v4903 = vmul.f32 %v4902, %v4893
    %v4904 = vmul.f32 %v4902, %v4894
    %v4905 = vadd.f32 %v4849, %v4903
    %v4906 = vadd.f32 %v4850, %v4904
    %s4907 = sld [smem:[#allocation13 + $0x82]]
    %v4908 = vstv %s4907
    %v4909 = vmul.f32 %v4908, %v4893
    %v4910 = vmul.f32 %v4908, %v4894
    %v4911 = vadd.f32 %v4861, %v4909
    %v4912 = vadd.f32 %v4862, %v4910
    %s4913 = sld [smem:[#allocation13 + $0x83]]
    %v4914 = vstv %s4913
    %v4915 = vmul.f32 %v4914, %v4893
    %v4916 = vmul.f32 %v4914, %v4894
    %v4917 = vadd.f32 %v4873, %v4915
    %v4918 = vadd.f32 %v4874, %v4916
    %s4919 = sld [smem:[#allocation13 + $0x84]]
    %v4920 = vstv %s4919
    %v4921 = vmul.f32 %v4920, %v4893
    %v4922 = vmul.f32 %v4920, %v4894
    %v4925 = vrot.slane %v4921, 1
    %v4926 = vrot.slane %v4922, 1
    %v4929 = vadd.f32 %v4899, %v4925
    %v4930 = vadd.f32 %v4900, %v4926
    %s4931 = sld [smem:[#allocation13 + $0x85]]
    %v4932 = vstv %s4931
    %v4933 = vmul.f32 %v4932, %v4893
    %v4934 = vmul.f32 %v4932, %v4894
    %v4937 = vrot.slane %v4933, 1
    %v4938 = vrot.slane %v4934, 1
    %v4941 = vadd.f32 %v4905, %v4937
    %v4942 = vadd.f32 %v4906, %v4938
    %s4943 = sld [smem:[#allocation13 + $0x86]]
    %v4944 = vstv %s4943
    %v4945 = vmul.f32 %v4944, %v4893
    %v4946 = vmul.f32 %v4944, %v4894
    %v4949 = vrot.slane %v4945, 1
    %v4950 = vrot.slane %v4946, 1
    %v4953 = vadd.f32 %v4911, %v4949
    %v4954 = vadd.f32 %v4912, %v4950
    %s4955 = sld [smem:[#allocation13 + $0x87]]
    %v4956 = vstv %s4955
    %v4957 = vmul.f32 %v4956, %v4893
    %v4958 = vmul.f32 %v4956, %v4894
    %v4961 = vrot.slane %v4957, 1
    %v4962 = vrot.slane %v4958, 1
    %v4965 = vadd.f32 %v4917, %v4961
    %v4966 = vadd.f32 %v4918, %v4962
    %s4967 = sld [smem:[#allocation13 + $0x88]]
    %v4968 = vstv %s4967
    %v4969 = vmul.f32 %v4968, %v4893
    %v4970 = vmul.f32 %v4968, %v4894
    %v4973 = vrot.slane %v4969, 2
    %v4974 = vrot.slane %v4970, 2
    %v4977 = vadd.f32 %v4929, %v4973
    %v4978 = vadd.f32 %v4930, %v4974
    %s4979 = sld [smem:[#allocation13 + $0x89]]
    %v4980 = vstv %s4979
    %v4981 = vmul.f32 %v4980, %v4893
    %v4982 = vmul.f32 %v4980, %v4894
    %v4985 = vrot.slane %v4981, 2
    %v4986 = vrot.slane %v4982, 2
    %v4989 = vadd.f32 %v4941, %v4985
    %v4990 = vadd.f32 %v4942, %v4986
    %s4991 = sld [smem:[#allocation13 + $0x8a]]
    %v4992 = vstv %s4991
    %v4993 = vmul.f32 %v4992, %v4893
    %v4994 = vmul.f32 %v4992, %v4894
    %v4997 = vrot.slane %v4993, 2
    %v4998 = vrot.slane %v4994, 2
    %v5001 = vadd.f32 %v4953, %v4997
    %v5002 = vadd.f32 %v4954, %v4998
    %s5003 = sld [smem:[#allocation13 + $0x8b]]
    %v5004 = vstv %s5003
    %v5005 = vmul.f32 %v5004, %v4893
    %v5006 = vmul.f32 %v5004, %v4894
    %v5009 = vrot.slane %v5005, 2
    %v5010 = vrot.slane %v5006, 2
    %v5013 = vadd.f32 %v4965, %v5009
    %v5014 = vadd.f32 %v4966, %v5010
    %s5015 = sld [smem:[#allocation13 + $0x8c]]
    %v5016 = vstv %s5015
    %v5017 = vmul.f32 %v5016, %v4893
    %v5018 = vmul.f32 %v5016, %v4894
    %v5021 = vrot.slane %v5017, 3
    %v5022 = vrot.slane %v5018, 3
    %v5025 = vadd.f32 %v4977, %v5021
    %v5026 = vadd.f32 %v4978, %v5022
    %s5027 = sld [smem:[#allocation13 + $0x8d]]
    %v5028 = vstv %s5027
    %v5029 = vmul.f32 %v5028, %v4893
    %v5030 = vmul.f32 %v5028, %v4894
    %v5033 = vrot.slane %v5029, 3
    %v5034 = vrot.slane %v5030, 3
    %v5037 = vadd.f32 %v4989, %v5033
    %v5038 = vadd.f32 %v4990, %v5034
    %s5039 = sld [smem:[#allocation13 + $0x8e]]
    %v5040 = vstv %s5039
    %v5041 = vmul.f32 %v5040, %v4893
    %v5042 = vmul.f32 %v5040, %v4894
    %v5045 = vrot.slane %v5041, 3
    %v5046 = vrot.slane %v5042, 3
    %v5049 = vadd.f32 %v5001, %v5045
    %v5050 = vadd.f32 %v5002, %v5046
    %s5051 = sld [smem:[#allocation13 + $0x8f]]
    %v5052 = vstv %s5051
    %v5053 = vmul.f32 %v5052, %v4893
    %v5054 = vmul.f32 %v5052, %v4894
    %v5057 = vrot.slane %v5053, 3
    %v5058 = vrot.slane %v5054, 3
    %v5061 = vadd.f32 %v5013, %v5057
    %v5062 = vadd.f32 %v5014, %v5058
    %v5065 = vcombine.low %v3147, %v3148
    %v5067 = vunpack.c.l.s4 1966171168
    %v5068 = vunpack.c.0.s8 %v5067
    %v5069 = vlaneseq
    %v5070 = vshrl.u32 %v5069, 7
    %v5071 = vsub.s32 %v5068, %v5070
    %v5072 = vrot.slane %v5065, %v5071
    %v5074 = vunpack.c.l.s4 1966171168
    %v5075 = vunpack.c.0.s8 %v5074
    %v5076 = vlaneseq
    %v5077 = vshrl.u32 %v5076, 7
    %v5078 = vsub.s32 %v5075, %v5077
    %v5079 = vrot.slane %v5072, %v5078
    %5081 = vst.msk [vmem:[#allocation2] ss:$8 sm:$0x3] %vm3331, %v5079
    %5082 = vst.msk [vmem:[#allocation2] ss:$8 sm:$0x0] %vm3331, %v5079
    %v5085 = vcombine.low %v3200, %v3201
    %v5087 = vunpack.c.l.s4 1966171168
    %v5088 = vunpack.c.0.s8 %v5087
    %v5089 = vlaneseq
    %v5090 = vshrl.u32 %v5089, 7
    %v5091 = vsub.s32 %v5088, %v5090
    %v5092 = vrot.slane %v5085, %v5091
    %v5094 = vunpack.c.l.s4 1966171168
    %v5095 = vunpack.c.0.s8 %v5094
    %v5096 = vlaneseq
    %v5097 = vshrl.u32 %v5096, 7
    %v5098 = vsub.s32 %v5095, %v5097
    %v5099 = vrot.slane %v5092, %v5098
    %5101 = vst.msk [vmem:[%s3352] ss:$8 sm:$0x3] %vm3331, %v5099
    %5102 = vst.msk [vmem:[%s3352] ss:$8 sm:$0x0] %vm3331, %v5099
    %v5105 = vcombine.low %v3253, %v3254
    %v5107 = vunpack.c.l.s4 1966171168
    %v5108 = vunpack.c.0.s8 %v5107
    %v5109 = vlaneseq
    %v5110 = vshrl.u32 %v5109, 7
    %v5111 = vsub.s32 %v5108, %v5110
    %v5112 = vrot.slane %v5105, %v5111
    %v5114 = vunpack.c.l.s4 1966171168
    %v5115 = vunpack.c.0.s8 %v5114
    %v5116 = vlaneseq
    %v5117 = vshrl.u32 %v5116, 7
    %v5118 = vsub.s32 %v5115, %v5117
    %v5119 = vrot.slane %v5112, %v5118
    %5121 = vst.msk [vmem:[%s3373] ss:$8 sm:$0x3] %vm3331, %v5119
    %5122 = vst.msk [vmem:[%s3373] ss:$8 sm:$0x0] %vm3331, %v5119
    %v5125 = vcombine.low %v3306, %v3307
    %v5127 = vunpack.c.l.s4 1966171168
    %v5128 = vunpack.c.0.s8 %v5127
    %v5129 = vlaneseq
    %v5130 = vshrl.u32 %v5129, 7
    %v5131 = vsub.s32 %v5128, %v5130
    %v5132 = vrot.slane %v5125, %v5131
    %v5134 = vunpack.c.l.s4 1966171168
    %v5135 = vunpack.c.0.s8 %v5134
    %v5136 = vlaneseq
    %v5137 = vshrl.u32 %v5136, 7
    %v5138 = vsub.s32 %v5135, %v5137
    %v5139 = vrot.slane %v5132, %v5138
    %5141 = vst.msk [vmem:[%s3394] ss:$8 sm:$0x3] %vm3331, %v5139
    %5142 = vst.msk [vmem:[%s3394] ss:$8 sm:$0x0] %vm3331, %v5139
    %v5143 = vld [vmem:[#allocation2] sm:$0xff]
    %v5144 = vld [vmem:[#allocation2 + $0x8] sm:$0xff]
    %5145 = vrot.lane.b32.xlu0 %v5143, 17
    %v5146 = vpop.permute.xlu0 %5145
    %5147 = vrot.lane.b32.xlu0 %v5144, 17
    %v5148 = vpop.permute.xlu0 %5147
    %v5149 = vsel %vm137, %v5146, %v5148
    %v5150 = vsel %vm137, %v5148, %v5146
    %v5151 = vld [vmem:[#allocation7] sm:$0x3]
    %v5153 = vlaneseq
    %v5154 = vshrl.u32 %v5153, 7
    %v5155 = vsub.s32 0, %v5154
    %v5156 = vrot.slane %v5151, %v5155
    %v5157 = vlaneseq
    %v5158 = vshrl.u32 %v5157, 7
    %v5159 = vsub.s32 1, %v5158
    %v5160 = vrot.slane %v5151, %v5159
    %v5163 = vmul.f32 %v5150, %v5156
    %v5164 = vmul.f32 %v5149, %v5160
    %s5165 = sld [smem:[#allocation13]]
    %v5166 = vstv %s5165
    %v5167 = vmul.f32 %v5166, %v5163
    %v5168 = vmul.f32 %v5166, %v5164
    %s5169 = sld [smem:[#allocation13 + $0x1]]
    %v5170 = vstv %s5169
    %v5171 = vmul.f32 %v5170, %v5163
    %v5172 = vmul.f32 %v5170, %v5164
    %s5173 = sld [smem:[#allocation13 + $0x2]]
    %v5174 = vstv %s5173
    %v5175 = vmul.f32 %v5174, %v5163
    %v5176 = vmul.f32 %v5174, %v5164
    %s5177 = sld [smem:[#allocation13 + $0x3]]
    %v5178 = vstv %s5177
    %v5179 = vmul.f32 %v5178, %v5163
    %v5180 = vmul.f32 %v5178, %v5164
    %s5181 = sld [smem:[#allocation13 + $0x4]]
    %v5182 = vstv %s5181
    %v5183 = vmul.f32 %v5182, %v5163
    %v5184 = vmul.f32 %v5182, %v5164
    %v5187 = vrot.slane %v5183, 1
    %v5188 = vrot.slane %v5184, 1
    %v5191 = vadd.f32 %v5167, %v5187
    %v5192 = vadd.f32 %v5168, %v5188
    %s5193 = sld [smem:[#allocation13 + $0x5]]
    %v5194 = vstv %s5193
    %v5195 = vmul.f32 %v5194, %v5163
    %v5196 = vmul.f32 %v5194, %v5164
    %v5199 = vrot.slane %v5195, 1
    %v5200 = vrot.slane %v5196, 1
    %v5203 = vadd.f32 %v5171, %v5199
    %v5204 = vadd.f32 %v5172, %v5200
    %s5205 = sld [smem:[#allocation13 + $0x6]]
    %v5206 = vstv %s5205
    %v5207 = vmul.f32 %v5206, %v5163
    %v5208 = vmul.f32 %v5206, %v5164
    %v5211 = vrot.slane %v5207, 1
    %v5212 = vrot.slane %v5208, 1
    %v5215 = vadd.f32 %v5175, %v5211
    %v5216 = vadd.f32 %v5176, %v5212
    %s5217 = sld [smem:[#allocation13 + $0x7]]
    %v5218 = vstv %s5217
    %v5219 = vmul.f32 %v5218, %v5163
    %v5220 = vmul.f32 %v5218, %v5164
    %v5223 = vrot.slane %v5219, 1
    %v5224 = vrot.slane %v5220, 1
    %v5227 = vadd.f32 %v5179, %v5223
    %v5228 = vadd.f32 %v5180, %v5224
    %s5229 = sld [smem:[#allocation13 + $0x8]]
    %v5230 = vstv %s5229
    %v5231 = vmul.f32 %v5230, %v5163
    %v5232 = vmul.f32 %v5230, %v5164
    %v5235 = vrot.slane %v5231, 2
    %v5236 = vrot.slane %v5232, 2
    %v5239 = vadd.f32 %v5191, %v5235
    %v5240 = vadd.f32 %v5192, %v5236
    %s5241 = sld [smem:[#allocation13 + $0x9]]
    %v5242 = vstv %s5241
    %v5243 = vmul.f32 %v5242, %v5163
    %v5244 = vmul.f32 %v5242, %v5164
    %v5247 = vrot.slane %v5243, 2
    %v5248 = vrot.slane %v5244, 2
    %v5251 = vadd.f32 %v5203, %v5247
    %v5252 = vadd.f32 %v5204, %v5248
    %s5253 = sld [smem:[#allocation13 + $0xa]]
    %v5254 = vstv %s5253
    %v5255 = vmul.f32 %v5254, %v5163
    %v5256 = vmul.f32 %v5254, %v5164
    %v5259 = vrot.slane %v5255, 2
    %v5260 = vrot.slane %v5256, 2
    %v5263 = vadd.f32 %v5215, %v5259
    %v5264 = vadd.f32 %v5216, %v5260
    %s5265 = sld [smem:[#allocation13 + $0xb]]
    %v5266 = vstv %s5265
    %v5267 = vmul.f32 %v5266, %v5163
    %v5268 = vmul.f32 %v5266, %v5164
    %v5271 = vrot.slane %v5267, 2
    %v5272 = vrot.slane %v5268, 2
    %v5275 = vadd.f32 %v5227, %v5271
    %v5276 = vadd.f32 %v5228, %v5272
    %s5277 = sld [smem:[#allocation13 + $0xc]]
    %v5278 = vstv %s5277
    %v5279 = vmul.f32 %v5278, %v5163
    %v5280 = vmul.f32 %v5278, %v5164
    %v5283 = vrot.slane %v5279, 3
    %v5284 = vrot.slane %v5280, 3
    %v5287 = vadd.f32 %v5239, %v5283
    %v5288 = vadd.f32 %v5240, %v5284
    %s5289 = sld [smem:[#allocation13 + $0xd]]
    %v5290 = vstv %s5289
    %v5291 = vmul.f32 %v5290, %v5163
    %v5292 = vmul.f32 %v5290, %v5164
    %v5295 = vrot.slane %v5291, 3
    %v5296 = vrot.slane %v5292, 3
    %v5299 = vadd.f32 %v5251, %v5295
    %v5300 = vadd.f32 %v5252, %v5296
    %s5301 = sld [smem:[#allocation13 + $0xe]]
    %v5302 = vstv %s5301
    %v5303 = vmul.f32 %v5302, %v5163
    %v5304 = vmul.f32 %v5302, %v5164
    %v5307 = vrot.slane %v5303, 3
    %v5308 = vrot.slane %v5304, 3
    %v5311 = vadd.f32 %v5263, %v5307
    %v5312 = vadd.f32 %v5264, %v5308
    %s5313 = sld [smem:[#allocation13 + $0xf]]
    %v5314 = vstv %s5313
    %v5315 = vmul.f32 %v5314, %v5163
    %v5316 = vmul.f32 %v5314, %v5164
    %v5319 = vrot.slane %v5315, 3
    %v5320 = vrot.slane %v5316, 3
    %v5323 = vadd.f32 %v5275, %v5319
    %v5324 = vadd.f32 %v5276, %v5320
    %5325 = vrot.lane.b32.xlu0 %v5143, 16
    %v5326 = vpop.permute.xlu0 %5325
    %5327 = vrot.lane.b32.xlu0 %v5144, 16
    %v5328 = vpop.permute.xlu0 %5327
    %v5329 = vsel %vm318, %v5326, %v5328
    %v5330 = vsel %vm318, %v5328, %v5326
    %v5331 = vld [vmem:[%s321] sm:$0x3]
    %v5333 = vlaneseq
    %v5334 = vshrl.u32 %v5333, 7
    %v5335 = vsub.s32 0, %v5334
    %v5336 = vrot.slane %v5331, %v5335
    %v5337 = vlaneseq
    %v5338 = vshrl.u32 %v5337, 7
    %v5339 = vsub.s32 1, %v5338
    %v5340 = vrot.slane %v5331, %v5339
    %v5343 = vmul.f32 %v5330, %v5336
    %v5344 = vmul.f32 %v5329, %v5340
    %s5345 = sld [smem:[#allocation13 + $0x10]]
    %v5346 = vstv %s5345
    %v5347 = vmul.f32 %v5346, %v5343
    %v5348 = vmul.f32 %v5346, %v5344
    %v5349 = vadd.f32 %v5287, %v5347
    %v5350 = vadd.f32 %v5288, %v5348
    %s5351 = sld [smem:[#allocation13 + $0x11]]
    %v5352 = vstv %s5351
    %v5353 = vmul.f32 %v5352, %v5343
    %v5354 = vmul.f32 %v5352, %v5344
    %v5355 = vadd.f32 %v5299, %v5353
    %v5356 = vadd.f32 %v5300, %v5354
    %s5357 = sld [smem:[#allocation13 + $0x12]]
    %v5358 = vstv %s5357
    %v5359 = vmul.f32 %v5358, %v5343
    %v5360 = vmul.f32 %v5358, %v5344
    %v5361 = vadd.f32 %v5311, %v5359
    %v5362 = vadd.f32 %v5312, %v5360
    %s5363 = sld [smem:[#allocation13 + $0x13]]
    %v5364 = vstv %s5363
    %v5365 = vmul.f32 %v5364, %v5343
    %v5366 = vmul.f32 %v5364, %v5344
    %v5367 = vadd.f32 %v5323, %v5365
    %v5368 = vadd.f32 %v5324, %v5366
    %s5369 = sld [smem:[#allocation13 + $0x14]]
    %v5370 = vstv %s5369
    %v5371 = vmul.f32 %v5370, %v5343
    %v5372 = vmul.f32 %v5370, %v5344
    %v5375 = vrot.slane %v5371, 1
    %v5376 = vrot.slane %v5372, 1
    %v5379 = vadd.f32 %v5349, %v5375
    %v5380 = vadd.f32 %v5350, %v5376
    %s5381 = sld [smem:[#allocation13 + $0x15]]
    %v5382 = vstv %s5381
    %v5383 = vmul.f32 %v5382, %v5343
    %v5384 = vmul.f32 %v5382, %v5344
    %v5387 = vrot.slane %v5383, 1
    %v5388 = vrot.slane %v5384, 1
    %v5391 = vadd.f32 %v5355, %v5387
    %v5392 = vadd.f32 %v5356, %v5388
    %s5393 = sld [smem:[#allocation13 + $0x16]]
    %v5394 = vstv %s5393
    %v5395 = vmul.f32 %v5394, %v5343
    %v5396 = vmul.f32 %v5394, %v5344
    %v5399 = vrot.slane %v5395, 1
    %v5400 = vrot.slane %v5396, 1
    %v5403 = vadd.f32 %v5361, %v5399
    %v5404 = vadd.f32 %v5362, %v5400
    %s5405 = sld [smem:[#allocation13 + $0x17]]
    %v5406 = vstv %s5405
    %v5407 = vmul.f32 %v5406, %v5343
    %v5408 = vmul.f32 %v5406, %v5344
    %v5411 = vrot.slane %v5407, 1
    %v5412 = vrot.slane %v5408, 1
    %v5415 = vadd.f32 %v5367, %v5411
    %v5416 = vadd.f32 %v5368, %v5412
    %s5417 = sld [smem:[#allocation13 + $0x18]]
    %v5418 = vstv %s5417
    %v5419 = vmul.f32 %v5418, %v5343
    %v5420 = vmul.f32 %v5418, %v5344
    %v5423 = vrot.slane %v5419, 2
    %v5424 = vrot.slane %v5420, 2
    %v5427 = vadd.f32 %v5379, %v5423
    %v5428 = vadd.f32 %v5380, %v5424
    %s5429 = sld [smem:[#allocation13 + $0x19]]
    %v5430 = vstv %s5429
    %v5431 = vmul.f32 %v5430, %v5343
    %v5432 = vmul.f32 %v5430, %v5344
    %v5435 = vrot.slane %v5431, 2
    %v5436 = vrot.slane %v5432, 2
    %v5439 = vadd.f32 %v5391, %v5435
    %v5440 = vadd.f32 %v5392, %v5436
    %s5441 = sld [smem:[#allocation13 + $0x1a]]
    %v5442 = vstv %s5441
    %v5443 = vmul.f32 %v5442, %v5343
    %v5444 = vmul.f32 %v5442, %v5344
    %v5447 = vrot.slane %v5443, 2
    %v5448 = vrot.slane %v5444, 2
    %v5451 = vadd.f32 %v5403, %v5447
    %v5452 = vadd.f32 %v5404, %v5448
    %s5453 = sld [smem:[#allocation13 + $0x1b]]
    %v5454 = vstv %s5453
    %v5455 = vmul.f32 %v5454, %v5343
    %v5456 = vmul.f32 %v5454, %v5344
    %v5459 = vrot.slane %v5455, 2
    %v5460 = vrot.slane %v5456, 2
    %v5463 = vadd.f32 %v5415, %v5459
    %v5464 = vadd.f32 %v5416, %v5460
    %s5465 = sld [smem:[#allocation13 + $0x1c]]
    %v5466 = vstv %s5465
    %v5467 = vmul.f32 %v5466, %v5343
    %v5468 = vmul.f32 %v5466, %v5344
    %v5471 = vrot.slane %v5467, 3
    %v5472 = vrot.slane %v5468, 3
    %v5475 = vadd.f32 %v5427, %v5471
    %v5476 = vadd.f32 %v5428, %v5472
    %s5477 = sld [smem:[#allocation13 + $0x1d]]
    %v5478 = vstv %s5477
    %v5479 = vmul.f32 %v5478, %v5343
    %v5480 = vmul.f32 %v5478, %v5344
    %v5483 = vrot.slane %v5479, 3
    %v5484 = vrot.slane %v5480, 3
    %v5487 = vadd.f32 %v5439, %v5483
    %v5488 = vadd.f32 %v5440, %v5484
    %s5489 = sld [smem:[#allocation13 + $0x1e]]
    %v5490 = vstv %s5489
    %v5491 = vmul.f32 %v5490, %v5343
    %v5492 = vmul.f32 %v5490, %v5344
    %v5495 = vrot.slane %v5491, 3
    %v5496 = vrot.slane %v5492, 3
    %v5499 = vadd.f32 %v5451, %v5495
    %v5500 = vadd.f32 %v5452, %v5496
    %s5501 = sld [smem:[#allocation13 + $0x1f]]
    %v5502 = vstv %s5501
    %v5503 = vmul.f32 %v5502, %v5343
    %v5504 = vmul.f32 %v5502, %v5344
    %v5507 = vrot.slane %v5503, 3
    %v5508 = vrot.slane %v5504, 3
    %v5511 = vadd.f32 %v5463, %v5507
    %v5512 = vadd.f32 %v5464, %v5508
    %5513 = vrot.lane.b32.xlu0 %v5143, 15
    %v5514 = vpop.permute.xlu0 %5513
    %5515 = vrot.lane.b32.xlu0 %v5144, 15
    %v5516 = vpop.permute.xlu0 %5515
    %v5517 = vsel %vm508, %v5514, %v5516
    %v5518 = vsel %vm508, %v5516, %v5514
    %v5519 = vld [vmem:[%s511] sm:$0x3]
    %v5521 = vlaneseq
    %v5522 = vshrl.u32 %v5521, 7
    %v5523 = vsub.s32 0, %v5522
    %v5524 = vrot.slane %v5519, %v5523
    %v5525 = vlaneseq
    %v5526 = vshrl.u32 %v5525, 7
    %v5527 = vsub.s32 1, %v5526
    %v5528 = vrot.slane %v5519, %v5527
    %v5531 = vmul.f32 %v5518, %v5524
    %v5532 = vmul.f32 %v5517, %v5528
    %s5533 = sld [smem:[#allocation13 + $0x20]]
    %v5534 = vstv %s5533
    %v5535 = vmul.f32 %v5534, %v5531
    %v5536 = vmul.f32 %v5534, %v5532
    %v5537 = vadd.f32 %v5475, %v5535
    %v5538 = vadd.f32 %v5476, %v5536
    %s5539 = sld [smem:[#allocation13 + $0x21]]
    %v5540 = vstv %s5539
    %v5541 = vmul.f32 %v5540, %v5531
    %v5542 = vmul.f32 %v5540, %v5532
    %v5543 = vadd.f32 %v5487, %v5541
    %v5544 = vadd.f32 %v5488, %v5542
    %s5545 = sld [smem:[#allocation13 + $0x22]]
    %v5546 = vstv %s5545
    %v5547 = vmul.f32 %v5546, %v5531
    %v5548 = vmul.f32 %v5546, %v5532
    %v5549 = vadd.f32 %v5499, %v5547
    %v5550 = vadd.f32 %v5500, %v5548
    %s5551 = sld [smem:[#allocation13 + $0x23]]
    %v5552 = vstv %s5551
    %v5553 = vmul.f32 %v5552, %v5531
    %v5554 = vmul.f32 %v5552, %v5532
    %v5555 = vadd.f32 %v5511, %v5553
    %v5556 = vadd.f32 %v5512, %v5554
    %s5557 = sld [smem:[#allocation13 + $0x24]]
    %v5558 = vstv %s5557
    %v5559 = vmul.f32 %v5558, %v5531
    %v5560 = vmul.f32 %v5558, %v5532
    %v5563 = vrot.slane %v5559, 1
    %v5564 = vrot.slane %v5560, 1
    %v5567 = vadd.f32 %v5537, %v5563
    %v5568 = vadd.f32 %v5538, %v5564
    %s5569 = sld [smem:[#allocation13 + $0x25]]
    %v5570 = vstv %s5569
    %v5571 = vmul.f32 %v5570, %v5531
    %v5572 = vmul.f32 %v5570, %v5532
    %v5575 = vrot.slane %v5571, 1
    %v5576 = vrot.slane %v5572, 1
    %v5579 = vadd.f32 %v5543, %v5575
    %v5580 = vadd.f32 %v5544, %v5576
    %s5581 = sld [smem:[#allocation13 + $0x26]]
    %v5582 = vstv %s5581
    %v5583 = vmul.f32 %v5582, %v5531
    %v5584 = vmul.f32 %v5582, %v5532
    %v5587 = vrot.slane %v5583, 1
    %v5588 = vrot.slane %v5584, 1
    %v5591 = vadd.f32 %v5549, %v5587
    %v5592 = vadd.f32 %v5550, %v5588
    %s5593 = sld [smem:[#allocation13 + $0x27]]
    %v5594 = vstv %s5593
    %v5595 = vmul.f32 %v5594, %v5531
    %v5596 = vmul.f32 %v5594, %v5532
    %v5599 = vrot.slane %v5595, 1
    %v5600 = vrot.slane %v5596, 1
    %v5603 = vadd.f32 %v5555, %v5599
    %v5604 = vadd.f32 %v5556, %v5600
    %s5605 = sld [smem:[#allocation13 + $0x28]]
    %v5606 = vstv %s5605
    %v5607 = vmul.f32 %v5606, %v5531
    %v5608 = vmul.f32 %v5606, %v5532
    %v5611 = vrot.slane %v5607, 2
    %v5612 = vrot.slane %v5608, 2
    %v5615 = vadd.f32 %v5567, %v5611
    %v5616 = vadd.f32 %v5568, %v5612
    %s5617 = sld [smem:[#allocation13 + $0x29]]
    %v5618 = vstv %s5617
    %v5619 = vmul.f32 %v5618, %v5531
    %v5620 = vmul.f32 %v5618, %v5532
    %v5623 = vrot.slane %v5619, 2
    %v5624 = vrot.slane %v5620, 2
    %v5627 = vadd.f32 %v5579, %v5623
    %v5628 = vadd.f32 %v5580, %v5624
    %s5629 = sld [smem:[#allocation13 + $0x2a]]
    %v5630 = vstv %s5629
    %v5631 = vmul.f32 %v5630, %v5531
    %v5632 = vmul.f32 %v5630, %v5532
    %v5635 = vrot.slane %v5631, 2
    %v5636 = vrot.slane %v5632, 2
    %v5639 = vadd.f32 %v5591, %v5635
    %v5640 = vadd.f32 %v5592, %v5636
    %s5641 = sld [smem:[#allocation13 + $0x2b]]
    %v5642 = vstv %s5641
    %v5643 = vmul.f32 %v5642, %v5531
    %v5644 = vmul.f32 %v5642, %v5532
    %v5647 = vrot.slane %v5643, 2
    %v5648 = vrot.slane %v5644, 2
    %v5651 = vadd.f32 %v5603, %v5647
    %v5652 = vadd.f32 %v5604, %v5648
    %s5653 = sld [smem:[#allocation13 + $0x2c]]
    %v5654 = vstv %s5653
    %v5655 = vmul.f32 %v5654, %v5531
    %v5656 = vmul.f32 %v5654, %v5532
    %v5659 = vrot.slane %v5655, 3
    %v5660 = vrot.slane %v5656, 3
    %v5663 = vadd.f32 %v5615, %v5659
    %v5664 = vadd.f32 %v5616, %v5660
    %s5665 = sld [smem:[#allocation13 + $0x2d]]
    %v5666 = vstv %s5665
    %v5667 = vmul.f32 %v5666, %v5531
    %v5668 = vmul.f32 %v5666, %v5532
    %v5671 = vrot.slane %v5667, 3
    %v5672 = vrot.slane %v5668, 3
    %v5675 = vadd.f32 %v5627, %v5671
    %v5676 = vadd.f32 %v5628, %v5672
    %s5677 = sld [smem:[#allocation13 + $0x2e]]
    %v5678 = vstv %s5677
    %v5679 = vmul.f32 %v5678, %v5531
    %v5680 = vmul.f32 %v5678, %v5532
    %v5683 = vrot.slane %v5679, 3
    %v5684 = vrot.slane %v5680, 3
    %v5687 = vadd.f32 %v5639, %v5683
    %v5688 = vadd.f32 %v5640, %v5684
    %s5689 = sld [smem:[#allocation13 + $0x2f]]
    %v5690 = vstv %s5689
    %v5691 = vmul.f32 %v5690, %v5531
    %v5692 = vmul.f32 %v5690, %v5532
    %v5695 = vrot.slane %v5691, 3
    %v5696 = vrot.slane %v5692, 3
    %v5699 = vadd.f32 %v5651, %v5695
    %v5700 = vadd.f32 %v5652, %v5696
    %5701 = vrot.lane.b32.xlu0 %v5143, 1
    %v5702 = vpop.permute.xlu0 %5701
    %5703 = vrot.lane.b32.xlu0 %v5144, 1
    %v5704 = vpop.permute.xlu0 %5703
    %v5705 = vsel %vm698, %v5702, %v5704
    %v5706 = vsel %vm698, %v5704, %v5702
    %v5707 = vld [vmem:[%s701] sm:$0x3]
    %v5709 = vlaneseq
    %v5710 = vshrl.u32 %v5709, 7
    %v5711 = vsub.s32 0, %v5710
    %v5712 = vrot.slane %v5707, %v5711
    %v5713 = vlaneseq
    %v5714 = vshrl.u32 %v5713, 7
    %v5715 = vsub.s32 1, %v5714
    %v5716 = vrot.slane %v5707, %v5715
    %v5719 = vmul.f32 %v5706, %v5712
    %v5720 = vmul.f32 %v5705, %v5716
    %s5721 = sld [smem:[#allocation13 + $0x30]]
    %v5722 = vstv %s5721
    %v5723 = vmul.f32 %v5722, %v5719
    %v5724 = vmul.f32 %v5722, %v5720
    %v5725 = vadd.f32 %v5663, %v5723
    %v5726 = vadd.f32 %v5664, %v5724
    %s5727 = sld [smem:[#allocation13 + $0x31]]
    %v5728 = vstv %s5727
    %v5729 = vmul.f32 %v5728, %v5719
    %v5730 = vmul.f32 %v5728, %v5720
    %v5731 = vadd.f32 %v5675, %v5729
    %v5732 = vadd.f32 %v5676, %v5730
    %s5733 = sld [smem:[#allocation13 + $0x32]]
    %v5734 = vstv %s5733
    %v5735 = vmul.f32 %v5734, %v5719
    %v5736 = vmul.f32 %v5734, %v5720
    %v5737 = vadd.f32 %v5687, %v5735
    %v5738 = vadd.f32 %v5688, %v5736
    %s5739 = sld [smem:[#allocation13 + $0x33]]
    %v5740 = vstv %s5739
    %v5741 = vmul.f32 %v5740, %v5719
    %v5742 = vmul.f32 %v5740, %v5720
    %v5743 = vadd.f32 %v5699, %v5741
    %v5744 = vadd.f32 %v5700, %v5742
    %s5745 = sld [smem:[#allocation13 + $0x34]]
    %v5746 = vstv %s5745
    %v5747 = vmul.f32 %v5746, %v5719
    %v5748 = vmul.f32 %v5746, %v5720
    %v5751 = vrot.slane %v5747, 1
    %v5752 = vrot.slane %v5748, 1
    %v5755 = vadd.f32 %v5725, %v5751
    %v5756 = vadd.f32 %v5726, %v5752
    %s5757 = sld [smem:[#allocation13 + $0x35]]
    %v5758 = vstv %s5757
    %v5759 = vmul.f32 %v5758, %v5719
    %v5760 = vmul.f32 %v5758, %v5720
    %v5763 = vrot.slane %v5759, 1
    %v5764 = vrot.slane %v5760, 1
    %v5767 = vadd.f32 %v5731, %v5763
    %v5768 = vadd.f32 %v5732, %v5764
    %s5769 = sld [smem:[#allocation13 + $0x36]]
    %v5770 = vstv %s5769
    %v5771 = vmul.f32 %v5770, %v5719
    %v5772 = vmul.f32 %v5770, %v5720
    %v5775 = vrot.slane %v5771, 1
    %v5776 = vrot.slane %v5772, 1
    %v5779 = vadd.f32 %v5737, %v5775
    %v5780 = vadd.f32 %v5738, %v5776
    %s5781 = sld [smem:[#allocation13 + $0x37]]
    %v5782 = vstv %s5781
    %v5783 = vmul.f32 %v5782, %v5719
    %v5784 = vmul.f32 %v5782, %v5720
    %v5787 = vrot.slane %v5783, 1
    %v5788 = vrot.slane %v5784, 1
    %v5791 = vadd.f32 %v5743, %v5787
    %v5792 = vadd.f32 %v5744, %v5788
    %s5793 = sld [smem:[#allocation13 + $0x38]]
    %v5794 = vstv %s5793
    %v5795 = vmul.f32 %v5794, %v5719
    %v5796 = vmul.f32 %v5794, %v5720
    %v5799 = vrot.slane %v5795, 2
    %v5800 = vrot.slane %v5796, 2
    %v5803 = vadd.f32 %v5755, %v5799
    %v5804 = vadd.f32 %v5756, %v5800
    %s5805 = sld [smem:[#allocation13 + $0x39]]
    %v5806 = vstv %s5805
    %v5807 = vmul.f32 %v5806, %v5719
    %v5808 = vmul.f32 %v5806, %v5720
    %v5811 = vrot.slane %v5807, 2
    %v5812 = vrot.slane %v5808, 2
    %v5815 = vadd.f32 %v5767, %v5811
    %v5816 = vadd.f32 %v5768, %v5812
    %s5817 = sld [smem:[#allocation13 + $0x3a]]
    %v5818 = vstv %s5817
    %v5819 = vmul.f32 %v5818, %v5719
    %v5820 = vmul.f32 %v5818, %v5720
    %v5823 = vrot.slane %v5819, 2
    %v5824 = vrot.slane %v5820, 2
    %v5827 = vadd.f32 %v5779, %v5823
    %v5828 = vadd.f32 %v5780, %v5824
    %s5829 = sld [smem:[#allocation13 + $0x3b]]
    %v5830 = vstv %s5829
    %v5831 = vmul.f32 %v5830, %v5719
    %v5832 = vmul.f32 %v5830, %v5720
    %v5835 = vrot.slane %v5831, 2
    %v5836 = vrot.slane %v5832, 2
    %v5839 = vadd.f32 %v5791, %v5835
    %v5840 = vadd.f32 %v5792, %v5836
    %s5841 = sld [smem:[#allocation13 + $0x3c]]
    %v5842 = vstv %s5841
    %v5843 = vmul.f32 %v5842, %v5719
    %v5844 = vmul.f32 %v5842, %v5720
    %v5847 = vrot.slane %v5843, 3
    %v5848 = vrot.slane %v5844, 3
    %v5851 = vadd.f32 %v5803, %v5847
    %v5852 = vadd.f32 %v5804, %v5848
    %s5853 = sld [smem:[#allocation13 + $0x3d]]
    %v5854 = vstv %s5853
    %v5855 = vmul.f32 %v5854, %v5719
    %v5856 = vmul.f32 %v5854, %v5720
    %v5859 = vrot.slane %v5855, 3
    %v5860 = vrot.slane %v5856, 3
    %v5863 = vadd.f32 %v5815, %v5859
    %v5864 = vadd.f32 %v5816, %v5860
    %s5865 = sld [smem:[#allocation13 + $0x3e]]
    %v5866 = vstv %s5865
    %v5867 = vmul.f32 %v5866, %v5719
    %v5868 = vmul.f32 %v5866, %v5720
    %v5871 = vrot.slane %v5867, 3
    %v5872 = vrot.slane %v5868, 3
    %v5875 = vadd.f32 %v5827, %v5871
    %v5876 = vadd.f32 %v5828, %v5872
    %s5877 = sld [smem:[#allocation13 + $0x3f]]
    %v5878 = vstv %s5877
    %v5879 = vmul.f32 %v5878, %v5719
    %v5880 = vmul.f32 %v5878, %v5720
    %v5883 = vrot.slane %v5879, 3
    %v5884 = vrot.slane %v5880, 3
    %v5887 = vadd.f32 %v5839, %v5883
    %v5888 = vadd.f32 %v5840, %v5884
    %s5889 = sld [smem:[#allocation13 + $0x40]]
    %v5890 = vstv %s5889
    %v5891 = vmul.f32 %v5890, %v5143
    %v5892 = vmul.f32 %v5890, %v5144
    %v5893 = vadd.f32 %v5851, %v5891
    %v5894 = vadd.f32 %v5852, %v5892
    %s5895 = sld [smem:[#allocation13 + $0x41]]
    %v5896 = vstv %s5895
    %v5897 = vmul.f32 %v5896, %v5143
    %v5898 = vmul.f32 %v5896, %v5144
    %v5899 = vadd.f32 %v5863, %v5897
    %v5900 = vadd.f32 %v5864, %v5898
    %s5901 = sld [smem:[#allocation13 + $0x42]]
    %v5902 = vstv %s5901
    %v5903 = vmul.f32 %v5902, %v5143
    %v5904 = vmul.f32 %v5902, %v5144
    %v5905 = vadd.f32 %v5875, %v5903
    %v5906 = vadd.f32 %v5876, %v5904
    %s5907 = sld [smem:[#allocation13 + $0x43]]
    %v5908 = vstv %s5907
    %v5909 = vmul.f32 %v5908, %v5143
    %v5910 = vmul.f32 %v5908, %v5144
    %v5911 = vadd.f32 %v5887, %v5909
    %v5912 = vadd.f32 %v5888, %v5910
    %s5913 = sld [smem:[#allocation13 + $0x44]]
    %v5914 = vstv %s5913
    %v5915 = vmul.f32 %v5914, %v5143
    %v5916 = vmul.f32 %v5914, %v5144
    %v5919 = vrot.slane %v5915, 1
    %v5920 = vrot.slane %v5916, 1
    %v5923 = vadd.f32 %v5893, %v5919
    %v5924 = vadd.f32 %v5894, %v5920
    %s5925 = sld [smem:[#allocation13 + $0x45]]
    %v5926 = vstv %s5925
    %v5927 = vmul.f32 %v5926, %v5143
    %v5928 = vmul.f32 %v5926, %v5144
    %v5931 = vrot.slane %v5927, 1
    %v5932 = vrot.slane %v5928, 1
    %v5935 = vadd.f32 %v5899, %v5931
    %v5936 = vadd.f32 %v5900, %v5932
    %s5937 = sld [smem:[#allocation13 + $0x46]]
    %v5938 = vstv %s5937
    %v5939 = vmul.f32 %v5938, %v5143
    %v5940 = vmul.f32 %v5938, %v5144
    %v5943 = vrot.slane %v5939, 1
    %v5944 = vrot.slane %v5940, 1
    %v5947 = vadd.f32 %v5905, %v5943
    %v5948 = vadd.f32 %v5906, %v5944
    %s5949 = sld [smem:[#allocation13 + $0x47]]
    %v5950 = vstv %s5949
    %v5951 = vmul.f32 %v5950, %v5143
    %v5952 = vmul.f32 %v5950, %v5144
    %v5955 = vrot.slane %v5951, 1
    %v5956 = vrot.slane %v5952, 1
    %v5959 = vadd.f32 %v5911, %v5955
    %v5960 = vadd.f32 %v5912, %v5956
    %s5961 = sld [smem:[#allocation13 + $0x48]]
    %v5962 = vstv %s5961
    %v5963 = vmul.f32 %v5962, %v5143
    %v5964 = vmul.f32 %v5962, %v5144
    %v5967 = vrot.slane %v5963, 2
    %v5968 = vrot.slane %v5964, 2
    %v5971 = vadd.f32 %v5923, %v5967
    %v5972 = vadd.f32 %v5924, %v5968
    %s5973 = sld [smem:[#allocation13 + $0x49]]
    %v5974 = vstv %s5973
    %v5975 = vmul.f32 %v5974, %v5143
    %v5976 = vmul.f32 %v5974, %v5144
    %v5979 = vrot.slane %v5975, 2
    %v5980 = vrot.slane %v5976, 2
    %v5983 = vadd.f32 %v5935, %v5979
    %v5984 = vadd.f32 %v5936, %v5980
    %s5985 = sld [smem:[#allocation13 + $0x4a]]
    %v5986 = vstv %s5985
    %v5987 = vmul.f32 %v5986, %v5143
    %v5988 = vmul.f32 %v5986, %v5144
    %v5991 = vrot.slane %v5987, 2
    %v5992 = vrot.slane %v5988, 2
    %v5995 = vadd.f32 %v5947, %v5991
    %v5996 = vadd.f32 %v5948, %v5992
    %s5997 = sld [smem:[#allocation13 + $0x4b]]
    %v5998 = vstv %s5997
    %v5999 = vmul.f32 %v5998, %v5143
    %v6000 = vmul.f32 %v5998, %v5144
    %v6003 = vrot.slane %v5999, 2
    %v6004 = vrot.slane %v6000, 2
    %v6007 = vadd.f32 %v5959, %v6003
    %v6008 = vadd.f32 %v5960, %v6004
    %s6009 = sld [smem:[#allocation13 + $0x4c]]
    %v6010 = vstv %s6009
    %v6011 = vmul.f32 %v6010, %v5143
    %v6012 = vmul.f32 %v6010, %v5144
    %v6015 = vrot.slane %v6011, 3
    %v6016 = vrot.slane %v6012, 3
    %v6019 = vadd.f32 %v5971, %v6015
    %v6020 = vadd.f32 %v5972, %v6016
    %s6021 = sld [smem:[#allocation13 + $0x4d]]
    %v6022 = vstv %s6021
    %v6023 = vmul.f32 %v6022, %v5143
    %v6024 = vmul.f32 %v6022, %v5144
    %v6027 = vrot.slane %v6023, 3
    %v6028 = vrot.slane %v6024, 3
    %v6031 = vadd.f32 %v5983, %v6027
    %v6032 = vadd.f32 %v5984, %v6028
    %s6033 = sld [smem:[#allocation13 + $0x4e]]
    %v6034 = vstv %s6033
    %v6035 = vmul.f32 %v6034, %v5143
    %v6036 = vmul.f32 %v6034, %v5144
    %v6039 = vrot.slane %v6035, 3
    %v6040 = vrot.slane %v6036, 3
    %v6043 = vadd.f32 %v5995, %v6039
    %v6044 = vadd.f32 %v5996, %v6040
    %s6045 = sld [smem:[#allocation13 + $0x4f]]
    %v6046 = vstv %s6045
    %v6047 = vmul.f32 %v6046, %v5143
    %v6048 = vmul.f32 %v6046, %v5144
    %v6051 = vrot.slane %v6047, 3
    %v6052 = vrot.slane %v6048, 3
    %v6055 = vadd.f32 %v6007, %v6051
    %v6056 = vadd.f32 %v6008, %v6052
    %6057 = vrot.lane.b32.xlu0 %v5143, 127
    %v6058 = vpop.permute.xlu0 %6057
    %6059 = vrot.lane.b32.xlu0 %v5144, 127
    %v6060 = vpop.permute.xlu0 %6059
    %v6061 = vsel %vm1056, %v6058, %v6060
    %v6062 = vsel %vm1056, %v6060, %v6058
    %v6063 = vld [vmem:[%s1059] sm:$0x3]
    %v6065 = vlaneseq
    %v6066 = vshrl.u32 %v6065, 7
    %v6067 = vsub.s32 0, %v6066
    %v6068 = vrot.slane %v6063, %v6067
    %v6069 = vlaneseq
    %v6070 = vshrl.u32 %v6069, 7
    %v6071 = vsub.s32 1, %v6070
    %v6072 = vrot.slane %v6063, %v6071
    %v6075 = vmul.f32 %v6061, %v6068
    %v6076 = vmul.f32 %v6062, %v6072
    %s6077 = sld [smem:[#allocation13 + $0x50]]
    %v6078 = vstv %s6077
    %v6079 = vmul.f32 %v6078, %v6075
    %v6080 = vmul.f32 %v6078, %v6076
    %v6081 = vadd.f32 %v6019, %v6079
    %v6082 = vadd.f32 %v6020, %v6080
    %s6083 = sld [smem:[#allocation13 + $0x51]]
    %v6084 = vstv %s6083
    %v6085 = vmul.f32 %v6084, %v6075
    %v6086 = vmul.f32 %v6084, %v6076
    %v6087 = vadd.f32 %v6031, %v6085
    %v6088 = vadd.f32 %v6032, %v6086
    %s6089 = sld [smem:[#allocation13 + $0x52]]
    %v6090 = vstv %s6089
    %v6091 = vmul.f32 %v6090, %v6075
    %v6092 = vmul.f32 %v6090, %v6076
    %v6093 = vadd.f32 %v6043, %v6091
    %v6094 = vadd.f32 %v6044, %v6092
    %s6095 = sld [smem:[#allocation13 + $0x53]]
    %v6096 = vstv %s6095
    %v6097 = vmul.f32 %v6096, %v6075
    %v6098 = vmul.f32 %v6096, %v6076
    %v6099 = vadd.f32 %v6055, %v6097
    %v6100 = vadd.f32 %v6056, %v6098
    %s6101 = sld [smem:[#allocation13 + $0x54]]
    %v6102 = vstv %s6101
    %v6103 = vmul.f32 %v6102, %v6075
    %v6104 = vmul.f32 %v6102, %v6076
    %v6107 = vrot.slane %v6103, 1
    %v6108 = vrot.slane %v6104, 1
    %v6111 = vadd.f32 %v6081, %v6107
    %v6112 = vadd.f32 %v6082, %v6108
    %s6113 = sld [smem:[#allocation13 + $0x55]]
    %v6114 = vstv %s6113
    %v6115 = vmul.f32 %v6114, %v6075
    %v6116 = vmul.f32 %v6114, %v6076
    %v6119 = vrot.slane %v6115, 1
    %v6120 = vrot.slane %v6116, 1
    %v6123 = vadd.f32 %v6087, %v6119
    %v6124 = vadd.f32 %v6088, %v6120
    %s6125 = sld [smem:[#allocation13 + $0x56]]
    %v6126 = vstv %s6125
    %v6127 = vmul.f32 %v6126, %v6075
    %v6128 = vmul.f32 %v6126, %v6076
    %v6131 = vrot.slane %v6127, 1
    %v6132 = vrot.slane %v6128, 1
    %v6135 = vadd.f32 %v6093, %v6131
    %v6136 = vadd.f32 %v6094, %v6132
    %s6137 = sld [smem:[#allocation13 + $0x57]]
    %v6138 = vstv %s6137
    %v6139 = vmul.f32 %v6138, %v6075
    %v6140 = vmul.f32 %v6138, %v6076
    %v6143 = vrot.slane %v6139, 1
    %v6144 = vrot.slane %v6140, 1
    %v6147 = vadd.f32 %v6099, %v6143
    %v6148 = vadd.f32 %v6100, %v6144
    %s6149 = sld [smem:[#allocation13 + $0x58]]
    %v6150 = vstv %s6149
    %v6151 = vmul.f32 %v6150, %v6075
    %v6152 = vmul.f32 %v6150, %v6076
    %v6155 = vrot.slane %v6151, 2
    %v6156 = vrot.slane %v6152, 2
    %v6159 = vadd.f32 %v6111, %v6155
    %v6160 = vadd.f32 %v6112, %v6156
    %s6161 = sld [smem:[#allocation13 + $0x59]]
    %v6162 = vstv %s6161
    %v6163 = vmul.f32 %v6162, %v6075
    %v6164 = vmul.f32 %v6162, %v6076
    %v6167 = vrot.slane %v6163, 2
    %v6168 = vrot.slane %v6164, 2
    %v6171 = vadd.f32 %v6123, %v6167
    %v6172 = vadd.f32 %v6124, %v6168
    %s6173 = sld [smem:[#allocation13 + $0x5a]]
    %v6174 = vstv %s6173
    %v6175 = vmul.f32 %v6174, %v6075
    %v6176 = vmul.f32 %v6174, %v6076
    %v6179 = vrot.slane %v6175, 2
    %v6180 = vrot.slane %v6176, 2
    %v6183 = vadd.f32 %v6135, %v6179
    %v6184 = vadd.f32 %v6136, %v6180
    %s6185 = sld [smem:[#allocation13 + $0x5b]]
    %v6186 = vstv %s6185
    %v6187 = vmul.f32 %v6186, %v6075
    %v6188 = vmul.f32 %v6186, %v6076
    %v6191 = vrot.slane %v6187, 2
    %v6192 = vrot.slane %v6188, 2
    %v6195 = vadd.f32 %v6147, %v6191
    %v6196 = vadd.f32 %v6148, %v6192
    %s6197 = sld [smem:[#allocation13 + $0x5c]]
    %v6198 = vstv %s6197
    %v6199 = vmul.f32 %v6198, %v6075
    %v6200 = vmul.f32 %v6198, %v6076
    %v6203 = vrot.slane %v6199, 3
    %v6204 = vrot.slane %v6200, 3
    %v6207 = vadd.f32 %v6159, %v6203
    %v6208 = vadd.f32 %v6160, %v6204
    %s6209 = sld [smem:[#allocation13 + $0x5d]]
    %v6210 = vstv %s6209
    %v6211 = vmul.f32 %v6210, %v6075
    %v6212 = vmul.f32 %v6210, %v6076
    %v6215 = vrot.slane %v6211, 3
    %v6216 = vrot.slane %v6212, 3
    %v6219 = vadd.f32 %v6171, %v6215
    %v6220 = vadd.f32 %v6172, %v6216
    %s6221 = sld [smem:[#allocation13 + $0x5e]]
    %v6222 = vstv %s6221
    %v6223 = vmul.f32 %v6222, %v6075
    %v6224 = vmul.f32 %v6222, %v6076
    %v6227 = vrot.slane %v6223, 3
    %v6228 = vrot.slane %v6224, 3
    %v6231 = vadd.f32 %v6183, %v6227
    %v6232 = vadd.f32 %v6184, %v6228
    %s6233 = sld [smem:[#allocation13 + $0x5f]]
    %v6234 = vstv %s6233
    %v6235 = vmul.f32 %v6234, %v6075
    %v6236 = vmul.f32 %v6234, %v6076
    %v6239 = vrot.slane %v6235, 3
    %v6240 = vrot.slane %v6236, 3
    %v6243 = vadd.f32 %v6195, %v6239
    %v6244 = vadd.f32 %v6196, %v6240
    %6245 = vrot.lane.b32.xlu0 %v5143, 113
    %v6246 = vpop.permute.xlu0 %6245
    %6247 = vrot.lane.b32.xlu0 %v5144, 113
    %v6248 = vpop.permute.xlu0 %6247
    %v6249 = vsel %vm1246, %v6246, %v6248
    %v6250 = vsel %vm1246, %v6248, %v6246
    %v6251 = vld [vmem:[%s1249] sm:$0x3]
    %v6253 = vlaneseq
    %v6254 = vshrl.u32 %v6253, 7
    %v6255 = vsub.s32 0, %v6254
    %v6256 = vrot.slane %v6251, %v6255
    %v6257 = vlaneseq
    %v6258 = vshrl.u32 %v6257, 7
    %v6259 = vsub.s32 1, %v6258
    %v6260 = vrot.slane %v6251, %v6259
    %v6263 = vmul.f32 %v6249, %v6256
    %v6264 = vmul.f32 %v6250, %v6260
    %s6265 = sld [smem:[#allocation13 + $0x60]]
    %v6266 = vstv %s6265
    %v6267 = vmul.f32 %v6266, %v6263
    %v6268 = vmul.f32 %v6266, %v6264
    %v6269 = vadd.f32 %v6207, %v6267
    %v6270 = vadd.f32 %v6208, %v6268
    %s6271 = sld [smem:[#allocation13 + $0x61]]
    %v6272 = vstv %s6271
    %v6273 = vmul.f32 %v6272, %v6263
    %v6274 = vmul.f32 %v6272, %v6264
    %v6275 = vadd.f32 %v6219, %v6273
    %v6276 = vadd.f32 %v6220, %v6274
    %s6277 = sld [smem:[#allocation13 + $0x62]]
    %v6278 = vstv %s6277
    %v6279 = vmul.f32 %v6278, %v6263
    %v6280 = vmul.f32 %v6278, %v6264
    %v6281 = vadd.f32 %v6231, %v6279
    %v6282 = vadd.f32 %v6232, %v6280
    %s6283 = sld [smem:[#allocation13 + $0x63]]
    %v6284 = vstv %s6283
    %v6285 = vmul.f32 %v6284, %v6263
    %v6286 = vmul.f32 %v6284, %v6264
    %v6287 = vadd.f32 %v6243, %v6285
    %v6288 = vadd.f32 %v6244, %v6286
    %s6289 = sld [smem:[#allocation13 + $0x64]]
    %v6290 = vstv %s6289
    %v6291 = vmul.f32 %v6290, %v6263
    %v6292 = vmul.f32 %v6290, %v6264
    %v6295 = vrot.slane %v6291, 1
    %v6296 = vrot.slane %v6292, 1
    %v6299 = vadd.f32 %v6269, %v6295
    %v6300 = vadd.f32 %v6270, %v6296
    %s6301 = sld [smem:[#allocation13 + $0x65]]
    %v6302 = vstv %s6301
    %v6303 = vmul.f32 %v6302, %v6263
    %v6304 = vmul.f32 %v6302, %v6264
    %v6307 = vrot.slane %v6303, 1
    %v6308 = vrot.slane %v6304, 1
    %v6311 = vadd.f32 %v6275, %v6307
    %v6312 = vadd.f32 %v6276, %v6308
    %s6313 = sld [smem:[#allocation13 + $0x66]]
    %v6314 = vstv %s6313
    %v6315 = vmul.f32 %v6314, %v6263
    %v6316 = vmul.f32 %v6314, %v6264
    %v6319 = vrot.slane %v6315, 1
    %v6320 = vrot.slane %v6316, 1
    %v6323 = vadd.f32 %v6281, %v6319
    %v6324 = vadd.f32 %v6282, %v6320
    %s6325 = sld [smem:[#allocation13 + $0x67]]
    %v6326 = vstv %s6325
    %v6327 = vmul.f32 %v6326, %v6263
    %v6328 = vmul.f32 %v6326, %v6264
    %v6331 = vrot.slane %v6327, 1
    %v6332 = vrot.slane %v6328, 1
    %v6335 = vadd.f32 %v6287, %v6331
    %v6336 = vadd.f32 %v6288, %v6332
    %s6337 = sld [smem:[#allocation13 + $0x68]]
    %v6338 = vstv %s6337
    %v6339 = vmul.f32 %v6338, %v6263
    %v6340 = vmul.f32 %v6338, %v6264
    %v6343 = vrot.slane %v6339, 2
    %v6344 = vrot.slane %v6340, 2
    %v6347 = vadd.f32 %v6299, %v6343
    %v6348 = vadd.f32 %v6300, %v6344
    %s6349 = sld [smem:[#allocation13 + $0x69]]
    %v6350 = vstv %s6349
    %v6351 = vmul.f32 %v6350, %v6263
    %v6352 = vmul.f32 %v6350, %v6264
    %v6355 = vrot.slane %v6351, 2
    %v6356 = vrot.slane %v6352, 2
    %v6359 = vadd.f32 %v6311, %v6355
    %v6360 = vadd.f32 %v6312, %v6356
    %s6361 = sld [smem:[#allocation13 + $0x6a]]
    %v6362 = vstv %s6361
    %v6363 = vmul.f32 %v6362, %v6263
    %v6364 = vmul.f32 %v6362, %v6264
    %v6367 = vrot.slane %v6363, 2
    %v6368 = vrot.slane %v6364, 2
    %v6371 = vadd.f32 %v6323, %v6367
    %v6372 = vadd.f32 %v6324, %v6368
    %s6373 = sld [smem:[#allocation13 + $0x6b]]
    %v6374 = vstv %s6373
    %v6375 = vmul.f32 %v6374, %v6263
    %v6376 = vmul.f32 %v6374, %v6264
    %v6379 = vrot.slane %v6375, 2
    %v6380 = vrot.slane %v6376, 2
    %v6383 = vadd.f32 %v6335, %v6379
    %v6384 = vadd.f32 %v6336, %v6380
    %s6385 = sld [smem:[#allocation13 + $0x6c]]
    %v6386 = vstv %s6385
    %v6387 = vmul.f32 %v6386, %v6263
    %v6388 = vmul.f32 %v6386, %v6264
    %v6391 = vrot.slane %v6387, 3
    %v6392 = vrot.slane %v6388, 3
    %v6395 = vadd.f32 %v6347, %v6391
    %v6396 = vadd.f32 %v6348, %v6392
    %s6397 = sld [smem:[#allocation13 + $0x6d]]
    %v6398 = vstv %s6397
    %v6399 = vmul.f32 %v6398, %v6263
    %v6400 = vmul.f32 %v6398, %v6264
    %v6403 = vrot.slane %v6399, 3
    %v6404 = vrot.slane %v6400, 3
    %v6407 = vadd.f32 %v6359, %v6403
    %v6408 = vadd.f32 %v6360, %v6404
    %s6409 = sld [smem:[#allocation13 + $0x6e]]
    %v6410 = vstv %s6409
    %v6411 = vmul.f32 %v6410, %v6263
    %v6412 = vmul.f32 %v6410, %v6264
    %v6415 = vrot.slane %v6411, 3
    %v6416 = vrot.slane %v6412, 3
    %v6419 = vadd.f32 %v6371, %v6415
    %v6420 = vadd.f32 %v6372, %v6416
    %s6421 = sld [smem:[#allocation13 + $0x6f]]
    %v6422 = vstv %s6421
    %v6423 = vmul.f32 %v6422, %v6263
    %v6424 = vmul.f32 %v6422, %v6264
    %v6427 = vrot.slane %v6423, 3
    %v6428 = vrot.slane %v6424, 3
    %v6431 = vadd.f32 %v6383, %v6427
    %v6432 = vadd.f32 %v6384, %v6428
    %6433 = vrot.lane.b32.xlu0 %v5143, 112
    %v6434 = vpop.permute.xlu0 %6433
    %6435 = vrot.lane.b32.xlu0 %v5144, 112
    %v6436 = vpop.permute.xlu0 %6435
    %v6437 = vsel %vm1436, %v6434, %v6436
    %v6438 = vsel %vm1436, %v6436, %v6434
    %v6439 = vld [vmem:[%s1439] sm:$0x3]
    %v6441 = vlaneseq
    %v6442 = vshrl.u32 %v6441, 7
    %v6443 = vsub.s32 0, %v6442
    %v6444 = vrot.slane %v6439, %v6443
    %v6445 = vlaneseq
    %v6446 = vshrl.u32 %v6445, 7
    %v6447 = vsub.s32 1, %v6446
    %v6448 = vrot.slane %v6439, %v6447
    %v6451 = vmul.f32 %v6437, %v6444
    %v6452 = vmul.f32 %v6438, %v6448
    %s6453 = sld [smem:[#allocation13 + $0x70]]
    %v6454 = vstv %s6453
    %v6455 = vmul.f32 %v6454, %v6451
    %v6456 = vmul.f32 %v6454, %v6452
    %v6457 = vadd.f32 %v6395, %v6455
    %v6458 = vadd.f32 %v6396, %v6456
    %s6459 = sld [smem:[#allocation13 + $0x71]]
    %v6460 = vstv %s6459
    %v6461 = vmul.f32 %v6460, %v6451
    %v6462 = vmul.f32 %v6460, %v6452
    %v6463 = vadd.f32 %v6407, %v6461
    %v6464 = vadd.f32 %v6408, %v6462
    %s6465 = sld [smem:[#allocation13 + $0x72]]
    %v6466 = vstv %s6465
    %v6467 = vmul.f32 %v6466, %v6451
    %v6468 = vmul.f32 %v6466, %v6452
    %v6469 = vadd.f32 %v6419, %v6467
    %v6470 = vadd.f32 %v6420, %v6468
    %s6471 = sld [smem:[#allocation13 + $0x73]]
    %v6472 = vstv %s6471
    %v6473 = vmul.f32 %v6472, %v6451
    %v6474 = vmul.f32 %v6472, %v6452
    %v6475 = vadd.f32 %v6431, %v6473
    %v6476 = vadd.f32 %v6432, %v6474
    %s6477 = sld [smem:[#allocation13 + $0x74]]
    %v6478 = vstv %s6477
    %v6479 = vmul.f32 %v6478, %v6451
    %v6480 = vmul.f32 %v6478, %v6452
    %v6483 = vrot.slane %v6479, 1
    %v6484 = vrot.slane %v6480, 1
    %v6487 = vadd.f32 %v6457, %v6483
    %v6488 = vadd.f32 %v6458, %v6484
    %s6489 = sld [smem:[#allocation13 + $0x75]]
    %v6490 = vstv %s6489
    %v6491 = vmul.f32 %v6490, %v6451
    %v6492 = vmul.f32 %v6490, %v6452
    %v6495 = vrot.slane %v6491, 1
    %v6496 = vrot.slane %v6492, 1
    %v6499 = vadd.f32 %v6463, %v6495
    %v6500 = vadd.f32 %v6464, %v6496
    %s6501 = sld [smem:[#allocation13 + $0x76]]
    %v6502 = vstv %s6501
    %v6503 = vmul.f32 %v6502, %v6451
    %v6504 = vmul.f32 %v6502, %v6452
    %v6507 = vrot.slane %v6503, 1
    %v6508 = vrot.slane %v6504, 1
    %v6511 = vadd.f32 %v6469, %v6507
    %v6512 = vadd.f32 %v6470, %v6508
    %s6513 = sld [smem:[#allocation13 + $0x77]]
    %v6514 = vstv %s6513
    %v6515 = vmul.f32 %v6514, %v6451
    %v6516 = vmul.f32 %v6514, %v6452
    %v6519 = vrot.slane %v6515, 1
    %v6520 = vrot.slane %v6516, 1
    %v6523 = vadd.f32 %v6475, %v6519
    %v6524 = vadd.f32 %v6476, %v6520
    %s6525 = sld [smem:[#allocation13 + $0x78]]
    %v6526 = vstv %s6525
    %v6527 = vmul.f32 %v6526, %v6451
    %v6528 = vmul.f32 %v6526, %v6452
    %v6531 = vrot.slane %v6527, 2
    %v6532 = vrot.slane %v6528, 2
    %v6535 = vadd.f32 %v6487, %v6531
    %v6536 = vadd.f32 %v6488, %v6532
    %s6537 = sld [smem:[#allocation13 + $0x79]]
    %v6538 = vstv %s6537
    %v6539 = vmul.f32 %v6538, %v6451
    %v6540 = vmul.f32 %v6538, %v6452
    %v6543 = vrot.slane %v6539, 2
    %v6544 = vrot.slane %v6540, 2
    %v6547 = vadd.f32 %v6499, %v6543
    %v6548 = vadd.f32 %v6500, %v6544
    %s6549 = sld [smem:[#allocation13 + $0x7a]]
    %v6550 = vstv %s6549
    %v6551 = vmul.f32 %v6550, %v6451
    %v6552 = vmul.f32 %v6550, %v6452
    %v6555 = vrot.slane %v6551, 2
    %v6556 = vrot.slane %v6552, 2
    %v6559 = vadd.f32 %v6511, %v6555
    %v6560 = vadd.f32 %v6512, %v6556
    %s6561 = sld [smem:[#allocation13 + $0x7b]]
    %v6562 = vstv %s6561
    %v6563 = vmul.f32 %v6562, %v6451
    %v6564 = vmul.f32 %v6562, %v6452
    %v6567 = vrot.slane %v6563, 2
    %v6568 = vrot.slane %v6564, 2
    %v6571 = vadd.f32 %v6523, %v6567
    %v6572 = vadd.f32 %v6524, %v6568
    %s6573 = sld [smem:[#allocation13 + $0x7c]]
    %v6574 = vstv %s6573
    %v6575 = vmul.f32 %v6574, %v6451
    %v6576 = vmul.f32 %v6574, %v6452
    %v6579 = vrot.slane %v6575, 3
    %v6580 = vrot.slane %v6576, 3
    %v6583 = vadd.f32 %v6535, %v6579
    %v6584 = vadd.f32 %v6536, %v6580
    %s6585 = sld [smem:[#allocation13 + $0x7d]]
    %v6586 = vstv %s6585
    %v6587 = vmul.f32 %v6586, %v6451
    %v6588 = vmul.f32 %v6586, %v6452
    %v6591 = vrot.slane %v6587, 3
    %v6592 = vrot.slane %v6588, 3
    %v6595 = vadd.f32 %v6547, %v6591
    %v6596 = vadd.f32 %v6548, %v6592
    %s6597 = sld [smem:[#allocation13 + $0x7e]]
    %v6598 = vstv %s6597
    %v6599 = vmul.f32 %v6598, %v6451
    %v6600 = vmul.f32 %v6598, %v6452
    %v6603 = vrot.slane %v6599, 3
    %v6604 = vrot.slane %v6600, 3
    %v6607 = vadd.f32 %v6559, %v6603
    %v6608 = vadd.f32 %v6560, %v6604
    %s6609 = sld [smem:[#allocation13 + $0x7f]]
    %v6610 = vstv %s6609
    %v6611 = vmul.f32 %v6610, %v6451
    %v6612 = vmul.f32 %v6610, %v6452
    %v6615 = vrot.slane %v6611, 3
    %v6616 = vrot.slane %v6612, 3
    %v6619 = vadd.f32 %v6571, %v6615
    %v6620 = vadd.f32 %v6572, %v6616
    %6621 = vrot.lane.b32.xlu0 %v5143, 111
    %v6622 = vpop.permute.xlu0 %6621
    %6623 = vrot.lane.b32.xlu0 %v5144, 111
    %v6624 = vpop.permute.xlu0 %6623
    %v6625 = vsel %vm1626, %v6622, %v6624
    %v6626 = vsel %vm1626, %v6624, %v6622
    %v6627 = vld [vmem:[%s1629] sm:$0x3]
    %v6629 = vlaneseq
    %v6630 = vshrl.u32 %v6629, 7
    %v6631 = vsub.s32 0, %v6630
    %v6632 = vrot.slane %v6627, %v6631
    %v6633 = vlaneseq
    %v6634 = vshrl.u32 %v6633, 7
    %v6635 = vsub.s32 1, %v6634
    %v6636 = vrot.slane %v6627, %v6635
    %v6639 = vmul.f32 %v6625, %v6632
    %v6640 = vmul.f32 %v6626, %v6636
    %s6641 = sld [smem:[#allocation13 + $0x80]]
    %v6642 = vstv %s6641
    %v6643 = vmul.f32 %v6642, %v6639
    %v6644 = vmul.f32 %v6642, %v6640
    %v6645 = vadd.f32 %v6583, %v6643
    %v6646 = vadd.f32 %v6584, %v6644
    %s6647 = sld [smem:[#allocation13 + $0x81]]
    %v6648 = vstv %s6647
    %v6649 = vmul.f32 %v6648, %v6639
    %v6650 = vmul.f32 %v6648, %v6640
    %v6651 = vadd.f32 %v6595, %v6649
    %v6652 = vadd.f32 %v6596, %v6650
    %s6653 = sld [smem:[#allocation13 + $0x82]]
    %v6654 = vstv %s6653
    %v6655 = vmul.f32 %v6654, %v6639
    %v6656 = vmul.f32 %v6654, %v6640
    %v6657 = vadd.f32 %v6607, %v6655
    %v6658 = vadd.f32 %v6608, %v6656
    %s6659 = sld [smem:[#allocation13 + $0x83]]
    %v6660 = vstv %s6659
    %v6661 = vmul.f32 %v6660, %v6639
    %v6662 = vmul.f32 %v6660, %v6640
    %v6663 = vadd.f32 %v6619, %v6661
    %v6664 = vadd.f32 %v6620, %v6662
    %s6665 = sld [smem:[#allocation13 + $0x84]]
    %v6666 = vstv %s6665
    %v6667 = vmul.f32 %v6666, %v6639
    %v6668 = vmul.f32 %v6666, %v6640
    %v6671 = vrot.slane %v6667, 1
    %v6672 = vrot.slane %v6668, 1
    %v6675 = vadd.f32 %v6645, %v6671
    %v6676 = vadd.f32 %v6646, %v6672
    %s6677 = sld [smem:[#allocation13 + $0x85]]
    %v6678 = vstv %s6677
    %v6679 = vmul.f32 %v6678, %v6639
    %v6680 = vmul.f32 %v6678, %v6640
    %v6683 = vrot.slane %v6679, 1
    %v6684 = vrot.slane %v6680, 1
    %v6687 = vadd.f32 %v6651, %v6683
    %v6688 = vadd.f32 %v6652, %v6684
    %s6689 = sld [smem:[#allocation13 + $0x86]]
    %v6690 = vstv %s6689
    %v6691 = vmul.f32 %v6690, %v6639
    %v6692 = vmul.f32 %v6690, %v6640
    %v6695 = vrot.slane %v6691, 1
    %v6696 = vrot.slane %v6692, 1
    %v6699 = vadd.f32 %v6657, %v6695
    %v6700 = vadd.f32 %v6658, %v6696
    %s6701 = sld [smem:[#allocation13 + $0x87]]
    %v6702 = vstv %s6701
    %v6703 = vmul.f32 %v6702, %v6639
    %v6704 = vmul.f32 %v6702, %v6640
    %v6707 = vrot.slane %v6703, 1
    %v6708 = vrot.slane %v6704, 1
    %v6711 = vadd.f32 %v6663, %v6707
    %v6712 = vadd.f32 %v6664, %v6708
    %s6713 = sld [smem:[#allocation13 + $0x88]]
    %v6714 = vstv %s6713
    %v6715 = vmul.f32 %v6714, %v6639
    %v6716 = vmul.f32 %v6714, %v6640
    %v6719 = vrot.slane %v6715, 2
    %v6720 = vrot.slane %v6716, 2
    %v6723 = vadd.f32 %v6675, %v6719
    %v6724 = vadd.f32 %v6676, %v6720
    %s6725 = sld [smem:[#allocation13 + $0x89]]
    %v6726 = vstv %s6725
    %v6727 = vmul.f32 %v6726, %v6639
    %v6728 = vmul.f32 %v6726, %v6640
    %v6731 = vrot.slane %v6727, 2
    %v6732 = vrot.slane %v6728, 2
    %v6735 = vadd.f32 %v6687, %v6731
    %v6736 = vadd.f32 %v6688, %v6732
    %s6737 = sld [smem:[#allocation13 + $0x8a]]
    %v6738 = vstv %s6737
    %v6739 = vmul.f32 %v6738, %v6639
    %v6740 = vmul.f32 %v6738, %v6640
    %v6743 = vrot.slane %v6739, 2
    %v6744 = vrot.slane %v6740, 2
    %v6747 = vadd.f32 %v6699, %v6743
    %v6748 = vadd.f32 %v6700, %v6744
    %s6749 = sld [smem:[#allocation13 + $0x8b]]
    %v6750 = vstv %s6749
    %v6751 = vmul.f32 %v6750, %v6639
    %v6752 = vmul.f32 %v6750, %v6640
    %v6755 = vrot.slane %v6751, 2
    %v6756 = vrot.slane %v6752, 2
    %v6759 = vadd.f32 %v6711, %v6755
    %v6760 = vadd.f32 %v6712, %v6756
    %s6761 = sld [smem:[#allocation13 + $0x8c]]
    %v6762 = vstv %s6761
    %v6763 = vmul.f32 %v6762, %v6639
    %v6764 = vmul.f32 %v6762, %v6640
    %v6767 = vrot.slane %v6763, 3
    %v6768 = vrot.slane %v6764, 3
    %v6771 = vadd.f32 %v6723, %v6767
    %v6772 = vadd.f32 %v6724, %v6768
    %s6773 = sld [smem:[#allocation13 + $0x8d]]
    %v6774 = vstv %s6773
    %v6775 = vmul.f32 %v6774, %v6639
    %v6776 = vmul.f32 %v6774, %v6640
    %v6779 = vrot.slane %v6775, 3
    %v6780 = vrot.slane %v6776, 3
    %v6783 = vadd.f32 %v6735, %v6779
    %v6784 = vadd.f32 %v6736, %v6780
    %s6785 = sld [smem:[#allocation13 + $0x8e]]
    %v6786 = vstv %s6785
    %v6787 = vmul.f32 %v6786, %v6639
    %v6788 = vmul.f32 %v6786, %v6640
    %v6791 = vrot.slane %v6787, 3
    %v6792 = vrot.slane %v6788, 3
    %v6795 = vadd.f32 %v6747, %v6791
    %v6796 = vadd.f32 %v6748, %v6792
    %s6797 = sld [smem:[#allocation13 + $0x8f]]
    %v6798 = vstv %s6797
    %v6799 = vmul.f32 %v6798, %v6639
    %v6800 = vmul.f32 %v6798, %v6640
    %v6803 = vrot.slane %v6799, 3
    %v6804 = vrot.slane %v6800, 3
    %v6807 = vadd.f32 %v6759, %v6803
    %v6808 = vadd.f32 %v6760, %v6804
    %v6809 = vsel %vm3095, %v5025, 0.0
    %v6810 = vsel %vm3095, %v5026, 0.0
    %v6811 = vadd.f32 %v6809, %v6810
    %6812 = vadd.xlane.f32.xlu0 %v6811
    %v6813 = vpop.xlane.xlu0 %6812
    %v6814 = vsel %vm3095, %v6771, 0.0
    %v6815 = vsel %vm3095, %v6772, 0.0
    %v6816 = vadd.f32 %v6814, %v6815
    %6817 = vadd.xlane.f32.xlu0 %v6816
    %v6818 = vpop.xlane.xlu0 %6817
    %v6819 = vadd.f32 %v6813, %v6818
    %v6820 = vmul.f32 %v6819, 0.001953125
    %v6821 = vsub.f32 %v5025, %v6820
    %v6822 = vsub.f32 %v5026, %v6820
    %v6823 = vmul.f32 %v6821, %v6821
    %v6824 = vmul.f32 %v6822, %v6822
    %v6825 = vsel %vm3095, %v6823, 0.0
    %v6826 = vsel %vm3095, %v6824, 0.0
    %v6827 = vadd.f32 %v6825, %v6826
    %6828 = vadd.xlane.f32.xlu0 %v6827
    %v6829 = vpop.xlane.xlu0 %6828
    %v6830 = vsub.f32 %v6771, %v6820
    %v6831 = vsub.f32 %v6772, %v6820
    %v6832 = vmul.f32 %v6830, %v6830
    %v6833 = vmul.f32 %v6831, %v6831
    %v6834 = vsel %vm3095, %v6832, 0.0
    %v6835 = vsel %vm3095, %v6833, 0.0
    %v6836 = vadd.f32 %v6834, %v6835
    %6837 = vadd.xlane.f32.xlu0 %v6836
    %v6838 = vpop.xlane.xlu0 %6837
    %v6839 = vadd.f32 %v6829, %v6838
    %v6840 = vmul.f32 %v6839, 0.001953125
    %s6841 = sld [smem:[#allocation15]]
    %v6842 = vadd.f32 %v6840, 1e-05
    %v6843 = vrsqrt.pop %v6842
    %v6844 = vstv %s6841
    %v6845 = vmul.f32 %v6844, %v6843
    %s6846 = sld [smem:[#allocation16]]
    %v6847 = vmul.f32 %v6820, %v6845
    %v6848 = vstv %s6846
    %v6849 = vsub.f32 %v6848, %v6847
    %v6850 = vmul.f32 %v5025, %v6845
    %v6851 = vmul.f32 %v5026, %v6845
    %v6852 = vadd.f32 %v6850, %v6849
    %v6853 = vadd.f32 %v6851, %v6849
    %v6854 = vld [vmem:[#allocation3] ss:$8 sm:$0x3]
    %v6856 = vlaneseq
    %v6857 = vshrl.u32 %v6856, 7
    %v6858 = vsub.s32 0, %v6857
    %v6859 = vrot.slane %v6854, %v6858
    %v6860 = vlaneseq
    %v6861 = vshrl.u32 %v6860, 7
    %v6862 = vsub.s32 1, %v6861
    %v6863 = vrot.slane %v6854, %v6862
    %v6866 = vadd.f32 %v6852, %v6859
    %v6867 = vadd.f32 %v6853, %v6863
    %v6868 = vmax.f32 %v6866, 0.0
    %v6869 = vmax.f32 %v6867, 0.0
    %v6872 = vcombine.low %v6868, %v6869
    %v6874 = vunpack.c.l.s4 1966171168
    %v6875 = vunpack.c.0.s8 %v6874
    %v6876 = vlaneseq
    %v6877 = vshrl.u32 %v6876, 7
    %v6878 = vsub.s32 %v6875, %v6877
    %v6879 = vrot.slane %v6872, %v6878
    %v6881 = vunpack.c.l.s4 1966171168
    %v6882 = vunpack.c.0.s8 %v6881
    %v6883 = vlaneseq
    %v6884 = vshrl.u32 %v6883, 7
    %v6885 = vsub.s32 %v6882, %v6884
    %v6886 = vrot.slane %v6879, %v6885
    %6888 = vst.msk [vmem:[#allocation18] ss:$4 sm:$0x3] %vm3331, %v6886
    %v6889 = vmul.f32 %v6771, %v6845
    %v6890 = vmul.f32 %v6772, %v6845
    %v6891 = vadd.f32 %v6889, %v6849
    %v6892 = vadd.f32 %v6890, %v6849
    %v6893 = vld [vmem:[%s1812] ss:$8 sm:$0x3]
    %v6895 = vlaneseq
    %v6896 = vshrl.u32 %v6895, 7
    %v6897 = vsub.s32 0, %v6896
    %v6898 = vrot.slane %v6893, %v6897
    %v6899 = vlaneseq
    %v6900 = vshrl.u32 %v6899, 7
    %v6901 = vsub.s32 1, %v6900
    %v6902 = vrot.slane %v6893, %v6901
    %v6905 = vadd.f32 %v6891, %v6898
    %v6906 = vadd.f32 %v6892, %v6902
    %v6907 = vmax.f32 %v6905, 0.0
    %v6908 = vmax.f32 %v6906, 0.0
    %v6911 = vcombine.low %v6907, %v6908
    %v6913 = vunpack.c.l.s4 1966171168
    %v6914 = vunpack.c.0.s8 %v6913
    %v6915 = vlaneseq
    %v6916 = vshrl.u32 %v6915, 7
    %v6917 = vsub.s32 %v6914, %v6916
    %v6918 = vrot.slane %v6911, %v6917
    %v6920 = vunpack.c.l.s4 1966171168
    %v6921 = vunpack.c.0.s8 %v6920
    %v6922 = vlaneseq
    %v6923 = vshrl.u32 %v6922, 7
    %v6924 = vsub.s32 %v6921, %v6923
    %v6925 = vrot.slane %v6918, %v6924
    %s6927 = scalar_lea.vmem [#allocation18], 8
    %6928 = vst.msk [vmem:[%s6927] ss:$4 sm:$0x3] %vm3331, %v6925
    %v6929 = vsel %vm3095, %v5037, 0.0
    %v6930 = vsel %vm3095, %v5038, 0.0
    %v6931 = vadd.f32 %v6929, %v6930
    %6932 = vadd.xlane.f32.xlu0 %v6931
    %v6933 = vpop.xlane.xlu0 %6932
    %v6934 = vsel %vm3095, %v6783, 0.0
    %v6935 = vsel %vm3095, %v6784, 0.0
    %v6936 = vadd.f32 %v6934, %v6935
    %6937 = vadd.xlane.f32.xlu0 %v6936
    %v6938 = vpop.xlane.xlu0 %6937
    %v6939 = vadd.f32 %v6933, %v6938
    %v6940 = vmul.f32 %v6939, 0.001953125
    %v6941 = vsub.f32 %v5037, %v6940
    %v6942 = vsub.f32 %v5038, %v6940
    %v6943 = vmul.f32 %v6941, %v6941
    %v6944 = vmul.f32 %v6942, %v6942
    %v6945 = vsel %vm3095, %v6943, 0.0
    %v6946 = vsel %vm3095, %v6944, 0.0
    %v6947 = vadd.f32 %v6945, %v6946
    %6948 = vadd.xlane.f32.xlu0 %v6947
    %v6949 = vpop.xlane.xlu0 %6948
    %v6950 = vsub.f32 %v6783, %v6940
    %v6951 = vsub.f32 %v6784, %v6940
    %v6952 = vmul.f32 %v6950, %v6950
    %v6953 = vmul.f32 %v6951, %v6951
    %v6954 = vsel %vm3095, %v6952, 0.0
    %v6955 = vsel %vm3095, %v6953, 0.0
    %v6956 = vadd.f32 %v6954, %v6955
    %6957 = vadd.xlane.f32.xlu0 %v6956
    %v6958 = vpop.xlane.xlu0 %6957
    %v6959 = vadd.f32 %v6949, %v6958
    %v6960 = vmul.f32 %v6959, 0.001953125
    %s6961 = sld [smem:[#allocation15 + $0x1]]
    %v6962 = vadd.f32 %v6960, 1e-05
    %v6963 = vrsqrt.pop %v6962
    %v6964 = vstv %s6961
    %v6965 = vmul.f32 %v6964, %v6963
    %s6966 = sld [smem:[#allocation16 + $0x1]]
    %v6967 = vmul.f32 %v6940, %v6965
    %v6968 = vstv %s6966
    %v6969 = vsub.f32 %v6968, %v6967
    %v6970 = vmul.f32 %v5037, %v6965
    %v6971 = vmul.f32 %v5038, %v6965
    %v6972 = vadd.f32 %v6970, %v6969
    %v6973 = vadd.f32 %v6971, %v6969
    %s6974 = scalar_lea.vmem [#allocation3], 1
    %v6975 = vld [vmem:[%s6974] ss:$8 sm:$0x3]
    %v6977 = vlaneseq
    %v6978 = vshrl.u32 %v6977, 7
    %v6979 = vsub.s32 0, %v6978
    %v6980 = vrot.slane %v6975, %v6979
    %v6981 = vlaneseq
    %v6982 = vshrl.u32 %v6981, 7
    %v6983 = vsub.s32 1, %v6982
    %v6984 = vrot.slane %v6975, %v6983
    %v6987 = vadd.f32 %v6972, %v6980
    %v6988 = vadd.f32 %v6973, %v6984
    %v6989 = vmax.f32 %v6987, 0.0
    %v6990 = vmax.f32 %v6988, 0.0
    %v6993 = vcombine.low %v6989, %v6990
    %v6995 = vunpack.c.l.s4 1966171168
    %v6996 = vunpack.c.0.s8 %v6995
    %v6997 = vlaneseq
    %v6998 = vshrl.u32 %v6997, 7
    %v6999 = vsub.s32 %v6996, %v6998
    %v7000 = vrot.slane %v6993, %v6999
    %v7002 = vunpack.c.l.s4 1966171168
    %v7003 = vunpack.c.0.s8 %v7002
    %v7004 = vlaneseq
    %v7005 = vshrl.u32 %v7004, 7
    %v7006 = vsub.s32 %v7003, %v7005
    %v7007 = vrot.slane %v7000, %v7006
    %s7009 = scalar_lea.vmem [#allocation18], 1
    %7010 = vst.msk [vmem:[%s7009] ss:$4 sm:$0x3] %vm3331, %v7007
    %v7011 = vmul.f32 %v6783, %v6965
    %v7012 = vmul.f32 %v6784, %v6965
    %v7013 = vadd.f32 %v7011, %v6969
    %v7014 = vadd.f32 %v7012, %v6969
    %s7015 = scalar_lea.vmem %s1812, 1 [#allocation3]
    %v7016 = vld [vmem:[%s7015] ss:$8 sm:$0x3]
    %v7018 = vlaneseq
    %v7019 = vshrl.u32 %v7018, 7
    %v7020 = vsub.s32 0, %v7019
    %v7021 = vrot.slane %v7016, %v7020
    %v7022 = vlaneseq
    %v7023 = vshrl.u32 %v7022, 7
    %v7024 = vsub.s32 1, %v7023
    %v7025 = vrot.slane %v7016, %v7024
    %v7028 = vadd.f32 %v7013, %v7021
    %v7029 = vadd.f32 %v7014, %v7025
    %v7030 = vmax.f32 %v7028, 0.0
    %v7031 = vmax.f32 %v7029, 0.0
    %v7034 = vcombine.low %v7030, %v7031
    %v7036 = vunpack.c.l.s4 1966171168
    %v7037 = vunpack.c.0.s8 %v7036
    %v7038 = vlaneseq
    %v7039 = vshrl.u32 %v7038, 7
    %v7040 = vsub.s32 %v7037, %v7039
    %v7041 = vrot.slane %v7034, %v7040
    %v7043 = vunpack.c.l.s4 1966171168
    %v7044 = vunpack.c.0.s8 %v7043
    %v7045 = vlaneseq
    %v7046 = vshrl.u32 %v7045, 7
    %v7047 = vsub.s32 %v7044, %v7046
    %v7048 = vrot.slane %v7041, %v7047
    %s7050 = scalar_lea.vmem %s6927, 1 [#allocation18]
    %7051 = vst.msk [vmem:[%s7050] ss:$4 sm:$0x3] %vm3331, %v7048
    %v7052 = vsel %vm3095, %v5049, 0.0
    %v7053 = vsel %vm3095, %v5050, 0.0
    %v7054 = vadd.f32 %v7052, %v7053
    %7055 = vadd.xlane.f32.xlu0 %v7054
    %v7056 = vpop.xlane.xlu0 %7055
    %v7057 = vsel %vm3095, %v6795, 0.0
    %v7058 = vsel %vm3095, %v6796, 0.0
    %v7059 = vadd.f32 %v7057, %v7058
    %7060 = vadd.xlane.f32.xlu0 %v7059
    %v7061 = vpop.xlane.xlu0 %7060
    %v7062 = vadd.f32 %v7056, %v7061
    %v7063 = vmul.f32 %v7062, 0.001953125
    %v7064 = vsub.f32 %v5049, %v7063
    %v7065 = vsub.f32 %v5050, %v7063
    %v7066 = vmul.f32 %v7064, %v7064
    %v7067 = vmul.f32 %v7065, %v7065
    %v7068 = vsel %vm3095, %v7066, 0.0
    %v7069 = vsel %vm3095, %v7067, 0.0
    %v7070 = vadd.f32 %v7068, %v7069
    %7071 = vadd.xlane.f32.xlu0 %v7070
    %v7072 = vpop.xlane.xlu0 %7071
    %v7073 = vsub.f32 %v6795, %v7063
    %v7074 = vsub.f32 %v6796, %v7063
    %v7075 = vmul.f32 %v7073, %v7073
    %v7076 = vmul.f32 %v7074, %v7074
    %v7077 = vsel %vm3095, %v7075, 0.0
    %v7078 = vsel %vm3095, %v7076, 0.0
    %v7079 = vadd.f32 %v7077, %v7078
    %7080 = vadd.xlane.f32.xlu0 %v7079
    %v7081 = vpop.xlane.xlu0 %7080
    %v7082 = vadd.f32 %v7072, %v7081
    %v7083 = vmul.f32 %v7082, 0.001953125
    %s7084 = sld [smem:[#allocation15 + $0x2]]
    %v7085 = vadd.f32 %v7083, 1e-05
    %v7086 = vrsqrt.pop %v7085
    %v7087 = vstv %s7084
    %v7088 = vmul.f32 %v7087, %v7086
    %s7089 = sld [smem:[#allocation16 + $0x2]]
    %v7090 = vmul.f32 %v7063, %v7088
    %v7091 = vstv %s7089
    %v7092 = vsub.f32 %v7091, %v7090
    %v7093 = vmul.f32 %v5049, %v7088
    %v7094 = vmul.f32 %v5050, %v7088
    %v7095 = vadd.f32 %v7093, %v7092
    %v7096 = vadd.f32 %v7094, %v7092
    %s7097 = scalar_lea.vmem [#allocation3], 2
    %v7098 = vld [vmem:[%s7097] ss:$8 sm:$0x3]
    %v7100 = vlaneseq
    %v7101 = vshrl.u32 %v7100, 7
    %v7102 = vsub.s32 0, %v7101
    %v7103 = vrot.slane %v7098, %v7102
    %v7104 = vlaneseq
    %v7105 = vshrl.u32 %v7104, 7
    %v7106 = vsub.s32 1, %v7105
    %v7107 = vrot.slane %v7098, %v7106
    %v7110 = vadd.f32 %v7095, %v7103
    %v7111 = vadd.f32 %v7096, %v7107
    %v7112 = vmax.f32 %v7110, 0.0
    %v7113 = vmax.f32 %v7111, 0.0
    %v7116 = vcombine.low %v7112, %v7113
    %v7118 = vunpack.c.l.s4 1966171168
    %v7119 = vunpack.c.0.s8 %v7118
    %v7120 = vlaneseq
    %v7121 = vshrl.u32 %v7120, 7
    %v7122 = vsub.s32 %v7119, %v7121
    %v7123 = vrot.slane %v7116, %v7122
    %v7125 = vunpack.c.l.s4 1966171168
    %v7126 = vunpack.c.0.s8 %v7125
    %v7127 = vlaneseq
    %v7128 = vshrl.u32 %v7127, 7
    %v7129 = vsub.s32 %v7126, %v7128
    %v7130 = vrot.slane %v7123, %v7129
    %s7132 = scalar_lea.vmem [#allocation18], 2
    %7133 = vst.msk [vmem:[%s7132] ss:$4 sm:$0x3] %vm3331, %v7130
    %v7134 = vmul.f32 %v6795, %v7088
    %v7135 = vmul.f32 %v6796, %v7088
    %v7136 = vadd.f32 %v7134, %v7092
    %v7137 = vadd.f32 %v7135, %v7092
    %s7138 = scalar_lea.vmem %s1812, 2 [#allocation3]
    %v7139 = vld [vmem:[%s7138] ss:$8 sm:$0x3]
    %v7141 = vlaneseq
    %v7142 = vshrl.u32 %v7141, 7
    %v7143 = vsub.s32 0, %v7142
    %v7144 = vrot.slane %v7139, %v7143
    %v7145 = vlaneseq
    %v7146 = vshrl.u32 %v7145, 7
    %v7147 = vsub.s32 1, %v7146
    %v7148 = vrot.slane %v7139, %v7147
    %v7151 = vadd.f32 %v7136, %v7144
    %v7152 = vadd.f32 %v7137, %v7148
    %v7153 = vmax.f32 %v7151, 0.0
    %v7154 = vmax.f32 %v7152, 0.0
    %v7157 = vcombine.low %v7153, %v7154
    %v7159 = vunpack.c.l.s4 1966171168
    %v7160 = vunpack.c.0.s8 %v7159
    %v7161 = vlaneseq
    %v7162 = vshrl.u32 %v7161, 7
    %v7163 = vsub.s32 %v7160, %v7162
    %v7164 = vrot.slane %v7157, %v7163
    %v7166 = vunpack.c.l.s4 1966171168
    %v7167 = vunpack.c.0.s8 %v7166
    %v7168 = vlaneseq
    %v7169 = vshrl.u32 %v7168, 7
    %v7170 = vsub.s32 %v7167, %v7169
    %v7171 = vrot.slane %v7164, %v7170
    %s7173 = scalar_lea.vmem %s6927, 2 [#allocation18]
    %7174 = vst.msk [vmem:[%s7173] ss:$4 sm:$0x3] %vm3331, %v7171
    %v7175 = vsel %vm3095, %v5061, 0.0
    %v7176 = vsel %vm3095, %v5062, 0.0
    %v7177 = vadd.f32 %v7175, %v7176
    %7178 = vadd.xlane.f32.xlu0 %v7177
    %v7179 = vpop.xlane.xlu0 %7178
    %v7180 = vsel %vm3095, %v6807, 0.0
    %v7181 = vsel %vm3095, %v6808, 0.0
    %v7182 = vadd.f32 %v7180, %v7181
    %7183 = vadd.xlane.f32.xlu0 %v7182
    %v7184 = vpop.xlane.xlu0 %7183
    %v7185 = vadd.f32 %v7179, %v7184
    %v7186 = vmul.f32 %v7185, 0.001953125
    %v7187 = vsub.f32 %v5061, %v7186
    %v7188 = vsub.f32 %v5062, %v7186
    %v7189 = vmul.f32 %v7187, %v7187
    %v7190 = vmul.f32 %v7188, %v7188
    %v7191 = vsel %vm3095, %v7189, 0.0
    %v7192 = vsel %vm3095, %v7190, 0.0
    %v7193 = vadd.f32 %v7191, %v7192
    %7194 = vadd.xlane.f32.xlu0 %v7193
    %v7195 = vpop.xlane.xlu0 %7194
    %v7196 = vsub.f32 %v6807, %v7186
    %v7197 = vsub.f32 %v6808, %v7186
    %v7198 = vmul.f32 %v7196, %v7196
    %v7199 = vmul.f32 %v7197, %v7197
    %v7200 = vsel %vm3095, %v7198, 0.0
    %v7201 = vsel %vm3095, %v7199, 0.0
    %v7202 = vadd.f32 %v7200, %v7201
    %7203 = vadd.xlane.f32.xlu0 %v7202
    %v7204 = vpop.xlane.xlu0 %7203
    %v7205 = vadd.f32 %v7195, %v7204
    %v7206 = vmul.f32 %v7205, 0.001953125
    %s7207 = sld [smem:[#allocation15 + $0x3]]
    %v7208 = vadd.f32 %v7206, 1e-05
    %v7209 = vrsqrt.pop %v7208
    %v7210 = vstv %s7207
    %v7211 = vmul.f32 %v7210, %v7209
    %s7212 = sld [smem:[#allocation16 + $0x3]]
    %v7213 = vmul.f32 %v7186, %v7211
    %v7214 = vstv %s7212
    %v7215 = vsub.f32 %v7214, %v7213
    %v7216 = vmul.f32 %v5061, %v7211
    %v7217 = vmul.f32 %v5062, %v7211
    %v7218 = vadd.f32 %v7216, %v7215
    %v7219 = vadd.f32 %v7217, %v7215
    %s7220 = scalar_lea.vmem [#allocation3], 3
    %v7221 = vld [vmem:[%s7220] ss:$8 sm:$0x3]
    %v7223 = vlaneseq
    %v7224 = vshrl.u32 %v7223, 7
    %v7225 = vsub.s32 0, %v7224
    %v7226 = vrot.slane %v7221, %v7225
    %v7227 = vlaneseq
    %v7228 = vshrl.u32 %v7227, 7
    %v7229 = vsub.s32 1, %v7228
    %v7230 = vrot.slane %v7221, %v7229
    %v7233 = vadd.f32 %v7218, %v7226
    %v7234 = vadd.f32 %v7219, %v7230
    %v7235 = vmax.f32 %v7233, 0.0
    %v7236 = vmax.f32 %v7234, 0.0
    %v7239 = vcombine.low %v7235, %v7236
    %v7241 = vunpack.c.l.s4 1966171168
    %v7242 = vunpack.c.0.s8 %v7241
    %v7243 = vlaneseq
    %v7244 = vshrl.u32 %v7243, 7
    %v7245 = vsub.s32 %v7242, %v7244
    %v7246 = vrot.slane %v7239, %v7245
    %v7248 = vunpack.c.l.s4 1966171168
    %v7249 = vunpack.c.0.s8 %v7248
    %v7250 = vlaneseq
    %v7251 = vshrl.u32 %v7250, 7
    %v7252 = vsub.s32 %v7249, %v7251
    %v7253 = vrot.slane %v7246, %v7252
    %s7255 = scalar_lea.vmem [#allocation18], 3
    %7256 = vst.msk [vmem:[%s7255] ss:$4 sm:$0x3] %vm3331, %v7253
    %v7257 = vmul.f32 %v6807, %v7211
    %v7258 = vmul.f32 %v6808, %v7211
    %v7259 = vadd.f32 %v7257, %v7215
    %v7260 = vadd.f32 %v7258, %v7215
    %s7261 = scalar_lea.vmem %s1812, 3 [#allocation3]
    %v7262 = vld [vmem:[%s7261] ss:$8 sm:$0x3]
    %v7264 = vlaneseq
    %v7265 = vshrl.u32 %v7264, 7
    %v7266 = vsub.s32 0, %v7265
    %v7267 = vrot.slane %v7262, %v7266
    %v7268 = vlaneseq
    %v7269 = vshrl.u32 %v7268, 7
    %v7270 = vsub.s32 1, %v7269
    %v7271 = vrot.slane %v7262, %v7270
    %v7274 = vadd.f32 %v7259, %v7267
    %v7275 = vadd.f32 %v7260, %v7271
    %v7276 = vmax.f32 %v7274, 0.0
    %v7277 = vmax.f32 %v7275, 0.0
    %v7280 = vcombine.low %v7276, %v7277
    %v7282 = vunpack.c.l.s4 1966171168
    %v7283 = vunpack.c.0.s8 %v7282
    %v7284 = vlaneseq
    %v7285 = vshrl.u32 %v7284, 7
    %v7286 = vsub.s32 %v7283, %v7285
    %v7287 = vrot.slane %v7280, %v7286
    %v7289 = vunpack.c.l.s4 1966171168
    %v7290 = vunpack.c.0.s8 %v7289
    %v7291 = vlaneseq
    %v7292 = vshrl.u32 %v7291, 7
    %v7293 = vsub.s32 %v7290, %v7292
    %v7294 = vrot.slane %v7287, %v7293
    %s7296 = scalar_lea.vmem %s6927, 3 [#allocation18]
    %7297 = vst.msk [vmem:[%s7296] ss:$4 sm:$0x3] %vm3331, %v7294
    // Predicated region
    $region66: #{tpu_custom_call.1} parent=1 // pred_check
      _
    $region67: #{tpu_custom_call.1} parent=1 // pred_check_branch
      %7299 = sbr.rel (0) target = $region69
    $region68: #{tpu_custom_call.1} parent=1 // pred_region
      %s7301 = ssub.s32 256, 256
      %7302 = vsyncadd [#allocation5], %s7301
      %s7303 = sshll.u32 [#allocation18], 4
      %s7304 = int_to_ptr.vmem [resolvable:$true] %s7303
      %7309 = dma.vmem_to_hbm [thread:$0]  %s7304, 256, %s8, [#allocation5], 128, 128, 8
    $region69: #{tpu_custom_call.1} parent=1 // pred_fallthru
      _
    // Predicated region
    $region70: #{tpu_custom_call.1} parent=1 // pred_check
      _
    $region71: #{tpu_custom_call.1} parent=1 // pred_check_branch
      %7311 = sbr.rel (0) target = $region73
    $region72: #{tpu_custom_call.1} parent=1 // pred_region
      %7312 = dma.done [#allocation5], 256
    $region73: #{tpu_custom_call.1} parent=1 // pred_fallthru
      _
    %7313 = vsyncpa [#allocation4], 1
    %7314 = vsyncpa [#allocation8], 1
    %7315 = vsyncpa [#allocation5], 1
    %7316 = vsyncpa [#allocation6], 1
    %7317 = vsyncpa [#allocation11], 1
    %7318 = vsyncpa [#allocation14], 1
    %7319 = vsyncpa [#allocation17], 1

</llo_original>
